<compile_context>
chip_gen: v5e
topology: v5e:2x2
jax: 0.10.0
libtpu: 0.0.40
codegen_flags: <defaults>
</compile_context>

<pallas_src>
import functools

import numpy as np
import jax
import jax.numpy as jnp
from jax.experimental import pallas as pl
from jax.experimental.pallas import tpu as pltpu

LANE = 128  # pad ragged / final feature dims to a lane-dense width


# ---------------------------------------------------------------------------
# Fused whole-network kernel (grid = (), everything resident in VMEM).
#
# Ref order:
#   x                      : (N, F0) f32         input node features
#   [P]                    : (K*N, N) bf16        one-hot gather (only if not ring)
#   per layer (5 refs):
#     wih_cat              : (F, 4F) bf16         per-gate W_ih^T, lanes [i|f|o|g]
#     whh_cat              : (F, 4F) bf16         per-gate W_hh^T, lanes [i|f|o|g]
#     bg_cat               : (1, 4F) f32          b_ih + b_hh,      lanes [i|f|o|g]
#     wcomb                : (2F, Fo) bf16        [fc_self^T ; fc_neigh^T]
#     bout                 : (1, Fo)  f32         bias
#   masks (n_layers-1)     : (N, Fo_li) f32       dropout, values in {0, 2}
#   out                    : (N, Fo_last_padded) f32
# ---------------------------------------------------------------------------
def graphsage_kernel(*refs, n_layers, k, ring):
    idx = 0
    x_ref = refs[idx]; idx += 1
    p_ref = None
    if not ring:
        p_ref = refs[idx]; idx += 1
    layer_refs = refs[idx: idx + 5 * n_layers]; idx += 5 * n_layers
    mask_refs = refs[idx: idx + n_layers - 1]; idx += n_layers - 1
    out_ref = refs[idx]

    h = x_ref[...]                      # (N, F0) f32
    n = h.shape[0]
    p_mat = None if ring else p_ref[...]        # (K*N, N) bf16

    for li in range(n_layers):
        wih, whh, bg, wcomb, bout = layer_refs[5 * li: 5 * li + 5]
        f = whh.shape[0]                # LSTM hidden size (= padded F_in)
        hb16 = h.astype(jnp.bfloat16)   # bound once, reused (gather + combine)

        # -- neighbor stack, time-major: xs[t*N + v] = h[neigh(v, t)] -------
        if ring:
            # ring graph: neighbor t of node v is (v + t + 1) % N -> static rolls
            xs = jnp.concatenate(
                [jnp.roll(h, -(t + 1), axis=0) for t in range(k)], axis=0)
            xs_b = xs.astype(jnp.bfloat16)                       # (K*N, F)
        else:
            # general fixed-K graph: one-hot gather as an MXU matmul
            xs_b = jnp.dot(p_mat, hb16,
                           preferred_element_type=jnp.float32).astype(jnp.bfloat16)

        # -- fused-gate batched input projection: ONE matmul for all K*N rows
        pre_all = jnp.dot(xs_b, wih[...],
                          preferred_element_type=jnp.float32) + bg[...]  # (K*N, 4F)

        # -- LSTM recurrence over the K neighbors (one fused matmul / step) --
        hs = jnp.zeros((n, f), jnp.float32)
        cs = jnp.zeros((n, f), jnp.float32)
        for t in range(k):                                       # static -> unrolled
            r0 = t * n                                           # sublane-aligned
            gates = pre_all[r0:r0 + n, :] + jnp.dot(
                hs.astype(jnp.bfloat16), whh[...],
                preferred_element_type=jnp.float32)              # (N, 4F)
            sig = jax.nn.sigmoid(gates[:, :3 * f])               # lanes [i|f|o]
            i_t = sig[:, :f]
            f_t = sig[:, f:2 * f]
            o_t = sig[:, 2 * f:]
            g_t = jnp.tanh(gates[:, 3 * f:])                     # lanes [g]
            cs = f_t * cs + i_t * g_t
            hs = o_t * jnp.tanh(cs)

        # -- fused SAGE combine: [h | h_neigh] @ [Wself; Wneigh] + b --------
        hcat = jnp.concatenate([hb16, hs.astype(jnp.bfloat16)], axis=1)
        y = jnp.dot(hcat, wcomb[...],
                    preferred_element_type=jnp.float32) + bout[...]
        if li < n_layers - 1:
            y = jnp.maximum(y, 0.0) * mask_refs[li][...]         # relu + dropout(0.5)
        else:
            y = jax.nn.sigmoid(y)
        h = y

    out_ref[...] = h


# ---------------------------------------------------------------------------
# Wrapper: parameter layout prep (transpose / gate-fuse / zero-pad) + one call.
# ---------------------------------------------------------------------------
def _pad_dim(n):
    """Zero-pad awkward feature dims (e.g. 100 -> 128) to lane-dense widths."""
    if n % LANE == 0:
        return n
    if n <= 64 and n % 8 == 0:
        return n
    return ((n + LANE - 1) // LANE) * LANE


def _prep_layer(p, fi_pad, fo_pad):
    """One SAGEConv('lstm') layer -> fused/padded/pre-transposed kernel operands."""
    fi = p["w_hh"].shape[1]           # original in_feats (= LSTM hidden)
    fo = p["w_self"].shape[0]
    order = (0, 1, 3, 2)              # PyTorch rows (i, f, g, o) -> lanes (i, f, o, g)

    w_ih = p["w_ih"].reshape(4, fi, fi)          # (gate, hidden, input)
    w_hh = p["w_hh"].reshape(4, fi, fi)
    b = (p["b_ih"] + p["b_hh"]).reshape(4, fi)

    dp = fi_pad - fi                              # zero pad -> numerically exact
    w_ih = jnp.pad(w_ih, ((0, 0), (0, dp), (0, dp)))
    w_hh = jnp.pad(w_hh, ((0, 0), (0, dp), (0, dp)))
    b = jnp.pad(b, ((0, 0), (0, dp)))

    wih_cat = jnp.concatenate([w_ih[g].T for g in order], axis=1).astype(jnp.bfloat16)
    whh_cat = jnp.concatenate([w_hh[g].T for g in order], axis=1).astype(jnp.bfloat16)
    bg_cat = jnp.concatenate([b[g] for g in order],
                             axis=0).reshape(1, 4 * fi_pad).astype(jnp.float32)

    pad_w = ((0, fi_pad - fi), (0, fo_pad - fo))
    wself = jnp.pad(p["w_self"].T, pad_w)         # (F_in_pad, F_out_pad)
    wneigh = jnp.pad(p["w_neigh"].T, pad_w)
    wcomb = jnp.concatenate([wself, wneigh], axis=0).astype(jnp.bfloat16)
    bout = jnp.pad(p["bias"].reshape(1, fo),
                   ((0, 0), (0, fo_pad - fo))).astype(jnp.float32)
    return [wih_cat, whh_cat, bg_cat, wcomb, bout]


def graphsage_forward(params_list, x, neigh_idx, seed, *, ring=False):
    n, f0 = x.shape
    k = neigh_idx.shape[1]
    n_layers = len(params_list)

    # consistent zero-padding of the feature-dim chain (16, 32, 100->128, 32, 1->128)
    fi_pads, fo_pads = [], []
    prev = f0
    for li, p in enumerate(params_list):
        fo = p["w_self"].shape[0]
        fi_pads.append(prev)
        fo_pad = LANE if li == n_layers - 1 else _pad_dim(fo)
        fo_pads.append(fo_pad)
        prev = fo_pad

    layer_args = []
    for p, fi_pad, fo_pad in zip(params_list, fi_pads, fo_pads):
        layer_args += _prep_layer(p, fi_pad, fo_pad)

    # training-mode dropout(0.5) masks, pre-scaled by 1/(1-p) = 2
    mkeys = jax.random.split(jax.random.PRNGKey(seed), n_layers - 1)
    masks = [jax.random.bernoulli(mkeys[i], 0.5, (n, fo_pads[i])).astype(jnp.float32) * 2.0
             for i in range(n_layers - 1)]

    inputs = [x.astype(jnp.float32)]
    if not ring:
        # general fixed-K graph fallback: dense one-hot gather/stack matrix
        idx_tm = jnp.transpose(neigh_idx).reshape(k * n)
        inputs.append(jax.nn.one_hot(idx_tm, n, dtype=jnp.bfloat16))
    inputs += layer_args + masks

    fo_last = params_list[-1]["w_self"].shape[0]
    kernel = functools.partial(graphsage_kernel, n_layers=n_layers, k=k, ring=ring)
    out = pl.pallas_call(
        kernel,
        out_shape=jax.ShapeDtypeStruct((n, fo_pads[-1]), jnp.float32),
        in_specs=[pl.BlockSpec(memory_space=pltpu.MemorySpace.VMEM)] * len(inputs),
        out_specs=pl.BlockSpec(memory_space=pltpu.MemorySpace.VMEM),
    )(*inputs)
    return out[:, :fo_last]


def init_sage_params(key, fi, fo):
    ks = jax.random.split(key, 7)
    s = 0.1
    return dict(
        w_ih=s * jax.random.normal(ks[0], (4 * fi, fi), jnp.float32),
        w_hh=s * jax.random.normal(ks[1], (4 * fi, fi), jnp.float32),
        b_ih=s * jax.random.normal(ks[2], (4 * fi,), jnp.float32),
        b_hh=s * jax.random.normal(ks[3], (4 * fi,), jnp.float32),
        w_self=s * jax.random.normal(ks[4], (fo, fi), jnp.float32),
        w_neigh=s * jax.random.normal(ks[5], (fo, fi), jnp.float32),
        bias=s * jax.random.normal(ks[6], (fo,), jnp.float32),
    )


if __name__ == "__main__":
    key = jax.random.PRNGKey(0)
    N, K = 64, 4                 # nodes, neighbors per node
    in_feats, h_feats = 16, 32
    layer_dims = [(in_feats, h_feats), (h_feats, 100), (100, h_feats), (h_feats, 1)]

    keys = jax.random.split(key, 3)
    pkeys = jax.random.split(keys[0], len(layer_dims))
    params_list = [init_sage_params(pkeys[i], fi, fo)
                   for i, (fi, fo) in enumerate(layer_dims)]

    x = jax.random.normal(keys[1], (N, in_feats), jnp.float32)
    # deterministic synthetic graph: node n's neighbors are n+1 .. n+K (mod N)
    neigh_idx = (jnp.arange(N)[:, None] + jnp.arange(1, K + 1)[None, :]) % N
    seed = 1234

    # statically decide (outside jit) whether the ring/roll gather applies
    ring_ref = (np.arange(N)[:, None] + np.arange(1, K + 1)[None, :]) % N
    ring = bool(np.array_equal(np.asarray(neigh_idx), ring_ref))

    fwd = jax.jit(functools.partial(graphsage_forward, ring=ring))
    out = jax.block_until_ready(fwd(params_list, x, neigh_idx, seed))

    assert out.shape == (N, 1)
    assert bool(jnp.all(jnp.isfinite(out)))
    assert bool(jnp.all((out >= 0.0) & (out <= 1.0)))   # sigmoid range
    print("KERNEL_OK")
</pallas_src>

<mosaic_0001>
module attributes {stable_mosaic.version = 11 : i64} {
  func.func @graphsage_kernel(%arg0: memref<64x16xf32, #tpu.memory_space<vmem>>, %arg1: memref<16x64xbf16, #tpu.memory_space<vmem>>, %arg2: memref<16x64xbf16, #tpu.memory_space<vmem>>, %arg3: memref<1x64xf32, #tpu.memory_space<vmem>>, %arg4: memref<32x32xbf16, #tpu.memory_space<vmem>>, %arg5: memref<1x32xf32, #tpu.memory_space<vmem>>, %arg6: memref<32x128xbf16, #tpu.memory_space<vmem>>, %arg7: memref<32x128xbf16, #tpu.memory_space<vmem>>, %arg8: memref<1x128xf32, #tpu.memory_space<vmem>>, %arg9: memref<64x128xbf16, #tpu.memory_space<vmem>>, %arg10: memref<1x128xf32, #tpu.memory_space<vmem>>, %arg11: memref<128x512xbf16, #tpu.memory_space<vmem>>, %arg12: memref<128x512xbf16, #tpu.memory_space<vmem>>, %arg13: memref<1x512xf32, #tpu.memory_space<vmem>>, %arg14: memref<256x32xbf16, #tpu.memory_space<vmem>>, %arg15: memref<1x32xf32, #tpu.memory_space<vmem>>, %arg16: memref<32x128xbf16, #tpu.memory_space<vmem>>, %arg17: memref<32x128xbf16, #tpu.memory_space<vmem>>, %arg18: memref<1x128xf32, #tpu.memory_space<vmem>>, %arg19: memref<64x128xbf16, #tpu.memory_space<vmem>>, %arg20: memref<1x128xf32, #tpu.memory_space<vmem>>, %arg21: memref<64x32xf32, #tpu.memory_space<vmem>>, %arg22: memref<64x128xf32, #tpu.memory_space<vmem>>, %arg23: memref<64x32xf32, #tpu.memory_space<vmem>>, %arg24: memref<64x128xf32, #tpu.memory_space<vmem>>) attributes {dimension_semantics = [], scalar_prefetch = 0 : i64, scratch_operands = 0 : i64, tpu.core_type = #tpu.core_type<tc>} {
    %c0 = arith.constant 0 : index
    %c0_0 = arith.constant 0 : index
    %0 = vector.load %arg0[%c0, %c0_0] : memref<64x16xf32, #tpu.memory_space<vmem>>, vector<64x16xf32>
    %1 = arith.truncf %0 : vector<64x16xf32> to vector<64x16xbf16>
    %2 = vector.extract_strided_slice %0 {offsets = [1, 0], sizes = [63, 16], strides = [1, 1]} : vector<64x16xf32> to vector<63x16xf32>
    %3 = vector.extract_strided_slice %0 {offsets = [0, 0], sizes = [1, 16], strides = [1, 1]} : vector<64x16xf32> to vector<1x16xf32>
    %4 = tpu.concatenate %2, %3 in 0 : vector<63x16xf32>, vector<1x16xf32> -> vector<64x16xf32>
    %5 = vector.extract_strided_slice %0 {offsets = [2, 0], sizes = [62, 16], strides = [1, 1]} : vector<64x16xf32> to vector<62x16xf32>
    %6 = vector.extract_strided_slice %0 {offsets = [0, 0], sizes = [2, 16], strides = [1, 1]} : vector<64x16xf32> to vector<2x16xf32>
    %7 = tpu.concatenate %5, %6 in 0 : vector<62x16xf32>, vector<2x16xf32> -> vector<64x16xf32>
    %8 = vector.extract_strided_slice %0 {offsets = [3, 0], sizes = [61, 16], strides = [1, 1]} : vector<64x16xf32> to vector<61x16xf32>
    %9 = vector.extract_strided_slice %0 {offsets = [0, 0], sizes = [3, 16], strides = [1, 1]} : vector<64x16xf32> to vector<3x16xf32>
    %10 = tpu.concatenate %8, %9 in 0 : vector<61x16xf32>, vector<3x16xf32> -> vector<64x16xf32>
    %11 = vector.extract_strided_slice %0 {offsets = [4, 0], sizes = [60, 16], strides = [1, 1]} : vector<64x16xf32> to vector<60x16xf32>
    %12 = vector.extract_strided_slice %0 {offsets = [0, 0], sizes = [4, 16], strides = [1, 1]} : vector<64x16xf32> to vector<4x16xf32>
    %13 = tpu.concatenate %11, %12 in 0 : vector<60x16xf32>, vector<4x16xf32> -> vector<64x16xf32>
    %14 = tpu.concatenate %4, %7, %10, %13 in 0 : vector<64x16xf32>, vector<64x16xf32>, vector<64x16xf32>, vector<64x16xf32> -> vector<256x16xf32>
    %15 = arith.truncf %14 : vector<256x16xf32> to vector<256x16xbf16>
    %c0_1 = arith.constant 0 : index
    %c0_2 = arith.constant 0 : index
    %16 = vector.load %arg1[%c0_1, %c0_2] : memref<16x64xbf16, #tpu.memory_space<vmem>>, vector<16x64xbf16>
    %cst = arith.constant dense<0.000000e+00> : vector<256x64xf32>
    %17 = tpu.matmul %15, %16, %cst {dimension_numbers = #tpu.dot_dimension_numbers<[1], [0], [0], [1], [0, 0, 1, 1], [], []>} : vector<256x16xbf16>, vector<16x64xbf16>, vector<256x64xf32> -> vector<256x64xf32>
    %c0_3 = arith.constant 0 : index
    %c0_4 = arith.constant 0 : index
    %18 = vector.load %arg3[%c0_3, %c0_4] : memref<1x64xf32, #tpu.memory_space<vmem>>, vector<1x64xf32>
    %19 = vector.broadcast %18 : vector<1x64xf32> to vector<256x64xf32>
    %20 = arith.addf %17, %19 : vector<256x64xf32>
    %cst_5 = arith.constant 0.000000e+00 : f32
    %21 = vector.broadcast %cst_5 : f32 to vector<64x16xf32>
    %cst_6 = arith.constant 0.000000e+00 : f32
    %22 = vector.broadcast %cst_6 : f32 to vector<64x16xf32>
    %23 = vector.extract_strided_slice %20 {offsets = [0, 0], sizes = [64, 64], strides = [1, 1]} : vector<256x64xf32> to vector<64x64xf32>
    %24 = arith.truncf %21 : vector<64x16xf32> to vector<64x16xbf16>
    %c0_7 = arith.constant 0 : index
    %c0_8 = arith.constant 0 : index
    %25 = vector.load %arg2[%c0_7, %c0_8] : memref<16x64xbf16, #tpu.memory_space<vmem>>, vector<16x64xbf16>
    %cst_9 = arith.constant dense<0.000000e+00> : vector<64x64xf32>
    %26 = tpu.matmul %24, %25, %cst_9 {dimension_numbers = #tpu.dot_dimension_numbers<[1], [0], [0], [1], [0, 0, 1, 1], [], []>} : vector<64x16xbf16>, vector<16x64xbf16>, vector<64x64xf32> -> vector<64x64xf32>
    %27 = arith.addf %23, %26 : vector<64x64xf32>
    %28 = vector.extract_strided_slice %27 {offsets = [0, 0], sizes = [64, 48], strides = [1, 1]} : vector<64x64xf32> to vector<64x48xf32>
    %29 = arith.negf %28 : vector<64x48xf32>
    %30 = math.exp %29 : vector<64x48xf32>
    %cst_10 = arith.constant 1.000000e+00 : f32
    %31 = vector.broadcast %cst_10 : f32 to vector<64x48xf32>
    %32 = arith.addf %31, %30 : vector<64x48xf32>
    %33 = arith.divf %31, %32 : vector<64x48xf32>
    %34 = vector.extract_strided_slice %33 {offsets = [0, 0], sizes = [64, 16], strides = [1, 1]} : vector<64x48xf32> to vector<64x16xf32>
    %35 = vector.extract_strided_slice %33 {offsets = [0, 16], sizes = [64, 16], strides = [1, 1]} : vector<64x48xf32> to vector<64x16xf32>
    %36 = vector.extract_strided_slice %33 {offsets = [0, 32], sizes = [64, 16], strides = [1, 1]} : vector<64x48xf32> to vector<64x16xf32>
    %37 = vector.extract_strided_slice %27 {offsets = [0, 48], sizes = [64, 16], strides = [1, 1]} : vector<64x64xf32> to vector<64x16xf32>
    %38 = math.tanh %37 : vector<64x16xf32>
    %39 = arith.mulf %35, %22 : vector<64x16xf32>
    %40 = arith.mulf %34, %38 : vector<64x16xf32>
    %41 = arith.addf %39, %40 : vector<64x16xf32>
    %42 = math.tanh %41 : vector<64x16xf32>
    %43 = arith.mulf %36, %42 : vector<64x16xf32>
    %44 = vector.extract_strided_slice %20 {offsets = [64, 0], sizes = [64, 64], strides = [1, 1]} : vector<256x64xf32> to vector<64x64xf32>
    %45 = arith.truncf %43 : vector<64x16xf32> to vector<64x16xbf16>
    %c0_11 = arith.constant 0 : index
    %c0_12 = arith.constant 0 : index
    %46 = vector.load %arg2[%c0_11, %c0_12] : memref<16x64xbf16, #tpu.memory_space<vmem>>, vector<16x64xbf16>
    %cst_13 = arith.constant dense<0.000000e+00> : vector<64x64xf32>
    %47 = tpu.matmul %45, %46, %cst_13 {dimension_numbers = #tpu.dot_dimension_numbers<[1], [0], [0], [1], [0, 0, 1, 1], [], []>} : vector<64x16xbf16>, vector<16x64xbf16>, vector<64x64xf32> -> vector<64x64xf32>
    %48 = arith.addf %44, %47 : vector<64x64xf32>
    %49 = vector.extract_strided_slice %48 {offsets = [0, 0], sizes = [64, 48], strides = [1, 1]} : vector<64x64xf32> to vector<64x48xf32>
    %50 = arith.negf %49 : vector<64x48xf32>
    %51 = math.exp %50 : vector<64x48xf32>
    %cst_14 = arith.constant 1.000000e+00 : f32
    %52 = vector.broadcast %cst_14 : f32 to vector<64x48xf32>
    %53 = arith.addf %52, %51 : vector<64x48xf32>
    %54 = arith.divf %52, %53 : vector<64x48xf32>
    %55 = vector.extract_strided_slice %54 {offsets = [0, 0], sizes = [64, 16], strides = [1, 1]} : vector<64x48xf32> to vector<64x16xf32>
    %56 = vector.extract_strided_slice %54 {offsets = [0, 16], sizes = [64, 16], strides = [1, 1]} : vector<64x48xf32> to vector<64x16xf32>
    %57 = vector.extract_strided_slice %54 {offsets = [0, 32], sizes = [64, 16], strides = [1, 1]} : vector<64x48xf32> to vector<64x16xf32>
    %58 = vector.extract_strided_slice %48 {offsets = [0, 48], sizes = [64, 16], strides = [1, 1]} : vector<64x64xf32> to vector<64x16xf32>
    %59 = math.tanh %58 : vector<64x16xf32>
    %60 = arith.mulf %56, %41 : vector<64x16xf32>
    %61 = arith.mulf %55, %59 : vector<64x16xf32>
    %62 = arith.addf %60, %61 : vector<64x16xf32>
    %63 = math.tanh %62 : vector<64x16xf32>
    %64 = arith.mulf %57, %63 : vector<64x16xf32>
    %65 = vector.extract_strided_slice %20 {offsets = [128, 0], sizes = [64, 64], strides = [1, 1]} : vector<256x64xf32> to vector<64x64xf32>
    %66 = arith.truncf %64 : vector<64x16xf32> to vector<64x16xbf16>
    %c0_15 = arith.constant 0 : index
    %c0_16 = arith.constant 0 : index
    %67 = vector.load %arg2[%c0_15, %c0_16] : memref<16x64xbf16, #tpu.memory_space<vmem>>, vector<16x64xbf16>
    %cst_17 = arith.constant dense<0.000000e+00> : vector<64x64xf32>
    %68 = tpu.matmul %66, %67, %cst_17 {dimension_numbers = #tpu.dot_dimension_numbers<[1], [0], [0], [1], [0, 0, 1, 1], [], []>} : vector<64x16xbf16>, vector<16x64xbf16>, vector<64x64xf32> -> vector<64x64xf32>
    %69 = arith.addf %65, %68 : vector<64x64xf32>
    %70 = vector.extract_strided_slice %69 {offsets = [0, 0], sizes = [64, 48], strides = [1, 1]} : vector<64x64xf32> to vector<64x48xf32>
    %71 = arith.negf %70 : vector<64x48xf32>
    %72 = math.exp %71 : vector<64x48xf32>
    %cst_18 = arith.constant 1.000000e+00 : f32
    %73 = vector.broadcast %cst_18 : f32 to vector<64x48xf32>
    %74 = arith.addf %73, %72 : vector<64x48xf32>
    %75 = arith.divf %73, %74 : vector<64x48xf32>
    %76 = vector.extract_strided_slice %75 {offsets = [0, 0], sizes = [64, 16], strides = [1, 1]} : vector<64x48xf32> to vector<64x16xf32>
    %77 = vector.extract_strided_slice %75 {offsets = [0, 16], sizes = [64, 16], strides = [1, 1]} : vector<64x48xf32> to vector<64x16xf32>
    %78 = vector.extract_strided_slice %75 {offsets = [0, 32], sizes = [64, 16], strides = [1, 1]} : vector<64x48xf32> to vector<64x16xf32>
    %79 = vector.extract_strided_slice %69 {offsets = [0, 48], sizes = [64, 16], strides = [1, 1]} : vector<64x64xf32> to vector<64x16xf32>
    %80 = math.tanh %79 : vector<64x16xf32>
    %81 = arith.mulf %77, %62 : vector<64x16xf32>
    %82 = arith.mulf %76, %80 : vector<64x16xf32>
    %83 = arith.addf %81, %82 : vector<64x16xf32>
    %84 = math.tanh %83 : vector<64x16xf32>
    %85 = arith.mulf %78, %84 : vector<64x16xf32>
    %86 = vector.extract_strided_slice %20 {offsets = [192, 0], sizes = [64, 64], strides = [1, 1]} : vector<256x64xf32> to vector<64x64xf32>
    %87 = arith.truncf %85 : vector<64x16xf32> to vector<64x16xbf16>
    %c0_19 = arith.constant 0 : index
    %c0_20 = arith.constant 0 : index
    %88 = vector.load %arg2[%c0_19, %c0_20] : memref<16x64xbf16, #tpu.memory_space<vmem>>, vector<16x64xbf16>
    %cst_21 = arith.constant dense<0.000000e+00> : vector<64x64xf32>
    %89 = tpu.matmul %87, %88, %cst_21 {dimension_numbers = #tpu.dot_dimension_numbers<[1], [0], [0], [1], [0, 0, 1, 1], [], []>} : vector<64x16xbf16>, vector<16x64xbf16>, vector<64x64xf32> -> vector<64x64xf32>
    %90 = arith.addf %86, %89 : vector<64x64xf32>
    %91 = vector.extract_strided_slice %90 {offsets = [0, 0], sizes = [64, 48], strides = [1, 1]} : vector<64x64xf32> to vector<64x48xf32>
    %92 = arith.negf %91 : vector<64x48xf32>
    %93 = math.exp %92 : vector<64x48xf32>
    %cst_22 = arith.constant 1.000000e+00 : f32
    %94 = vector.broadcast %cst_22 : f32 to vector<64x48xf32>
    %95 = arith.addf %94, %93 : vector<64x48xf32>
    %96 = arith.divf %94, %95 : vector<64x48xf32>
    %97 = vector.extract_strided_slice %96 {offsets = [0, 0], sizes = [64, 16], strides = [1, 1]} : vector<64x48xf32> to vector<64x16xf32>
    %98 = vector.extract_strided_slice %96 {offsets = [0, 16], sizes = [64, 16], strides = [1, 1]} : vector<64x48xf32> to vector<64x16xf32>
    %99 = vector.extract_strided_slice %96 {offsets = [0, 32], sizes = [64, 16], strides = [1, 1]} : vector<64x48xf32> to vector<64x16xf32>
    %100 = vector.extract_strided_slice %90 {offsets = [0, 48], sizes = [64, 16], strides = [1, 1]} : vector<64x64xf32> to vector<64x16xf32>
    %101 = math.tanh %100 : vector<64x16xf32>
    %102 = arith.mulf %98, %83 : vector<64x16xf32>
    %103 = arith.mulf %97, %101 : vector<64x16xf32>
    %104 = arith.addf %102, %103 : vector<64x16xf32>
    %105 = math.tanh %104 : vector<64x16xf32>
    %106 = arith.mulf %99, %105 : vector<64x16xf32>
    %107 = arith.truncf %106 : vector<64x16xf32> to vector<64x16xbf16>
    %108 = tpu.concatenate %1, %107 in 1 : vector<64x16xbf16>, vector<64x16xbf16> -> vector<64x32xbf16>
    %c0_23 = arith.constant 0 : index
    %c0_24 = arith.constant 0 : index
    %109 = vector.load %arg4[%c0_23, %c0_24] : memref<32x32xbf16, #tpu.memory_space<vmem>>, vector<32x32xbf16>
    %cst_25 = arith.constant dense<0.000000e+00> : vector<64x32xf32>
    %110 = tpu.matmul %108, %109, %cst_25 {dimension_numbers = #tpu.dot_dimension_numbers<[1], [0], [0], [1], [0, 0, 1, 1], [], []>} : vector<64x32xbf16>, vector<32x32xbf16>, vector<64x32xf32> -> vector<64x32xf32>
    %c0_26 = arith.constant 0 : index
    %c0_27 = arith.constant 0 : index
    %111 = vector.load %arg5[%c0_26, %c0_27] : memref<1x32xf32, #tpu.memory_space<vmem>>, vector<1x32xf32>
    %112 = vector.broadcast %111 : vector<1x32xf32> to vector<64x32xf32>
    %113 = arith.addf %110, %112 : vector<64x32xf32>
    %cst_28 = arith.constant 0.000000e+00 : f32
    %114 = vector.broadcast %cst_28 : f32 to vector<64x32xf32>
    %115 = arith.maximumf %113, %114 : vector<64x32xf32>
    %c0_29 = arith.constant 0 : index
    %c0_30 = arith.constant 0 : index
    %116 = vector.load %arg21[%c0_29, %c0_30] : memref<64x32xf32, #tpu.memory_space<vmem>>, vector<64x32xf32>
    %117 = arith.mulf %115, %116 : vector<64x32xf32>
    %118 = arith.truncf %117 : vector<64x32xf32> to vector<64x32xbf16>
    %119 = vector.extract_strided_slice %117 {offsets = [1, 0], sizes = [63, 32], strides = [1, 1]} : vector<64x32xf32> to vector<63x32xf32>
    %120 = vector.extract_strided_slice %117 {offsets = [0, 0], sizes = [1, 32], strides = [1, 1]} : vector<64x32xf32> to vector<1x32xf32>
    %121 = tpu.concatenate %119, %120 in 0 : vector<63x32xf32>, vector<1x32xf32> -> vector<64x32xf32>
    %122 = vector.extract_strided_slice %117 {offsets = [2, 0], sizes = [62, 32], strides = [1, 1]} : vector<64x32xf32> to vector<62x32xf32>
    %123 = vector.extract_strided_slice %117 {offsets = [0, 0], sizes = [2, 32], strides = [1, 1]} : vector<64x32xf32> to vector<2x32xf32>
    %124 = tpu.concatenate %122, %123 in 0 : vector<62x32xf32>, vector<2x32xf32> -> vector<64x32xf32>
    %125 = vector.extract_strided_slice %117 {offsets = [3, 0], sizes = [61, 32], strides = [1, 1]} : vector<64x32xf32> to vector<61x32xf32>
    %126 = vector.extract_strided_slice %117 {offsets = [0, 0], sizes = [3, 32], strides = [1, 1]} : vector<64x32xf32> to vector<3x32xf32>
    %127 = tpu.concatenate %125, %126 in 0 : vector<61x32xf32>, vector<3x32xf32> -> vector<64x32xf32>
    %128 = vector.extract_strided_slice %117 {offsets = [4, 0], sizes = [60, 32], strides = [1, 1]} : vector<64x32xf32> to vector<60x32xf32>
    %129 = vector.extract_strided_slice %117 {offsets = [0, 0], sizes = [4, 32], strides = [1, 1]} : vector<64x32xf32> to vector<4x32xf32>
    %130 = tpu.concatenate %128, %129 in 0 : vector<60x32xf32>, vector<4x32xf32> -> vector<64x32xf32>
    %131 = tpu.concatenate %121, %124, %127, %130 in 0 : vector<64x32xf32>, vector<64x32xf32>, vector<64x32xf32>, vector<64x32xf32> -> vector<256x32xf32>
    %132 = arith.truncf %131 : vector<256x32xf32> to vector<256x32xbf16>
    %c0_31 = arith.constant 0 : index
    %c0_32 = arith.constant 0 : index
    %133 = vector.load %arg6[%c0_31, %c0_32] : memref<32x128xbf16, #tpu.memory_space<vmem>>, vector<32x128xbf16>
    %cst_33 = arith.constant dense<0.000000e+00> : vector<256x128xf32>
    %134 = tpu.matmul %132, %133, %cst_33 {dimension_numbers = #tpu.dot_dimension_numbers<[1], [0], [0], [1], [0, 0, 1, 1], [], []>} : vector<256x32xbf16>, vector<32x128xbf16>, vector<256x128xf32> -> vector<256x128xf32>
    %c0_34 = arith.constant 0 : index
    %c0_35 = arith.constant 0 : index
    %135 = vector.load %arg8[%c0_34, %c0_35] : memref<1x128xf32, #tpu.memory_space<vmem>>, vector<1x128xf32>
    %136 = vector.broadcast %135 : vector<1x128xf32> to vector<256x128xf32>
    %137 = arith.addf %134, %136 : vector<256x128xf32>
    %cst_36 = arith.constant 0.000000e+00 : f32
    %138 = vector.broadcast %cst_36 : f32 to vector<64x32xf32>
    %cst_37 = arith.constant 0.000000e+00 : f32
    %139 = vector.broadcast %cst_37 : f32 to vector<64x32xf32>
    %140 = vector.extract_strided_slice %137 {offsets = [0, 0], sizes = [64, 128], strides = [1, 1]} : vector<256x128xf32> to vector<64x128xf32>
    %141 = arith.truncf %138 : vector<64x32xf32> to vector<64x32xbf16>
    %c0_38 = arith.constant 0 : index
    %c0_39 = arith.constant 0 : index
    %142 = vector.load %arg7[%c0_38, %c0_39] : memref<32x128xbf16, #tpu.memory_space<vmem>>, vector<32x128xbf16>
    %cst_40 = arith.constant dense<0.000000e+00> : vector<64x128xf32>
    %143 = tpu.matmul %141, %142, %cst_40 {dimension_numbers = #tpu.dot_dimension_numbers<[1], [0], [0], [1], [0, 0, 1, 1], [], []>} : vector<64x32xbf16>, vector<32x128xbf16>, vector<64x128xf32> -> vector<64x128xf32>
    %144 = arith.addf %140, %143 : vector<64x128xf32>
    %145 = vector.extract_strided_slice %144 {offsets = [0, 0], sizes = [64, 96], strides = [1, 1]} : vector<64x128xf32> to vector<64x96xf32>
    %146 = arith.negf %145 : vector<64x96xf32>
    %147 = math.exp %146 : vector<64x96xf32>
    %cst_41 = arith.constant 1.000000e+00 : f32
    %148 = vector.broadcast %cst_41 : f32 to vector<64x96xf32>
    %149 = arith.addf %148, %147 : vector<64x96xf32>
    %150 = arith.divf %148, %149 : vector<64x96xf32>
    %151 = vector.extract_strided_slice %150 {offsets = [0, 0], sizes = [64, 32], strides = [1, 1]} : vector<64x96xf32> to vector<64x32xf32>
    %152 = vector.extract_strided_slice %150 {offsets = [0, 32], sizes = [64, 32], strides = [1, 1]} : vector<64x96xf32> to vector<64x32xf32>
    %153 = vector.extract_strided_slice %150 {offsets = [0, 64], sizes = [64, 32], strides = [1, 1]} : vector<64x96xf32> to vector<64x32xf32>
    %154 = vector.extract_strided_slice %144 {offsets = [0, 96], sizes = [64, 32], strides = [1, 1]} : vector<64x128xf32> to vector<64x32xf32>
    %155 = math.tanh %154 : vector<64x32xf32>
    %156 = arith.mulf %152, %139 : vector<64x32xf32>
    %157 = arith.mulf %151, %155 : vector<64x32xf32>
    %158 = arith.addf %156, %157 : vector<64x32xf32>
    %159 = math.tanh %158 : vector<64x32xf32>
    %160 = arith.mulf %153, %159 : vector<64x32xf32>
    %161 = vector.extract_strided_slice %137 {offsets = [64, 0], sizes = [64, 128], strides = [1, 1]} : vector<256x128xf32> to vector<64x128xf32>
    %162 = arith.truncf %160 : vector<64x32xf32> to vector<64x32xbf16>
    %c0_42 = arith.constant 0 : index
    %c0_43 = arith.constant 0 : index
    %163 = vector.load %arg7[%c0_42, %c0_43] : memref<32x128xbf16, #tpu.memory_space<vmem>>, vector<32x128xbf16>
    %cst_44 = arith.constant dense<0.000000e+00> : vector<64x128xf32>
    %164 = tpu.matmul %162, %163, %cst_44 {dimension_numbers = #tpu.dot_dimension_numbers<[1], [0], [0], [1], [0, 0, 1, 1], [], []>} : vector<64x32xbf16>, vector<32x128xbf16>, vector<64x128xf32> -> vector<64x128xf32>
    %165 = arith.addf %161, %164 : vector<64x128xf32>
    %166 = vector.extract_strided_slice %165 {offsets = [0, 0], sizes = [64, 96], strides = [1, 1]} : vector<64x128xf32> to vector<64x96xf32>
    %167 = arith.negf %166 : vector<64x96xf32>
    %168 = math.exp %167 : vector<64x96xf32>
    %cst_45 = arith.constant 1.000000e+00 : f32
    %169 = vector.broadcast %cst_45 : f32 to vector<64x96xf32>
    %170 = arith.addf %169, %168 : vector<64x96xf32>
    %171 = arith.divf %169, %170 : vector<64x96xf32>
    %172 = vector.extract_strided_slice %171 {offsets = [0, 0], sizes = [64, 32], strides = [1, 1]} : vector<64x96xf32> to vector<64x32xf32>
    %173 = vector.extract_strided_slice %171 {offsets = [0, 32], sizes = [64, 32], strides = [1, 1]} : vector<64x96xf32> to vector<64x32xf32>
    %174 = vector.extract_strided_slice %171 {offsets = [0, 64], sizes = [64, 32], strides = [1, 1]} : vector<64x96xf32> to vector<64x32xf32>
    %175 = vector.extract_strided_slice %165 {offsets = [0, 96], sizes = [64, 32], strides = [1, 1]} : vector<64x128xf32> to vector<64x32xf32>
    %176 = math.tanh %175 : vector<64x32xf32>
    %177 = arith.mulf %173, %158 : vector<64x32xf32>
    %178 = arith.mulf %172, %176 : vector<64x32xf32>
    %179 = arith.addf %177, %178 : vector<64x32xf32>
    %180 = math.tanh %179 : vector<64x32xf32>
    %181 = arith.mulf %174, %180 : vector<64x32xf32>
    %182 = vector.extract_strided_slice %137 {offsets = [128, 0], sizes = [64, 128], strides = [1, 1]} : vector<256x128xf32> to vector<64x128xf32>
    %183 = arith.truncf %181 : vector<64x32xf32> to vector<64x32xbf16>
    %c0_46 = arith.constant 0 : index
    %c0_47 = arith.constant 0 : index
    %184 = vector.load %arg7[%c0_46, %c0_47] : memref<32x128xbf16, #tpu.memory_space<vmem>>, vector<32x128xbf16>
    %cst_48 = arith.constant dense<0.000000e+00> : vector<64x128xf32>
    %185 = tpu.matmul %183, %184, %cst_48 {dimension_numbers = #tpu.dot_dimension_numbers<[1], [0], [0], [1], [0, 0, 1, 1], [], []>} : vector<64x32xbf16>, vector<32x128xbf16>, vector<64x128xf32> -> vector<64x128xf32>
    %186 = arith.addf %182, %185 : vector<64x128xf32>
    %187 = vector.extract_strided_slice %186 {offsets = [0, 0], sizes = [64, 96], strides = [1, 1]} : vector<64x128xf32> to vector<64x96xf32>
    %188 = arith.negf %187 : vector<64x96xf32>
    %189 = math.exp %188 : vector<64x96xf32>
    %cst_49 = arith.constant 1.000000e+00 : f32
    %190 = vector.broadcast %cst_49 : f32 to vector<64x96xf32>
    %191 = arith.addf %190, %189 : vector<64x96xf32>
    %192 = arith.divf %190, %191 : vector<64x96xf32>
    %193 = vector.extract_strided_slice %192 {offsets = [0, 0], sizes = [64, 32], strides = [1, 1]} : vector<64x96xf32> to vector<64x32xf32>
    %194 = vector.extract_strided_slice %192 {offsets = [0, 32], sizes = [64, 32], strides = [1, 1]} : vector<64x96xf32> to vector<64x32xf32>
    %195 = vector.extract_strided_slice %192 {offsets = [0, 64], sizes = [64, 32], strides = [1, 1]} : vector<64x96xf32> to vector<64x32xf32>
    %196 = vector.extract_strided_slice %186 {offsets = [0, 96], sizes = [64, 32], strides = [1, 1]} : vector<64x128xf32> to vector<64x32xf32>
    %197 = math.tanh %196 : vector<64x32xf32>
    %198 = arith.mulf %194, %179 : vector<64x32xf32>
    %199 = arith.mulf %193, %197 : vector<64x32xf32>
    %200 = arith.addf %198, %199 : vector<64x32xf32>
    %201 = math.tanh %200 : vector<64x32xf32>
    %202 = arith.mulf %195, %201 : vector<64x32xf32>
    %203 = vector.extract_strided_slice %137 {offsets = [192, 0], sizes = [64, 128], strides = [1, 1]} : vector<256x128xf32> to vector<64x128xf32>
    %204 = arith.truncf %202 : vector<64x32xf32> to vector<64x32xbf16>
    %c0_50 = arith.constant 0 : index
    %c0_51 = arith.constant 0 : index
    %205 = vector.load %arg7[%c0_50, %c0_51] : memref<32x128xbf16, #tpu.memory_space<vmem>>, vector<32x128xbf16>
    %cst_52 = arith.constant dense<0.000000e+00> : vector<64x128xf32>
    %206 = tpu.matmul %204, %205, %cst_52 {dimension_numbers = #tpu.dot_dimension_numbers<[1], [0], [0], [1], [0, 0, 1, 1], [], []>} : vector<64x32xbf16>, vector<32x128xbf16>, vector<64x128xf32> -> vector<64x128xf32>
    %207 = arith.addf %203, %206 : vector<64x128xf32>
    %208 = vector.extract_strided_slice %207 {offsets = [0, 0], sizes = [64, 96], strides = [1, 1]} : vector<64x128xf32> to vector<64x96xf32>
    %209 = arith.negf %208 : vector<64x96xf32>
    %210 = math.exp %209 : vector<64x96xf32>
    %cst_53 = arith.constant 1.000000e+00 : f32
    %211 = vector.broadcast %cst_53 : f32 to vector<64x96xf32>
    %212 = arith.addf %211, %210 : vector<64x96xf32>
    %213 = arith.divf %211, %212 : vector<64x96xf32>
    %214 = vector.extract_strided_slice %213 {offsets = [0, 0], sizes = [64, 32], strides = [1, 1]} : vector<64x96xf32> to vector<64x32xf32>
    %215 = vector.extract_strided_slice %213 {offsets = [0, 32], sizes = [64, 32], strides = [1, 1]} : vector<64x96xf32> to vector<64x32xf32>
    %216 = vector.extract_strided_slice %213 {offsets = [0, 64], sizes = [64, 32], strides = [1, 1]} : vector<64x96xf32> to vector<64x32xf32>
    %217 = vector.extract_strided_slice %207 {offsets = [0, 96], sizes = [64, 32], strides = [1, 1]} : vector<64x128xf32> to vector<64x32xf32>
    %218 = math.tanh %217 : vector<64x32xf32>
    %219 = arith.mulf %215, %200 : vector<64x32xf32>
    %220 = arith.mulf %214, %218 : vector<64x32xf32>
    %221 = arith.addf %219, %220 : vector<64x32xf32>
    %222 = math.tanh %221 : vector<64x32xf32>
    %223 = arith.mulf %216, %222 : vector<64x32xf32>
    %224 = arith.truncf %223 : vector<64x32xf32> to vector<64x32xbf16>
    %225 = tpu.concatenate %118, %224 in 1 : vector<64x32xbf16>, vector<64x32xbf16> -> vector<64x64xbf16>
    %c0_54 = arith.constant 0 : index
    %c0_55 = arith.constant 0 : index
    %226 = vector.load %arg9[%c0_54, %c0_55] : memref<64x128xbf16, #tpu.memory_space<vmem>>, vector<64x128xbf16>
    %cst_56 = arith.constant dense<0.000000e+00> : vector<64x128xf32>
    %227 = tpu.matmul %225, %226, %cst_56 {dimension_numbers = #tpu.dot_dimension_numbers<[1], [0], [0], [1], [0, 0, 1, 1], [], []>} : vector<64x64xbf16>, vector<64x128xbf16>, vector<64x128xf32> -> vector<64x128xf32>
    %c0_57 = arith.constant 0 : index
    %c0_58 = arith.constant 0 : index
    %228 = vector.load %arg10[%c0_57, %c0_58] : memref<1x128xf32, #tpu.memory_space<vmem>>, vector<1x128xf32>
    %229 = vector.broadcast %228 : vector<1x128xf32> to vector<64x128xf32>
    %230 = arith.addf %227, %229 : vector<64x128xf32>
    %cst_59 = arith.constant 0.000000e+00 : f32
    %231 = vector.broadcast %cst_59 : f32 to vector<64x128xf32>
    %232 = arith.maximumf %230, %231 : vector<64x128xf32>
    %c0_60 = arith.constant 0 : index
    %c0_61 = arith.constant 0 : index
    %233 = vector.load %arg22[%c0_60, %c0_61] : memref<64x128xf32, #tpu.memory_space<vmem>>, vector<64x128xf32>
    %234 = arith.mulf %232, %233 : vector<64x128xf32>
    %235 = arith.truncf %234 : vector<64x128xf32> to vector<64x128xbf16>
    %236 = vector.extract_strided_slice %234 {offsets = [1, 0], sizes = [63, 128], strides = [1, 1]} : vector<64x128xf32> to vector<63x128xf32>
    %237 = vector.extract_strided_slice %234 {offsets = [0, 0], sizes = [1, 128], strides = [1, 1]} : vector<64x128xf32> to vector<1x128xf32>
    %238 = tpu.concatenate %236, %237 in 0 : vector<63x128xf32>, vector<1x128xf32> -> vector<64x128xf32>
    %239 = vector.extract_strided_slice %234 {offsets = [2, 0], sizes = [62, 128], strides = [1, 1]} : vector<64x128xf32> to vector<62x128xf32>
    %240 = vector.extract_strided_slice %234 {offsets = [0, 0], sizes = [2, 128], strides = [1, 1]} : vector<64x128xf32> to vector<2x128xf32>
    %241 = tpu.concatenate %239, %240 in 0 : vector<62x128xf32>, vector<2x128xf32> -> vector<64x128xf32>
    %242 = vector.extract_strided_slice %234 {offsets = [3, 0], sizes = [61, 128], strides = [1, 1]} : vector<64x128xf32> to vector<61x128xf32>
    %243 = vector.extract_strided_slice %234 {offsets = [0, 0], sizes = [3, 128], strides = [1, 1]} : vector<64x128xf32> to vector<3x128xf32>
    %244 = tpu.concatenate %242, %243 in 0 : vector<61x128xf32>, vector<3x128xf32> -> vector<64x128xf32>
    %245 = vector.extract_strided_slice %234 {offsets = [4, 0], sizes = [60, 128], strides = [1, 1]} : vector<64x128xf32> to vector<60x128xf32>
    %246 = vector.extract_strided_slice %234 {offsets = [0, 0], sizes = [4, 128], strides = [1, 1]} : vector<64x128xf32> to vector<4x128xf32>
    %247 = tpu.concatenate %245, %246 in 0 : vector<60x128xf32>, vector<4x128xf32> -> vector<64x128xf32>
    %248 = tpu.concatenate %238, %241, %244, %247 in 0 : vector<64x128xf32>, vector<64x128xf32>, vector<64x128xf32>, vector<64x128xf32> -> vector<256x128xf32>
    %249 = arith.truncf %248 : vector<256x128xf32> to vector<256x128xbf16>
    %c0_62 = arith.constant 0 : index
    %c0_63 = arith.constant 0 : index
    %250 = vector.load %arg11[%c0_62, %c0_63] : memref<128x512xbf16, #tpu.memory_space<vmem>>, vector<128x512xbf16>
    %cst_64 = arith.constant dense<0.000000e+00> : vector<256x512xf32>
    %251 = tpu.matmul %249, %250, %cst_64 {dimension_numbers = #tpu.dot_dimension_numbers<[1], [0], [0], [1], [0, 0, 1, 1], [], []>} : vector<256x128xbf16>, vector<128x512xbf16>, vector<256x512xf32> -> vector<256x512xf32>
    %c0_65 = arith.constant 0 : index
    %c0_66 = arith.constant 0 : index
    %252 = vector.load %arg13[%c0_65, %c0_66] : memref<1x512xf32, #tpu.memory_space<vmem>>, vector<1x512xf32>
    %253 = vector.broadcast %252 : vector<1x512xf32> to vector<256x512xf32>
    %254 = arith.addf %251, %253 : vector<256x512xf32>
    %cst_67 = arith.constant 0.000000e+00 : f32
    %255 = vector.broadcast %cst_67 : f32 to vector<64x128xf32>
    %cst_68 = arith.constant 0.000000e+00 : f32
    %256 = vector.broadcast %cst_68 : f32 to vector<64x128xf32>
    %257 = vector.extract_strided_slice %254 {offsets = [0, 0], sizes = [64, 512], strides = [1, 1]} : vector<256x512xf32> to vector<64x512xf32>
    %258 = arith.truncf %255 : vector<64x128xf32> to vector<64x128xbf16>
    %c0_69 = arith.constant 0 : index
    %c0_70 = arith.constant 0 : index
    %259 = vector.load %arg12[%c0_69, %c0_70] : memref<128x512xbf16, #tpu.memory_space<vmem>>, vector<128x512xbf16>
    %cst_71 = arith.constant dense<0.000000e+00> : vector<64x512xf32>
    %260 = tpu.matmul %258, %259, %cst_71 {dimension_numbers = #tpu.dot_dimension_numbers<[1], [0], [0], [1], [0, 0, 1, 1], [], []>} : vector<64x128xbf16>, vector<128x512xbf16>, vector<64x512xf32> -> vector<64x512xf32>
    %261 = arith.addf %257, %260 : vector<64x512xf32>
    %262 = vector.extract_strided_slice %261 {offsets = [0, 0], sizes = [64, 384], strides = [1, 1]} : vector<64x512xf32> to vector<64x384xf32>
    %263 = arith.negf %262 : vector<64x384xf32>
    %264 = math.exp %263 : vector<64x384xf32>
    %cst_72 = arith.constant 1.000000e+00 : f32
    %265 = vector.broadcast %cst_72 : f32 to vector<64x384xf32>
    %266 = arith.addf %265, %264 : vector<64x384xf32>
    %267 = arith.divf %265, %266 : vector<64x384xf32>
    %268 = vector.extract_strided_slice %267 {offsets = [0, 0], sizes = [64, 128], strides = [1, 1]} : vector<64x384xf32> to vector<64x128xf32>
    %269 = vector.extract_strided_slice %267 {offsets = [0, 128], sizes = [64, 128], strides = [1, 1]} : vector<64x384xf32> to vector<64x128xf32>
    %270 = vector.extract_strided_slice %267 {offsets = [0, 256], sizes = [64, 128], strides = [1, 1]} : vector<64x384xf32> to vector<64x128xf32>
    %271 = vector.extract_strided_slice %261 {offsets = [0, 384], sizes = [64, 128], strides = [1, 1]} : vector<64x512xf32> to vector<64x128xf32>
    %272 = math.tanh %271 : vector<64x128xf32>
    %273 = arith.mulf %269, %256 : vector<64x128xf32>
    %274 = arith.mulf %268, %272 : vector<64x128xf32>
    %275 = arith.addf %273, %274 : vector<64x128xf32>
    %276 = math.tanh %275 : vector<64x128xf32>
    %277 = arith.mulf %270, %276 : vector<64x128xf32>
    %278 = vector.extract_strided_slice %254 {offsets = [64, 0], sizes = [64, 512], strides = [1, 1]} : vector<256x512xf32> to vector<64x512xf32>
    %279 = arith.truncf %277 : vector<64x128xf32> to vector<64x128xbf16>
    %c0_73 = arith.constant 0 : index
    %c0_74 = arith.constant 0 : index
    %280 = vector.load %arg12[%c0_73, %c0_74] : memref<128x512xbf16, #tpu.memory_space<vmem>>, vector<128x512xbf16>
    %cst_75 = arith.constant dense<0.000000e+00> : vector<64x512xf32>
    %281 = tpu.matmul %279, %280, %cst_75 {dimension_numbers = #tpu.dot_dimension_numbers<[1], [0], [0], [1], [0, 0, 1, 1], [], []>} : vector<64x128xbf16>, vector<128x512xbf16>, vector<64x512xf32> -> vector<64x512xf32>
    %282 = arith.addf %278, %281 : vector<64x512xf32>
    %283 = vector.extract_strided_slice %282 {offsets = [0, 0], sizes = [64, 384], strides = [1, 1]} : vector<64x512xf32> to vector<64x384xf32>
    %284 = arith.negf %283 : vector<64x384xf32>
    %285 = math.exp %284 : vector<64x384xf32>
    %cst_76 = arith.constant 1.000000e+00 : f32
    %286 = vector.broadcast %cst_76 : f32 to vector<64x384xf32>
    %287 = arith.addf %286, %285 : vector<64x384xf32>
    %288 = arith.divf %286, %287 : vector<64x384xf32>
    %289 = vector.extract_strided_slice %288 {offsets = [0, 0], sizes = [64, 128], strides = [1, 1]} : vector<64x384xf32> to vector<64x128xf32>
    %290 = vector.extract_strided_slice %288 {offsets = [0, 128], sizes = [64, 128], strides = [1, 1]} : vector<64x384xf32> to vector<64x128xf32>
    %291 = vector.extract_strided_slice %288 {offsets = [0, 256], sizes = [64, 128], strides = [1, 1]} : vector<64x384xf32> to vector<64x128xf32>
    %292 = vector.extract_strided_slice %282 {offsets = [0, 384], sizes = [64, 128], strides = [1, 1]} : vector<64x512xf32> to vector<64x128xf32>
    %293 = math.tanh %292 : vector<64x128xf32>
    %294 = arith.mulf %290, %275 : vector<64x128xf32>
    %295 = arith.mulf %289, %293 : vector<64x128xf32>
    %296 = arith.addf %294, %295 : vector<64x128xf32>
    %297 = math.tanh %296 : vector<64x128xf32>
    %298 = arith.mulf %291, %297 : vector<64x128xf32>
    %299 = vector.extract_strided_slice %254 {offsets = [128, 0], sizes = [64, 512], strides = [1, 1]} : vector<256x512xf32> to vector<64x512xf32>
    %300 = arith.truncf %298 : vector<64x128xf32> to vector<64x128xbf16>
    %c0_77 = arith.constant 0 : index
    %c0_78 = arith.constant 0 : index
    %301 = vector.load %arg12[%c0_77, %c0_78] : memref<128x512xbf16, #tpu.memory_space<vmem>>, vector<128x512xbf16>
    %cst_79 = arith.constant dense<0.000000e+00> : vector<64x512xf32>
    %302 = tpu.matmul %300, %301, %cst_79 {dimension_numbers = #tpu.dot_dimension_numbers<[1], [0], [0], [1], [0, 0, 1, 1], [], []>} : vector<64x128xbf16>, vector<128x512xbf16>, vector<64x512xf32> -> vector<64x512xf32>
    %303 = arith.addf %299, %302 : vector<64x512xf32>
    %304 = vector.extract_strided_slice %303 {offsets = [0, 0], sizes = [64, 384], strides = [1, 1]} : vector<64x512xf32> to vector<64x384xf32>
    %305 = arith.negf %304 : vector<64x384xf32>
    %306 = math.exp %305 : vector<64x384xf32>
    %cst_80 = arith.constant 1.000000e+00 : f32
    %307 = vector.broadcast %cst_80 : f32 to vector<64x384xf32>
    %308 = arith.addf %307, %306 : vector<64x384xf32>
    %309 = arith.divf %307, %308 : vector<64x384xf32>
    %310 = vector.extract_strided_slice %309 {offsets = [0, 0], sizes = [64, 128], strides = [1, 1]} : vector<64x384xf32> to vector<64x128xf32>
    %311 = vector.extract_strided_slice %309 {offsets = [0, 128], sizes = [64, 128], strides = [1, 1]} : vector<64x384xf32> to vector<64x128xf32>
    %312 = vector.extract_strided_slice %309 {offsets = [0, 256], sizes = [64, 128], strides = [1, 1]} : vector<64x384xf32> to vector<64x128xf32>
    %313 = vector.extract_strided_slice %303 {offsets = [0, 384], sizes = [64, 128], strides = [1, 1]} : vector<64x512xf32> to vector<64x128xf32>
    %314 = math.tanh %313 : vector<64x128xf32>
    %315 = arith.mulf %311, %296 : vector<64x128xf32>
    %316 = arith.mulf %310, %314 : vector<64x128xf32>
    %317 = arith.addf %315, %316 : vector<64x128xf32>
    %318 = math.tanh %317 : vector<64x128xf32>
    %319 = arith.mulf %312, %318 : vector<64x128xf32>
    %320 = vector.extract_strided_slice %254 {offsets = [192, 0], sizes = [64, 512], strides = [1, 1]} : vector<256x512xf32> to vector<64x512xf32>
    %321 = arith.truncf %319 : vector<64x128xf32> to vector<64x128xbf16>
    %c0_81 = arith.constant 0 : index
    %c0_82 = arith.constant 0 : index
    %322 = vector.load %arg12[%c0_81, %c0_82] : memref<128x512xbf16, #tpu.memory_space<vmem>>, vector<128x512xbf16>
    %cst_83 = arith.constant dense<0.000000e+00> : vector<64x512xf32>
    %323 = tpu.matmul %321, %322, %cst_83 {dimension_numbers = #tpu.dot_dimension_numbers<[1], [0], [0], [1], [0, 0, 1, 1], [], []>} : vector<64x128xbf16>, vector<128x512xbf16>, vector<64x512xf32> -> vector<64x512xf32>
    %324 = arith.addf %320, %323 : vector<64x512xf32>
    %325 = vector.extract_strided_slice %324 {offsets = [0, 0], sizes = [64, 384], strides = [1, 1]} : vector<64x512xf32> to vector<64x384xf32>
    %326 = arith.negf %325 : vector<64x384xf32>
    %327 = math.exp %326 : vector<64x384xf32>
    %cst_84 = arith.constant 1.000000e+00 : f32
    %328 = vector.broadcast %cst_84 : f32 to vector<64x384xf32>
    %329 = arith.addf %328, %327 : vector<64x384xf32>
    %330 = arith.divf %328, %329 : vector<64x384xf32>
    %331 = vector.extract_strided_slice %330 {offsets = [0, 0], sizes = [64, 128], strides = [1, 1]} : vector<64x384xf32> to vector<64x128xf32>
    %332 = vector.extract_strided_slice %330 {offsets = [0, 128], sizes = [64, 128], strides = [1, 1]} : vector<64x384xf32> to vector<64x128xf32>
    %333 = vector.extract_strided_slice %330 {offsets = [0, 256], sizes = [64, 128], strides = [1, 1]} : vector<64x384xf32> to vector<64x128xf32>
    %334 = vector.extract_strided_slice %324 {offsets = [0, 384], sizes = [64, 128], strides = [1, 1]} : vector<64x512xf32> to vector<64x128xf32>
    %335 = math.tanh %334 : vector<64x128xf32>
    %336 = arith.mulf %332, %317 : vector<64x128xf32>
    %337 = arith.mulf %331, %335 : vector<64x128xf32>
    %338 = arith.addf %336, %337 : vector<64x128xf32>
    %339 = math.tanh %338 : vector<64x128xf32>
    %340 = arith.mulf %333, %339 : vector<64x128xf32>
    %341 = arith.truncf %340 : vector<64x128xf32> to vector<64x128xbf16>
    %342 = tpu.concatenate %235, %341 in 1 : vector<64x128xbf16>, vector<64x128xbf16> -> vector<64x256xbf16>
    %c0_85 = arith.constant 0 : index
    %c0_86 = arith.constant 0 : index
    %343 = vector.load %arg14[%c0_85, %c0_86] : memref<256x32xbf16, #tpu.memory_space<vmem>>, vector<256x32xbf16>
    %cst_87 = arith.constant dense<0.000000e+00> : vector<64x32xf32>
    %344 = tpu.matmul %342, %343, %cst_87 {dimension_numbers = #tpu.dot_dimension_numbers<[1], [0], [0], [1], [0, 0, 1, 1], [], []>} : vector<64x256xbf16>, vector<256x32xbf16>, vector<64x32xf32> -> vector<64x32xf32>
    %c0_88 = arith.constant 0 : index
    %c0_89 = arith.constant 0 : index
    %345 = vector.load %arg15[%c0_88, %c0_89] : memref<1x32xf32, #tpu.memory_space<vmem>>, vector<1x32xf32>
    %346 = vector.broadcast %345 : vector<1x32xf32> to vector<64x32xf32>
    %347 = arith.addf %344, %346 : vector<64x32xf32>
    %cst_90 = arith.constant 0.000000e+00 : f32
    %348 = vector.broadcast %cst_90 : f32 to vector<64x32xf32>
    %349 = arith.maximumf %347, %348 : vector<64x32xf32>
    %c0_91 = arith.constant 0 : index
    %c0_92 = arith.constant 0 : index
    %350 = vector.load %arg23[%c0_91, %c0_92] : memref<64x32xf32, #tpu.memory_space<vmem>>, vector<64x32xf32>
    %351 = arith.mulf %349, %350 : vector<64x32xf32>
    %352 = arith.truncf %351 : vector<64x32xf32> to vector<64x32xbf16>
    %353 = vector.extract_strided_slice %351 {offsets = [1, 0], sizes = [63, 32], strides = [1, 1]} : vector<64x32xf32> to vector<63x32xf32>
    %354 = vector.extract_strided_slice %351 {offsets = [0, 0], sizes = [1, 32], strides = [1, 1]} : vector<64x32xf32> to vector<1x32xf32>
    %355 = tpu.concatenate %353, %354 in 0 : vector<63x32xf32>, vector<1x32xf32> -> vector<64x32xf32>
    %356 = vector.extract_strided_slice %351 {offsets = [2, 0], sizes = [62, 32], strides = [1, 1]} : vector<64x32xf32> to vector<62x32xf32>
    %357 = vector.extract_strided_slice %351 {offsets = [0, 0], sizes = [2, 32], strides = [1, 1]} : vector<64x32xf32> to vector<2x32xf32>
    %358 = tpu.concatenate %356, %357 in 0 : vector<62x32xf32>, vector<2x32xf32> -> vector<64x32xf32>
    %359 = vector.extract_strided_slice %351 {offsets = [3, 0], sizes = [61, 32], strides = [1, 1]} : vector<64x32xf32> to vector<61x32xf32>
    %360 = vector.extract_strided_slice %351 {offsets = [0, 0], sizes = [3, 32], strides = [1, 1]} : vector<64x32xf32> to vector<3x32xf32>
    %361 = tpu.concatenate %359, %360 in 0 : vector<61x32xf32>, vector<3x32xf32> -> vector<64x32xf32>
    %362 = vector.extract_strided_slice %351 {offsets = [4, 0], sizes = [60, 32], strides = [1, 1]} : vector<64x32xf32> to vector<60x32xf32>
    %363 = vector.extract_strided_slice %351 {offsets = [0, 0], sizes = [4, 32], strides = [1, 1]} : vector<64x32xf32> to vector<4x32xf32>
    %364 = tpu.concatenate %362, %363 in 0 : vector<60x32xf32>, vector<4x32xf32> -> vector<64x32xf32>
    %365 = tpu.concatenate %355, %358, %361, %364 in 0 : vector<64x32xf32>, vector<64x32xf32>, vector<64x32xf32>, vector<64x32xf32> -> vector<256x32xf32>
    %366 = arith.truncf %365 : vector<256x32xf32> to vector<256x32xbf16>
    %c0_93 = arith.constant 0 : index
    %c0_94 = arith.constant 0 : index
    %367 = vector.load %arg16[%c0_93, %c0_94] : memref<32x128xbf16, #tpu.memory_space<vmem>>, vector<32x128xbf16>
    %cst_95 = arith.constant dense<0.000000e+00> : vector<256x128xf32>
    %368 = tpu.matmul %366, %367, %cst_95 {dimension_numbers = #tpu.dot_dimension_numbers<[1], [0], [0], [1], [0, 0, 1, 1], [], []>} : vector<256x32xbf16>, vector<32x128xbf16>, vector<256x128xf32> -> vector<256x128xf32>
    %c0_96 = arith.constant 0 : index
    %c0_97 = arith.constant 0 : index
    %369 = vector.load %arg18[%c0_96, %c0_97] : memref<1x128xf32, #tpu.memory_space<vmem>>, vector<1x128xf32>
    %370 = vector.broadcast %369 : vector<1x128xf32> to vector<256x128xf32>
    %371 = arith.addf %368, %370 : vector<256x128xf32>
    %cst_98 = arith.constant 0.000000e+00 : f32
    %372 = vector.broadcast %cst_98 : f32 to vector<64x32xf32>
    %cst_99 = arith.constant 0.000000e+00 : f32
    %373 = vector.broadcast %cst_99 : f32 to vector<64x32xf32>
    %374 = vector.extract_strided_slice %371 {offsets = [0, 0], sizes = [64, 128], strides = [1, 1]} : vector<256x128xf32> to vector<64x128xf32>
    %375 = arith.truncf %372 : vector<64x32xf32> to vector<64x32xbf16>
    %c0_100 = arith.constant 0 : index
    %c0_101 = arith.constant 0 : index
    %376 = vector.load %arg17[%c0_100, %c0_101] : memref<32x128xbf16, #tpu.memory_space<vmem>>, vector<32x128xbf16>
    %cst_102 = arith.constant dense<0.000000e+00> : vector<64x128xf32>
    %377 = tpu.matmul %375, %376, %cst_102 {dimension_numbers = #tpu.dot_dimension_numbers<[1], [0], [0], [1], [0, 0, 1, 1], [], []>} : vector<64x32xbf16>, vector<32x128xbf16>, vector<64x128xf32> -> vector<64x128xf32>
    %378 = arith.addf %374, %377 : vector<64x128xf32>
    %379 = vector.extract_strided_slice %378 {offsets = [0, 0], sizes = [64, 96], strides = [1, 1]} : vector<64x128xf32> to vector<64x96xf32>
    %380 = arith.negf %379 : vector<64x96xf32>
    %381 = math.exp %380 : vector<64x96xf32>
    %cst_103 = arith.constant 1.000000e+00 : f32
    %382 = vector.broadcast %cst_103 : f32 to vector<64x96xf32>
    %383 = arith.addf %382, %381 : vector<64x96xf32>
    %384 = arith.divf %382, %383 : vector<64x96xf32>
    %385 = vector.extract_strided_slice %384 {offsets = [0, 0], sizes = [64, 32], strides = [1, 1]} : vector<64x96xf32> to vector<64x32xf32>
    %386 = vector.extract_strided_slice %384 {offsets = [0, 32], sizes = [64, 32], strides = [1, 1]} : vector<64x96xf32> to vector<64x32xf32>
    %387 = vector.extract_strided_slice %384 {offsets = [0, 64], sizes = [64, 32], strides = [1, 1]} : vector<64x96xf32> to vector<64x32xf32>
    %388 = vector.extract_strided_slice %378 {offsets = [0, 96], sizes = [64, 32], strides = [1, 1]} : vector<64x128xf32> to vector<64x32xf32>
    %389 = math.tanh %388 : vector<64x32xf32>
    %390 = arith.mulf %386, %373 : vector<64x32xf32>
    %391 = arith.mulf %385, %389 : vector<64x32xf32>
    %392 = arith.addf %390, %391 : vector<64x32xf32>
    %393 = math.tanh %392 : vector<64x32xf32>
    %394 = arith.mulf %387, %393 : vector<64x32xf32>
    %395 = vector.extract_strided_slice %371 {offsets = [64, 0], sizes = [64, 128], strides = [1, 1]} : vector<256x128xf32> to vector<64x128xf32>
    %396 = arith.truncf %394 : vector<64x32xf32> to vector<64x32xbf16>
    %c0_104 = arith.constant 0 : index
    %c0_105 = arith.constant 0 : index
    %397 = vector.load %arg17[%c0_104, %c0_105] : memref<32x128xbf16, #tpu.memory_space<vmem>>, vector<32x128xbf16>
    %cst_106 = arith.constant dense<0.000000e+00> : vector<64x128xf32>
    %398 = tpu.matmul %396, %397, %cst_106 {dimension_numbers = #tpu.dot_dimension_numbers<[1], [0], [0], [1], [0, 0, 1, 1], [], []>} : vector<64x32xbf16>, vector<32x128xbf16>, vector<64x128xf32> -> vector<64x128xf32>
    %399 = arith.addf %395, %398 : vector<64x128xf32>
    %400 = vector.extract_strided_slice %399 {offsets = [0, 0], sizes = [64, 96], strides = [1, 1]} : vector<64x128xf32> to vector<64x96xf32>
    %401 = arith.negf %400 : vector<64x96xf32>
    %402 = math.exp %401 : vector<64x96xf32>
    %cst_107 = arith.constant 1.000000e+00 : f32
    %403 = vector.broadcast %cst_107 : f32 to vector<64x96xf32>
    %404 = arith.addf %403, %402 : vector<64x96xf32>
    %405 = arith.divf %403, %404 : vector<64x96xf32>
    %406 = vector.extract_strided_slice %405 {offsets = [0, 0], sizes = [64, 32], strides = [1, 1]} : vector<64x96xf32> to vector<64x32xf32>
    %407 = vector.extract_strided_slice %405 {offsets = [0, 32], sizes = [64, 32], strides = [1, 1]} : vector<64x96xf32> to vector<64x32xf32>
    %408 = vector.extract_strided_slice %405 {offsets = [0, 64], sizes = [64, 32], strides = [1, 1]} : vector<64x96xf32> to vector<64x32xf32>
    %409 = vector.extract_strided_slice %399 {offsets = [0, 96], sizes = [64, 32], strides = [1, 1]} : vector<64x128xf32> to vector<64x32xf32>
    %410 = math.tanh %409 : vector<64x32xf32>
    %411 = arith.mulf %407, %392 : vector<64x32xf32>
    %412 = arith.mulf %406, %410 : vector<64x32xf32>
    %413 = arith.addf %411, %412 : vector<64x32xf32>
    %414 = math.tanh %413 : vector<64x32xf32>
    %415 = arith.mulf %408, %414 : vector<64x32xf32>
    %416 = vector.extract_strided_slice %371 {offsets = [128, 0], sizes = [64, 128], strides = [1, 1]} : vector<256x128xf32> to vector<64x128xf32>
    %417 = arith.truncf %415 : vector<64x32xf32> to vector<64x32xbf16>
    %c0_108 = arith.constant 0 : index
    %c0_109 = arith.constant 0 : index
    %418 = vector.load %arg17[%c0_108, %c0_109] : memref<32x128xbf16, #tpu.memory_space<vmem>>, vector<32x128xbf16>
    %cst_110 = arith.constant dense<0.000000e+00> : vector<64x128xf32>
    %419 = tpu.matmul %417, %418, %cst_110 {dimension_numbers = #tpu.dot_dimension_numbers<[1], [0], [0], [1], [0, 0, 1, 1], [], []>} : vector<64x32xbf16>, vector<32x128xbf16>, vector<64x128xf32> -> vector<64x128xf32>
    %420 = arith.addf %416, %419 : vector<64x128xf32>
    %421 = vector.extract_strided_slice %420 {offsets = [0, 0], sizes = [64, 96], strides = [1, 1]} : vector<64x128xf32> to vector<64x96xf32>
    %422 = arith.negf %421 : vector<64x96xf32>
    %423 = math.exp %422 : vector<64x96xf32>
    %cst_111 = arith.constant 1.000000e+00 : f32
    %424 = vector.broadcast %cst_111 : f32 to vector<64x96xf32>
    %425 = arith.addf %424, %423 : vector<64x96xf32>
    %426 = arith.divf %424, %425 : vector<64x96xf32>
    %427 = vector.extract_strided_slice %426 {offsets = [0, 0], sizes = [64, 32], strides = [1, 1]} : vector<64x96xf32> to vector<64x32xf32>
    %428 = vector.extract_strided_slice %426 {offsets = [0, 32], sizes = [64, 32], strides = [1, 1]} : vector<64x96xf32> to vector<64x32xf32>
    %429 = vector.extract_strided_slice %426 {offsets = [0, 64], sizes = [64, 32], strides = [1, 1]} : vector<64x96xf32> to vector<64x32xf32>
    %430 = vector.extract_strided_slice %420 {offsets = [0, 96], sizes = [64, 32], strides = [1, 1]} : vector<64x128xf32> to vector<64x32xf32>
    %431 = math.tanh %430 : vector<64x32xf32>
    %432 = arith.mulf %428, %413 : vector<64x32xf32>
    %433 = arith.mulf %427, %431 : vector<64x32xf32>
    %434 = arith.addf %432, %433 : vector<64x32xf32>
    %435 = math.tanh %434 : vector<64x32xf32>
    %436 = arith.mulf %429, %435 : vector<64x32xf32>
    %437 = vector.extract_strided_slice %371 {offsets = [192, 0], sizes = [64, 128], strides = [1, 1]} : vector<256x128xf32> to vector<64x128xf32>
    %438 = arith.truncf %436 : vector<64x32xf32> to vector<64x32xbf16>
    %c0_112 = arith.constant 0 : index
    %c0_113 = arith.constant 0 : index
    %439 = vector.load %arg17[%c0_112, %c0_113] : memref<32x128xbf16, #tpu.memory_space<vmem>>, vector<32x128xbf16>
    %cst_114 = arith.constant dense<0.000000e+00> : vector<64x128xf32>
    %440 = tpu.matmul %438, %439, %cst_114 {dimension_numbers = #tpu.dot_dimension_numbers<[1], [0], [0], [1], [0, 0, 1, 1], [], []>} : vector<64x32xbf16>, vector<32x128xbf16>, vector<64x128xf32> -> vector<64x128xf32>
    %441 = arith.addf %437, %440 : vector<64x128xf32>
    %442 = vector.extract_strided_slice %441 {offsets = [0, 0], sizes = [64, 96], strides = [1, 1]} : vector<64x128xf32> to vector<64x96xf32>
    %443 = arith.negf %442 : vector<64x96xf32>
    %444 = math.exp %443 : vector<64x96xf32>
    %cst_115 = arith.constant 1.000000e+00 : f32
    %445 = vector.broadcast %cst_115 : f32 to vector<64x96xf32>
    %446 = arith.addf %445, %444 : vector<64x96xf32>
    %447 = arith.divf %445, %446 : vector<64x96xf32>
    %448 = vector.extract_strided_slice %447 {offsets = [0, 0], sizes = [64, 32], strides = [1, 1]} : vector<64x96xf32> to vector<64x32xf32>
    %449 = vector.extract_strided_slice %447 {offsets = [0, 32], sizes = [64, 32], strides = [1, 1]} : vector<64x96xf32> to vector<64x32xf32>
    %450 = vector.extract_strided_slice %447 {offsets = [0, 64], sizes = [64, 32], strides = [1, 1]} : vector<64x96xf32> to vector<64x32xf32>
    %451 = vector.extract_strided_slice %441 {offsets = [0, 96], sizes = [64, 32], strides = [1, 1]} : vector<64x128xf32> to vector<64x32xf32>
    %452 = math.tanh %451 : vector<64x32xf32>
    %453 = arith.mulf %449, %434 : vector<64x32xf32>
    %454 = arith.mulf %448, %452 : vector<64x32xf32>
    %455 = arith.addf %453, %454 : vector<64x32xf32>
    %456 = math.tanh %455 : vector<64x32xf32>
    %457 = arith.mulf %450, %456 : vector<64x32xf32>
    %458 = arith.truncf %457 : vector<64x32xf32> to vector<64x32xbf16>
    %459 = tpu.concatenate %352, %458 in 1 : vector<64x32xbf16>, vector<64x32xbf16> -> vector<64x64xbf16>
    %c0_116 = arith.constant 0 : index
    %c0_117 = arith.constant 0 : index
    %460 = vector.load %arg19[%c0_116, %c0_117] : memref<64x128xbf16, #tpu.memory_space<vmem>>, vector<64x128xbf16>
    %cst_118 = arith.constant dense<0.000000e+00> : vector<64x128xf32>
    %461 = tpu.matmul %459, %460, %cst_118 {dimension_numbers = #tpu.dot_dimension_numbers<[1], [0], [0], [1], [0, 0, 1, 1], [], []>} : vector<64x64xbf16>, vector<64x128xbf16>, vector<64x128xf32> -> vector<64x128xf32>
    %c0_119 = arith.constant 0 : index
    %c0_120 = arith.constant 0 : index
    %462 = vector.load %arg20[%c0_119, %c0_120] : memref<1x128xf32, #tpu.memory_space<vmem>>, vector<1x128xf32>
    %463 = vector.broadcast %462 : vector<1x128xf32> to vector<64x128xf32>
    %464 = arith.addf %461, %463 : vector<64x128xf32>
    %465 = arith.negf %464 : vector<64x128xf32>
    %466 = math.exp %465 : vector<64x128xf32>
    %cst_121 = arith.constant 1.000000e+00 : f32
    %467 = vector.broadcast %cst_121 : f32 to vector<64x128xf32>
    %468 = arith.addf %467, %466 : vector<64x128xf32>
    %469 = arith.divf %467, %468 : vector<64x128xf32>
    %c0_122 = arith.constant 0 : index
    %c0_123 = arith.constant 0 : index
    %470 = vector.load %arg24[%c0_122, %c0_123] : memref<64x128xf32, #tpu.memory_space<vmem>>, vector<64x128xf32>
    tpu.vector_store %arg24[%c0_122, %c0_123], %469 {strides = array<i32>} : memref<64x128xf32, #tpu.memory_space<vmem>>, vector<64x128xf32>,
    return
  }
}

</mosaic_0001>

<llo_original>
// kernel: graphsage_forward.3
$region0: #{graphsage_forward.3}
  #allocation0 [shape = 'u32[]', space=smem, size = 0x4, offset = 0x4, fixed_abs, tag = 'smem constant byte address 0x4 - core index']
  #allocation1 [shape = 'u32[72,128]{1,0:T(1,128)}', space=vmem, size = 0x9000, scoped, tag = 'internal scratch']
  %s0 = inlined_call_operand.vmem [shape: f32[64,16], index: 0, kind: input, shape index: {}]
  %s1 = inlined_call_operand.vmem [shape: bf16[16,64], index: 1, kind: input, shape index: {}]
  %s2 = inlined_call_operand.vmem [shape: bf16[16,64], index: 2, kind: input, shape index: {}]
  %s3 = inlined_call_operand.vmem [shape: f32[1,64], index: 3, kind: input, shape index: {}]
  %s4 = inlined_call_operand.vmem [shape: bf16[32,32], index: 4, kind: input, shape index: {}]
  %s5 = inlined_call_operand.vmem [shape: f32[1,32], index: 5, kind: input, shape index: {}]
  %s6 = inlined_call_operand.vmem [shape: bf16[32,128], index: 6, kind: input, shape index: {}]
  %s7 = inlined_call_operand.vmem [shape: bf16[32,128], index: 7, kind: input, shape index: {}]
  %s8 = inlined_call_operand.vmem [shape: f32[1,128], index: 8, kind: input, shape index: {}]
  %s9 = inlined_call_operand.vmem [shape: bf16[64,128], index: 9, kind: input, shape index: {}]
  %s10 = inlined_call_operand.vmem [shape: f32[1,128], index: 10, kind: input, shape index: {}]
  %s11 = inlined_call_operand.vmem [shape: bf16[128,512], index: 11, kind: input, shape index: {}]
  %s12 = inlined_call_operand.vmem [shape: bf16[128,512], index: 12, kind: input, shape index: {}]
  %s13 = inlined_call_operand.vmem [shape: f32[1,512], index: 13, kind: input, shape index: {}]
  %s14 = inlined_call_operand.vmem [shape: bf16[256,32], index: 14, kind: input, shape index: {}]
  %s15 = inlined_call_operand.vmem [shape: f32[1,32], index: 15, kind: input, shape index: {}]
  %s16 = inlined_call_operand.vmem [shape: bf16[32,128], index: 16, kind: input, shape index: {}]
  %s17 = inlined_call_operand.vmem [shape: bf16[32,128], index: 17, kind: input, shape index: {}]
  %s18 = inlined_call_operand.vmem [shape: f32[1,128], index: 18, kind: input, shape index: {}]
  %s19 = inlined_call_operand.vmem [shape: bf16[64,128], index: 19, kind: input, shape index: {}]
  %s20 = inlined_call_operand.vmem [shape: f32[1,128], index: 20, kind: input, shape index: {}]
  %s21 = inlined_call_operand.vmem [shape: f32[64,32], index: 21, kind: input, shape index: {}]
  %s22 = inlined_call_operand.vmem [shape: f32[64,128], index: 22, kind: input, shape index: {}]
  %s23 = inlined_call_operand.vmem [shape: f32[64,32], index: 23, kind: input, shape index: {}]
  %s24 = inlined_call_operand.vmem [shape: f32[64,128], index: 24, kind: output, shape index: {}]
  %s25 = sld [smem:[#allocation0]]
  $region106: #{graphsage_forward.3} parent=0
    _
  %s27 = ssub.s32 1, %s25
  %s28 = scalar_select 0, %s27, %s25
  // Predicated region
  $region2: #{graphsage_forward.3} parent=0 // pred_check
    _
  $region3: #{graphsage_forward.3} parent=0 // pred_check_branch
    %30 = sbr.rel (0) target = $region5
  $region4: #{graphsage_forward.3} parent=0 // pred_region
    _
  $region5: #{graphsage_forward.3} parent=0 // pred_fallthru
    _
  // Predicated region
  $region6: #{graphsage_forward.3} parent=0 // pred_check
    _
  $region7: #{graphsage_forward.3} parent=0 // pred_check_branch
    %32 = sbr.rel (0) target = $region9
  $region8: #{graphsage_forward.3} parent=0 // pred_region
    _
  $region9: #{graphsage_forward.3} parent=0 // pred_fallthru
    _
  // Predicated region
  $region10: #{graphsage_forward.3} parent=0 // pred_check
    _
  $region11: #{graphsage_forward.3} parent=0 // pred_check_branch
    %34 = sbr.rel (0) target = $region13
  $region12: #{graphsage_forward.3} parent=0 // pred_region
    _
  $region13: #{graphsage_forward.3} parent=0 // pred_fallthru
    _
  // Predicated region
  $region14: #{graphsage_forward.3} parent=0 // pred_check
    _
  $region15: #{graphsage_forward.3} parent=0 // pred_check_branch
    %36 = sbr.rel (0) target = $region17
  $region16: #{graphsage_forward.3} parent=0 // pred_region
    _
  $region17: #{graphsage_forward.3} parent=0 // pred_fallthru
    _
  // Predicated region
  $region18: #{graphsage_forward.3} parent=0 // pred_check
    _
  $region19: #{graphsage_forward.3} parent=0 // pred_check_branch
    %38 = sbr.rel (0) target = $region21
  $region20: #{graphsage_forward.3} parent=0 // pred_region
    _
  $region21: #{graphsage_forward.3} parent=0 // pred_fallthru
    _
  // Predicated region
  $region22: #{graphsage_forward.3} parent=0 // pred_check
    _
  $region23: #{graphsage_forward.3} parent=0 // pred_check_branch
    %40 = sbr.rel (0) target = $region25
  $region24: #{graphsage_forward.3} parent=0 // pred_region
    _
  $region25: #{graphsage_forward.3} parent=0 // pred_fallthru
    _
  // Predicated region
  $region26: #{graphsage_forward.3} parent=0 // pred_check
    _
  $region27: #{graphsage_forward.3} parent=0 // pred_check_branch
    %42 = sbr.rel (0) target = $region29
  $region28: #{graphsage_forward.3} parent=0 // pred_region
    _
  $region29: #{graphsage_forward.3} parent=0 // pred_fallthru
    _
  // Predicated region
  $region30: #{graphsage_forward.3} parent=0 // pred_check
    _
  $region31: #{graphsage_forward.3} parent=0 // pred_check_branch
    %44 = sbr.rel (0) target = $region33
  $region32: #{graphsage_forward.3} parent=0 // pred_region
    _
  $region33: #{graphsage_forward.3} parent=0 // pred_fallthru
    _
  // Predicated region
  $region34: #{graphsage_forward.3} parent=0 // pred_check
    _
  $region35: #{graphsage_forward.3} parent=0 // pred_check_branch
    %46 = sbr.rel (0) target = $region37
  $region36: #{graphsage_forward.3} parent=0 // pred_region
    _
  $region37: #{graphsage_forward.3} parent=0 // pred_fallthru
    _
  // Predicated region
  $region38: #{graphsage_forward.3} parent=0 // pred_check
    _
  $region39: #{graphsage_forward.3} parent=0 // pred_check_branch
    %48 = sbr.rel (0) target = $region41
  $region40: #{graphsage_forward.3} parent=0 // pred_region
    _
  $region41: #{graphsage_forward.3} parent=0 // pred_fallthru
    _
  // Predicated region
  $region42: #{graphsage_forward.3} parent=0 // pred_check
    _
  $region43: #{graphsage_forward.3} parent=0 // pred_check_branch
    %50 = sbr.rel (0) target = $region45
  $region44: #{graphsage_forward.3} parent=0 // pred_region
    _
  $region45: #{graphsage_forward.3} parent=0 // pred_fallthru
    _
  // Predicated region
  $region46: #{graphsage_forward.3} parent=0 // pred_check
    _
  $region47: #{graphsage_forward.3} parent=0 // pred_check_branch
    %52 = sbr.rel (0) target = $region49
  $region48: #{graphsage_forward.3} parent=0 // pred_region
    _
  $region49: #{graphsage_forward.3} parent=0 // pred_fallthru
    _
  // Predicated region
  $region50: #{graphsage_forward.3} parent=0 // pred_check
    _
  $region51: #{graphsage_forward.3} parent=0 // pred_check_branch
    %54 = sbr.rel (0) target = $region53
  $region52: #{graphsage_forward.3} parent=0 // pred_region
    _
  $region53: #{graphsage_forward.3} parent=0 // pred_fallthru
    _
  // Predicated region
  $region54: #{graphsage_forward.3} parent=0 // pred_check
    _
  $region55: #{graphsage_forward.3} parent=0 // pred_check_branch
    %56 = sbr.rel (0) target = $region57
  $region56: #{graphsage_forward.3} parent=0 // pred_region
    _
  $region57: #{graphsage_forward.3} parent=0 // pred_fallthru
    _
  // Predicated region
  $region58: #{graphsage_forward.3} parent=0 // pred_check
    _
  $region59: #{graphsage_forward.3} parent=0 // pred_check_branch
    %58 = sbr.rel (0) target = $region61
  $region60: #{graphsage_forward.3} parent=0 // pred_region
    _
  $region61: #{graphsage_forward.3} parent=0 // pred_fallthru
    _
  // Predicated region
  $region62: #{graphsage_forward.3} parent=0 // pred_check
    _
  $region63: #{graphsage_forward.3} parent=0 // pred_check_branch
    %60 = sbr.rel (0) target = $region65
  $region64: #{graphsage_forward.3} parent=0 // pred_region
    _
  $region65: #{graphsage_forward.3} parent=0 // pred_fallthru
    _
  // Predicated region
  $region66: #{graphsage_forward.3} parent=0 // pred_check
    _
  $region67: #{graphsage_forward.3} parent=0 // pred_check_branch
    %62 = sbr.rel (0) target = $region69
  $region68: #{graphsage_forward.3} parent=0 // pred_region
    _
  $region69: #{graphsage_forward.3} parent=0 // pred_fallthru
    _
  // Predicated region
  $region70: #{graphsage_forward.3} parent=0 // pred_check
    _
  $region71: #{graphsage_forward.3} parent=0 // pred_check_branch
    %64 = sbr.rel (0) target = $region73
  $region72: #{graphsage_forward.3} parent=0 // pred_region
    _
  $region73: #{graphsage_forward.3} parent=0 // pred_fallthru
    _
  // Predicated region
  $region74: #{graphsage_forward.3} parent=0 // pred_check
    _
  $region75: #{graphsage_forward.3} parent=0 // pred_check_branch
    %66 = sbr.rel (0) target = $region77
  $region76: #{graphsage_forward.3} parent=0 // pred_region
    _
  $region77: #{graphsage_forward.3} parent=0 // pred_fallthru
    _
  // Predicated region
  $region78: #{graphsage_forward.3} parent=0 // pred_check
    _
  $region79: #{graphsage_forward.3} parent=0 // pred_check_branch
    %68 = sbr.rel (0) target = $region81
  $region80: #{graphsage_forward.3} parent=0 // pred_region
    _
  $region81: #{graphsage_forward.3} parent=0 // pred_fallthru
    _
  // Predicated region
  $region82: #{graphsage_forward.3} parent=0 // pred_check
    _
  $region83: #{graphsage_forward.3} parent=0 // pred_check_branch
    %70 = sbr.rel (0) target = $region85
  $region84: #{graphsage_forward.3} parent=0 // pred_region
    _
  $region85: #{graphsage_forward.3} parent=0 // pred_fallthru
    _
  // Predicated region
  $region86: #{graphsage_forward.3} parent=0 // pred_check
    _
  $region87: #{graphsage_forward.3} parent=0 // pred_check_branch
    %72 = sbr.rel (0) target = $region89
  $region88: #{graphsage_forward.3} parent=0 // pred_region
    _
  $region89: #{graphsage_forward.3} parent=0 // pred_fallthru
    _
  // Predicated region
  $region90: #{graphsage_forward.3} parent=0 // pred_check
    _
  $region91: #{graphsage_forward.3} parent=0 // pred_check_branch
    %74 = sbr.rel (0) target = $region93
  $region92: #{graphsage_forward.3} parent=0 // pred_region
    _
  $region93: #{graphsage_forward.3} parent=0 // pred_fallthru
    _
  // Predicated region
  $region94: #{graphsage_forward.3} parent=0 // pred_check
    _
  $region95: #{graphsage_forward.3} parent=0 // pred_check_branch
    %76 = sbr.rel (0) target = $region97
  $region96: #{graphsage_forward.3} parent=0 // pred_region
    _
  $region97: #{graphsage_forward.3} parent=0 // pred_fallthru
    _
  %v78 = vld [vmem:[%s0] sm:$0xff]
  %v79 = vld [vmem:[%s0 + $0x8] sm:$0xff]
  %v80 = vld [vmem:[%s0 + $0x10] sm:$0xff]
  %v81 = vld [vmem:[%s0 + $0x18] sm:$0xff]
  %v82 = vld [vmem:[%s0 + $0x20] sm:$0xff]
  %v83 = vld [vmem:[%s0 + $0x28] sm:$0xff]
  %v84 = vld [vmem:[%s0 + $0x30] sm:$0xff]
  %v85 = vld [vmem:[%s0 + $0x38] sm:$0xff]
  %v86 = vpack.c.bf16 %v78, %v78
  %v87 = vpack.c.bf16 %v79, %v79
  %v88 = vpack.c.bf16 %v80, %v80
  %v89 = vpack.c.bf16 %v81, %v81
  %v90 = vpack.c.bf16 %v82, %v82
  %v91 = vpack.c.bf16 %v83, %v83
  %v92 = vpack.c.bf16 %v84, %v84
  %v93 = vpack.c.bf16 %v85, %v85
  %vm102 = vcmask 1046528
  %v103 = vrot.slane %v78, 1
  %v104 = vrot.slane %v79, 1
  %v105 = vsel %vm102, %v103, %v104
  %v106 = vrot.slane %v80, 1
  %v107 = vsel %vm102, %v104, %v106
  %v108 = vrot.slane %v81, 1
  %v109 = vsel %vm102, %v106, %v108
  %v110 = vrot.slane %v82, 1
  %v111 = vsel %vm102, %v108, %v110
  %v112 = vrot.slane %v83, 1
  %v113 = vsel %vm102, %v110, %v112
  %v114 = vrot.slane %v84, 1
  %v115 = vsel %vm102, %v112, %v114
  %v116 = vrot.slane %v85, 1
  %v117 = vsel %vm102, %v114, %v116
  %v127 = vsel %vm102, %v116, %v103
  %vm128 = vcmask 1045504
  %v129 = vrot.slane %v78, 2
  %v130 = vrot.slane %v79, 2
  %v131 = vsel %vm128, %v129, %v130
  %v132 = vrot.slane %v80, 2
  %v133 = vsel %vm128, %v130, %v132
  %v134 = vrot.slane %v81, 2
  %v135 = vsel %vm128, %v132, %v134
  %v136 = vrot.slane %v82, 2
  %v137 = vsel %vm128, %v134, %v136
  %v138 = vrot.slane %v83, 2
  %v139 = vsel %vm128, %v136, %v138
  %v140 = vrot.slane %v84, 2
  %v141 = vsel %vm128, %v138, %v140
  %v142 = vrot.slane %v85, 2
  %v143 = vsel %vm128, %v140, %v142
  %v153 = vsel %vm128, %v142, %v129
  %vm154 = vcmask 1044480
  %v155 = vrot.slane %v78, 3
  %v156 = vrot.slane %v79, 3
  %v157 = vsel %vm154, %v155, %v156
  %v158 = vrot.slane %v80, 3
  %v159 = vsel %vm154, %v156, %v158
  %v160 = vrot.slane %v81, 3
  %v161 = vsel %vm154, %v158, %v160
  %v162 = vrot.slane %v82, 3
  %v163 = vsel %vm154, %v160, %v162
  %v164 = vrot.slane %v83, 3
  %v165 = vsel %vm154, %v162, %v164
  %v166 = vrot.slane %v84, 3
  %v167 = vsel %vm154, %v164, %v166
  %v168 = vrot.slane %v85, 3
  %v169 = vsel %vm154, %v166, %v168
  %v179 = vsel %vm154, %v168, %v155
  %vm180 = vcmask 1043456
  %v181 = vrot.slane %v78, 4
  %v182 = vrot.slane %v79, 4
  %v183 = vsel %vm180, %v181, %v182
  %v184 = vrot.slane %v80, 4
  %v185 = vsel %vm180, %v182, %v184
  %v186 = vrot.slane %v81, 4
  %v187 = vsel %vm180, %v184, %v186
  %v188 = vrot.slane %v82, 4
  %v189 = vsel %vm180, %v186, %v188
  %v190 = vrot.slane %v83, 4
  %v191 = vsel %vm180, %v188, %v190
  %v192 = vrot.slane %v84, 4
  %v193 = vsel %vm180, %v190, %v192
  %v194 = vrot.slane %v85, 4
  %v195 = vsel %vm180, %v192, %v194
  %v205 = vsel %vm180, %v194, %v181
  %v206 = vpack.c.bf16 %v107, %v105
  %v207 = vpack.c.bf16 %v111, %v109
  %v208 = vpack.c.bf16 %v115, %v113
  %v209 = vpack.c.bf16 %v127, %v117
  %v210 = vpack.c.bf16 %v133, %v131
  %v211 = vpack.c.bf16 %v137, %v135
  %v212 = vpack.c.bf16 %v141, %v139
  %v213 = vpack.c.bf16 %v153, %v143
  %v214 = vpack.c.bf16 %v159, %v157
  %v215 = vpack.c.bf16 %v163, %v161
  %v216 = vpack.c.bf16 %v167, %v165
  %v217 = vpack.c.bf16 %v179, %v169
  %v218 = vpack.c.bf16 %v185, %v183
  %v219 = vpack.c.bf16 %v189, %v187
  %v220 = vpack.c.bf16 %v193, %v191
  %v221 = vpack.c.bf16 %v205, %v195
  %v222 = vld [vmem:[%s1] sm:$0xf]
  %v223 = vld [vmem:[%s1 + $0x4] sm:$0xf]
  %v224 = vld [vmem:[%s3] sm:$0x1]
  %v226 = vperm.slane %v224, 0
  %v230 = vunpack.c.l.b16 %v222
  %v231 = vunpack.c.l.b16 %v223
  %v232 = vpack.c.b16 %v231, %v230
  %vm234 = vcmask 130048
  %v236 = vsel %vm234, %v206, 0
  %v239 = vsel %vm234, %v207, 0
  %v242 = vsel %vm234, %v208, 0
  %v245 = vsel %vm234, %v209, 0
  %v248 = vsel %vm234, %v210, 0
  %v251 = vsel %vm234, %v211, 0
  %v254 = vsel %vm234, %v212, 0
  %v257 = vsel %vm234, %v213, 0
  %v260 = vsel %vm234, %v214, 0
  %v263 = vsel %vm234, %v215, 0
  %v266 = vsel %vm234, %v216, 0
  %v269 = vsel %vm234, %v217, 0
  %v272 = vsel %vm234, %v218, 0
  %v275 = vsel %vm234, %v219, 0
  %v278 = vsel %vm234, %v220, 0
  %v281 = vsel %vm234, %v221, 0
  %283 = vmatpush.bf16.msra.mxu0 0
  %284 = vmatpush.bf16.msra.mxu0 0
  %285 = vmatpush.bf16.msra.mxu0 0
  %286 = vmatpush.bf16.msra.mxu0 0
  %287 = vmatpush.bf16.msra.mxu0 0
  %288 = vmatpush.bf16.msra.mxu0 0
  %289 = vmatpush.bf16.msra.mxu0 0
  %290 = vmatpush.bf16.msra.mxu0 %v232
  %291 = vmatmul.bf16.gmra.mxu0 %v236
  %v292 = vpop.f32.mrf.mxu0
  %v293 = vadd.f32 %v226, %v292
  %v294 = vpop.f32.mrf.mxu0
  %v295 = vadd.f32 %v226, %v294
  %296 = vmatmul.bf16.gmra.mxu0 %v239
  %v297 = vpop.f32.mrf.mxu0
  %v298 = vadd.f32 %v226, %v297
  %v299 = vpop.f32.mrf.mxu0
  %v300 = vadd.f32 %v226, %v299
  %301 = vmatmul.bf16.gmra.mxu0 %v242
  %v302 = vpop.f32.mrf.mxu0
  %v303 = vadd.f32 %v226, %v302
  %v304 = vpop.f32.mrf.mxu0
  %v305 = vadd.f32 %v226, %v304
  %306 = vmatmul.bf16.gmra.mxu0 %v245
  %v307 = vpop.f32.mrf.mxu0
  %v308 = vadd.f32 %v226, %v307
  %v309 = vpop.f32.mrf.mxu0
  %v310 = vadd.f32 %v226, %v309
  %311 = vmatmul.bf16.gmra.mxu0 %v248
  %v312 = vpop.f32.mrf.mxu0
  %v313 = vadd.f32 %v226, %v312
  %v314 = vpop.f32.mrf.mxu0
  %v315 = vadd.f32 %v226, %v314
  %316 = vmatmul.bf16.gmra.mxu0 %v251
  %v317 = vpop.f32.mrf.mxu0
  %v318 = vadd.f32 %v226, %v317
  %v319 = vpop.f32.mrf.mxu0
  %v320 = vadd.f32 %v226, %v319
  %321 = vmatmul.bf16.gmra.mxu0 %v254
  %v322 = vpop.f32.mrf.mxu0
  %v323 = vadd.f32 %v226, %v322
  %v324 = vpop.f32.mrf.mxu0
  %v325 = vadd.f32 %v226, %v324
  %326 = vmatmul.bf16.gmra.mxu0 %v257
  %v327 = vpop.f32.mrf.mxu0
  %v328 = vadd.f32 %v226, %v327
  %v329 = vpop.f32.mrf.mxu0
  %v330 = vadd.f32 %v226, %v329
  %331 = vmatmul.bf16.gmra.mxu0 %v260
  %v332 = vpop.f32.mrf.mxu0
  %v333 = vadd.f32 %v226, %v332
  %v334 = vpop.f32.mrf.mxu0
  %v335 = vadd.f32 %v226, %v334
  %336 = vmatmul.bf16.gmra.mxu0 %v263
  %v337 = vpop.f32.mrf.mxu0
  %v338 = vadd.f32 %v226, %v337
  %v339 = vpop.f32.mrf.mxu0
  %v340 = vadd.f32 %v226, %v339
  %341 = vmatmul.bf16.gmra.mxu0 %v266
  %v342 = vpop.f32.mrf.mxu0
  %v343 = vadd.f32 %v226, %v342
  %v344 = vpop.f32.mrf.mxu0
  %v345 = vadd.f32 %v226, %v344
  %346 = vmatmul.bf16.gmra.mxu0 %v269
  %v347 = vpop.f32.mrf.mxu0
  %v348 = vadd.f32 %v226, %v347
  %v349 = vpop.f32.mrf.mxu0
  %v350 = vadd.f32 %v226, %v349
  %351 = vmatmul.bf16.gmra.mxu0 %v272
  %v352 = vpop.f32.mrf.mxu0
  %v353 = vadd.f32 %v226, %v352
  %v354 = vpop.f32.mrf.mxu0
  %v355 = vadd.f32 %v226, %v354
  %356 = vmatmul.bf16.gmra.mxu0 %v275
  %v357 = vpop.f32.mrf.mxu0
  %v358 = vadd.f32 %v226, %v357
  %v359 = vpop.f32.mrf.mxu0
  %v360 = vadd.f32 %v226, %v359
  %361 = vmatmul.bf16.gmra.mxu0 %v278
  %v362 = vpop.f32.mrf.mxu0
  %v363 = vadd.f32 %v226, %v362
  %v364 = vpop.f32.mrf.mxu0
  %v365 = vadd.f32 %v226, %v364
  %366 = vmatmul.bf16.gmra.mxu0 %v281
  %v367 = vpop.f32.mrf.mxu0
  %v368 = vadd.f32 %v226, %v367
  %v369 = vpop.f32.mrf.mxu0
  %v370 = vadd.f32 %v226, %v369
  %371 = vdwg.mxu0
  %v372 = vld [vmem:[%s2] sm:$0xf]
  %v373 = vld [vmem:[%s2 + $0x4] sm:$0xf]
  %v376 = vunpack.c.l.b16 %v372
  %v377 = vunpack.c.l.b16 %v373
  %v378 = vpack.c.b16 %v377, %v376
  %v381 = vsel %vm234, 0, 0
  %383 = vmatpush.bf16.msra.mxu0 0
  %384 = vmatpush.bf16.msra.mxu0 0
  %385 = vmatpush.bf16.msra.mxu0 0
  %386 = vmatpush.bf16.msra.mxu0 0
  %387 = vmatpush.bf16.msra.mxu0 0
  %388 = vmatpush.bf16.msra.mxu0 0
  %389 = vmatpush.bf16.msra.mxu0 0
  %390 = vmatpush.bf16.msra.mxu0 %v378
  %391 = vmatmul.bf16.gmra.mxu0 %v381
  %v392 = vpop.f32.mrf.mxu0
  %v393 = vadd.f32 0.0, %v392
  %v394 = vpop.f32.mrf.mxu0
  %v395 = vadd.f32 0.0, %v394
  %396 = vmatmul.bf16.gmra.mxu0 %v381
  %v397 = vpop.f32.mrf.mxu0
  %v398 = vadd.f32 0.0, %v397
  %v399 = vpop.f32.mrf.mxu0
  %v400 = vadd.f32 0.0, %v399
  %401 = vmatmul.bf16.gmra.mxu0 %v381
  %v402 = vpop.f32.mrf.mxu0
  %v403 = vadd.f32 0.0, %v402
  %v404 = vpop.f32.mrf.mxu0
  %v405 = vadd.f32 0.0, %v404
  %406 = vmatmul.bf16.gmra.mxu0 %v381
  %v407 = vpop.f32.mrf.mxu0
  %v408 = vadd.f32 0.0, %v407
  %v409 = vpop.f32.mrf.mxu0
  %v410 = vadd.f32 0.0, %v409
  %411 = vdwg.mxu0
  %v412 = vadd.f32 %v293, %v393
  %v413 = vadd.f32 %v295, %v395
  %v414 = vadd.f32 %v298, %v398
  %v415 = vadd.f32 %v300, %v400
  %v416 = vadd.f32 %v303, %v403
  %v417 = vadd.f32 %v305, %v405
  %v418 = vadd.f32 %v308, %v408
  %v419 = vadd.f32 %v310, %v410
  %v420 = vxor.u32 %v412, 2147483648
  %v421 = vxor.u32 %v413, 2147483648
  %v422 = vxor.u32 %v414, 2147483648
  %v423 = vxor.u32 %v415, 2147483648
  %v424 = vxor.u32 %v416, 2147483648
  %v425 = vxor.u32 %v417, 2147483648
  %v426 = vxor.u32 %v418, 2147483648
  %v427 = vxor.u32 %v419, 2147483648
  %v428 = vmul.f32 %v420, 1.442695
  %v429 = vpow.pop %v428
  %v430 = vmul.f32 %v421, 1.442695
  %v431 = vpow.pop %v430
  %v432 = vmul.f32 %v422, 1.442695
  %v433 = vpow.pop %v432
  %v434 = vmul.f32 %v423, 1.442695
  %v435 = vpow.pop %v434
  %v436 = vmul.f32 %v424, 1.442695
  %v437 = vpow.pop %v436
  %v438 = vmul.f32 %v425, 1.442695
  %v439 = vpow.pop %v438
  %v440 = vmul.f32 %v426, 1.442695
  %v441 = vpow.pop %v440
  %v442 = vmul.f32 %v427, 1.442695
  %v443 = vpow.pop %v442
  %v444 = vadd.f32 %v429, 1.0
  %v445 = vadd.f32 %v431, 1.0
  %v446 = vadd.f32 %v433, 1.0
  %v447 = vadd.f32 %v435, 1.0
  %v448 = vadd.f32 %v437, 1.0
  %v449 = vadd.f32 %v439, 1.0
  %v450 = vadd.f32 %v441, 1.0
  %v451 = vadd.f32 %v443, 1.0
  %v452 = vrcp.pop %v444
  %v453 = vmul.f32 %v444, %v452
  %v454 = vsub.f32 1.0, %v453
  %v455 = vmul.f32 %v452, %v454
  %v456 = vadd.f32 %v452, %v455
  %vm457 = vweird.f32 %v444
  %vm458 = vweird.f32 %v452
  %vm459 = vmor %vm457, %vm458
  %v460 = vsel %vm459, %v452, %v456
  %v461 = vand.u32 2147483647, %v444
  %vm462 = vcmp.eq.f32.partialorder %v461, 8.507059e+37
  %v463 = vand.u32 %v444, 2147483648
  %v464 = vor.u32 1.1754944e-38, %v463
  %v465 = vsel %vm462, %v464, %v460
  %v466 = vmul.f32 1.0, %v465
  %v467 = vrcp.pop %v445
  %v468 = vmul.f32 %v445, %v467
  %v469 = vsub.f32 1.0, %v468
  %v470 = vmul.f32 %v467, %v469
  %v471 = vadd.f32 %v467, %v470
  %vm472 = vweird.f32 %v445
  %vm473 = vweird.f32 %v467
  %vm474 = vmor %vm472, %vm473
  %v475 = vsel %vm474, %v467, %v471
  %v476 = vand.u32 2147483647, %v445
  %vm477 = vcmp.eq.f32.partialorder %v476, 8.507059e+37
  %v478 = vand.u32 %v445, 2147483648
  %v479 = vor.u32 1.1754944e-38, %v478
  %v480 = vsel %vm477, %v479, %v475
  %v481 = vmul.f32 1.0, %v480
  %v482 = vrcp.pop %v446
  %v483 = vmul.f32 %v446, %v482
  %v484 = vsub.f32 1.0, %v483
  %v485 = vmul.f32 %v482, %v484
  %v486 = vadd.f32 %v482, %v485
  %vm487 = vweird.f32 %v446
  %vm488 = vweird.f32 %v482
  %vm489 = vmor %vm487, %vm488
  %v490 = vsel %vm489, %v482, %v486
  %v491 = vand.u32 2147483647, %v446
  %vm492 = vcmp.eq.f32.partialorder %v491, 8.507059e+37
  %v493 = vand.u32 %v446, 2147483648
  %v494 = vor.u32 1.1754944e-38, %v493
  %v495 = vsel %vm492, %v494, %v490
  %v496 = vmul.f32 1.0, %v495
  %v497 = vrcp.pop %v447
  %v498 = vmul.f32 %v447, %v497
  %v499 = vsub.f32 1.0, %v498
  %v500 = vmul.f32 %v497, %v499
  %v501 = vadd.f32 %v497, %v500
  %vm502 = vweird.f32 %v447
  %vm503 = vweird.f32 %v497
  %vm504 = vmor %vm502, %vm503
  %v505 = vsel %vm504, %v497, %v501
  %v506 = vand.u32 2147483647, %v447
  %vm507 = vcmp.eq.f32.partialorder %v506, 8.507059e+37
  %v508 = vand.u32 %v447, 2147483648
  %v509 = vor.u32 1.1754944e-38, %v508
  %v510 = vsel %vm507, %v509, %v505
  %v511 = vmul.f32 1.0, %v510
  %v512 = vrcp.pop %v448
  %v513 = vmul.f32 %v448, %v512
  %v514 = vsub.f32 1.0, %v513
  %v515 = vmul.f32 %v512, %v514
  %v516 = vadd.f32 %v512, %v515
  %vm517 = vweird.f32 %v448
  %vm518 = vweird.f32 %v512
  %vm519 = vmor %vm517, %vm518
  %v520 = vsel %vm519, %v512, %v516
  %v521 = vand.u32 2147483647, %v448
  %vm522 = vcmp.eq.f32.partialorder %v521, 8.507059e+37
  %v523 = vand.u32 %v448, 2147483648
  %v524 = vor.u32 1.1754944e-38, %v523
  %v525 = vsel %vm522, %v524, %v520
  %v526 = vmul.f32 1.0, %v525
  %v527 = vrcp.pop %v449
  %v528 = vmul.f32 %v449, %v527
  %v529 = vsub.f32 1.0, %v528
  %v530 = vmul.f32 %v527, %v529
  %v531 = vadd.f32 %v527, %v530
  %vm532 = vweird.f32 %v449
  %vm533 = vweird.f32 %v527
  %vm534 = vmor %vm532, %vm533
  %v535 = vsel %vm534, %v527, %v531
  %v536 = vand.u32 2147483647, %v449
  %vm537 = vcmp.eq.f32.partialorder %v536, 8.507059e+37
  %v538 = vand.u32 %v449, 2147483648
  %v539 = vor.u32 1.1754944e-38, %v538
  %v540 = vsel %vm537, %v539, %v535
  %v541 = vmul.f32 1.0, %v540
  %v542 = vrcp.pop %v450
  %v543 = vmul.f32 %v450, %v542
  %v544 = vsub.f32 1.0, %v543
  %v545 = vmul.f32 %v542, %v544
  %v546 = vadd.f32 %v542, %v545
  %vm547 = vweird.f32 %v450
  %vm548 = vweird.f32 %v542
  %vm549 = vmor %vm547, %vm548
  %v550 = vsel %vm549, %v542, %v546
  %v551 = vand.u32 2147483647, %v450
  %vm552 = vcmp.eq.f32.partialorder %v551, 8.507059e+37
  %v553 = vand.u32 %v450, 2147483648
  %v554 = vor.u32 1.1754944e-38, %v553
  %v555 = vsel %vm552, %v554, %v550
  %v556 = vmul.f32 1.0, %v555
  %v557 = vrcp.pop %v451
  %v558 = vmul.f32 %v451, %v557
  %v559 = vsub.f32 1.0, %v558
  %v560 = vmul.f32 %v557, %v559
  %v561 = vadd.f32 %v557, %v560
  %vm562 = vweird.f32 %v451
  %vm563 = vweird.f32 %v557
  %vm564 = vmor %vm562, %vm563
  %v565 = vsel %vm564, %v557, %v561
  %v566 = vand.u32 2147483647, %v451
  %vm567 = vcmp.eq.f32.partialorder %v566, 8.507059e+37
  %v568 = vand.u32 %v451, 2147483648
  %v569 = vor.u32 1.1754944e-38, %v568
  %v570 = vsel %vm567, %v569, %v565
  %v571 = vmul.f32 1.0, %v570
  %v572 = vtanh.pop %v412
  %v573 = vtanh.pop %v413
  %v574 = vtanh.pop %v414
  %v575 = vtanh.pop %v415
  %v576 = vtanh.pop %v416
  %v577 = vtanh.pop %v417
  %v578 = vtanh.pop %v418
  %v579 = vtanh.pop %v419
  %v580 = vmul.f32 %v466, 0.0
  %v581 = vmul.f32 %v481, 0.0
  %v582 = vmul.f32 %v496, 0.0
  %v583 = vmul.f32 %v511, 0.0
  %v584 = vmul.f32 %v526, 0.0
  %v585 = vmul.f32 %v541, 0.0
  %v586 = vmul.f32 %v556, 0.0
  %v587 = vmul.f32 %v571, 0.0
  %596 = vrot.lane.b32.xlu0 %v572, 80
  %v597 = vpop.permute.xlu0 %596
  %598 = vrot.lane.b32.xlu0 %v573, 80
  %v599 = vpop.permute.xlu0 %598
  %600 = vrot.lane.b32.xlu0 %v574, 80
  %v601 = vpop.permute.xlu0 %600
  %602 = vrot.lane.b32.xlu0 %v575, 80
  %v603 = vpop.permute.xlu0 %602
  %604 = vrot.lane.b32.xlu0 %v576, 80
  %v605 = vpop.permute.xlu0 %604
  %606 = vrot.lane.b32.xlu0 %v577, 80
  %v607 = vpop.permute.xlu0 %606
  %608 = vrot.lane.b32.xlu0 %v578, 80
  %v609 = vpop.permute.xlu0 %608
  %610 = vrot.lane.b32.xlu0 %v579, 80
  %v611 = vpop.permute.xlu0 %610
  %v620 = vmul.f32 %v466, %v597
  %v621 = vmul.f32 %v481, %v599
  %v622 = vmul.f32 %v496, %v601
  %v623 = vmul.f32 %v511, %v603
  %v624 = vmul.f32 %v526, %v605
  %v625 = vmul.f32 %v541, %v607
  %v626 = vmul.f32 %v556, %v609
  %v627 = vmul.f32 %v571, %v611
  %636 = vrot.lane.b32.xlu0 %v620, 16
  %v637 = vpop.permute.xlu0 %636
  %638 = vrot.lane.b32.xlu0 %v621, 16
  %v639 = vpop.permute.xlu0 %638
  %640 = vrot.lane.b32.xlu0 %v622, 16
  %v641 = vpop.permute.xlu0 %640
  %642 = vrot.lane.b32.xlu0 %v623, 16
  %v643 = vpop.permute.xlu0 %642
  %644 = vrot.lane.b32.xlu0 %v624, 16
  %v645 = vpop.permute.xlu0 %644
  %646 = vrot.lane.b32.xlu0 %v625, 16
  %v647 = vpop.permute.xlu0 %646
  %648 = vrot.lane.b32.xlu0 %v626, 16
  %v649 = vpop.permute.xlu0 %648
  %650 = vrot.lane.b32.xlu0 %v627, 16
  %v651 = vpop.permute.xlu0 %650
  %v660 = vadd.f32 %v580, %v637
  %v661 = vadd.f32 %v581, %v639
  %v662 = vadd.f32 %v582, %v641
  %v663 = vadd.f32 %v583, %v643
  %v664 = vadd.f32 %v584, %v645
  %v665 = vadd.f32 %v585, %v647
  %v666 = vadd.f32 %v586, %v649
  %v667 = vadd.f32 %v587, %v651
  %v668 = vtanh.pop %v660
  %v669 = vtanh.pop %v661
  %v670 = vtanh.pop %v662
  %v671 = vtanh.pop %v663
  %v672 = vtanh.pop %v664
  %v673 = vtanh.pop %v665
  %v674 = vtanh.pop %v666
  %v675 = vtanh.pop %v667
  %684 = vrot.lane.b32.xlu0 %v668, 16
  %v685 = vpop.permute.xlu0 %684
  %686 = vrot.lane.b32.xlu0 %v669, 16
  %v687 = vpop.permute.xlu0 %686
  %688 = vrot.lane.b32.xlu0 %v670, 16
  %v689 = vpop.permute.xlu0 %688
  %690 = vrot.lane.b32.xlu0 %v671, 16
  %v691 = vpop.permute.xlu0 %690
  %692 = vrot.lane.b32.xlu0 %v672, 16
  %v693 = vpop.permute.xlu0 %692
  %694 = vrot.lane.b32.xlu0 %v673, 16
  %v695 = vpop.permute.xlu0 %694
  %696 = vrot.lane.b32.xlu0 %v674, 16
  %v697 = vpop.permute.xlu0 %696
  %698 = vrot.lane.b32.xlu0 %v675, 16
  %v699 = vpop.permute.xlu0 %698
  %v708 = vmul.f32 %v466, %v685
  %v709 = vmul.f32 %v481, %v687
  %v710 = vmul.f32 %v496, %v689
  %v711 = vmul.f32 %v511, %v691
  %v712 = vmul.f32 %v526, %v693
  %v713 = vmul.f32 %v541, %v695
  %v714 = vmul.f32 %v556, %v697
  %v715 = vmul.f32 %v571, %v699
  %v716 = vpack.c.bf16 %v709, %v708
  %v717 = vpack.c.bf16 %v711, %v710
  %v718 = vpack.c.bf16 %v713, %v712
  %v719 = vpack.c.bf16 %v715, %v714
  %724 = vrot.lane.b32.xlu0 %v716, 96
  %v725 = vpop.permute.xlu0 %724
  %726 = vrot.lane.b32.xlu0 %v717, 96
  %v727 = vpop.permute.xlu0 %726
  %728 = vrot.lane.b32.xlu0 %v718, 96
  %v729 = vpop.permute.xlu0 %728
  %730 = vrot.lane.b32.xlu0 %v719, 96
  %v731 = vpop.permute.xlu0 %730
  %v733 = vsel %vm234, %v725, 0
  %v736 = vsel %vm234, %v727, 0
  %v739 = vsel %vm234, %v729, 0
  %v742 = vsel %vm234, %v731, 0
  %744 = vmatpush.bf16.msra.mxu0 0
  %745 = vmatpush.bf16.msra.mxu0 0
  %746 = vmatpush.bf16.msra.mxu0 0
  %747 = vmatpush.bf16.msra.mxu0 0
  %748 = vmatpush.bf16.msra.mxu0 0
  %749 = vmatpush.bf16.msra.mxu0 0
  %750 = vmatpush.bf16.msra.mxu0 0
  %751 = vmatpush.bf16.msra.mxu0 %v378
  %752 = vmatmul.bf16.gmra.mxu0 %v733
  %v753 = vpop.f32.mrf.mxu0
  %v754 = vadd.f32 0.0, %v753
  %v755 = vpop.f32.mrf.mxu0
  %v756 = vadd.f32 0.0, %v755
  %757 = vmatmul.bf16.gmra.mxu0 %v736
  %v758 = vpop.f32.mrf.mxu0
  %v759 = vadd.f32 0.0, %v758
  %v760 = vpop.f32.mrf.mxu0
  %v761 = vadd.f32 0.0, %v760
  %762 = vmatmul.bf16.gmra.mxu0 %v739
  %v763 = vpop.f32.mrf.mxu0
  %v764 = vadd.f32 0.0, %v763
  %v765 = vpop.f32.mrf.mxu0
  %v766 = vadd.f32 0.0, %v765
  %767 = vmatmul.bf16.gmra.mxu0 %v742
  %v768 = vpop.f32.mrf.mxu0
  %v769 = vadd.f32 0.0, %v768
  %v770 = vpop.f32.mrf.mxu0
  %v771 = vadd.f32 0.0, %v770
  %772 = vdwg.mxu0
  %v773 = vadd.f32 %v313, %v754
  %v774 = vadd.f32 %v315, %v756
  %v775 = vadd.f32 %v318, %v759
  %v776 = vadd.f32 %v320, %v761
  %v777 = vadd.f32 %v323, %v764
  %v778 = vadd.f32 %v325, %v766
  %v779 = vadd.f32 %v328, %v769
  %v780 = vadd.f32 %v330, %v771
  %v781 = vxor.u32 %v773, 2147483648
  %v782 = vxor.u32 %v774, 2147483648
  %v783 = vxor.u32 %v775, 2147483648
  %v784 = vxor.u32 %v776, 2147483648
  %v785 = vxor.u32 %v777, 2147483648
  %v786 = vxor.u32 %v778, 2147483648
  %v787 = vxor.u32 %v779, 2147483648
  %v788 = vxor.u32 %v780, 2147483648
  %v789 = vmul.f32 %v781, 1.442695
  %v790 = vpow.pop %v789
  %v791 = vmul.f32 %v782, 1.442695
  %v792 = vpow.pop %v791
  %v793 = vmul.f32 %v783, 1.442695
  %v794 = vpow.pop %v793
  %v795 = vmul.f32 %v784, 1.442695
  %v796 = vpow.pop %v795
  %v797 = vmul.f32 %v785, 1.442695
  %v798 = vpow.pop %v797
  %v799 = vmul.f32 %v786, 1.442695
  %v800 = vpow.pop %v799
  %v801 = vmul.f32 %v787, 1.442695
  %v802 = vpow.pop %v801
  %v803 = vmul.f32 %v788, 1.442695
  %v804 = vpow.pop %v803
  %v805 = vadd.f32 %v790, 1.0
  %v806 = vadd.f32 %v792, 1.0
  %v807 = vadd.f32 %v794, 1.0
  %v808 = vadd.f32 %v796, 1.0
  %v809 = vadd.f32 %v798, 1.0
  %v810 = vadd.f32 %v800, 1.0
  %v811 = vadd.f32 %v802, 1.0
  %v812 = vadd.f32 %v804, 1.0
  %v813 = vrcp.pop %v805
  %v814 = vmul.f32 %v805, %v813
  %v815 = vsub.f32 1.0, %v814
  %v816 = vmul.f32 %v813, %v815
  %v817 = vadd.f32 %v813, %v816
  %vm818 = vweird.f32 %v805
  %vm819 = vweird.f32 %v813
  %vm820 = vmor %vm818, %vm819
  %v821 = vsel %vm820, %v813, %v817
  %v822 = vand.u32 2147483647, %v805
  %vm823 = vcmp.eq.f32.partialorder %v822, 8.507059e+37
  %v824 = vand.u32 %v805, 2147483648
  %v825 = vor.u32 1.1754944e-38, %v824
  %v826 = vsel %vm823, %v825, %v821
  %v827 = vmul.f32 1.0, %v826
  %v828 = vrcp.pop %v806
  %v829 = vmul.f32 %v806, %v828
  %v830 = vsub.f32 1.0, %v829
  %v831 = vmul.f32 %v828, %v830
  %v832 = vadd.f32 %v828, %v831
  %vm833 = vweird.f32 %v806
  %vm834 = vweird.f32 %v828
  %vm835 = vmor %vm833, %vm834
  %v836 = vsel %vm835, %v828, %v832
  %v837 = vand.u32 2147483647, %v806
  %vm838 = vcmp.eq.f32.partialorder %v837, 8.507059e+37
  %v839 = vand.u32 %v806, 2147483648
  %v840 = vor.u32 1.1754944e-38, %v839
  %v841 = vsel %vm838, %v840, %v836
  %v842 = vmul.f32 1.0, %v841
  %v843 = vrcp.pop %v807
  %v844 = vmul.f32 %v807, %v843
  %v845 = vsub.f32 1.0, %v844
  %v846 = vmul.f32 %v843, %v845
  %v847 = vadd.f32 %v843, %v846
  %vm848 = vweird.f32 %v807
  %vm849 = vweird.f32 %v843
  %vm850 = vmor %vm848, %vm849
  %v851 = vsel %vm850, %v843, %v847
  %v852 = vand.u32 2147483647, %v807
  %vm853 = vcmp.eq.f32.partialorder %v852, 8.507059e+37
  %v854 = vand.u32 %v807, 2147483648
  %v855 = vor.u32 1.1754944e-38, %v854
  %v856 = vsel %vm853, %v855, %v851
  %v857 = vmul.f32 1.0, %v856
  %v858 = vrcp.pop %v808
  %v859 = vmul.f32 %v808, %v858
  %v860 = vsub.f32 1.0, %v859
  %v861 = vmul.f32 %v858, %v860
  %v862 = vadd.f32 %v858, %v861
  %vm863 = vweird.f32 %v808
  %vm864 = vweird.f32 %v858
  %vm865 = vmor %vm863, %vm864
  %v866 = vsel %vm865, %v858, %v862
  %v867 = vand.u32 2147483647, %v808
  %vm868 = vcmp.eq.f32.partialorder %v867, 8.507059e+37
  %v869 = vand.u32 %v808, 2147483648
  %v870 = vor.u32 1.1754944e-38, %v869
  %v871 = vsel %vm868, %v870, %v866
  %v872 = vmul.f32 1.0, %v871
  %v873 = vrcp.pop %v809
  %v874 = vmul.f32 %v809, %v873
  %v875 = vsub.f32 1.0, %v874
  %v876 = vmul.f32 %v873, %v875
  %v877 = vadd.f32 %v873, %v876
  %vm878 = vweird.f32 %v809
  %vm879 = vweird.f32 %v873
  %vm880 = vmor %vm878, %vm879
  %v881 = vsel %vm880, %v873, %v877
  %v882 = vand.u32 2147483647, %v809
  %vm883 = vcmp.eq.f32.partialorder %v882, 8.507059e+37
  %v884 = vand.u32 %v809, 2147483648
  %v885 = vor.u32 1.1754944e-38, %v884
  %v886 = vsel %vm883, %v885, %v881
  %v887 = vmul.f32 1.0, %v886
  %v888 = vrcp.pop %v810
  %v889 = vmul.f32 %v810, %v888
  %v890 = vsub.f32 1.0, %v889
  %v891 = vmul.f32 %v888, %v890
  %v892 = vadd.f32 %v888, %v891
  %vm893 = vweird.f32 %v810
  %vm894 = vweird.f32 %v888
  %vm895 = vmor %vm893, %vm894
  %v896 = vsel %vm895, %v888, %v892
  %v897 = vand.u32 2147483647, %v810
  %vm898 = vcmp.eq.f32.partialorder %v897, 8.507059e+37
  %v899 = vand.u32 %v810, 2147483648
  %v900 = vor.u32 1.1754944e-38, %v899
  %v901 = vsel %vm898, %v900, %v896
  %v902 = vmul.f32 1.0, %v901
  %v903 = vrcp.pop %v811
  %v904 = vmul.f32 %v811, %v903
  %v905 = vsub.f32 1.0, %v904
  %v906 = vmul.f32 %v903, %v905
  %v907 = vadd.f32 %v903, %v906
  %vm908 = vweird.f32 %v811
  %vm909 = vweird.f32 %v903
  %vm910 = vmor %vm908, %vm909
  %v911 = vsel %vm910, %v903, %v907
  %v912 = vand.u32 2147483647, %v811
  %vm913 = vcmp.eq.f32.partialorder %v912, 8.507059e+37
  %v914 = vand.u32 %v811, 2147483648
  %v915 = vor.u32 1.1754944e-38, %v914
  %v916 = vsel %vm913, %v915, %v911
  %v917 = vmul.f32 1.0, %v916
  %v918 = vrcp.pop %v812
  %v919 = vmul.f32 %v812, %v918
  %v920 = vsub.f32 1.0, %v919
  %v921 = vmul.f32 %v918, %v920
  %v922 = vadd.f32 %v918, %v921
  %vm923 = vweird.f32 %v812
  %vm924 = vweird.f32 %v918
  %vm925 = vmor %vm923, %vm924
  %v926 = vsel %vm925, %v918, %v922
  %v927 = vand.u32 2147483647, %v812
  %vm928 = vcmp.eq.f32.partialorder %v927, 8.507059e+37
  %v929 = vand.u32 %v812, 2147483648
  %v930 = vor.u32 1.1754944e-38, %v929
  %v931 = vsel %vm928, %v930, %v926
  %v932 = vmul.f32 1.0, %v931
  %v933 = vtanh.pop %v773
  %v934 = vtanh.pop %v774
  %v935 = vtanh.pop %v775
  %v936 = vtanh.pop %v776
  %v937 = vtanh.pop %v777
  %v938 = vtanh.pop %v778
  %v939 = vtanh.pop %v779
  %v940 = vtanh.pop %v780
  %v941 = vmul.f32 %v827, %v660
  %v942 = vmul.f32 %v842, %v661
  %v943 = vmul.f32 %v857, %v662
  %v944 = vmul.f32 %v872, %v663
  %v945 = vmul.f32 %v887, %v664
  %v946 = vmul.f32 %v902, %v665
  %v947 = vmul.f32 %v917, %v666
  %v948 = vmul.f32 %v932, %v667
  %957 = vrot.lane.b32.xlu0 %v933, 80
  %v958 = vpop.permute.xlu0 %957
  %959 = vrot.lane.b32.xlu0 %v934, 80
  %v960 = vpop.permute.xlu0 %959
  %961 = vrot.lane.b32.xlu0 %v935, 80
  %v962 = vpop.permute.xlu0 %961
  %963 = vrot.lane.b32.xlu0 %v936, 80
  %v964 = vpop.permute.xlu0 %963
  %965 = vrot.lane.b32.xlu0 %v937, 80
  %v966 = vpop.permute.xlu0 %965
  %967 = vrot.lane.b32.xlu0 %v938, 80
  %v968 = vpop.permute.xlu0 %967
  %969 = vrot.lane.b32.xlu0 %v939, 80
  %v970 = vpop.permute.xlu0 %969
  %971 = vrot.lane.b32.xlu0 %v940, 80
  %v972 = vpop.permute.xlu0 %971
  %v981 = vmul.f32 %v827, %v958
  %v982 = vmul.f32 %v842, %v960
  %v983 = vmul.f32 %v857, %v962
  %v984 = vmul.f32 %v872, %v964
  %v985 = vmul.f32 %v887, %v966
  %v986 = vmul.f32 %v902, %v968
  %v987 = vmul.f32 %v917, %v970
  %v988 = vmul.f32 %v932, %v972
  %997 = vrot.lane.b32.xlu0 %v981, 16
  %v998 = vpop.permute.xlu0 %997
  %999 = vrot.lane.b32.xlu0 %v982, 16
  %v1000 = vpop.permute.xlu0 %999
  %1001 = vrot.lane.b32.xlu0 %v983, 16
  %v1002 = vpop.permute.xlu0 %1001
  %1003 = vrot.lane.b32.xlu0 %v984, 16
  %v1004 = vpop.permute.xlu0 %1003
  %1005 = vrot.lane.b32.xlu0 %v985, 16
  %v1006 = vpop.permute.xlu0 %1005
  %1007 = vrot.lane.b32.xlu0 %v986, 16
  %v1008 = vpop.permute.xlu0 %1007
  %1009 = vrot.lane.b32.xlu0 %v987, 16
  %v1010 = vpop.permute.xlu0 %1009
  %1011 = vrot.lane.b32.xlu0 %v988, 16
  %v1012 = vpop.permute.xlu0 %1011
  %v1021 = vadd.f32 %v941, %v998
  %v1022 = vadd.f32 %v942, %v1000
  %v1023 = vadd.f32 %v943, %v1002
  %v1024 = vadd.f32 %v944, %v1004
  %v1025 = vadd.f32 %v945, %v1006
  %v1026 = vadd.f32 %v946, %v1008
  %v1027 = vadd.f32 %v947, %v1010
  %v1028 = vadd.f32 %v948, %v1012
  %v1029 = vtanh.pop %v1021
  %v1030 = vtanh.pop %v1022
  %v1031 = vtanh.pop %v1023
  %v1032 = vtanh.pop %v1024
  %v1033 = vtanh.pop %v1025
  %v1034 = vtanh.pop %v1026
  %v1035 = vtanh.pop %v1027
  %v1036 = vtanh.pop %v1028
  %1045 = vrot.lane.b32.xlu0 %v1029, 16
  %v1046 = vpop.permute.xlu0 %1045
  %1047 = vrot.lane.b32.xlu0 %v1030, 16
  %v1048 = vpop.permute.xlu0 %1047
  %1049 = vrot.lane.b32.xlu0 %v1031, 16
  %v1050 = vpop.permute.xlu0 %1049
  %1051 = vrot.lane.b32.xlu0 %v1032, 16
  %v1052 = vpop.permute.xlu0 %1051
  %1053 = vrot.lane.b32.xlu0 %v1033, 16
  %v1054 = vpop.permute.xlu0 %1053
  %1055 = vrot.lane.b32.xlu0 %v1034, 16
  %v1056 = vpop.permute.xlu0 %1055
  %1057 = vrot.lane.b32.xlu0 %v1035, 16
  %v1058 = vpop.permute.xlu0 %1057
  %1059 = vrot.lane.b32.xlu0 %v1036, 16
  %v1060 = vpop.permute.xlu0 %1059
  %v1069 = vmul.f32 %v827, %v1046
  %v1070 = vmul.f32 %v842, %v1048
  %v1071 = vmul.f32 %v857, %v1050
  %v1072 = vmul.f32 %v872, %v1052
  %v1073 = vmul.f32 %v887, %v1054
  %v1074 = vmul.f32 %v902, %v1056
  %v1075 = vmul.f32 %v917, %v1058
  %v1076 = vmul.f32 %v932, %v1060
  %v1077 = vpack.c.bf16 %v1070, %v1069
  %v1078 = vpack.c.bf16 %v1072, %v1071
  %v1079 = vpack.c.bf16 %v1074, %v1073
  %v1080 = vpack.c.bf16 %v1076, %v1075
  %1085 = vrot.lane.b32.xlu0 %v1077, 96
  %v1086 = vpop.permute.xlu0 %1085
  %1087 = vrot.lane.b32.xlu0 %v1078, 96
  %v1088 = vpop.permute.xlu0 %1087
  %1089 = vrot.lane.b32.xlu0 %v1079, 96
  %v1090 = vpop.permute.xlu0 %1089
  %1091 = vrot.lane.b32.xlu0 %v1080, 96
  %v1092 = vpop.permute.xlu0 %1091
  %v1094 = vsel %vm234, %v1086, 0
  %v1097 = vsel %vm234, %v1088, 0
  %v1100 = vsel %vm234, %v1090, 0
  %v1103 = vsel %vm234, %v1092, 0
  %1105 = vmatpush.bf16.msra.mxu0 0
  %1106 = vmatpush.bf16.msra.mxu0 0
  %1107 = vmatpush.bf16.msra.mxu0 0
  %1108 = vmatpush.bf16.msra.mxu0 0
  %1109 = vmatpush.bf16.msra.mxu0 0
  %1110 = vmatpush.bf16.msra.mxu0 0
  %1111 = vmatpush.bf16.msra.mxu0 0
  %1112 = vmatpush.bf16.msra.mxu0 %v378
  %1113 = vmatmul.bf16.gmra.mxu0 %v1094
  %v1114 = vpop.f32.mrf.mxu0
  %v1115 = vadd.f32 0.0, %v1114
  %v1116 = vpop.f32.mrf.mxu0
  %v1117 = vadd.f32 0.0, %v1116
  %1118 = vmatmul.bf16.gmra.mxu0 %v1097
  %v1119 = vpop.f32.mrf.mxu0
  %v1120 = vadd.f32 0.0, %v1119
  %v1121 = vpop.f32.mrf.mxu0
  %v1122 = vadd.f32 0.0, %v1121
  %1123 = vmatmul.bf16.gmra.mxu0 %v1100
  %v1124 = vpop.f32.mrf.mxu0
  %v1125 = vadd.f32 0.0, %v1124
  %v1126 = vpop.f32.mrf.mxu0
  %v1127 = vadd.f32 0.0, %v1126
  %1128 = vmatmul.bf16.gmra.mxu0 %v1103
  %v1129 = vpop.f32.mrf.mxu0
  %v1130 = vadd.f32 0.0, %v1129
  %v1131 = vpop.f32.mrf.mxu0
  %v1132 = vadd.f32 0.0, %v1131
  %1133 = vdwg.mxu0
  %v1134 = vadd.f32 %v333, %v1115
  %v1135 = vadd.f32 %v335, %v1117
  %v1136 = vadd.f32 %v338, %v1120
  %v1137 = vadd.f32 %v340, %v1122
  %v1138 = vadd.f32 %v343, %v1125
  %v1139 = vadd.f32 %v345, %v1127
  %v1140 = vadd.f32 %v348, %v1130
  %v1141 = vadd.f32 %v350, %v1132
  %v1142 = vxor.u32 %v1134, 2147483648
  %v1143 = vxor.u32 %v1135, 2147483648
  %v1144 = vxor.u32 %v1136, 2147483648
  %v1145 = vxor.u32 %v1137, 2147483648
  %v1146 = vxor.u32 %v1138, 2147483648
  %v1147 = vxor.u32 %v1139, 2147483648
  %v1148 = vxor.u32 %v1140, 2147483648
  %v1149 = vxor.u32 %v1141, 2147483648
  %v1150 = vmul.f32 %v1142, 1.442695
  %v1151 = vpow.pop %v1150
  %v1152 = vmul.f32 %v1143, 1.442695
  %v1153 = vpow.pop %v1152
  %v1154 = vmul.f32 %v1144, 1.442695
  %v1155 = vpow.pop %v1154
  %v1156 = vmul.f32 %v1145, 1.442695
  %v1157 = vpow.pop %v1156
  %v1158 = vmul.f32 %v1146, 1.442695
  %v1159 = vpow.pop %v1158
  %v1160 = vmul.f32 %v1147, 1.442695
  %v1161 = vpow.pop %v1160
  %v1162 = vmul.f32 %v1148, 1.442695
  %v1163 = vpow.pop %v1162
  %v1164 = vmul.f32 %v1149, 1.442695
  %v1165 = vpow.pop %v1164
  %v1166 = vadd.f32 %v1151, 1.0
  %v1167 = vadd.f32 %v1153, 1.0
  %v1168 = vadd.f32 %v1155, 1.0
  %v1169 = vadd.f32 %v1157, 1.0
  %v1170 = vadd.f32 %v1159, 1.0
  %v1171 = vadd.f32 %v1161, 1.0
  %v1172 = vadd.f32 %v1163, 1.0
  %v1173 = vadd.f32 %v1165, 1.0
  %v1174 = vrcp.pop %v1166
  %v1175 = vmul.f32 %v1166, %v1174
  %v1176 = vsub.f32 1.0, %v1175
  %v1177 = vmul.f32 %v1174, %v1176
  %v1178 = vadd.f32 %v1174, %v1177
  %vm1179 = vweird.f32 %v1166
  %vm1180 = vweird.f32 %v1174
  %vm1181 = vmor %vm1179, %vm1180
  %v1182 = vsel %vm1181, %v1174, %v1178
  %v1183 = vand.u32 2147483647, %v1166
  %vm1184 = vcmp.eq.f32.partialorder %v1183, 8.507059e+37
  %v1185 = vand.u32 %v1166, 2147483648
  %v1186 = vor.u32 1.1754944e-38, %v1185
  %v1187 = vsel %vm1184, %v1186, %v1182
  %v1188 = vmul.f32 1.0, %v1187
  %v1189 = vrcp.pop %v1167
  %v1190 = vmul.f32 %v1167, %v1189
  %v1191 = vsub.f32 1.0, %v1190
  %v1192 = vmul.f32 %v1189, %v1191
  %v1193 = vadd.f32 %v1189, %v1192
  %vm1194 = vweird.f32 %v1167
  %vm1195 = vweird.f32 %v1189
  %vm1196 = vmor %vm1194, %vm1195
  %v1197 = vsel %vm1196, %v1189, %v1193
  %v1198 = vand.u32 2147483647, %v1167
  %vm1199 = vcmp.eq.f32.partialorder %v1198, 8.507059e+37
  %v1200 = vand.u32 %v1167, 2147483648
  %v1201 = vor.u32 1.1754944e-38, %v1200
  %v1202 = vsel %vm1199, %v1201, %v1197
  %v1203 = vmul.f32 1.0, %v1202
  %v1204 = vrcp.pop %v1168
  %v1205 = vmul.f32 %v1168, %v1204
  %v1206 = vsub.f32 1.0, %v1205
  %v1207 = vmul.f32 %v1204, %v1206
  %v1208 = vadd.f32 %v1204, %v1207
  %vm1209 = vweird.f32 %v1168
  %vm1210 = vweird.f32 %v1204
  %vm1211 = vmor %vm1209, %vm1210
  %v1212 = vsel %vm1211, %v1204, %v1208
  %v1213 = vand.u32 2147483647, %v1168
  %vm1214 = vcmp.eq.f32.partialorder %v1213, 8.507059e+37
  %v1215 = vand.u32 %v1168, 2147483648
  %v1216 = vor.u32 1.1754944e-38, %v1215
  %v1217 = vsel %vm1214, %v1216, %v1212
  %v1218 = vmul.f32 1.0, %v1217
  %v1219 = vrcp.pop %v1169
  %v1220 = vmul.f32 %v1169, %v1219
  %v1221 = vsub.f32 1.0, %v1220
  %v1222 = vmul.f32 %v1219, %v1221
  %v1223 = vadd.f32 %v1219, %v1222
  %vm1224 = vweird.f32 %v1169
  %vm1225 = vweird.f32 %v1219
  %vm1226 = vmor %vm1224, %vm1225
  %v1227 = vsel %vm1226, %v1219, %v1223
  %v1228 = vand.u32 2147483647, %v1169
  %vm1229 = vcmp.eq.f32.partialorder %v1228, 8.507059e+37
  %v1230 = vand.u32 %v1169, 2147483648
  %v1231 = vor.u32 1.1754944e-38, %v1230
  %v1232 = vsel %vm1229, %v1231, %v1227
  %v1233 = vmul.f32 1.0, %v1232
  %v1234 = vrcp.pop %v1170
  %v1235 = vmul.f32 %v1170, %v1234
  %v1236 = vsub.f32 1.0, %v1235
  %v1237 = vmul.f32 %v1234, %v1236
  %v1238 = vadd.f32 %v1234, %v1237
  %vm1239 = vweird.f32 %v1170
  %vm1240 = vweird.f32 %v1234
  %vm1241 = vmor %vm1239, %vm1240
  %v1242 = vsel %vm1241, %v1234, %v1238
  %v1243 = vand.u32 2147483647, %v1170
  %vm1244 = vcmp.eq.f32.partialorder %v1243, 8.507059e+37
  %v1245 = vand.u32 %v1170, 2147483648
  %v1246 = vor.u32 1.1754944e-38, %v1245
  %v1247 = vsel %vm1244, %v1246, %v1242
  %v1248 = vmul.f32 1.0, %v1247
  %v1249 = vrcp.pop %v1171
  %v1250 = vmul.f32 %v1171, %v1249
  %v1251 = vsub.f32 1.0, %v1250
  %v1252 = vmul.f32 %v1249, %v1251
  %v1253 = vadd.f32 %v1249, %v1252
  %vm1254 = vweird.f32 %v1171
  %vm1255 = vweird.f32 %v1249
  %vm1256 = vmor %vm1254, %vm1255
  %v1257 = vsel %vm1256, %v1249, %v1253
  %v1258 = vand.u32 2147483647, %v1171
  %vm1259 = vcmp.eq.f32.partialorder %v1258, 8.507059e+37
  %v1260 = vand.u32 %v1171, 2147483648
  %v1261 = vor.u32 1.1754944e-38, %v1260
  %v1262 = vsel %vm1259, %v1261, %v1257
  %v1263 = vmul.f32 1.0, %v1262
  %v1264 = vrcp.pop %v1172
  %v1265 = vmul.f32 %v1172, %v1264
  %v1266 = vsub.f32 1.0, %v1265
  %v1267 = vmul.f32 %v1264, %v1266
  %v1268 = vadd.f32 %v1264, %v1267
  %vm1269 = vweird.f32 %v1172
  %vm1270 = vweird.f32 %v1264
  %vm1271 = vmor %vm1269, %vm1270
  %v1272 = vsel %vm1271, %v1264, %v1268
  %v1273 = vand.u32 2147483647, %v1172
  %vm1274 = vcmp.eq.f32.partialorder %v1273, 8.507059e+37
  %v1275 = vand.u32 %v1172, 2147483648
  %v1276 = vor.u32 1.1754944e-38, %v1275
  %v1277 = vsel %vm1274, %v1276, %v1272
  %v1278 = vmul.f32 1.0, %v1277
  %v1279 = vrcp.pop %v1173
  %v1280 = vmul.f32 %v1173, %v1279
  %v1281 = vsub.f32 1.0, %v1280
  %v1282 = vmul.f32 %v1279, %v1281
  %v1283 = vadd.f32 %v1279, %v1282
  %vm1284 = vweird.f32 %v1173
  %vm1285 = vweird.f32 %v1279
  %vm1286 = vmor %vm1284, %vm1285
  %v1287 = vsel %vm1286, %v1279, %v1283
  %v1288 = vand.u32 2147483647, %v1173
  %vm1289 = vcmp.eq.f32.partialorder %v1288, 8.507059e+37
  %v1290 = vand.u32 %v1173, 2147483648
  %v1291 = vor.u32 1.1754944e-38, %v1290
  %v1292 = vsel %vm1289, %v1291, %v1287
  %v1293 = vmul.f32 1.0, %v1292
  %v1294 = vtanh.pop %v1134
  %v1295 = vtanh.pop %v1135
  %v1296 = vtanh.pop %v1136
  %v1297 = vtanh.pop %v1137
  %v1298 = vtanh.pop %v1138
  %v1299 = vtanh.pop %v1139
  %v1300 = vtanh.pop %v1140
  %v1301 = vtanh.pop %v1141
  %v1302 = vmul.f32 %v1188, %v1021
  %v1303 = vmul.f32 %v1203, %v1022
  %v1304 = vmul.f32 %v1218, %v1023
  %v1305 = vmul.f32 %v1233, %v1024
  %v1306 = vmul.f32 %v1248, %v1025
  %v1307 = vmul.f32 %v1263, %v1026
  %v1308 = vmul.f32 %v1278, %v1027
  %v1309 = vmul.f32 %v1293, %v1028
  %1318 = vrot.lane.b32.xlu0 %v1294, 80
  %v1319 = vpop.permute.xlu0 %1318
  %1320 = vrot.lane.b32.xlu0 %v1295, 80
  %v1321 = vpop.permute.xlu0 %1320
  %1322 = vrot.lane.b32.xlu0 %v1296, 80
  %v1323 = vpop.permute.xlu0 %1322
  %1324 = vrot.lane.b32.xlu0 %v1297, 80
  %v1325 = vpop.permute.xlu0 %1324
  %1326 = vrot.lane.b32.xlu0 %v1298, 80
  %v1327 = vpop.permute.xlu0 %1326
  %1328 = vrot.lane.b32.xlu0 %v1299, 80
  %v1329 = vpop.permute.xlu0 %1328
  %1330 = vrot.lane.b32.xlu0 %v1300, 80
  %v1331 = vpop.permute.xlu0 %1330
  %1332 = vrot.lane.b32.xlu0 %v1301, 80
  %v1333 = vpop.permute.xlu0 %1332
  %v1342 = vmul.f32 %v1188, %v1319
  %v1343 = vmul.f32 %v1203, %v1321
  %v1344 = vmul.f32 %v1218, %v1323
  %v1345 = vmul.f32 %v1233, %v1325
  %v1346 = vmul.f32 %v1248, %v1327
  %v1347 = vmul.f32 %v1263, %v1329
  %v1348 = vmul.f32 %v1278, %v1331
  %v1349 = vmul.f32 %v1293, %v1333
  %1358 = vrot.lane.b32.xlu0 %v1342, 16
  %v1359 = vpop.permute.xlu0 %1358
  %1360 = vrot.lane.b32.xlu0 %v1343, 16
  %v1361 = vpop.permute.xlu0 %1360
  %1362 = vrot.lane.b32.xlu0 %v1344, 16
  %v1363 = vpop.permute.xlu0 %1362
  %1364 = vrot.lane.b32.xlu0 %v1345, 16
  %v1365 = vpop.permute.xlu0 %1364
  %1366 = vrot.lane.b32.xlu0 %v1346, 16
  %v1367 = vpop.permute.xlu0 %1366
  %1368 = vrot.lane.b32.xlu0 %v1347, 16
  %v1369 = vpop.permute.xlu0 %1368
  %1370 = vrot.lane.b32.xlu0 %v1348, 16
  %v1371 = vpop.permute.xlu0 %1370
  %1372 = vrot.lane.b32.xlu0 %v1349, 16
  %v1373 = vpop.permute.xlu0 %1372
  %v1382 = vadd.f32 %v1302, %v1359
  %v1383 = vadd.f32 %v1303, %v1361
  %v1384 = vadd.f32 %v1304, %v1363
  %v1385 = vadd.f32 %v1305, %v1365
  %v1386 = vadd.f32 %v1306, %v1367
  %v1387 = vadd.f32 %v1307, %v1369
  %v1388 = vadd.f32 %v1308, %v1371
  %v1389 = vadd.f32 %v1309, %v1373
  %v1390 = vtanh.pop %v1382
  %v1391 = vtanh.pop %v1383
  %v1392 = vtanh.pop %v1384
  %v1393 = vtanh.pop %v1385
  %v1394 = vtanh.pop %v1386
  %v1395 = vtanh.pop %v1387
  %v1396 = vtanh.pop %v1388
  %v1397 = vtanh.pop %v1389
  %1406 = vrot.lane.b32.xlu0 %v1390, 16
  %v1407 = vpop.permute.xlu0 %1406
  %1408 = vrot.lane.b32.xlu0 %v1391, 16
  %v1409 = vpop.permute.xlu0 %1408
  %1410 = vrot.lane.b32.xlu0 %v1392, 16
  %v1411 = vpop.permute.xlu0 %1410
  %1412 = vrot.lane.b32.xlu0 %v1393, 16
  %v1413 = vpop.permute.xlu0 %1412
  %1414 = vrot.lane.b32.xlu0 %v1394, 16
  %v1415 = vpop.permute.xlu0 %1414
  %1416 = vrot.lane.b32.xlu0 %v1395, 16
  %v1417 = vpop.permute.xlu0 %1416
  %1418 = vrot.lane.b32.xlu0 %v1396, 16
  %v1419 = vpop.permute.xlu0 %1418
  %1420 = vrot.lane.b32.xlu0 %v1397, 16
  %v1421 = vpop.permute.xlu0 %1420
  %v1430 = vmul.f32 %v1188, %v1407
  %v1431 = vmul.f32 %v1203, %v1409
  %v1432 = vmul.f32 %v1218, %v1411
  %v1433 = vmul.f32 %v1233, %v1413
  %v1434 = vmul.f32 %v1248, %v1415
  %v1435 = vmul.f32 %v1263, %v1417
  %v1436 = vmul.f32 %v1278, %v1419
  %v1437 = vmul.f32 %v1293, %v1421
  %v1438 = vpack.c.bf16 %v1431, %v1430
  %v1439 = vpack.c.bf16 %v1433, %v1432
  %v1440 = vpack.c.bf16 %v1435, %v1434
  %v1441 = vpack.c.bf16 %v1437, %v1436
  %1446 = vrot.lane.b32.xlu0 %v1438, 96
  %v1447 = vpop.permute.xlu0 %1446
  %1448 = vrot.lane.b32.xlu0 %v1439, 96
  %v1449 = vpop.permute.xlu0 %1448
  %1450 = vrot.lane.b32.xlu0 %v1440, 96
  %v1451 = vpop.permute.xlu0 %1450
  %1452 = vrot.lane.b32.xlu0 %v1441, 96
  %v1453 = vpop.permute.xlu0 %1452
  %v1455 = vsel %vm234, %v1447, 0
  %v1458 = vsel %vm234, %v1449, 0
  %v1461 = vsel %vm234, %v1451, 0
  %v1464 = vsel %vm234, %v1453, 0
  %1466 = vmatpush.bf16.msra.mxu0 0
  %1467 = vmatpush.bf16.msra.mxu0 0
  %1468 = vmatpush.bf16.msra.mxu0 0
  %1469 = vmatpush.bf16.msra.mxu0 0
  %1470 = vmatpush.bf16.msra.mxu0 0
  %1471 = vmatpush.bf16.msra.mxu0 0
  %1472 = vmatpush.bf16.msra.mxu0 0
  %1473 = vmatpush.bf16.msra.mxu0 %v378
  %1474 = vmatmul.bf16.gmra.mxu0 %v1455
  %v1475 = vpop.f32.mrf.mxu0
  %v1476 = vadd.f32 0.0, %v1475
  %v1477 = vpop.f32.mrf.mxu0
  %v1478 = vadd.f32 0.0, %v1477
  %1479 = vmatmul.bf16.gmra.mxu0 %v1458
  %v1480 = vpop.f32.mrf.mxu0
  %v1481 = vadd.f32 0.0, %v1480
  %v1482 = vpop.f32.mrf.mxu0
  %v1483 = vadd.f32 0.0, %v1482
  %1484 = vmatmul.bf16.gmra.mxu0 %v1461
  %v1485 = vpop.f32.mrf.mxu0
  %v1486 = vadd.f32 0.0, %v1485
  %v1487 = vpop.f32.mrf.mxu0
  %v1488 = vadd.f32 0.0, %v1487
  %1489 = vmatmul.bf16.gmra.mxu0 %v1464
  %v1490 = vpop.f32.mrf.mxu0
  %v1491 = vadd.f32 0.0, %v1490
  %v1492 = vpop.f32.mrf.mxu0
  %v1493 = vadd.f32 0.0, %v1492
  %1494 = vdwg.mxu0
  %v1495 = vadd.f32 %v353, %v1476
  %v1496 = vadd.f32 %v355, %v1478
  %v1497 = vadd.f32 %v358, %v1481
  %v1498 = vadd.f32 %v360, %v1483
  %v1499 = vadd.f32 %v363, %v1486
  %v1500 = vadd.f32 %v365, %v1488
  %v1501 = vadd.f32 %v368, %v1491
  %v1502 = vadd.f32 %v370, %v1493
  %v1503 = vxor.u32 %v1495, 2147483648
  %v1504 = vxor.u32 %v1496, 2147483648
  %v1505 = vxor.u32 %v1497, 2147483648
  %v1506 = vxor.u32 %v1498, 2147483648
  %v1507 = vxor.u32 %v1499, 2147483648
  %v1508 = vxor.u32 %v1500, 2147483648
  %v1509 = vxor.u32 %v1501, 2147483648
  %v1510 = vxor.u32 %v1502, 2147483648
  %v1511 = vmul.f32 %v1503, 1.442695
  %v1512 = vpow.pop %v1511
  %v1513 = vmul.f32 %v1504, 1.442695
  %v1514 = vpow.pop %v1513
  %v1515 = vmul.f32 %v1505, 1.442695
  %v1516 = vpow.pop %v1515
  %v1517 = vmul.f32 %v1506, 1.442695
  %v1518 = vpow.pop %v1517
  %v1519 = vmul.f32 %v1507, 1.442695
  %v1520 = vpow.pop %v1519
  %v1521 = vmul.f32 %v1508, 1.442695
  %v1522 = vpow.pop %v1521
  %v1523 = vmul.f32 %v1509, 1.442695
  %v1524 = vpow.pop %v1523
  %v1525 = vmul.f32 %v1510, 1.442695
  %v1526 = vpow.pop %v1525
  %v1527 = vadd.f32 %v1512, 1.0
  %v1528 = vadd.f32 %v1514, 1.0
  %v1529 = vadd.f32 %v1516, 1.0
  %v1530 = vadd.f32 %v1518, 1.0
  %v1531 = vadd.f32 %v1520, 1.0
  %v1532 = vadd.f32 %v1522, 1.0
  %v1533 = vadd.f32 %v1524, 1.0
  %v1534 = vadd.f32 %v1526, 1.0
  %v1535 = vrcp.pop %v1527
  %v1536 = vmul.f32 %v1527, %v1535
  %v1537 = vsub.f32 1.0, %v1536
  %v1538 = vmul.f32 %v1535, %v1537
  %v1539 = vadd.f32 %v1535, %v1538
  %vm1540 = vweird.f32 %v1527
  %vm1541 = vweird.f32 %v1535
  %vm1542 = vmor %vm1540, %vm1541
  %v1543 = vsel %vm1542, %v1535, %v1539
  %v1544 = vand.u32 2147483647, %v1527
  %vm1545 = vcmp.eq.f32.partialorder %v1544, 8.507059e+37
  %v1546 = vand.u32 %v1527, 2147483648
  %v1547 = vor.u32 1.1754944e-38, %v1546
  %v1548 = vsel %vm1545, %v1547, %v1543
  %v1549 = vmul.f32 1.0, %v1548
  %v1550 = vrcp.pop %v1528
  %v1551 = vmul.f32 %v1528, %v1550
  %v1552 = vsub.f32 1.0, %v1551
  %v1553 = vmul.f32 %v1550, %v1552
  %v1554 = vadd.f32 %v1550, %v1553
  %vm1555 = vweird.f32 %v1528
  %vm1556 = vweird.f32 %v1550
  %vm1557 = vmor %vm1555, %vm1556
  %v1558 = vsel %vm1557, %v1550, %v1554
  %v1559 = vand.u32 2147483647, %v1528
  %vm1560 = vcmp.eq.f32.partialorder %v1559, 8.507059e+37
  %v1561 = vand.u32 %v1528, 2147483648
  %v1562 = vor.u32 1.1754944e-38, %v1561
  %v1563 = vsel %vm1560, %v1562, %v1558
  %v1564 = vmul.f32 1.0, %v1563
  %v1565 = vrcp.pop %v1529
  %v1566 = vmul.f32 %v1529, %v1565
  %v1567 = vsub.f32 1.0, %v1566
  %v1568 = vmul.f32 %v1565, %v1567
  %v1569 = vadd.f32 %v1565, %v1568
  %vm1570 = vweird.f32 %v1529
  %vm1571 = vweird.f32 %v1565
  %vm1572 = vmor %vm1570, %vm1571
  %v1573 = vsel %vm1572, %v1565, %v1569
  %v1574 = vand.u32 2147483647, %v1529
  %vm1575 = vcmp.eq.f32.partialorder %v1574, 8.507059e+37
  %v1576 = vand.u32 %v1529, 2147483648
  %v1577 = vor.u32 1.1754944e-38, %v1576
  %v1578 = vsel %vm1575, %v1577, %v1573
  %v1579 = vmul.f32 1.0, %v1578
  %v1580 = vrcp.pop %v1530
  %v1581 = vmul.f32 %v1530, %v1580
  %v1582 = vsub.f32 1.0, %v1581
  %v1583 = vmul.f32 %v1580, %v1582
  %v1584 = vadd.f32 %v1580, %v1583
  %vm1585 = vweird.f32 %v1530
  %vm1586 = vweird.f32 %v1580
  %vm1587 = vmor %vm1585, %vm1586
  %v1588 = vsel %vm1587, %v1580, %v1584
  %v1589 = vand.u32 2147483647, %v1530
  %vm1590 = vcmp.eq.f32.partialorder %v1589, 8.507059e+37
  %v1591 = vand.u32 %v1530, 2147483648
  %v1592 = vor.u32 1.1754944e-38, %v1591
  %v1593 = vsel %vm1590, %v1592, %v1588
  %v1594 = vmul.f32 1.0, %v1593
  %v1595 = vrcp.pop %v1531
  %v1596 = vmul.f32 %v1531, %v1595
  %v1597 = vsub.f32 1.0, %v1596
  %v1598 = vmul.f32 %v1595, %v1597
  %v1599 = vadd.f32 %v1595, %v1598
  %vm1600 = vweird.f32 %v1531
  %vm1601 = vweird.f32 %v1595
  %vm1602 = vmor %vm1600, %vm1601
  %v1603 = vsel %vm1602, %v1595, %v1599
  %v1604 = vand.u32 2147483647, %v1531
  %vm1605 = vcmp.eq.f32.partialorder %v1604, 8.507059e+37
  %v1606 = vand.u32 %v1531, 2147483648
  %v1607 = vor.u32 1.1754944e-38, %v1606
  %v1608 = vsel %vm1605, %v1607, %v1603
  %v1609 = vmul.f32 1.0, %v1608
  %v1610 = vrcp.pop %v1532
  %v1611 = vmul.f32 %v1532, %v1610
  %v1612 = vsub.f32 1.0, %v1611
  %v1613 = vmul.f32 %v1610, %v1612
  %v1614 = vadd.f32 %v1610, %v1613
  %vm1615 = vweird.f32 %v1532
  %vm1616 = vweird.f32 %v1610
  %vm1617 = vmor %vm1615, %vm1616
  %v1618 = vsel %vm1617, %v1610, %v1614
  %v1619 = vand.u32 2147483647, %v1532
  %vm1620 = vcmp.eq.f32.partialorder %v1619, 8.507059e+37
  %v1621 = vand.u32 %v1532, 2147483648
  %v1622 = vor.u32 1.1754944e-38, %v1621
  %v1623 = vsel %vm1620, %v1622, %v1618
  %v1624 = vmul.f32 1.0, %v1623
  %v1625 = vrcp.pop %v1533
  %v1626 = vmul.f32 %v1533, %v1625
  %v1627 = vsub.f32 1.0, %v1626
  %v1628 = vmul.f32 %v1625, %v1627
  %v1629 = vadd.f32 %v1625, %v1628
  %vm1630 = vweird.f32 %v1533
  %vm1631 = vweird.f32 %v1625
  %vm1632 = vmor %vm1630, %vm1631
  %v1633 = vsel %vm1632, %v1625, %v1629
  %v1634 = vand.u32 2147483647, %v1533
  %vm1635 = vcmp.eq.f32.partialorder %v1634, 8.507059e+37
  %v1636 = vand.u32 %v1533, 2147483648
  %v1637 = vor.u32 1.1754944e-38, %v1636
  %v1638 = vsel %vm1635, %v1637, %v1633
  %v1639 = vmul.f32 1.0, %v1638
  %v1640 = vrcp.pop %v1534
  %v1641 = vmul.f32 %v1534, %v1640
  %v1642 = vsub.f32 1.0, %v1641
  %v1643 = vmul.f32 %v1640, %v1642
  %v1644 = vadd.f32 %v1640, %v1643
  %vm1645 = vweird.f32 %v1534
  %vm1646 = vweird.f32 %v1640
  %vm1647 = vmor %vm1645, %vm1646
  %v1648 = vsel %vm1647, %v1640, %v1644
  %v1649 = vand.u32 2147483647, %v1534
  %vm1650 = vcmp.eq.f32.partialorder %v1649, 8.507059e+37
  %v1651 = vand.u32 %v1534, 2147483648
  %v1652 = vor.u32 1.1754944e-38, %v1651
  %v1653 = vsel %vm1650, %v1652, %v1648
  %v1654 = vmul.f32 1.0, %v1653
  %v1655 = vtanh.pop %v1495
  %v1656 = vtanh.pop %v1496
  %v1657 = vtanh.pop %v1497
  %v1658 = vtanh.pop %v1498
  %v1659 = vtanh.pop %v1499
  %v1660 = vtanh.pop %v1500
  %v1661 = vtanh.pop %v1501
  %v1662 = vtanh.pop %v1502
  %v1663 = vmul.f32 %v1549, %v1382
  %v1664 = vmul.f32 %v1564, %v1383
  %v1665 = vmul.f32 %v1579, %v1384
  %v1666 = vmul.f32 %v1594, %v1385
  %v1667 = vmul.f32 %v1609, %v1386
  %v1668 = vmul.f32 %v1624, %v1387
  %v1669 = vmul.f32 %v1639, %v1388
  %v1670 = vmul.f32 %v1654, %v1389
  %1679 = vrot.lane.b32.xlu0 %v1655, 80
  %v1680 = vpop.permute.xlu0 %1679
  %1681 = vrot.lane.b32.xlu0 %v1656, 80
  %v1682 = vpop.permute.xlu0 %1681
  %1683 = vrot.lane.b32.xlu0 %v1657, 80
  %v1684 = vpop.permute.xlu0 %1683
  %1685 = vrot.lane.b32.xlu0 %v1658, 80
  %v1686 = vpop.permute.xlu0 %1685
  %1687 = vrot.lane.b32.xlu0 %v1659, 80
  %v1688 = vpop.permute.xlu0 %1687
  %1689 = vrot.lane.b32.xlu0 %v1660, 80
  %v1690 = vpop.permute.xlu0 %1689
  %1691 = vrot.lane.b32.xlu0 %v1661, 80
  %v1692 = vpop.permute.xlu0 %1691
  %1693 = vrot.lane.b32.xlu0 %v1662, 80
  %v1694 = vpop.permute.xlu0 %1693
  %v1703 = vmul.f32 %v1549, %v1680
  %v1704 = vmul.f32 %v1564, %v1682
  %v1705 = vmul.f32 %v1579, %v1684
  %v1706 = vmul.f32 %v1594, %v1686
  %v1707 = vmul.f32 %v1609, %v1688
  %v1708 = vmul.f32 %v1624, %v1690
  %v1709 = vmul.f32 %v1639, %v1692
  %v1710 = vmul.f32 %v1654, %v1694
  %1719 = vrot.lane.b32.xlu0 %v1703, 16
  %v1720 = vpop.permute.xlu0 %1719
  %1721 = vrot.lane.b32.xlu0 %v1704, 16
  %v1722 = vpop.permute.xlu0 %1721
  %1723 = vrot.lane.b32.xlu0 %v1705, 16
  %v1724 = vpop.permute.xlu0 %1723
  %1725 = vrot.lane.b32.xlu0 %v1706, 16
  %v1726 = vpop.permute.xlu0 %1725
  %1727 = vrot.lane.b32.xlu0 %v1707, 16
  %v1728 = vpop.permute.xlu0 %1727
  %1729 = vrot.lane.b32.xlu0 %v1708, 16
  %v1730 = vpop.permute.xlu0 %1729
  %1731 = vrot.lane.b32.xlu0 %v1709, 16
  %v1732 = vpop.permute.xlu0 %1731
  %1733 = vrot.lane.b32.xlu0 %v1710, 16
  %v1734 = vpop.permute.xlu0 %1733
  %v1743 = vadd.f32 %v1663, %v1720
  %v1744 = vadd.f32 %v1664, %v1722
  %v1745 = vadd.f32 %v1665, %v1724
  %v1746 = vadd.f32 %v1666, %v1726
  %v1747 = vadd.f32 %v1667, %v1728
  %v1748 = vadd.f32 %v1668, %v1730
  %v1749 = vadd.f32 %v1669, %v1732
  %v1750 = vadd.f32 %v1670, %v1734
  %v1751 = vtanh.pop %v1743
  %v1752 = vtanh.pop %v1744
  %v1753 = vtanh.pop %v1745
  %v1754 = vtanh.pop %v1746
  %v1755 = vtanh.pop %v1747
  %v1756 = vtanh.pop %v1748
  %v1757 = vtanh.pop %v1749
  %v1758 = vtanh.pop %v1750
  %1767 = vrot.lane.b32.xlu0 %v1751, 16
  %v1768 = vpop.permute.xlu0 %1767
  %1769 = vrot.lane.b32.xlu0 %v1752, 16
  %v1770 = vpop.permute.xlu0 %1769
  %1771 = vrot.lane.b32.xlu0 %v1753, 16
  %v1772 = vpop.permute.xlu0 %1771
  %1773 = vrot.lane.b32.xlu0 %v1754, 16
  %v1774 = vpop.permute.xlu0 %1773
  %1775 = vrot.lane.b32.xlu0 %v1755, 16
  %v1776 = vpop.permute.xlu0 %1775
  %1777 = vrot.lane.b32.xlu0 %v1756, 16
  %v1778 = vpop.permute.xlu0 %1777
  %1779 = vrot.lane.b32.xlu0 %v1757, 16
  %v1780 = vpop.permute.xlu0 %1779
  %1781 = vrot.lane.b32.xlu0 %v1758, 16
  %v1782 = vpop.permute.xlu0 %1781
  %v1791 = vmul.f32 %v1549, %v1768
  %v1792 = vmul.f32 %v1564, %v1770
  %v1793 = vmul.f32 %v1579, %v1772
  %v1794 = vmul.f32 %v1594, %v1774
  %v1795 = vmul.f32 %v1609, %v1776
  %v1796 = vmul.f32 %v1624, %v1778
  %v1797 = vmul.f32 %v1639, %v1780
  %v1798 = vmul.f32 %v1654, %v1782
  %v1799 = vpack.c.bf16 %v1791, %v1791
  %v1800 = vpack.c.bf16 %v1792, %v1792
  %v1801 = vpack.c.bf16 %v1793, %v1793
  %v1802 = vpack.c.bf16 %v1794, %v1794
  %v1803 = vpack.c.bf16 %v1795, %v1795
  %v1804 = vpack.c.bf16 %v1796, %v1796
  %v1805 = vpack.c.bf16 %v1797, %v1797
  %v1806 = vpack.c.bf16 %v1798, %v1798
  %v1815 = vunpack.c.l.b16 %v86
  %v1816 = vunpack.c.l.b16 %v87
  %v1817 = vunpack.c.l.b16 %v88
  %v1818 = vunpack.c.l.b16 %v89
  %v1819 = vunpack.c.l.b16 %v90
  %v1820 = vunpack.c.l.b16 %v91
  %v1821 = vunpack.c.l.b16 %v92
  %v1822 = vunpack.c.l.b16 %v93
  %v1823 = vpack.c.b16 %v1816, %v1815
  %v1824 = vpack.c.b16 %v1818, %v1817
  %v1825 = vpack.c.b16 %v1820, %v1819
  %v1826 = vpack.c.b16 %v1822, %v1821
  %v1835 = vunpack.c.l.b16 %v1799
  %v1836 = vunpack.c.l.b16 %v1800
  %v1837 = vunpack.c.l.b16 %v1801
  %v1838 = vunpack.c.l.b16 %v1802
  %v1839 = vunpack.c.l.b16 %v1803
  %v1840 = vunpack.c.l.b16 %v1804
  %v1841 = vunpack.c.l.b16 %v1805
  %v1842 = vunpack.c.l.b16 %v1806
  %v1843 = vpack.c.b16 %v1836, %v1835
  %v1844 = vpack.c.b16 %v1838, %v1837
  %v1845 = vpack.c.b16 %v1840, %v1839
  %v1846 = vpack.c.b16 %v1842, %v1841
  %1847 = vrot.lane.b32.xlu0 %v1843, 112
  %v1848 = vpop.permute.xlu0 %1847
  %1849 = vrot.lane.b32.xlu0 %v1844, 112
  %v1850 = vpop.permute.xlu0 %1849
  %1851 = vrot.lane.b32.xlu0 %v1845, 112
  %v1852 = vpop.permute.xlu0 %1851
  %1853 = vrot.lane.b32.xlu0 %v1846, 112
  %v1854 = vpop.permute.xlu0 %1853
  %v1857 = vsel %vm234, %v1823, %v1848
  %v1860 = vsel %vm234, %v1824, %v1850
  %v1863 = vsel %vm234, %v1825, %v1852
  %v1866 = vsel %vm234, %v1826, %v1854
  %v1867 = vld [vmem:[%s4] sm:$0xf]
  %v1868 = vld [vmem:[%s4 + $0x4] sm:$0xf]
  %v1869 = vld [vmem:[%s4 + $0x8] sm:$0xf]
  %v1870 = vld [vmem:[%s4 + $0xc] sm:$0xf]
  %v1871 = vld [vmem:[%s5] sm:$0x1]
  %v1873 = vperm.slane %v1871, 0
  %v1879 = vunpack.c.l.b16 %v1867
  %v1880 = vunpack.c.l.b16 %v1868
  %v1881 = vunpack.c.l.b16 %v1869
  %v1882 = vunpack.c.l.b16 %v1870
  %v1883 = vpack.c.b16 %v1880, %v1879
  %v1884 = vpack.c.b16 %v1882, %v1881
  %vm1887 = vcmask 261120
  %v1888 = vsel %vm1887, %v1857, 0
  %v1890 = vsel %vm1887, %v1860, 0
  %v1892 = vsel %vm1887, %v1863, 0
  %v1894 = vsel %vm1887, %v1866, 0
  %1896 = vmatpush.bf16.msra.mxu0 0
  %1897 = vmatpush.bf16.msra.mxu0 0
  %1898 = vmatpush.bf16.msra.mxu0 0
  %1899 = vmatpush.bf16.msra.mxu0 0
  %1900 = vmatpush.bf16.msra.mxu0 0
  %1901 = vmatpush.bf16.msra.mxu0 0
  %1902 = vmatpush.bf16.msra.mxu0 %v1884
  %1903 = vmatpush.bf16.msra.mxu0 %v1883
  %1904 = vmatmul.bf16.gmra.mxu0 %v1888
  %v1905 = vpop.f32.mrf.mxu0
  %v1906 = vadd.f32 %v1873, %v1905
  %v1907 = vpop.f32.mrf.mxu0
  %v1908 = vadd.f32 %v1873, %v1907
  %1909 = vmatmul.bf16.gmra.mxu0 %v1890
  %v1910 = vpop.f32.mrf.mxu0
  %v1911 = vadd.f32 %v1873, %v1910
  %v1912 = vpop.f32.mrf.mxu0
  %v1913 = vadd.f32 %v1873, %v1912
  %1914 = vmatmul.bf16.gmra.mxu0 %v1892
  %v1915 = vpop.f32.mrf.mxu0
  %v1916 = vadd.f32 %v1873, %v1915
  %v1917 = vpop.f32.mrf.mxu0
  %v1918 = vadd.f32 %v1873, %v1917
  %1919 = vmatmul.bf16.gmra.mxu0 %v1894
  %v1920 = vpop.f32.mrf.mxu0
  %v1921 = vadd.f32 %v1873, %v1920
  %v1922 = vpop.f32.mrf.mxu0
  %v1923 = vadd.f32 %v1873, %v1922
  %1924 = vdwg.mxu0
  %v1925 = vmax.f32 %v1906, 0.0
  %v1926 = vmax.f32 %v1908, 0.0
  %v1927 = vmax.f32 %v1911, 0.0
  %v1928 = vmax.f32 %v1913, 0.0
  %v1929 = vmax.f32 %v1916, 0.0
  %v1930 = vmax.f32 %v1918, 0.0
  %v1931 = vmax.f32 %v1921, 0.0
  %v1932 = vmax.f32 %v1923, 0.0
  %v1933 = vld [vmem:[%s21] sm:$0xff]
  %v1934 = vld [vmem:[%s21 + $0x8] sm:$0xff]
  %v1935 = vld [vmem:[%s21 + $0x10] sm:$0xff]
  %v1936 = vld [vmem:[%s21 + $0x18] sm:$0xff]
  %v1937 = vld [vmem:[%s21 + $0x20] sm:$0xff]
  %v1938 = vld [vmem:[%s21 + $0x28] sm:$0xff]
  %v1939 = vld [vmem:[%s21 + $0x30] sm:$0xff]
  %v1940 = vld [vmem:[%s21 + $0x38] sm:$0xff]
  %v1941 = vmul.f32 %v1925, %v1933
  %v1942 = vmul.f32 %v1926, %v1934
  %v1943 = vmul.f32 %v1927, %v1935
  %v1944 = vmul.f32 %v1928, %v1936
  %v1945 = vmul.f32 %v1929, %v1937
  %v1946 = vmul.f32 %v1930, %v1938
  %v1947 = vmul.f32 %v1931, %v1939
  %v1948 = vmul.f32 %v1932, %v1940
  %v1949 = vpack.c.bf16 %v1941, %v1941
  %v1950 = vpack.c.bf16 %v1942, %v1942
  %v1951 = vpack.c.bf16 %v1943, %v1943
  %v1952 = vpack.c.bf16 %v1944, %v1944
  %v1953 = vpack.c.bf16 %v1945, %v1945
  %v1954 = vpack.c.bf16 %v1946, %v1946
  %v1955 = vpack.c.bf16 %v1947, %v1947
  %v1956 = vpack.c.bf16 %v1948, %v1948
  %v1965 = vrot.slane %v1941, 1
  %v1966 = vrot.slane %v1942, 1
  %v1967 = vsel %vm102, %v1965, %v1966
  %v1968 = vrot.slane %v1943, 1
  %v1969 = vsel %vm102, %v1966, %v1968
  %v1970 = vrot.slane %v1944, 1
  %v1971 = vsel %vm102, %v1968, %v1970
  %v1972 = vrot.slane %v1945, 1
  %v1973 = vsel %vm102, %v1970, %v1972
  %v1974 = vrot.slane %v1946, 1
  %v1975 = vsel %vm102, %v1972, %v1974
  %v1976 = vrot.slane %v1947, 1
  %v1977 = vsel %vm102, %v1974, %v1976
  %v1978 = vrot.slane %v1948, 1
  %v1979 = vsel %vm102, %v1976, %v1978
  %v1989 = vsel %vm102, %v1978, %v1965
  %v1990 = vrot.slane %v1941, 2
  %v1991 = vrot.slane %v1942, 2
  %v1992 = vsel %vm128, %v1990, %v1991
  %v1993 = vrot.slane %v1943, 2
  %v1994 = vsel %vm128, %v1991, %v1993
  %v1995 = vrot.slane %v1944, 2
  %v1996 = vsel %vm128, %v1993, %v1995
  %v1997 = vrot.slane %v1945, 2
  %v1998 = vsel %vm128, %v1995, %v1997
  %v1999 = vrot.slane %v1946, 2
  %v2000 = vsel %vm128, %v1997, %v1999
  %v2001 = vrot.slane %v1947, 2
  %v2002 = vsel %vm128, %v1999, %v2001
  %v2003 = vrot.slane %v1948, 2
  %v2004 = vsel %vm128, %v2001, %v2003
  %v2014 = vsel %vm128, %v2003, %v1990
  %v2015 = vrot.slane %v1941, 3
  %v2016 = vrot.slane %v1942, 3
  %v2017 = vsel %vm154, %v2015, %v2016
  %v2018 = vrot.slane %v1943, 3
  %v2019 = vsel %vm154, %v2016, %v2018
  %v2020 = vrot.slane %v1944, 3
  %v2021 = vsel %vm154, %v2018, %v2020
  %v2022 = vrot.slane %v1945, 3
  %v2023 = vsel %vm154, %v2020, %v2022
  %v2024 = vrot.slane %v1946, 3
  %v2025 = vsel %vm154, %v2022, %v2024
  %v2026 = vrot.slane %v1947, 3
  %v2027 = vsel %vm154, %v2024, %v2026
  %v2028 = vrot.slane %v1948, 3
  %v2029 = vsel %vm154, %v2026, %v2028
  %v2039 = vsel %vm154, %v2028, %v2015
  %v2040 = vrot.slane %v1941, 4
  %v2041 = vrot.slane %v1942, 4
  %v2042 = vsel %vm180, %v2040, %v2041
  %v2043 = vrot.slane %v1943, 4
  %v2044 = vsel %vm180, %v2041, %v2043
  %v2045 = vrot.slane %v1944, 4
  %v2046 = vsel %vm180, %v2043, %v2045
  %v2047 = vrot.slane %v1945, 4
  %v2048 = vsel %vm180, %v2045, %v2047
  %v2049 = vrot.slane %v1946, 4
  %v2050 = vsel %vm180, %v2047, %v2049
  %v2051 = vrot.slane %v1947, 4
  %v2052 = vsel %vm180, %v2049, %v2051
  %v2053 = vrot.slane %v1948, 4
  %v2054 = vsel %vm180, %v2051, %v2053
  %v2064 = vsel %vm180, %v2053, %v2040
  %v2065 = vpack.c.bf16 %v1969, %v1967
  %v2066 = vpack.c.bf16 %v1973, %v1971
  %v2067 = vpack.c.bf16 %v1977, %v1975
  %v2068 = vpack.c.bf16 %v1989, %v1979
  %v2069 = vpack.c.bf16 %v1994, %v1992
  %v2070 = vpack.c.bf16 %v1998, %v1996
  %v2071 = vpack.c.bf16 %v2002, %v2000
  %v2072 = vpack.c.bf16 %v2014, %v2004
  %v2073 = vpack.c.bf16 %v2019, %v2017
  %v2074 = vpack.c.bf16 %v2023, %v2021
  %v2075 = vpack.c.bf16 %v2027, %v2025
  %v2076 = vpack.c.bf16 %v2039, %v2029
  %v2077 = vpack.c.bf16 %v2044, %v2042
  %v2078 = vpack.c.bf16 %v2048, %v2046
  %v2079 = vpack.c.bf16 %v2052, %v2050
  %v2080 = vpack.c.bf16 %v2064, %v2054
  %v2081 = vld [vmem:[%s6] sm:$0xf]
  %v2082 = vld [vmem:[%s6 + $0x4] sm:$0xf]
  %v2083 = vld [vmem:[%s6 + $0x8] sm:$0xf]
  %v2084 = vld [vmem:[%s6 + $0xc] sm:$0xf]
  %v2085 = vld [vmem:[%s8] sm:$0x1]
  %v2087 = vperm.slane %v2085, 0
  %v2093 = vunpack.c.l.b16 %v2081
  %v2094 = vunpack.c.l.b16 %v2082
  %v2095 = vunpack.c.l.b16 %v2083
  %v2096 = vunpack.c.l.b16 %v2084
  %v2097 = vpack.c.b16 %v2094, %v2093
  %v2098 = vpack.c.b16 %v2096, %v2095
  %v2102 = vsel %vm1887, %v2065, 0
  %v2105 = vsel %vm1887, %v2066, 0
  %v2108 = vsel %vm1887, %v2067, 0
  %v2111 = vsel %vm1887, %v2068, 0
  %v2114 = vsel %vm1887, %v2069, 0
  %v2117 = vsel %vm1887, %v2070, 0
  %v2120 = vsel %vm1887, %v2071, 0
  %v2123 = vsel %vm1887, %v2072, 0
  %v2126 = vsel %vm1887, %v2073, 0
  %v2129 = vsel %vm1887, %v2074, 0
  %v2132 = vsel %vm1887, %v2075, 0
  %v2135 = vsel %vm1887, %v2076, 0
  %v2138 = vsel %vm1887, %v2077, 0
  %v2141 = vsel %vm1887, %v2078, 0
  %v2144 = vsel %vm1887, %v2079, 0
  %v2147 = vsel %vm1887, %v2080, 0
  %2149 = vmatpush.bf16.msra.mxu0 0
  %2150 = vmatpush.bf16.msra.mxu0 0
  %2151 = vmatpush.bf16.msra.mxu0 0
  %2152 = vmatpush.bf16.msra.mxu0 0
  %2153 = vmatpush.bf16.msra.mxu0 0
  %2154 = vmatpush.bf16.msra.mxu0 0
  %2155 = vmatpush.bf16.msra.mxu0 %v2098
  %2156 = vmatpush.bf16.msra.mxu0 %v2097
  %2157 = vmatmul.bf16.gmra.mxu0 %v2102
  %v2158 = vpop.f32.mrf.mxu0
  %v2159 = vadd.f32 %v2087, %v2158
  %v2160 = vpop.f32.mrf.mxu0
  %v2161 = vadd.f32 %v2087, %v2160
  %2162 = vmatmul.bf16.gmra.mxu0 %v2105
  %v2163 = vpop.f32.mrf.mxu0
  %v2164 = vadd.f32 %v2087, %v2163
  %v2165 = vpop.f32.mrf.mxu0
  %v2166 = vadd.f32 %v2087, %v2165
  %2167 = vmatmul.bf16.gmra.mxu0 %v2108
  %v2168 = vpop.f32.mrf.mxu0
  %v2169 = vadd.f32 %v2087, %v2168
  %v2170 = vpop.f32.mrf.mxu0
  %v2171 = vadd.f32 %v2087, %v2170
  %2172 = vmatmul.bf16.gmra.mxu0 %v2111
  %v2173 = vpop.f32.mrf.mxu0
  %v2174 = vadd.f32 %v2087, %v2173
  %v2175 = vpop.f32.mrf.mxu0
  %v2176 = vadd.f32 %v2087, %v2175
  %2177 = vmatmul.bf16.gmra.mxu0 %v2114
  %v2178 = vpop.f32.mrf.mxu0
  %v2179 = vadd.f32 %v2087, %v2178
  %v2180 = vpop.f32.mrf.mxu0
  %v2181 = vadd.f32 %v2087, %v2180
  %2182 = vmatmul.bf16.gmra.mxu0 %v2117
  %v2183 = vpop.f32.mrf.mxu0
  %v2184 = vadd.f32 %v2087, %v2183
  %v2185 = vpop.f32.mrf.mxu0
  %v2186 = vadd.f32 %v2087, %v2185
  %2187 = vmatmul.bf16.gmra.mxu0 %v2120
  %v2188 = vpop.f32.mrf.mxu0
  %v2189 = vadd.f32 %v2087, %v2188
  %v2190 = vpop.f32.mrf.mxu0
  %v2191 = vadd.f32 %v2087, %v2190
  %2192 = vmatmul.bf16.gmra.mxu0 %v2123
  %v2193 = vpop.f32.mrf.mxu0
  %v2194 = vadd.f32 %v2087, %v2193
  %v2195 = vpop.f32.mrf.mxu0
  %v2196 = vadd.f32 %v2087, %v2195
  %2197 = vmatmul.bf16.gmra.mxu0 %v2126
  %v2198 = vpop.f32.mrf.mxu0
  %v2199 = vadd.f32 %v2087, %v2198
  %v2200 = vpop.f32.mrf.mxu0
  %v2201 = vadd.f32 %v2087, %v2200
  %2202 = vmatmul.bf16.gmra.mxu0 %v2129
  %v2203 = vpop.f32.mrf.mxu0
  %v2204 = vadd.f32 %v2087, %v2203
  %v2205 = vpop.f32.mrf.mxu0
  %v2206 = vadd.f32 %v2087, %v2205
  %2207 = vmatmul.bf16.gmra.mxu0 %v2132
  %v2208 = vpop.f32.mrf.mxu0
  %v2209 = vadd.f32 %v2087, %v2208
  %v2210 = vpop.f32.mrf.mxu0
  %v2211 = vadd.f32 %v2087, %v2210
  %2212 = vmatmul.bf16.gmra.mxu0 %v2135
  %v2213 = vpop.f32.mrf.mxu0
  %v2214 = vadd.f32 %v2087, %v2213
  %v2215 = vpop.f32.mrf.mxu0
  %v2216 = vadd.f32 %v2087, %v2215
  %2217 = vmatmul.bf16.gmra.mxu0 %v2138
  %v2218 = vpop.f32.mrf.mxu0
  %v2219 = vadd.f32 %v2087, %v2218
  %v2220 = vpop.f32.mrf.mxu0
  %v2221 = vadd.f32 %v2087, %v2220
  %2222 = vmatmul.bf16.gmra.mxu0 %v2141
  %v2223 = vpop.f32.mrf.mxu0
  %v2224 = vadd.f32 %v2087, %v2223
  %v2225 = vpop.f32.mrf.mxu0
  %v2226 = vadd.f32 %v2087, %v2225
  %2227 = vmatmul.bf16.gmra.mxu0 %v2144
  %v2228 = vpop.f32.mrf.mxu0
  %v2229 = vadd.f32 %v2087, %v2228
  %v2230 = vpop.f32.mrf.mxu0
  %v2231 = vadd.f32 %v2087, %v2230
  %2232 = vmatmul.bf16.gmra.mxu0 %v2147
  %v2233 = vpop.f32.mrf.mxu0
  %v2234 = vadd.f32 %v2087, %v2233
  %v2235 = vpop.f32.mrf.mxu0
  %v2236 = vadd.f32 %v2087, %v2235
  %2237 = vdwg.mxu0
  %v2238 = vld [vmem:[%s7] sm:$0xf]
  %v2239 = vld [vmem:[%s7 + $0x4] sm:$0xf]
  %v2240 = vld [vmem:[%s7 + $0x8] sm:$0xf]
  %v2241 = vld [vmem:[%s7 + $0xc] sm:$0xf]
  %v2246 = vunpack.c.l.b16 %v2238
  %v2247 = vunpack.c.l.b16 %v2239
  %v2248 = vunpack.c.l.b16 %v2240
  %v2249 = vunpack.c.l.b16 %v2241
  %v2250 = vpack.c.b16 %v2247, %v2246
  %v2251 = vpack.c.b16 %v2249, %v2248
  %v2254 = vsel %vm1887, 0, 0
  %2256 = vmatpush.bf16.msra.mxu0 0
  %2257 = vmatpush.bf16.msra.mxu0 0
  %2258 = vmatpush.bf16.msra.mxu0 0
  %2259 = vmatpush.bf16.msra.mxu0 0
  %2260 = vmatpush.bf16.msra.mxu0 0
  %2261 = vmatpush.bf16.msra.mxu0 0
  %2262 = vmatpush.bf16.msra.mxu0 %v2251
  %2263 = vmatpush.bf16.msra.mxu0 %v2250
  %2264 = vmatmul.bf16.gmra.mxu0 %v2254
  %v2265 = vpop.f32.mrf.mxu0
  %v2266 = vadd.f32 0.0, %v2265
  %v2267 = vpop.f32.mrf.mxu0
  %v2268 = vadd.f32 0.0, %v2267
  %2269 = vmatmul.bf16.gmra.mxu0 %v2254
  %v2270 = vpop.f32.mrf.mxu0
  %v2271 = vadd.f32 0.0, %v2270
  %v2272 = vpop.f32.mrf.mxu0
  %v2273 = vadd.f32 0.0, %v2272
  %2274 = vmatmul.bf16.gmra.mxu0 %v2254
  %v2275 = vpop.f32.mrf.mxu0
  %v2276 = vadd.f32 0.0, %v2275
  %v2277 = vpop.f32.mrf.mxu0
  %v2278 = vadd.f32 0.0, %v2277
  %2279 = vmatmul.bf16.gmra.mxu0 %v2254
  %v2280 = vpop.f32.mrf.mxu0
  %v2281 = vadd.f32 0.0, %v2280
  %v2282 = vpop.f32.mrf.mxu0
  %v2283 = vadd.f32 0.0, %v2282
  %2284 = vdwg.mxu0
  %v2285 = vadd.f32 %v2159, %v2266
  %v2286 = vadd.f32 %v2161, %v2268
  %v2287 = vadd.f32 %v2164, %v2271
  %v2288 = vadd.f32 %v2166, %v2273
  %v2289 = vadd.f32 %v2169, %v2276
  %v2290 = vadd.f32 %v2171, %v2278
  %v2291 = vadd.f32 %v2174, %v2281
  %v2292 = vadd.f32 %v2176, %v2283
  %v2293 = vxor.u32 %v2285, 2147483648
  %v2294 = vxor.u32 %v2286, 2147483648
  %v2295 = vxor.u32 %v2287, 2147483648
  %v2296 = vxor.u32 %v2288, 2147483648
  %v2297 = vxor.u32 %v2289, 2147483648
  %v2298 = vxor.u32 %v2290, 2147483648
  %v2299 = vxor.u32 %v2291, 2147483648
  %v2300 = vxor.u32 %v2292, 2147483648
  %v2301 = vmul.f32 %v2293, 1.442695
  %v2302 = vpow.pop %v2301
  %v2303 = vmul.f32 %v2294, 1.442695
  %v2304 = vpow.pop %v2303
  %v2305 = vmul.f32 %v2295, 1.442695
  %v2306 = vpow.pop %v2305
  %v2307 = vmul.f32 %v2296, 1.442695
  %v2308 = vpow.pop %v2307
  %v2309 = vmul.f32 %v2297, 1.442695
  %v2310 = vpow.pop %v2309
  %v2311 = vmul.f32 %v2298, 1.442695
  %v2312 = vpow.pop %v2311
  %v2313 = vmul.f32 %v2299, 1.442695
  %v2314 = vpow.pop %v2313
  %v2315 = vmul.f32 %v2300, 1.442695
  %v2316 = vpow.pop %v2315
  %v2317 = vadd.f32 %v2302, 1.0
  %v2318 = vadd.f32 %v2304, 1.0
  %v2319 = vadd.f32 %v2306, 1.0
  %v2320 = vadd.f32 %v2308, 1.0
  %v2321 = vadd.f32 %v2310, 1.0
  %v2322 = vadd.f32 %v2312, 1.0
  %v2323 = vadd.f32 %v2314, 1.0
  %v2324 = vadd.f32 %v2316, 1.0
  %v2325 = vrcp.pop %v2317
  %v2326 = vmul.f32 %v2317, %v2325
  %v2327 = vsub.f32 1.0, %v2326
  %v2328 = vmul.f32 %v2325, %v2327
  %v2329 = vadd.f32 %v2325, %v2328
  %vm2330 = vweird.f32 %v2317
  %vm2331 = vweird.f32 %v2325
  %vm2332 = vmor %vm2330, %vm2331
  %v2333 = vsel %vm2332, %v2325, %v2329
  %v2334 = vand.u32 2147483647, %v2317
  %vm2335 = vcmp.eq.f32.partialorder %v2334, 8.507059e+37
  %v2336 = vand.u32 %v2317, 2147483648
  %v2337 = vor.u32 1.1754944e-38, %v2336
  %v2338 = vsel %vm2335, %v2337, %v2333
  %v2339 = vmul.f32 1.0, %v2338
  %v2340 = vrcp.pop %v2318
  %v2341 = vmul.f32 %v2318, %v2340
  %v2342 = vsub.f32 1.0, %v2341
  %v2343 = vmul.f32 %v2340, %v2342
  %v2344 = vadd.f32 %v2340, %v2343
  %vm2345 = vweird.f32 %v2318
  %vm2346 = vweird.f32 %v2340
  %vm2347 = vmor %vm2345, %vm2346
  %v2348 = vsel %vm2347, %v2340, %v2344
  %v2349 = vand.u32 2147483647, %v2318
  %vm2350 = vcmp.eq.f32.partialorder %v2349, 8.507059e+37
  %v2351 = vand.u32 %v2318, 2147483648
  %v2352 = vor.u32 1.1754944e-38, %v2351
  %v2353 = vsel %vm2350, %v2352, %v2348
  %v2354 = vmul.f32 1.0, %v2353
  %v2355 = vrcp.pop %v2319
  %v2356 = vmul.f32 %v2319, %v2355
  %v2357 = vsub.f32 1.0, %v2356
  %v2358 = vmul.f32 %v2355, %v2357
  %v2359 = vadd.f32 %v2355, %v2358
  %vm2360 = vweird.f32 %v2319
  %vm2361 = vweird.f32 %v2355
  %vm2362 = vmor %vm2360, %vm2361
  %v2363 = vsel %vm2362, %v2355, %v2359
  %v2364 = vand.u32 2147483647, %v2319
  %vm2365 = vcmp.eq.f32.partialorder %v2364, 8.507059e+37
  %v2366 = vand.u32 %v2319, 2147483648
  %v2367 = vor.u32 1.1754944e-38, %v2366
  %v2368 = vsel %vm2365, %v2367, %v2363
  %v2369 = vmul.f32 1.0, %v2368
  %v2370 = vrcp.pop %v2320
  %v2371 = vmul.f32 %v2320, %v2370
  %v2372 = vsub.f32 1.0, %v2371
  %v2373 = vmul.f32 %v2370, %v2372
  %v2374 = vadd.f32 %v2370, %v2373
  %vm2375 = vweird.f32 %v2320
  %vm2376 = vweird.f32 %v2370
  %vm2377 = vmor %vm2375, %vm2376
  %v2378 = vsel %vm2377, %v2370, %v2374
  %v2379 = vand.u32 2147483647, %v2320
  %vm2380 = vcmp.eq.f32.partialorder %v2379, 8.507059e+37
  %v2381 = vand.u32 %v2320, 2147483648
  %v2382 = vor.u32 1.1754944e-38, %v2381
  %v2383 = vsel %vm2380, %v2382, %v2378
  %v2384 = vmul.f32 1.0, %v2383
  %v2385 = vrcp.pop %v2321
  %v2386 = vmul.f32 %v2321, %v2385
  %v2387 = vsub.f32 1.0, %v2386
  %v2388 = vmul.f32 %v2385, %v2387
  %v2389 = vadd.f32 %v2385, %v2388
  %vm2390 = vweird.f32 %v2321
  %vm2391 = vweird.f32 %v2385
  %vm2392 = vmor %vm2390, %vm2391
  %v2393 = vsel %vm2392, %v2385, %v2389
  %v2394 = vand.u32 2147483647, %v2321
  %vm2395 = vcmp.eq.f32.partialorder %v2394, 8.507059e+37
  %v2396 = vand.u32 %v2321, 2147483648
  %v2397 = vor.u32 1.1754944e-38, %v2396
  %v2398 = vsel %vm2395, %v2397, %v2393
  %v2399 = vmul.f32 1.0, %v2398
  %v2400 = vrcp.pop %v2322
  %v2401 = vmul.f32 %v2322, %v2400
  %v2402 = vsub.f32 1.0, %v2401
  %v2403 = vmul.f32 %v2400, %v2402
  %v2404 = vadd.f32 %v2400, %v2403
  %vm2405 = vweird.f32 %v2322
  %vm2406 = vweird.f32 %v2400
  %vm2407 = vmor %vm2405, %vm2406
  %v2408 = vsel %vm2407, %v2400, %v2404
  %v2409 = vand.u32 2147483647, %v2322
  %vm2410 = vcmp.eq.f32.partialorder %v2409, 8.507059e+37
  %v2411 = vand.u32 %v2322, 2147483648
  %v2412 = vor.u32 1.1754944e-38, %v2411
  %v2413 = vsel %vm2410, %v2412, %v2408
  %v2414 = vmul.f32 1.0, %v2413
  %v2415 = vrcp.pop %v2323
  %v2416 = vmul.f32 %v2323, %v2415
  %v2417 = vsub.f32 1.0, %v2416
  %v2418 = vmul.f32 %v2415, %v2417
  %v2419 = vadd.f32 %v2415, %v2418
  %vm2420 = vweird.f32 %v2323
  %vm2421 = vweird.f32 %v2415
  %vm2422 = vmor %vm2420, %vm2421
  %v2423 = vsel %vm2422, %v2415, %v2419
  %v2424 = vand.u32 2147483647, %v2323
  %vm2425 = vcmp.eq.f32.partialorder %v2424, 8.507059e+37
  %v2426 = vand.u32 %v2323, 2147483648
  %v2427 = vor.u32 1.1754944e-38, %v2426
  %v2428 = vsel %vm2425, %v2427, %v2423
  %v2429 = vmul.f32 1.0, %v2428
  %v2430 = vrcp.pop %v2324
  %v2431 = vmul.f32 %v2324, %v2430
  %v2432 = vsub.f32 1.0, %v2431
  %v2433 = vmul.f32 %v2430, %v2432
  %v2434 = vadd.f32 %v2430, %v2433
  %vm2435 = vweird.f32 %v2324
  %vm2436 = vweird.f32 %v2430
  %vm2437 = vmor %vm2435, %vm2436
  %v2438 = vsel %vm2437, %v2430, %v2434
  %v2439 = vand.u32 2147483647, %v2324
  %vm2440 = vcmp.eq.f32.partialorder %v2439, 8.507059e+37
  %v2441 = vand.u32 %v2324, 2147483648
  %v2442 = vor.u32 1.1754944e-38, %v2441
  %v2443 = vsel %vm2440, %v2442, %v2438
  %v2444 = vmul.f32 1.0, %v2443
  %v2445 = vtanh.pop %v2285
  %v2446 = vtanh.pop %v2286
  %v2447 = vtanh.pop %v2287
  %v2448 = vtanh.pop %v2288
  %v2449 = vtanh.pop %v2289
  %v2450 = vtanh.pop %v2290
  %v2451 = vtanh.pop %v2291
  %v2452 = vtanh.pop %v2292
  %v2453 = vmul.f32 %v2339, 0.0
  %v2454 = vmul.f32 %v2354, 0.0
  %v2455 = vmul.f32 %v2369, 0.0
  %v2456 = vmul.f32 %v2384, 0.0
  %v2457 = vmul.f32 %v2399, 0.0
  %v2458 = vmul.f32 %v2414, 0.0
  %v2459 = vmul.f32 %v2429, 0.0
  %v2460 = vmul.f32 %v2444, 0.0
  %2469 = vrot.lane.b32.xlu0 %v2445, 32
  %v2470 = vpop.permute.xlu0 %2469
  %2471 = vrot.lane.b32.xlu0 %v2446, 32
  %v2472 = vpop.permute.xlu0 %2471
  %2473 = vrot.lane.b32.xlu0 %v2447, 32
  %v2474 = vpop.permute.xlu0 %2473
  %2475 = vrot.lane.b32.xlu0 %v2448, 32
  %v2476 = vpop.permute.xlu0 %2475
  %2477 = vrot.lane.b32.xlu0 %v2449, 32
  %v2478 = vpop.permute.xlu0 %2477
  %2479 = vrot.lane.b32.xlu0 %v2450, 32
  %v2480 = vpop.permute.xlu0 %2479
  %2481 = vrot.lane.b32.xlu0 %v2451, 32
  %v2482 = vpop.permute.xlu0 %2481
  %2483 = vrot.lane.b32.xlu0 %v2452, 32
  %v2484 = vpop.permute.xlu0 %2483
  %v2493 = vmul.f32 %v2339, %v2470
  %v2494 = vmul.f32 %v2354, %v2472
  %v2495 = vmul.f32 %v2369, %v2474
  %v2496 = vmul.f32 %v2384, %v2476
  %v2497 = vmul.f32 %v2399, %v2478
  %v2498 = vmul.f32 %v2414, %v2480
  %v2499 = vmul.f32 %v2429, %v2482
  %v2500 = vmul.f32 %v2444, %v2484
  %2509 = vrot.lane.b32.xlu0 %v2493, 32
  %v2510 = vpop.permute.xlu0 %2509
  %2511 = vrot.lane.b32.xlu0 %v2494, 32
  %v2512 = vpop.permute.xlu0 %2511
  %2513 = vrot.lane.b32.xlu0 %v2495, 32
  %v2514 = vpop.permute.xlu0 %2513
  %2515 = vrot.lane.b32.xlu0 %v2496, 32
  %v2516 = vpop.permute.xlu0 %2515
  %2517 = vrot.lane.b32.xlu0 %v2497, 32
  %v2518 = vpop.permute.xlu0 %2517
  %2519 = vrot.lane.b32.xlu0 %v2498, 32
  %v2520 = vpop.permute.xlu0 %2519
  %2521 = vrot.lane.b32.xlu0 %v2499, 32
  %v2522 = vpop.permute.xlu0 %2521
  %2523 = vrot.lane.b32.xlu0 %v2500, 32
  %v2524 = vpop.permute.xlu0 %2523
  %v2533 = vadd.f32 %v2453, %v2510
  %v2534 = vadd.f32 %v2454, %v2512
  %v2535 = vadd.f32 %v2455, %v2514
  %v2536 = vadd.f32 %v2456, %v2516
  %v2537 = vadd.f32 %v2457, %v2518
  %v2538 = vadd.f32 %v2458, %v2520
  %v2539 = vadd.f32 %v2459, %v2522
  %v2540 = vadd.f32 %v2460, %v2524
  %v2541 = vtanh.pop %v2533
  %v2542 = vtanh.pop %v2534
  %v2543 = vtanh.pop %v2535
  %v2544 = vtanh.pop %v2536
  %v2545 = vtanh.pop %v2537
  %v2546 = vtanh.pop %v2538
  %v2547 = vtanh.pop %v2539
  %v2548 = vtanh.pop %v2540
  %2557 = vrot.lane.b32.xlu0 %v2541, 32
  %v2558 = vpop.permute.xlu0 %2557
  %2559 = vrot.lane.b32.xlu0 %v2542, 32
  %v2560 = vpop.permute.xlu0 %2559
  %2561 = vrot.lane.b32.xlu0 %v2543, 32
  %v2562 = vpop.permute.xlu0 %2561
  %2563 = vrot.lane.b32.xlu0 %v2544, 32
  %v2564 = vpop.permute.xlu0 %2563
  %2565 = vrot.lane.b32.xlu0 %v2545, 32
  %v2566 = vpop.permute.xlu0 %2565
  %2567 = vrot.lane.b32.xlu0 %v2546, 32
  %v2568 = vpop.permute.xlu0 %2567
  %2569 = vrot.lane.b32.xlu0 %v2547, 32
  %v2570 = vpop.permute.xlu0 %2569
  %2571 = vrot.lane.b32.xlu0 %v2548, 32
  %v2572 = vpop.permute.xlu0 %2571
  %v2581 = vmul.f32 %v2339, %v2558
  %v2582 = vmul.f32 %v2354, %v2560
  %v2583 = vmul.f32 %v2369, %v2562
  %v2584 = vmul.f32 %v2384, %v2564
  %v2585 = vmul.f32 %v2399, %v2566
  %v2586 = vmul.f32 %v2414, %v2568
  %v2587 = vmul.f32 %v2429, %v2570
  %v2588 = vmul.f32 %v2444, %v2572
  %v2589 = vpack.c.bf16 %v2582, %v2581
  %v2590 = vpack.c.bf16 %v2584, %v2583
  %v2591 = vpack.c.bf16 %v2586, %v2585
  %v2592 = vpack.c.bf16 %v2588, %v2587
  %2597 = vrot.lane.b32.xlu0 %v2589, 64
  %v2598 = vpop.permute.xlu0 %2597
  %2599 = vrot.lane.b32.xlu0 %v2590, 64
  %v2600 = vpop.permute.xlu0 %2599
  %2601 = vrot.lane.b32.xlu0 %v2591, 64
  %v2602 = vpop.permute.xlu0 %2601
  %2603 = vrot.lane.b32.xlu0 %v2592, 64
  %v2604 = vpop.permute.xlu0 %2603
  %v2606 = vsel %vm1887, %v2598, 0
  %v2609 = vsel %vm1887, %v2600, 0
  %v2612 = vsel %vm1887, %v2602, 0
  %v2615 = vsel %vm1887, %v2604, 0
  %2617 = vmatpush.bf16.msra.mxu0 0
  %2618 = vmatpush.bf16.msra.mxu0 0
  %2619 = vmatpush.bf16.msra.mxu0 0
  %2620 = vmatpush.bf16.msra.mxu0 0
  %2621 = vmatpush.bf16.msra.mxu0 0
  %2622 = vmatpush.bf16.msra.mxu0 0
  %2623 = vmatpush.bf16.msra.mxu0 %v2251
  %2624 = vmatpush.bf16.msra.mxu0 %v2250
  %2625 = vmatmul.bf16.gmra.mxu0 %v2606
  %v2626 = vpop.f32.mrf.mxu0
  %v2627 = vadd.f32 0.0, %v2626
  %v2628 = vpop.f32.mrf.mxu0
  %v2629 = vadd.f32 0.0, %v2628
  %2630 = vmatmul.bf16.gmra.mxu0 %v2609
  %v2631 = vpop.f32.mrf.mxu0
  %v2632 = vadd.f32 0.0, %v2631
  %v2633 = vpop.f32.mrf.mxu0
  %v2634 = vadd.f32 0.0, %v2633
  %2635 = vmatmul.bf16.gmra.mxu0 %v2612
  %v2636 = vpop.f32.mrf.mxu0
  %v2637 = vadd.f32 0.0, %v2636
  %v2638 = vpop.f32.mrf.mxu0
  %v2639 = vadd.f32 0.0, %v2638
  %2640 = vmatmul.bf16.gmra.mxu0 %v2615
  %v2641 = vpop.f32.mrf.mxu0
  %v2642 = vadd.f32 0.0, %v2641
  %v2643 = vpop.f32.mrf.mxu0
  %v2644 = vadd.f32 0.0, %v2643
  %2645 = vdwg.mxu0
  %v2646 = vadd.f32 %v2179, %v2627
  %v2647 = vadd.f32 %v2181, %v2629
  %v2648 = vadd.f32 %v2184, %v2632
  %v2649 = vadd.f32 %v2186, %v2634
  %v2650 = vadd.f32 %v2189, %v2637
  %v2651 = vadd.f32 %v2191, %v2639
  %v2652 = vadd.f32 %v2194, %v2642
  %v2653 = vadd.f32 %v2196, %v2644
  %v2654 = vxor.u32 %v2646, 2147483648
  %v2655 = vxor.u32 %v2647, 2147483648
  %v2656 = vxor.u32 %v2648, 2147483648
  %v2657 = vxor.u32 %v2649, 2147483648
  %v2658 = vxor.u32 %v2650, 2147483648
  %v2659 = vxor.u32 %v2651, 2147483648
  %v2660 = vxor.u32 %v2652, 2147483648
  %v2661 = vxor.u32 %v2653, 2147483648
  %v2662 = vmul.f32 %v2654, 1.442695
  %v2663 = vpow.pop %v2662
  %v2664 = vmul.f32 %v2655, 1.442695
  %v2665 = vpow.pop %v2664
  %v2666 = vmul.f32 %v2656, 1.442695
  %v2667 = vpow.pop %v2666
  %v2668 = vmul.f32 %v2657, 1.442695
  %v2669 = vpow.pop %v2668
  %v2670 = vmul.f32 %v2658, 1.442695
  %v2671 = vpow.pop %v2670
  %v2672 = vmul.f32 %v2659, 1.442695
  %v2673 = vpow.pop %v2672
  %v2674 = vmul.f32 %v2660, 1.442695
  %v2675 = vpow.pop %v2674
  %v2676 = vmul.f32 %v2661, 1.442695
  %v2677 = vpow.pop %v2676
  %v2678 = vadd.f32 %v2663, 1.0
  %v2679 = vadd.f32 %v2665, 1.0
  %v2680 = vadd.f32 %v2667, 1.0
  %v2681 = vadd.f32 %v2669, 1.0
  %v2682 = vadd.f32 %v2671, 1.0
  %v2683 = vadd.f32 %v2673, 1.0
  %v2684 = vadd.f32 %v2675, 1.0
  %v2685 = vadd.f32 %v2677, 1.0
  %v2686 = vrcp.pop %v2678
  %v2687 = vmul.f32 %v2678, %v2686
  %v2688 = vsub.f32 1.0, %v2687
  %v2689 = vmul.f32 %v2686, %v2688
  %v2690 = vadd.f32 %v2686, %v2689
  %vm2691 = vweird.f32 %v2678
  %vm2692 = vweird.f32 %v2686
  %vm2693 = vmor %vm2691, %vm2692
  %v2694 = vsel %vm2693, %v2686, %v2690
  %v2695 = vand.u32 2147483647, %v2678
  %vm2696 = vcmp.eq.f32.partialorder %v2695, 8.507059e+37
  %v2697 = vand.u32 %v2678, 2147483648
  %v2698 = vor.u32 1.1754944e-38, %v2697
  %v2699 = vsel %vm2696, %v2698, %v2694
  %v2700 = vmul.f32 1.0, %v2699
  %v2701 = vrcp.pop %v2679
  %v2702 = vmul.f32 %v2679, %v2701
  %v2703 = vsub.f32 1.0, %v2702
  %v2704 = vmul.f32 %v2701, %v2703
  %v2705 = vadd.f32 %v2701, %v2704
  %vm2706 = vweird.f32 %v2679
  %vm2707 = vweird.f32 %v2701
  %vm2708 = vmor %vm2706, %vm2707
  %v2709 = vsel %vm2708, %v2701, %v2705
  %v2710 = vand.u32 2147483647, %v2679
  %vm2711 = vcmp.eq.f32.partialorder %v2710, 8.507059e+37
  %v2712 = vand.u32 %v2679, 2147483648
  %v2713 = vor.u32 1.1754944e-38, %v2712
  %v2714 = vsel %vm2711, %v2713, %v2709
  %v2715 = vmul.f32 1.0, %v2714
  %v2716 = vrcp.pop %v2680
  %v2717 = vmul.f32 %v2680, %v2716
  %v2718 = vsub.f32 1.0, %v2717
  %v2719 = vmul.f32 %v2716, %v2718
  %v2720 = vadd.f32 %v2716, %v2719
  %vm2721 = vweird.f32 %v2680
  %vm2722 = vweird.f32 %v2716
  %vm2723 = vmor %vm2721, %vm2722
  %v2724 = vsel %vm2723, %v2716, %v2720
  %v2725 = vand.u32 2147483647, %v2680
  %vm2726 = vcmp.eq.f32.partialorder %v2725, 8.507059e+37
  %v2727 = vand.u32 %v2680, 2147483648
  %v2728 = vor.u32 1.1754944e-38, %v2727
  %v2729 = vsel %vm2726, %v2728, %v2724
  %v2730 = vmul.f32 1.0, %v2729
  %v2731 = vrcp.pop %v2681
  %v2732 = vmul.f32 %v2681, %v2731
  %v2733 = vsub.f32 1.0, %v2732
  %v2734 = vmul.f32 %v2731, %v2733
  %v2735 = vadd.f32 %v2731, %v2734
  %vm2736 = vweird.f32 %v2681
  %vm2737 = vweird.f32 %v2731
  %vm2738 = vmor %vm2736, %vm2737
  %v2739 = vsel %vm2738, %v2731, %v2735
  %v2740 = vand.u32 2147483647, %v2681
  %vm2741 = vcmp.eq.f32.partialorder %v2740, 8.507059e+37
  %v2742 = vand.u32 %v2681, 2147483648
  %v2743 = vor.u32 1.1754944e-38, %v2742
  %v2744 = vsel %vm2741, %v2743, %v2739
  %v2745 = vmul.f32 1.0, %v2744
  %v2746 = vrcp.pop %v2682
  %v2747 = vmul.f32 %v2682, %v2746
  %v2748 = vsub.f32 1.0, %v2747
  %v2749 = vmul.f32 %v2746, %v2748
  %v2750 = vadd.f32 %v2746, %v2749
  %vm2751 = vweird.f32 %v2682
  %vm2752 = vweird.f32 %v2746
  %vm2753 = vmor %vm2751, %vm2752
  %v2754 = vsel %vm2753, %v2746, %v2750
  %v2755 = vand.u32 2147483647, %v2682
  %vm2756 = vcmp.eq.f32.partialorder %v2755, 8.507059e+37
  %v2757 = vand.u32 %v2682, 2147483648
  %v2758 = vor.u32 1.1754944e-38, %v2757
  %v2759 = vsel %vm2756, %v2758, %v2754
  %v2760 = vmul.f32 1.0, %v2759
  %v2761 = vrcp.pop %v2683
  %v2762 = vmul.f32 %v2683, %v2761
  %v2763 = vsub.f32 1.0, %v2762
  %v2764 = vmul.f32 %v2761, %v2763
  %v2765 = vadd.f32 %v2761, %v2764
  %vm2766 = vweird.f32 %v2683
  %vm2767 = vweird.f32 %v2761
  %vm2768 = vmor %vm2766, %vm2767
  %v2769 = vsel %vm2768, %v2761, %v2765
  %v2770 = vand.u32 2147483647, %v2683
  %vm2771 = vcmp.eq.f32.partialorder %v2770, 8.507059e+37
  %v2772 = vand.u32 %v2683, 2147483648
  %v2773 = vor.u32 1.1754944e-38, %v2772
  %v2774 = vsel %vm2771, %v2773, %v2769
  %v2775 = vmul.f32 1.0, %v2774
  %v2776 = vrcp.pop %v2684
  %v2777 = vmul.f32 %v2684, %v2776
  %v2778 = vsub.f32 1.0, %v2777
  %v2779 = vmul.f32 %v2776, %v2778
  %v2780 = vadd.f32 %v2776, %v2779
  %vm2781 = vweird.f32 %v2684
  %vm2782 = vweird.f32 %v2776
  %vm2783 = vmor %vm2781, %vm2782
  %v2784 = vsel %vm2783, %v2776, %v2780
  %v2785 = vand.u32 2147483647, %v2684
  %vm2786 = vcmp.eq.f32.partialorder %v2785, 8.507059e+37
  %v2787 = vand.u32 %v2684, 2147483648
  %v2788 = vor.u32 1.1754944e-38, %v2787
  %v2789 = vsel %vm2786, %v2788, %v2784
  %v2790 = vmul.f32 1.0, %v2789
  %v2791 = vrcp.pop %v2685
  %v2792 = vmul.f32 %v2685, %v2791
  %v2793 = vsub.f32 1.0, %v2792
  %v2794 = vmul.f32 %v2791, %v2793
  %v2795 = vadd.f32 %v2791, %v2794
  %vm2796 = vweird.f32 %v2685
  %vm2797 = vweird.f32 %v2791
  %vm2798 = vmor %vm2796, %vm2797
  %v2799 = vsel %vm2798, %v2791, %v2795
  %v2800 = vand.u32 2147483647, %v2685
  %vm2801 = vcmp.eq.f32.partialorder %v2800, 8.507059e+37
  %v2802 = vand.u32 %v2685, 2147483648
  %v2803 = vor.u32 1.1754944e-38, %v2802
  %v2804 = vsel %vm2801, %v2803, %v2799
  %v2805 = vmul.f32 1.0, %v2804
  %v2806 = vtanh.pop %v2646
  %v2807 = vtanh.pop %v2647
  %v2808 = vtanh.pop %v2648
  %v2809 = vtanh.pop %v2649
  %v2810 = vtanh.pop %v2650
  %v2811 = vtanh.pop %v2651
  %v2812 = vtanh.pop %v2652
  %v2813 = vtanh.pop %v2653
  %v2814 = vmul.f32 %v2700, %v2533
  %v2815 = vmul.f32 %v2715, %v2534
  %v2816 = vmul.f32 %v2730, %v2535
  %v2817 = vmul.f32 %v2745, %v2536
  %v2818 = vmul.f32 %v2760, %v2537
  %v2819 = vmul.f32 %v2775, %v2538
  %v2820 = vmul.f32 %v2790, %v2539
  %v2821 = vmul.f32 %v2805, %v2540
  %2830 = vrot.lane.b32.xlu0 %v2806, 32
  %v2831 = vpop.permute.xlu0 %2830
  %2832 = vrot.lane.b32.xlu0 %v2807, 32
  %v2833 = vpop.permute.xlu0 %2832
  %2834 = vrot.lane.b32.xlu0 %v2808, 32
  %v2835 = vpop.permute.xlu0 %2834
  %2836 = vrot.lane.b32.xlu0 %v2809, 32
  %v2837 = vpop.permute.xlu0 %2836
  %2838 = vrot.lane.b32.xlu0 %v2810, 32
  %v2839 = vpop.permute.xlu0 %2838
  %2840 = vrot.lane.b32.xlu0 %v2811, 32
  %v2841 = vpop.permute.xlu0 %2840
  %2842 = vrot.lane.b32.xlu0 %v2812, 32
  %v2843 = vpop.permute.xlu0 %2842
  %2844 = vrot.lane.b32.xlu0 %v2813, 32
  %v2845 = vpop.permute.xlu0 %2844
  %v2854 = vmul.f32 %v2700, %v2831
  %v2855 = vmul.f32 %v2715, %v2833
  %v2856 = vmul.f32 %v2730, %v2835
  %v2857 = vmul.f32 %v2745, %v2837
  %v2858 = vmul.f32 %v2760, %v2839
  %v2859 = vmul.f32 %v2775, %v2841
  %v2860 = vmul.f32 %v2790, %v2843
  %v2861 = vmul.f32 %v2805, %v2845
  %2870 = vrot.lane.b32.xlu0 %v2854, 32
  %v2871 = vpop.permute.xlu0 %2870
  %2872 = vrot.lane.b32.xlu0 %v2855, 32
  %v2873 = vpop.permute.xlu0 %2872
  %2874 = vrot.lane.b32.xlu0 %v2856, 32
  %v2875 = vpop.permute.xlu0 %2874
  %2876 = vrot.lane.b32.xlu0 %v2857, 32
  %v2877 = vpop.permute.xlu0 %2876
  %2878 = vrot.lane.b32.xlu0 %v2858, 32
  %v2879 = vpop.permute.xlu0 %2878
  %2880 = vrot.lane.b32.xlu0 %v2859, 32
  %v2881 = vpop.permute.xlu0 %2880
  %2882 = vrot.lane.b32.xlu0 %v2860, 32
  %v2883 = vpop.permute.xlu0 %2882
  %2884 = vrot.lane.b32.xlu0 %v2861, 32
  %v2885 = vpop.permute.xlu0 %2884
  %v2894 = vadd.f32 %v2814, %v2871
  %v2895 = vadd.f32 %v2815, %v2873
  %v2896 = vadd.f32 %v2816, %v2875
  %v2897 = vadd.f32 %v2817, %v2877
  %v2898 = vadd.f32 %v2818, %v2879
  %v2899 = vadd.f32 %v2819, %v2881
  %v2900 = vadd.f32 %v2820, %v2883
  %v2901 = vadd.f32 %v2821, %v2885
  %v2902 = vtanh.pop %v2894
  %v2903 = vtanh.pop %v2895
  %v2904 = vtanh.pop %v2896
  %v2905 = vtanh.pop %v2897
  %v2906 = vtanh.pop %v2898
  %v2907 = vtanh.pop %v2899
  %v2908 = vtanh.pop %v2900
  %v2909 = vtanh.pop %v2901
  %2918 = vrot.lane.b32.xlu0 %v2902, 32
  %v2919 = vpop.permute.xlu0 %2918
  %2920 = vrot.lane.b32.xlu0 %v2903, 32
  %v2921 = vpop.permute.xlu0 %2920
  %2922 = vrot.lane.b32.xlu0 %v2904, 32
  %v2923 = vpop.permute.xlu0 %2922
  %2924 = vrot.lane.b32.xlu0 %v2905, 32
  %v2925 = vpop.permute.xlu0 %2924
  %2926 = vrot.lane.b32.xlu0 %v2906, 32
  %v2927 = vpop.permute.xlu0 %2926
  %2928 = vrot.lane.b32.xlu0 %v2907, 32
  %v2929 = vpop.permute.xlu0 %2928
  %2930 = vrot.lane.b32.xlu0 %v2908, 32
  %v2931 = vpop.permute.xlu0 %2930
  %2932 = vrot.lane.b32.xlu0 %v2909, 32
  %v2933 = vpop.permute.xlu0 %2932
  %v2942 = vmul.f32 %v2700, %v2919
  %v2943 = vmul.f32 %v2715, %v2921
  %v2944 = vmul.f32 %v2730, %v2923
  %v2945 = vmul.f32 %v2745, %v2925
  %v2946 = vmul.f32 %v2760, %v2927
  %v2947 = vmul.f32 %v2775, %v2929
  %v2948 = vmul.f32 %v2790, %v2931
  %v2949 = vmul.f32 %v2805, %v2933
  %v2950 = vpack.c.bf16 %v2943, %v2942
  %v2951 = vpack.c.bf16 %v2945, %v2944
  %v2952 = vpack.c.bf16 %v2947, %v2946
  %v2953 = vpack.c.bf16 %v2949, %v2948
  %2958 = vrot.lane.b32.xlu0 %v2950, 64
  %v2959 = vpop.permute.xlu0 %2958
  %2960 = vrot.lane.b32.xlu0 %v2951, 64
  %v2961 = vpop.permute.xlu0 %2960
  %2962 = vrot.lane.b32.xlu0 %v2952, 64
  %v2963 = vpop.permute.xlu0 %2962
  %2964 = vrot.lane.b32.xlu0 %v2953, 64
  %v2965 = vpop.permute.xlu0 %2964
  %v2967 = vsel %vm1887, %v2959, 0
  %v2970 = vsel %vm1887, %v2961, 0
  %v2973 = vsel %vm1887, %v2963, 0
  %v2976 = vsel %vm1887, %v2965, 0
  %2978 = vmatpush.bf16.msra.mxu0 0
  %2979 = vmatpush.bf16.msra.mxu0 0
  %2980 = vmatpush.bf16.msra.mxu0 0
  %2981 = vmatpush.bf16.msra.mxu0 0
  %2982 = vmatpush.bf16.msra.mxu0 0
  %2983 = vmatpush.bf16.msra.mxu0 0
  %2984 = vmatpush.bf16.msra.mxu0 %v2251
  %2985 = vmatpush.bf16.msra.mxu0 %v2250
  %2986 = vmatmul.bf16.gmra.mxu0 %v2967
  %v2987 = vpop.f32.mrf.mxu0
  %v2988 = vadd.f32 0.0, %v2987
  %v2989 = vpop.f32.mrf.mxu0
  %v2990 = vadd.f32 0.0, %v2989
  %2991 = vmatmul.bf16.gmra.mxu0 %v2970
  %v2992 = vpop.f32.mrf.mxu0
  %v2993 = vadd.f32 0.0, %v2992
  %v2994 = vpop.f32.mrf.mxu0
  %v2995 = vadd.f32 0.0, %v2994
  %2996 = vmatmul.bf16.gmra.mxu0 %v2973
  %v2997 = vpop.f32.mrf.mxu0
  %v2998 = vadd.f32 0.0, %v2997
  %v2999 = vpop.f32.mrf.mxu0
  %v3000 = vadd.f32 0.0, %v2999
  %3001 = vmatmul.bf16.gmra.mxu0 %v2976
  %v3002 = vpop.f32.mrf.mxu0
  %v3003 = vadd.f32 0.0, %v3002
  %v3004 = vpop.f32.mrf.mxu0
  %v3005 = vadd.f32 0.0, %v3004
  %3006 = vdwg.mxu0
  %v3007 = vadd.f32 %v2199, %v2988
  %v3008 = vadd.f32 %v2201, %v2990
  %v3009 = vadd.f32 %v2204, %v2993
  %v3010 = vadd.f32 %v2206, %v2995
  %v3011 = vadd.f32 %v2209, %v2998
  %v3012 = vadd.f32 %v2211, %v3000
  %v3013 = vadd.f32 %v2214, %v3003
  %v3014 = vadd.f32 %v2216, %v3005
  %v3015 = vxor.u32 %v3007, 2147483648
  %v3016 = vxor.u32 %v3008, 2147483648
  %v3017 = vxor.u32 %v3009, 2147483648
  %v3018 = vxor.u32 %v3010, 2147483648
  %v3019 = vxor.u32 %v3011, 2147483648
  %v3020 = vxor.u32 %v3012, 2147483648
  %v3021 = vxor.u32 %v3013, 2147483648
  %v3022 = vxor.u32 %v3014, 2147483648
  %v3023 = vmul.f32 %v3015, 1.442695
  %v3024 = vpow.pop %v3023
  %v3025 = vmul.f32 %v3016, 1.442695
  %v3026 = vpow.pop %v3025
  %v3027 = vmul.f32 %v3017, 1.442695
  %v3028 = vpow.pop %v3027
  %v3029 = vmul.f32 %v3018, 1.442695
  %v3030 = vpow.pop %v3029
  %v3031 = vmul.f32 %v3019, 1.442695
  %v3032 = vpow.pop %v3031
  %v3033 = vmul.f32 %v3020, 1.442695
  %v3034 = vpow.pop %v3033
  %v3035 = vmul.f32 %v3021, 1.442695
  %v3036 = vpow.pop %v3035
  %v3037 = vmul.f32 %v3022, 1.442695
  %v3038 = vpow.pop %v3037
  %v3039 = vadd.f32 %v3024, 1.0
  %v3040 = vadd.f32 %v3026, 1.0
  %v3041 = vadd.f32 %v3028, 1.0
  %v3042 = vadd.f32 %v3030, 1.0
  %v3043 = vadd.f32 %v3032, 1.0
  %v3044 = vadd.f32 %v3034, 1.0
  %v3045 = vadd.f32 %v3036, 1.0
  %v3046 = vadd.f32 %v3038, 1.0
  %v3047 = vrcp.pop %v3039
  %v3048 = vmul.f32 %v3039, %v3047
  %v3049 = vsub.f32 1.0, %v3048
  %v3050 = vmul.f32 %v3047, %v3049
  %v3051 = vadd.f32 %v3047, %v3050
  %vm3052 = vweird.f32 %v3039
  %vm3053 = vweird.f32 %v3047
  %vm3054 = vmor %vm3052, %vm3053
  %v3055 = vsel %vm3054, %v3047, %v3051
  %v3056 = vand.u32 2147483647, %v3039
  %vm3057 = vcmp.eq.f32.partialorder %v3056, 8.507059e+37
  %v3058 = vand.u32 %v3039, 2147483648
  %v3059 = vor.u32 1.1754944e-38, %v3058
  %v3060 = vsel %vm3057, %v3059, %v3055
  %v3061 = vmul.f32 1.0, %v3060
  %v3062 = vrcp.pop %v3040
  %v3063 = vmul.f32 %v3040, %v3062
  %v3064 = vsub.f32 1.0, %v3063
  %v3065 = vmul.f32 %v3062, %v3064
  %v3066 = vadd.f32 %v3062, %v3065
  %vm3067 = vweird.f32 %v3040
  %vm3068 = vweird.f32 %v3062
  %vm3069 = vmor %vm3067, %vm3068
  %v3070 = vsel %vm3069, %v3062, %v3066
  %v3071 = vand.u32 2147483647, %v3040
  %vm3072 = vcmp.eq.f32.partialorder %v3071, 8.507059e+37
  %v3073 = vand.u32 %v3040, 2147483648
  %v3074 = vor.u32 1.1754944e-38, %v3073
  %v3075 = vsel %vm3072, %v3074, %v3070
  %v3076 = vmul.f32 1.0, %v3075
  %v3077 = vrcp.pop %v3041
  %v3078 = vmul.f32 %v3041, %v3077
  %v3079 = vsub.f32 1.0, %v3078
  %v3080 = vmul.f32 %v3077, %v3079
  %v3081 = vadd.f32 %v3077, %v3080
  %vm3082 = vweird.f32 %v3041
  %vm3083 = vweird.f32 %v3077
  %vm3084 = vmor %vm3082, %vm3083
  %v3085 = vsel %vm3084, %v3077, %v3081
  %v3086 = vand.u32 2147483647, %v3041
  %vm3087 = vcmp.eq.f32.partialorder %v3086, 8.507059e+37
  %v3088 = vand.u32 %v3041, 2147483648
  %v3089 = vor.u32 1.1754944e-38, %v3088
  %v3090 = vsel %vm3087, %v3089, %v3085
  %v3091 = vmul.f32 1.0, %v3090
  %v3092 = vrcp.pop %v3042
  %v3093 = vmul.f32 %v3042, %v3092
  %v3094 = vsub.f32 1.0, %v3093
  %v3095 = vmul.f32 %v3092, %v3094
  %v3096 = vadd.f32 %v3092, %v3095
  %vm3097 = vweird.f32 %v3042
  %vm3098 = vweird.f32 %v3092
  %vm3099 = vmor %vm3097, %vm3098
  %v3100 = vsel %vm3099, %v3092, %v3096
  %v3101 = vand.u32 2147483647, %v3042
  %vm3102 = vcmp.eq.f32.partialorder %v3101, 8.507059e+37
  %v3103 = vand.u32 %v3042, 2147483648
  %v3104 = vor.u32 1.1754944e-38, %v3103
  %v3105 = vsel %vm3102, %v3104, %v3100
  %v3106 = vmul.f32 1.0, %v3105
  %v3107 = vrcp.pop %v3043
  %v3108 = vmul.f32 %v3043, %v3107
  %v3109 = vsub.f32 1.0, %v3108
  %v3110 = vmul.f32 %v3107, %v3109
  %v3111 = vadd.f32 %v3107, %v3110
  %vm3112 = vweird.f32 %v3043
  %vm3113 = vweird.f32 %v3107
  %vm3114 = vmor %vm3112, %vm3113
  %v3115 = vsel %vm3114, %v3107, %v3111
  %v3116 = vand.u32 2147483647, %v3043
  %vm3117 = vcmp.eq.f32.partialorder %v3116, 8.507059e+37
  %v3118 = vand.u32 %v3043, 2147483648
  %v3119 = vor.u32 1.1754944e-38, %v3118
  %v3120 = vsel %vm3117, %v3119, %v3115
  %v3121 = vmul.f32 1.0, %v3120
  %v3122 = vrcp.pop %v3044
  %v3123 = vmul.f32 %v3044, %v3122
  %v3124 = vsub.f32 1.0, %v3123
  %v3125 = vmul.f32 %v3122, %v3124
  %v3126 = vadd.f32 %v3122, %v3125
  %vm3127 = vweird.f32 %v3044
  %vm3128 = vweird.f32 %v3122
  %vm3129 = vmor %vm3127, %vm3128
  %v3130 = vsel %vm3129, %v3122, %v3126
  %v3131 = vand.u32 2147483647, %v3044
  %vm3132 = vcmp.eq.f32.partialorder %v3131, 8.507059e+37
  %v3133 = vand.u32 %v3044, 2147483648
  %v3134 = vor.u32 1.1754944e-38, %v3133
  %v3135 = vsel %vm3132, %v3134, %v3130
  %v3136 = vmul.f32 1.0, %v3135
  %v3137 = vrcp.pop %v3045
  %v3138 = vmul.f32 %v3045, %v3137
  %v3139 = vsub.f32 1.0, %v3138
  %v3140 = vmul.f32 %v3137, %v3139
  %v3141 = vadd.f32 %v3137, %v3140
  %vm3142 = vweird.f32 %v3045
  %vm3143 = vweird.f32 %v3137
  %vm3144 = vmor %vm3142, %vm3143
  %v3145 = vsel %vm3144, %v3137, %v3141
  %v3146 = vand.u32 2147483647, %v3045
  %vm3147 = vcmp.eq.f32.partialorder %v3146, 8.507059e+37
  %v3148 = vand.u32 %v3045, 2147483648
  %v3149 = vor.u32 1.1754944e-38, %v3148
  %v3150 = vsel %vm3147, %v3149, %v3145
  %v3151 = vmul.f32 1.0, %v3150
  %v3152 = vrcp.pop %v3046
  %v3153 = vmul.f32 %v3046, %v3152
  %v3154 = vsub.f32 1.0, %v3153
  %v3155 = vmul.f32 %v3152, %v3154
  %v3156 = vadd.f32 %v3152, %v3155
  %vm3157 = vweird.f32 %v3046
  %vm3158 = vweird.f32 %v3152
  %vm3159 = vmor %vm3157, %vm3158
  %v3160 = vsel %vm3159, %v3152, %v3156
  %v3161 = vand.u32 2147483647, %v3046
  %vm3162 = vcmp.eq.f32.partialorder %v3161, 8.507059e+37
  %v3163 = vand.u32 %v3046, 2147483648
  %v3164 = vor.u32 1.1754944e-38, %v3163
  %v3165 = vsel %vm3162, %v3164, %v3160
  %v3166 = vmul.f32 1.0, %v3165
  %v3167 = vtanh.pop %v3007
  %v3168 = vtanh.pop %v3008
  %v3169 = vtanh.pop %v3009
  %v3170 = vtanh.pop %v3010
  %v3171 = vtanh.pop %v3011
  %v3172 = vtanh.pop %v3012
  %v3173 = vtanh.pop %v3013
  %v3174 = vtanh.pop %v3014
  %v3175 = vmul.f32 %v3061, %v2894
  %v3176 = vmul.f32 %v3076, %v2895
  %v3177 = vmul.f32 %v3091, %v2896
  %v3178 = vmul.f32 %v3106, %v2897
  %v3179 = vmul.f32 %v3121, %v2898
  %v3180 = vmul.f32 %v3136, %v2899
  %v3181 = vmul.f32 %v3151, %v2900
  %v3182 = vmul.f32 %v3166, %v2901
  %3191 = vrot.lane.b32.xlu0 %v3167, 32
  %v3192 = vpop.permute.xlu0 %3191
  %3193 = vrot.lane.b32.xlu0 %v3168, 32
  %v3194 = vpop.permute.xlu0 %3193
  %3195 = vrot.lane.b32.xlu0 %v3169, 32
  %v3196 = vpop.permute.xlu0 %3195
  %3197 = vrot.lane.b32.xlu0 %v3170, 32
  %v3198 = vpop.permute.xlu0 %3197
  %3199 = vrot.lane.b32.xlu0 %v3171, 32
  %v3200 = vpop.permute.xlu0 %3199
  %3201 = vrot.lane.b32.xlu0 %v3172, 32
  %v3202 = vpop.permute.xlu0 %3201
  %3203 = vrot.lane.b32.xlu0 %v3173, 32
  %v3204 = vpop.permute.xlu0 %3203
  %3205 = vrot.lane.b32.xlu0 %v3174, 32
  %v3206 = vpop.permute.xlu0 %3205
  %v3215 = vmul.f32 %v3061, %v3192
  %v3216 = vmul.f32 %v3076, %v3194
  %v3217 = vmul.f32 %v3091, %v3196
  %v3218 = vmul.f32 %v3106, %v3198
  %v3219 = vmul.f32 %v3121, %v3200
  %v3220 = vmul.f32 %v3136, %v3202
  %v3221 = vmul.f32 %v3151, %v3204
  %v3222 = vmul.f32 %v3166, %v3206
  %3231 = vrot.lane.b32.xlu0 %v3215, 32
  %v3232 = vpop.permute.xlu0 %3231
  %3233 = vrot.lane.b32.xlu0 %v3216, 32
  %v3234 = vpop.permute.xlu0 %3233
  %3235 = vrot.lane.b32.xlu0 %v3217, 32
  %v3236 = vpop.permute.xlu0 %3235
  %3237 = vrot.lane.b32.xlu0 %v3218, 32
  %v3238 = vpop.permute.xlu0 %3237
  %3239 = vrot.lane.b32.xlu0 %v3219, 32
  %v3240 = vpop.permute.xlu0 %3239
  %3241 = vrot.lane.b32.xlu0 %v3220, 32
  %v3242 = vpop.permute.xlu0 %3241
  %3243 = vrot.lane.b32.xlu0 %v3221, 32
  %v3244 = vpop.permute.xlu0 %3243
  %3245 = vrot.lane.b32.xlu0 %v3222, 32
  %v3246 = vpop.permute.xlu0 %3245
  %v3255 = vadd.f32 %v3175, %v3232
  %v3256 = vadd.f32 %v3176, %v3234
  %v3257 = vadd.f32 %v3177, %v3236
  %v3258 = vadd.f32 %v3178, %v3238
  %v3259 = vadd.f32 %v3179, %v3240
  %v3260 = vadd.f32 %v3180, %v3242
  %v3261 = vadd.f32 %v3181, %v3244
  %v3262 = vadd.f32 %v3182, %v3246
  %v3263 = vtanh.pop %v3255
  %v3264 = vtanh.pop %v3256
  %v3265 = vtanh.pop %v3257
  %v3266 = vtanh.pop %v3258
  %v3267 = vtanh.pop %v3259
  %v3268 = vtanh.pop %v3260
  %v3269 = vtanh.pop %v3261
  %v3270 = vtanh.pop %v3262
  %3279 = vrot.lane.b32.xlu0 %v3263, 32
  %v3280 = vpop.permute.xlu0 %3279
  %3281 = vrot.lane.b32.xlu0 %v3264, 32
  %v3282 = vpop.permute.xlu0 %3281
  %3283 = vrot.lane.b32.xlu0 %v3265, 32
  %v3284 = vpop.permute.xlu0 %3283
  %3285 = vrot.lane.b32.xlu0 %v3266, 32
  %v3286 = vpop.permute.xlu0 %3285
  %3287 = vrot.lane.b32.xlu0 %v3267, 32
  %v3288 = vpop.permute.xlu0 %3287
  %3289 = vrot.lane.b32.xlu0 %v3268, 32
  %v3290 = vpop.permute.xlu0 %3289
  %3291 = vrot.lane.b32.xlu0 %v3269, 32
  %v3292 = vpop.permute.xlu0 %3291
  %3293 = vrot.lane.b32.xlu0 %v3270, 32
  %v3294 = vpop.permute.xlu0 %3293
  %v3303 = vmul.f32 %v3061, %v3280
  %v3304 = vmul.f32 %v3076, %v3282
  %v3305 = vmul.f32 %v3091, %v3284
  %v3306 = vmul.f32 %v3106, %v3286
  %v3307 = vmul.f32 %v3121, %v3288
  %v3308 = vmul.f32 %v3136, %v3290
  %v3309 = vmul.f32 %v3151, %v3292
  %v3310 = vmul.f32 %v3166, %v3294
  %v3311 = vpack.c.bf16 %v3304, %v3303
  %v3312 = vpack.c.bf16 %v3306, %v3305
  %v3313 = vpack.c.bf16 %v3308, %v3307
  %v3314 = vpack.c.bf16 %v3310, %v3309
  %3319 = vrot.lane.b32.xlu0 %v3311, 64
  %v3320 = vpop.permute.xlu0 %3319
  %3321 = vrot.lane.b32.xlu0 %v3312, 64
  %v3322 = vpop.permute.xlu0 %3321
  %3323 = vrot.lane.b32.xlu0 %v3313, 64
  %v3324 = vpop.permute.xlu0 %3323
  %3325 = vrot.lane.b32.xlu0 %v3314, 64
  %v3326 = vpop.permute.xlu0 %3325
  %v3328 = vsel %vm1887, %v3320, 0
  %v3331 = vsel %vm1887, %v3322, 0
  %v3334 = vsel %vm1887, %v3324, 0
  %v3337 = vsel %vm1887, %v3326, 0
  %3339 = vmatpush.bf16.msra.mxu0 0
  %3340 = vmatpush.bf16.msra.mxu0 0
  %3341 = vmatpush.bf16.msra.mxu0 0
  %3342 = vmatpush.bf16.msra.mxu0 0
  %3343 = vmatpush.bf16.msra.mxu0 0
  %3344 = vmatpush.bf16.msra.mxu0 0
  %3345 = vmatpush.bf16.msra.mxu0 %v2251
  %3346 = vmatpush.bf16.msra.mxu0 %v2250
  %3347 = vmatmul.bf16.gmra.mxu0 %v3328
  %v3348 = vpop.f32.mrf.mxu0
  %v3349 = vadd.f32 0.0, %v3348
  %v3350 = vpop.f32.mrf.mxu0
  %v3351 = vadd.f32 0.0, %v3350
  %3352 = vmatmul.bf16.gmra.mxu0 %v3331
  %v3353 = vpop.f32.mrf.mxu0
  %v3354 = vadd.f32 0.0, %v3353
  %v3355 = vpop.f32.mrf.mxu0
  %v3356 = vadd.f32 0.0, %v3355
  %3357 = vmatmul.bf16.gmra.mxu0 %v3334
  %v3358 = vpop.f32.mrf.mxu0
  %v3359 = vadd.f32 0.0, %v3358
  %v3360 = vpop.f32.mrf.mxu0
  %v3361 = vadd.f32 0.0, %v3360
  %3362 = vmatmul.bf16.gmra.mxu0 %v3337
  %v3363 = vpop.f32.mrf.mxu0
  %v3364 = vadd.f32 0.0, %v3363
  %v3365 = vpop.f32.mrf.mxu0
  %v3366 = vadd.f32 0.0, %v3365
  %3367 = vdwg.mxu0
  %v3368 = vadd.f32 %v2219, %v3349
  %v3369 = vadd.f32 %v2221, %v3351
  %v3370 = vadd.f32 %v2224, %v3354
  %v3371 = vadd.f32 %v2226, %v3356
  %v3372 = vadd.f32 %v2229, %v3359
  %v3373 = vadd.f32 %v2231, %v3361
  %v3374 = vadd.f32 %v2234, %v3364
  %v3375 = vadd.f32 %v2236, %v3366
  %v3376 = vxor.u32 %v3368, 2147483648
  %v3377 = vxor.u32 %v3369, 2147483648
  %v3378 = vxor.u32 %v3370, 2147483648
  %v3379 = vxor.u32 %v3371, 2147483648
  %v3380 = vxor.u32 %v3372, 2147483648
  %v3381 = vxor.u32 %v3373, 2147483648
  %v3382 = vxor.u32 %v3374, 2147483648
  %v3383 = vxor.u32 %v3375, 2147483648
  %v3384 = vmul.f32 %v3376, 1.442695
  %v3385 = vpow.pop %v3384
  %v3386 = vmul.f32 %v3377, 1.442695
  %v3387 = vpow.pop %v3386
  %v3388 = vmul.f32 %v3378, 1.442695
  %v3389 = vpow.pop %v3388
  %v3390 = vmul.f32 %v3379, 1.442695
  %v3391 = vpow.pop %v3390
  %v3392 = vmul.f32 %v3380, 1.442695
  %v3393 = vpow.pop %v3392
  %v3394 = vmul.f32 %v3381, 1.442695
  %v3395 = vpow.pop %v3394
  %v3396 = vmul.f32 %v3382, 1.442695
  %v3397 = vpow.pop %v3396
  %v3398 = vmul.f32 %v3383, 1.442695
  %v3399 = vpow.pop %v3398
  %v3400 = vadd.f32 %v3385, 1.0
  %v3401 = vadd.f32 %v3387, 1.0
  %v3402 = vadd.f32 %v3389, 1.0
  %v3403 = vadd.f32 %v3391, 1.0
  %v3404 = vadd.f32 %v3393, 1.0
  %v3405 = vadd.f32 %v3395, 1.0
  %v3406 = vadd.f32 %v3397, 1.0
  %v3407 = vadd.f32 %v3399, 1.0
  %v3408 = vrcp.pop %v3400
  %v3409 = vmul.f32 %v3400, %v3408
  %v3410 = vsub.f32 1.0, %v3409
  %v3411 = vmul.f32 %v3408, %v3410
  %v3412 = vadd.f32 %v3408, %v3411
  %vm3413 = vweird.f32 %v3400
  %vm3414 = vweird.f32 %v3408
  %vm3415 = vmor %vm3413, %vm3414
  %v3416 = vsel %vm3415, %v3408, %v3412
  %v3417 = vand.u32 2147483647, %v3400
  %vm3418 = vcmp.eq.f32.partialorder %v3417, 8.507059e+37
  %v3419 = vand.u32 %v3400, 2147483648
  %v3420 = vor.u32 1.1754944e-38, %v3419
  %v3421 = vsel %vm3418, %v3420, %v3416
  %v3422 = vmul.f32 1.0, %v3421
  %v3423 = vrcp.pop %v3401
  %v3424 = vmul.f32 %v3401, %v3423
  %v3425 = vsub.f32 1.0, %v3424
  %v3426 = vmul.f32 %v3423, %v3425
  %v3427 = vadd.f32 %v3423, %v3426
  %vm3428 = vweird.f32 %v3401
  %vm3429 = vweird.f32 %v3423
  %vm3430 = vmor %vm3428, %vm3429
  %v3431 = vsel %vm3430, %v3423, %v3427
  %v3432 = vand.u32 2147483647, %v3401
  %vm3433 = vcmp.eq.f32.partialorder %v3432, 8.507059e+37
  %v3434 = vand.u32 %v3401, 2147483648
  %v3435 = vor.u32 1.1754944e-38, %v3434
  %v3436 = vsel %vm3433, %v3435, %v3431
  %v3437 = vmul.f32 1.0, %v3436
  %v3438 = vrcp.pop %v3402
  %v3439 = vmul.f32 %v3402, %v3438
  %v3440 = vsub.f32 1.0, %v3439
  %v3441 = vmul.f32 %v3438, %v3440
  %v3442 = vadd.f32 %v3438, %v3441
  %vm3443 = vweird.f32 %v3402
  %vm3444 = vweird.f32 %v3438
  %vm3445 = vmor %vm3443, %vm3444
  %v3446 = vsel %vm3445, %v3438, %v3442
  %v3447 = vand.u32 2147483647, %v3402
  %vm3448 = vcmp.eq.f32.partialorder %v3447, 8.507059e+37
  %v3449 = vand.u32 %v3402, 2147483648
  %v3450 = vor.u32 1.1754944e-38, %v3449
  %v3451 = vsel %vm3448, %v3450, %v3446
  %v3452 = vmul.f32 1.0, %v3451
  %v3453 = vrcp.pop %v3403
  %v3454 = vmul.f32 %v3403, %v3453
  %v3455 = vsub.f32 1.0, %v3454
  %v3456 = vmul.f32 %v3453, %v3455
  %v3457 = vadd.f32 %v3453, %v3456
  %vm3458 = vweird.f32 %v3403
  %vm3459 = vweird.f32 %v3453
  %vm3460 = vmor %vm3458, %vm3459
  %v3461 = vsel %vm3460, %v3453, %v3457
  %v3462 = vand.u32 2147483647, %v3403
  %vm3463 = vcmp.eq.f32.partialorder %v3462, 8.507059e+37
  %v3464 = vand.u32 %v3403, 2147483648
  %v3465 = vor.u32 1.1754944e-38, %v3464
  %v3466 = vsel %vm3463, %v3465, %v3461
  %v3467 = vmul.f32 1.0, %v3466
  %v3468 = vrcp.pop %v3404
  %v3469 = vmul.f32 %v3404, %v3468
  %v3470 = vsub.f32 1.0, %v3469
  %v3471 = vmul.f32 %v3468, %v3470
  %v3472 = vadd.f32 %v3468, %v3471
  %vm3473 = vweird.f32 %v3404
  %vm3474 = vweird.f32 %v3468
  %vm3475 = vmor %vm3473, %vm3474
  %v3476 = vsel %vm3475, %v3468, %v3472
  %v3477 = vand.u32 2147483647, %v3404
  %vm3478 = vcmp.eq.f32.partialorder %v3477, 8.507059e+37
  %v3479 = vand.u32 %v3404, 2147483648
  %v3480 = vor.u32 1.1754944e-38, %v3479
  %v3481 = vsel %vm3478, %v3480, %v3476
  %v3482 = vmul.f32 1.0, %v3481
  %v3483 = vrcp.pop %v3405
  %v3484 = vmul.f32 %v3405, %v3483
  %v3485 = vsub.f32 1.0, %v3484
  %v3486 = vmul.f32 %v3483, %v3485
  %v3487 = vadd.f32 %v3483, %v3486
  %vm3488 = vweird.f32 %v3405
  %vm3489 = vweird.f32 %v3483
  %vm3490 = vmor %vm3488, %vm3489
  %v3491 = vsel %vm3490, %v3483, %v3487
  %v3492 = vand.u32 2147483647, %v3405
  %vm3493 = vcmp.eq.f32.partialorder %v3492, 8.507059e+37
  %v3494 = vand.u32 %v3405, 2147483648
  %v3495 = vor.u32 1.1754944e-38, %v3494
  %v3496 = vsel %vm3493, %v3495, %v3491
  %v3497 = vmul.f32 1.0, %v3496
  %v3498 = vrcp.pop %v3406
  %v3499 = vmul.f32 %v3406, %v3498
  %v3500 = vsub.f32 1.0, %v3499
  %v3501 = vmul.f32 %v3498, %v3500
  %v3502 = vadd.f32 %v3498, %v3501
  %vm3503 = vweird.f32 %v3406
  %vm3504 = vweird.f32 %v3498
  %vm3505 = vmor %vm3503, %vm3504
  %v3506 = vsel %vm3505, %v3498, %v3502
  %v3507 = vand.u32 2147483647, %v3406
  %vm3508 = vcmp.eq.f32.partialorder %v3507, 8.507059e+37
  %v3509 = vand.u32 %v3406, 2147483648
  %v3510 = vor.u32 1.1754944e-38, %v3509
  %v3511 = vsel %vm3508, %v3510, %v3506
  %v3512 = vmul.f32 1.0, %v3511
  %v3513 = vrcp.pop %v3407
  %v3514 = vmul.f32 %v3407, %v3513
  %v3515 = vsub.f32 1.0, %v3514
  %v3516 = vmul.f32 %v3513, %v3515
  %v3517 = vadd.f32 %v3513, %v3516
  %vm3518 = vweird.f32 %v3407
  %vm3519 = vweird.f32 %v3513
  %vm3520 = vmor %vm3518, %vm3519
  %v3521 = vsel %vm3520, %v3513, %v3517
  %v3522 = vand.u32 2147483647, %v3407
  %vm3523 = vcmp.eq.f32.partialorder %v3522, 8.507059e+37
  %v3524 = vand.u32 %v3407, 2147483648
  %v3525 = vor.u32 1.1754944e-38, %v3524
  %v3526 = vsel %vm3523, %v3525, %v3521
  %v3527 = vmul.f32 1.0, %v3526
  %v3528 = vtanh.pop %v3368
  %v3529 = vtanh.pop %v3369
  %v3530 = vtanh.pop %v3370
  %v3531 = vtanh.pop %v3371
  %v3532 = vtanh.pop %v3372
  %v3533 = vtanh.pop %v3373
  %v3534 = vtanh.pop %v3374
  %v3535 = vtanh.pop %v3375
  %v3536 = vmul.f32 %v3422, %v3255
  %v3537 = vmul.f32 %v3437, %v3256
  %v3538 = vmul.f32 %v3452, %v3257
  %v3539 = vmul.f32 %v3467, %v3258
  %v3540 = vmul.f32 %v3482, %v3259
  %v3541 = vmul.f32 %v3497, %v3260
  %v3542 = vmul.f32 %v3512, %v3261
  %v3543 = vmul.f32 %v3527, %v3262
  %3552 = vrot.lane.b32.xlu0 %v3528, 32
  %v3553 = vpop.permute.xlu0 %3552
  %3554 = vrot.lane.b32.xlu0 %v3529, 32
  %v3555 = vpop.permute.xlu0 %3554
  %3556 = vrot.lane.b32.xlu0 %v3530, 32
  %v3557 = vpop.permute.xlu0 %3556
  %3558 = vrot.lane.b32.xlu0 %v3531, 32
  %v3559 = vpop.permute.xlu0 %3558
  %3560 = vrot.lane.b32.xlu0 %v3532, 32
  %v3561 = vpop.permute.xlu0 %3560
  %3562 = vrot.lane.b32.xlu0 %v3533, 32
  %v3563 = vpop.permute.xlu0 %3562
  %3564 = vrot.lane.b32.xlu0 %v3534, 32
  %v3565 = vpop.permute.xlu0 %3564
  %3566 = vrot.lane.b32.xlu0 %v3535, 32
  %v3567 = vpop.permute.xlu0 %3566
  %v3576 = vmul.f32 %v3422, %v3553
  %v3577 = vmul.f32 %v3437, %v3555
  %v3578 = vmul.f32 %v3452, %v3557
  %v3579 = vmul.f32 %v3467, %v3559
  %v3580 = vmul.f32 %v3482, %v3561
  %v3581 = vmul.f32 %v3497, %v3563
  %v3582 = vmul.f32 %v3512, %v3565
  %v3583 = vmul.f32 %v3527, %v3567
  %3592 = vrot.lane.b32.xlu0 %v3576, 32
  %v3593 = vpop.permute.xlu0 %3592
  %3594 = vrot.lane.b32.xlu0 %v3577, 32
  %v3595 = vpop.permute.xlu0 %3594
  %3596 = vrot.lane.b32.xlu0 %v3578, 32
  %v3597 = vpop.permute.xlu0 %3596
  %3598 = vrot.lane.b32.xlu0 %v3579, 32
  %v3599 = vpop.permute.xlu0 %3598
  %3600 = vrot.lane.b32.xlu0 %v3580, 32
  %v3601 = vpop.permute.xlu0 %3600
  %3602 = vrot.lane.b32.xlu0 %v3581, 32
  %v3603 = vpop.permute.xlu0 %3602
  %3604 = vrot.lane.b32.xlu0 %v3582, 32
  %v3605 = vpop.permute.xlu0 %3604
  %3606 = vrot.lane.b32.xlu0 %v3583, 32
  %v3607 = vpop.permute.xlu0 %3606
  %v3616 = vadd.f32 %v3536, %v3593
  %v3617 = vadd.f32 %v3537, %v3595
  %v3618 = vadd.f32 %v3538, %v3597
  %v3619 = vadd.f32 %v3539, %v3599
  %v3620 = vadd.f32 %v3540, %v3601
  %v3621 = vadd.f32 %v3541, %v3603
  %v3622 = vadd.f32 %v3542, %v3605
  %v3623 = vadd.f32 %v3543, %v3607
  %v3624 = vtanh.pop %v3616
  %v3625 = vtanh.pop %v3617
  %v3626 = vtanh.pop %v3618
  %v3627 = vtanh.pop %v3619
  %v3628 = vtanh.pop %v3620
  %v3629 = vtanh.pop %v3621
  %v3630 = vtanh.pop %v3622
  %v3631 = vtanh.pop %v3623
  %3640 = vrot.lane.b32.xlu0 %v3624, 32
  %v3641 = vpop.permute.xlu0 %3640
  %3642 = vrot.lane.b32.xlu0 %v3625, 32
  %v3643 = vpop.permute.xlu0 %3642
  %3644 = vrot.lane.b32.xlu0 %v3626, 32
  %v3645 = vpop.permute.xlu0 %3644
  %3646 = vrot.lane.b32.xlu0 %v3627, 32
  %v3647 = vpop.permute.xlu0 %3646
  %3648 = vrot.lane.b32.xlu0 %v3628, 32
  %v3649 = vpop.permute.xlu0 %3648
  %3650 = vrot.lane.b32.xlu0 %v3629, 32
  %v3651 = vpop.permute.xlu0 %3650
  %3652 = vrot.lane.b32.xlu0 %v3630, 32
  %v3653 = vpop.permute.xlu0 %3652
  %3654 = vrot.lane.b32.xlu0 %v3631, 32
  %v3655 = vpop.permute.xlu0 %3654
  %v3664 = vmul.f32 %v3422, %v3641
  %v3665 = vmul.f32 %v3437, %v3643
  %v3666 = vmul.f32 %v3452, %v3645
  %v3667 = vmul.f32 %v3467, %v3647
  %v3668 = vmul.f32 %v3482, %v3649
  %v3669 = vmul.f32 %v3497, %v3651
  %v3670 = vmul.f32 %v3512, %v3653
  %v3671 = vmul.f32 %v3527, %v3655
  %v3672 = vpack.c.bf16 %v3664, %v3664
  %v3673 = vpack.c.bf16 %v3665, %v3665
  %v3674 = vpack.c.bf16 %v3666, %v3666
  %v3675 = vpack.c.bf16 %v3667, %v3667
  %v3676 = vpack.c.bf16 %v3668, %v3668
  %v3677 = vpack.c.bf16 %v3669, %v3669
  %v3678 = vpack.c.bf16 %v3670, %v3670
  %v3679 = vpack.c.bf16 %v3671, %v3671
  %v3688 = vunpack.c.l.b16 %v1949
  %v3689 = vunpack.c.l.b16 %v1950
  %v3690 = vunpack.c.l.b16 %v1951
  %v3691 = vunpack.c.l.b16 %v1952
  %v3692 = vunpack.c.l.b16 %v1953
  %v3693 = vunpack.c.l.b16 %v1954
  %v3694 = vunpack.c.l.b16 %v1955
  %v3695 = vunpack.c.l.b16 %v1956
  %v3696 = vpack.c.b16 %v3689, %v3688
  %v3697 = vpack.c.b16 %v3691, %v3690
  %v3698 = vpack.c.b16 %v3693, %v3692
  %v3699 = vpack.c.b16 %v3695, %v3694
  %v3708 = vunpack.c.l.b16 %v3672
  %v3709 = vunpack.c.l.b16 %v3673
  %v3710 = vunpack.c.l.b16 %v3674
  %v3711 = vunpack.c.l.b16 %v3675
  %v3712 = vunpack.c.l.b16 %v3676
  %v3713 = vunpack.c.l.b16 %v3677
  %v3714 = vunpack.c.l.b16 %v3678
  %v3715 = vunpack.c.l.b16 %v3679
  %v3716 = vpack.c.b16 %v3709, %v3708
  %v3717 = vpack.c.b16 %v3711, %v3710
  %v3718 = vpack.c.b16 %v3713, %v3712
  %v3719 = vpack.c.b16 %v3715, %v3714
  %3720 = vrot.lane.b32.xlu0 %v3716, 96
  %v3721 = vpop.permute.xlu0 %3720
  %3722 = vrot.lane.b32.xlu0 %v3717, 96
  %v3723 = vpop.permute.xlu0 %3722
  %3724 = vrot.lane.b32.xlu0 %v3718, 96
  %v3725 = vpop.permute.xlu0 %3724
  %3726 = vrot.lane.b32.xlu0 %v3719, 96
  %v3727 = vpop.permute.xlu0 %3726
  %v3730 = vsel %vm1887, %v3696, %v3721
  %v3733 = vsel %vm1887, %v3697, %v3723
  %v3736 = vsel %vm1887, %v3698, %v3725
  %v3739 = vsel %vm1887, %v3699, %v3727
  %v3740 = vld [vmem:[%s9] sm:$0xf]
  %v3741 = vld [vmem:[%s9 + $0x4] sm:$0xf]
  %v3742 = vld [vmem:[%s9 + $0x8] sm:$0xf]
  %v3743 = vld [vmem:[%s9 + $0xc] sm:$0xf]
  %v3744 = vld [vmem:[%s9 + $0x10] sm:$0xf]
  %v3745 = vld [vmem:[%s9 + $0x14] sm:$0xf]
  %v3746 = vld [vmem:[%s9 + $0x18] sm:$0xf]
  %v3747 = vld [vmem:[%s9 + $0x1c] sm:$0xf]
  %v3748 = vld [vmem:[%s10] sm:$0x1]
  %v3750 = vperm.slane %v3748, 0
  %v3760 = vunpack.c.l.b16 %v3740
  %v3761 = vunpack.c.l.b16 %v3741
  %v3762 = vunpack.c.l.b16 %v3742
  %v3763 = vunpack.c.l.b16 %v3743
  %v3764 = vunpack.c.l.b16 %v3744
  %v3765 = vunpack.c.l.b16 %v3745
  %v3766 = vunpack.c.l.b16 %v3746
  %v3767 = vunpack.c.l.b16 %v3747
  %v3768 = vpack.c.b16 %v3761, %v3760
  %v3769 = vpack.c.b16 %v3763, %v3762
  %v3770 = vpack.c.b16 %v3765, %v3764
  %v3771 = vpack.c.b16 %v3767, %v3766
  %vm3776 = vcmask 523264
  %v3777 = vsel %vm3776, %v3730, 0
  %v3779 = vsel %vm3776, %v3733, 0
  %v3781 = vsel %vm3776, %v3736, 0
  %v3783 = vsel %vm3776, %v3739, 0
  %3785 = vmatpush.bf16.msra.mxu0 0
  %3786 = vmatpush.bf16.msra.mxu0 0
  %3787 = vmatpush.bf16.msra.mxu0 0
  %3788 = vmatpush.bf16.msra.mxu0 0
  %3789 = vmatpush.bf16.msra.mxu0 %v3771
  %3790 = vmatpush.bf16.msra.mxu0 %v3770
  %3791 = vmatpush.bf16.msra.mxu0 %v3769
  %3792 = vmatpush.bf16.msra.mxu0 %v3768
  %3793 = vmatmul.bf16.gmra.mxu0 %v3777
  %v3794 = vpop.f32.mrf.mxu0
  %v3795 = vadd.f32 %v3750, %v3794
  %v3796 = vpop.f32.mrf.mxu0
  %v3797 = vadd.f32 %v3750, %v3796
  %3798 = vmatmul.bf16.gmra.mxu0 %v3779
  %v3799 = vpop.f32.mrf.mxu0
  %v3800 = vadd.f32 %v3750, %v3799
  %v3801 = vpop.f32.mrf.mxu0
  %v3802 = vadd.f32 %v3750, %v3801
  %3803 = vmatmul.bf16.gmra.mxu0 %v3781
  %v3804 = vpop.f32.mrf.mxu0
  %v3805 = vadd.f32 %v3750, %v3804
  %v3806 = vpop.f32.mrf.mxu0
  %v3807 = vadd.f32 %v3750, %v3806
  %3808 = vmatmul.bf16.gmra.mxu0 %v3783
  %v3809 = vpop.f32.mrf.mxu0
  %v3810 = vadd.f32 %v3750, %v3809
  %v3811 = vpop.f32.mrf.mxu0
  %v3812 = vadd.f32 %v3750, %v3811
  %3813 = vdwg.mxu0
  %v3814 = vmax.f32 %v3795, 0.0
  %v3815 = vmax.f32 %v3797, 0.0
  %v3816 = vmax.f32 %v3800, 0.0
  %v3817 = vmax.f32 %v3802, 0.0
  %v3818 = vmax.f32 %v3805, 0.0
  %v3819 = vmax.f32 %v3807, 0.0
  %v3820 = vmax.f32 %v3810, 0.0
  %v3821 = vmax.f32 %v3812, 0.0
  %v3822 = vld [vmem:[%s22] sm:$0xff]
  %v3823 = vld [vmem:[%s22 + $0x8] sm:$0xff]
  %v3824 = vld [vmem:[%s22 + $0x10] sm:$0xff]
  %v3825 = vld [vmem:[%s22 + $0x18] sm:$0xff]
  %v3826 = vld [vmem:[%s22 + $0x20] sm:$0xff]
  %v3827 = vld [vmem:[%s22 + $0x28] sm:$0xff]
  %v3828 = vld [vmem:[%s22 + $0x30] sm:$0xff]
  %v3829 = vld [vmem:[%s22 + $0x38] sm:$0xff]
  %v3830 = vmul.f32 %v3814, %v3822
  %v3831 = vmul.f32 %v3815, %v3823
  %v3832 = vmul.f32 %v3816, %v3824
  %v3833 = vmul.f32 %v3817, %v3825
  %v3834 = vmul.f32 %v3818, %v3826
  %v3835 = vmul.f32 %v3819, %v3827
  %v3836 = vmul.f32 %v3820, %v3828
  %v3837 = vmul.f32 %v3821, %v3829
  %v3838 = vpack.c.bf16 %v3830, %v3830
  %v3839 = vpack.c.bf16 %v3831, %v3831
  %v3840 = vpack.c.bf16 %v3832, %v3832
  %v3841 = vpack.c.bf16 %v3833, %v3833
  %v3842 = vpack.c.bf16 %v3834, %v3834
  %v3843 = vpack.c.bf16 %v3835, %v3835
  %v3844 = vpack.c.bf16 %v3836, %v3836
  %v3845 = vpack.c.bf16 %v3837, %v3837
  %v3854 = vrot.slane %v3830, 1
  %v3855 = vrot.slane %v3831, 1
  %v3856 = vsel %vm102, %v3854, %v3855
  %v3857 = vrot.slane %v3832, 1
  %v3858 = vsel %vm102, %v3855, %v3857
  %v3859 = vrot.slane %v3833, 1
  %v3860 = vsel %vm102, %v3857, %v3859
  %v3861 = vrot.slane %v3834, 1
  %v3862 = vsel %vm102, %v3859, %v3861
  %v3863 = vrot.slane %v3835, 1
  %v3864 = vsel %vm102, %v3861, %v3863
  %v3865 = vrot.slane %v3836, 1
  %v3866 = vsel %vm102, %v3863, %v3865
  %v3867 = vrot.slane %v3837, 1
  %v3868 = vsel %vm102, %v3865, %v3867
  %v3878 = vsel %vm102, %v3867, %v3854
  %v3879 = vrot.slane %v3830, 2
  %v3880 = vrot.slane %v3831, 2
  %v3881 = vsel %vm128, %v3879, %v3880
  %v3882 = vrot.slane %v3832, 2
  %v3883 = vsel %vm128, %v3880, %v3882
  %v3884 = vrot.slane %v3833, 2
  %v3885 = vsel %vm128, %v3882, %v3884
  %v3886 = vrot.slane %v3834, 2
  %v3887 = vsel %vm128, %v3884, %v3886
  %v3888 = vrot.slane %v3835, 2
  %v3889 = vsel %vm128, %v3886, %v3888
  %v3890 = vrot.slane %v3836, 2
  %v3891 = vsel %vm128, %v3888, %v3890
  %v3892 = vrot.slane %v3837, 2
  %v3893 = vsel %vm128, %v3890, %v3892
  %v3903 = vsel %vm128, %v3892, %v3879
  %v3904 = vrot.slane %v3830, 3
  %v3905 = vrot.slane %v3831, 3
  %v3906 = vsel %vm154, %v3904, %v3905
  %v3907 = vrot.slane %v3832, 3
  %v3908 = vsel %vm154, %v3905, %v3907
  %v3909 = vrot.slane %v3833, 3
  %v3910 = vsel %vm154, %v3907, %v3909
  %v3911 = vrot.slane %v3834, 3
  %v3912 = vsel %vm154, %v3909, %v3911
  %v3913 = vrot.slane %v3835, 3
  %v3914 = vsel %vm154, %v3911, %v3913
  %v3915 = vrot.slane %v3836, 3
  %v3916 = vsel %vm154, %v3913, %v3915
  %v3917 = vrot.slane %v3837, 3
  %v3918 = vsel %vm154, %v3915, %v3917
  %v3928 = vsel %vm154, %v3917, %v3904
  %v3929 = vrot.slane %v3830, 4
  %v3930 = vrot.slane %v3831, 4
  %v3931 = vsel %vm180, %v3929, %v3930
  %v3932 = vrot.slane %v3832, 4
  %v3933 = vsel %vm180, %v3930, %v3932
  %v3934 = vrot.slane %v3833, 4
  %v3935 = vsel %vm180, %v3932, %v3934
  %v3936 = vrot.slane %v3834, 4
  %v3937 = vsel %vm180, %v3934, %v3936
  %v3938 = vrot.slane %v3835, 4
  %v3939 = vsel %vm180, %v3936, %v3938
  %v3940 = vrot.slane %v3836, 4
  %v3941 = vsel %vm180, %v3938, %v3940
  %v3942 = vrot.slane %v3837, 4
  %v3943 = vsel %vm180, %v3940, %v3942
  %v3953 = vsel %vm180, %v3942, %v3929
  %v3954 = vpack.c.bf16 %v3858, %v3856
  %v3955 = vpack.c.bf16 %v3862, %v3860
  %v3956 = vpack.c.bf16 %v3866, %v3864
  %v3957 = vpack.c.bf16 %v3878, %v3868
  %v3958 = vpack.c.bf16 %v3883, %v3881
  %v3959 = vpack.c.bf16 %v3887, %v3885
  %v3960 = vpack.c.bf16 %v3891, %v3889
  %v3961 = vpack.c.bf16 %v3903, %v3893
  %v3962 = vpack.c.bf16 %v3908, %v3906
  %v3963 = vpack.c.bf16 %v3912, %v3910
  %v3964 = vpack.c.bf16 %v3916, %v3914
  %v3965 = vpack.c.bf16 %v3928, %v3918
  %v3966 = vpack.c.bf16 %v3933, %v3931
  %v3967 = vpack.c.bf16 %v3937, %v3935
  %v3968 = vpack.c.bf16 %v3941, %v3939
  %v3969 = vpack.c.bf16 %v3953, %v3943
  %v3970 = vld [vmem:[%s11] sm:$0xff]
  %v3971 = vld [vmem:[%s11 + $0x8] sm:$0xff]
  %v3972 = vld [vmem:[%s11 + $0x10] sm:$0xff]
  %v3973 = vld [vmem:[%s11 + $0x18] sm:$0xff]
  %v3974 = vld [vmem:[%s11 + $0x20] sm:$0xff]
  %v3975 = vld [vmem:[%s11 + $0x28] sm:$0xff]
  %v3976 = vld [vmem:[%s11 + $0x30] sm:$0xff]
  %v3977 = vld [vmem:[%s11 + $0x38] sm:$0xff]
  %v3978 = vld [vmem:[%s11 + $0x40] sm:$0xff]
  %v3979 = vld [vmem:[%s11 + $0x48] sm:$0xff]
  %v3980 = vld [vmem:[%s11 + $0x50] sm:$0xff]
  %v3981 = vld [vmem:[%s11 + $0x58] sm:$0xff]
  %v3982 = vld [vmem:[%s11 + $0x60] sm:$0xff]
  %v3983 = vld [vmem:[%s11 + $0x68] sm:$0xff]
  %v3984 = vld [vmem:[%s11 + $0x70] sm:$0xff]
  %v3985 = vld [vmem:[%s11 + $0x78] sm:$0xff]
  %v3986 = vld [vmem:[%s11 + $0x80] sm:$0xff]
  %v3987 = vld [vmem:[%s11 + $0x88] sm:$0xff]
  %v3988 = vld [vmem:[%s11 + $0x90] sm:$0xff]
  %v3989 = vld [vmem:[%s11 + $0x98] sm:$0xff]
  %v3990 = vld [vmem:[%s11 + $0xa0] sm:$0xff]
  %v3991 = vld [vmem:[%s11 + $0xa8] sm:$0xff]
  %v3992 = vld [vmem:[%s11 + $0xb0] sm:$0xff]
  %v3993 = vld [vmem:[%s11 + $0xb8] sm:$0xff]
  %v3994 = vld [vmem:[%s11 + $0xc0] sm:$0xff]
  %v3995 = vld [vmem:[%s11 + $0xc8] sm:$0xff]
  %v3996 = vld [vmem:[%s11 + $0xd0] sm:$0xff]
  %v3997 = vld [vmem:[%s11 + $0xd8] sm:$0xff]
  %v3998 = vld [vmem:[%s11 + $0xe0] sm:$0xff]
  %v3999 = vld [vmem:[%s11 + $0xe8] sm:$0xff]
  %v4000 = vld [vmem:[%s11 + $0xf0] sm:$0xff]
  %v4001 = vld [vmem:[%s11 + $0xf8] sm:$0xff]
  %v4002 = vld [vmem:[%s13] sm:$0xf]
  %v4004 = vperm.slane %v4002, 0
  %v4005 = vperm.slane %v4002, 1
  %v4006 = vperm.slane %v4002, 2
  %v4007 = vperm.slane %v4002, 3
  %v4044 = vunpack.c.l.b16 %v3970
  %v4045 = vunpack.c.h.b16 %v3970
  %v4046 = vunpack.c.l.b16 %v3971
  %v4047 = vunpack.c.h.b16 %v3971
  %v4048 = vunpack.c.l.b16 %v3972
  %v4049 = vunpack.c.h.b16 %v3972
  %v4050 = vunpack.c.l.b16 %v3973
  %v4051 = vunpack.c.h.b16 %v3973
  %v4052 = vunpack.c.l.b16 %v3974
  %v4053 = vunpack.c.h.b16 %v3974
  %v4054 = vunpack.c.l.b16 %v3975
  %v4055 = vunpack.c.h.b16 %v3975
  %v4056 = vunpack.c.l.b16 %v3976
  %v4057 = vunpack.c.h.b16 %v3976
  %v4058 = vunpack.c.l.b16 %v3977
  %v4059 = vunpack.c.h.b16 %v3977
  %v4060 = vunpack.c.l.b16 %v3978
  %v4061 = vunpack.c.h.b16 %v3978
  %v4062 = vunpack.c.l.b16 %v3979
  %v4063 = vunpack.c.h.b16 %v3979
  %v4064 = vunpack.c.l.b16 %v3980
  %v4065 = vunpack.c.h.b16 %v3980
  %v4066 = vunpack.c.l.b16 %v3981
  %v4067 = vunpack.c.h.b16 %v3981
  %v4068 = vunpack.c.l.b16 %v3982
  %v4069 = vunpack.c.h.b16 %v3982
  %v4070 = vunpack.c.l.b16 %v3983
  %v4071 = vunpack.c.h.b16 %v3983
  %v4072 = vunpack.c.l.b16 %v3984
  %v4073 = vunpack.c.h.b16 %v3984
  %v4074 = vunpack.c.l.b16 %v3985
  %v4075 = vunpack.c.h.b16 %v3985
  %v4076 = vunpack.c.l.b16 %v3986
  %v4077 = vunpack.c.h.b16 %v3986
  %v4078 = vunpack.c.l.b16 %v3987
  %v4079 = vunpack.c.h.b16 %v3987
  %v4080 = vunpack.c.l.b16 %v3988
  %v4081 = vunpack.c.h.b16 %v3988
  %v4082 = vunpack.c.l.b16 %v3989
  %v4083 = vunpack.c.h.b16 %v3989
  %v4084 = vunpack.c.l.b16 %v3990
  %v4085 = vunpack.c.h.b16 %v3990
  %v4086 = vunpack.c.l.b16 %v3991
  %v4087 = vunpack.c.h.b16 %v3991
  %v4088 = vunpack.c.l.b16 %v3992
  %v4089 = vunpack.c.h.b16 %v3992
  %v4090 = vunpack.c.l.b16 %v3993
  %v4091 = vunpack.c.h.b16 %v3993
  %v4092 = vunpack.c.l.b16 %v3994
  %v4093 = vunpack.c.h.b16 %v3994
  %v4094 = vunpack.c.l.b16 %v3995
  %v4095 = vunpack.c.h.b16 %v3995
  %v4096 = vunpack.c.l.b16 %v3996
  %v4097 = vunpack.c.h.b16 %v3996
  %v4098 = vunpack.c.l.b16 %v3997
  %v4099 = vunpack.c.h.b16 %v3997
  %v4100 = vunpack.c.l.b16 %v3998
  %v4101 = vunpack.c.h.b16 %v3998
  %v4102 = vunpack.c.l.b16 %v3999
  %v4103 = vunpack.c.h.b16 %v3999
  %v4104 = vunpack.c.l.b16 %v4000
  %v4105 = vunpack.c.h.b16 %v4000
  %v4106 = vunpack.c.l.b16 %v4001
  %v4107 = vunpack.c.h.b16 %v4001
  %v4108 = vpack.c.b16 %v4048, %v4044
  %v4109 = vpack.c.b16 %v4049, %v4045
  %v4110 = vpack.c.b16 %v4050, %v4046
  %v4111 = vpack.c.b16 %v4051, %v4047
  %v4112 = vpack.c.b16 %v4056, %v4052
  %v4113 = vpack.c.b16 %v4057, %v4053
  %v4114 = vpack.c.b16 %v4058, %v4054
  %v4115 = vpack.c.b16 %v4059, %v4055
  %v4116 = vpack.c.b16 %v4064, %v4060
  %v4117 = vpack.c.b16 %v4065, %v4061
  %v4118 = vpack.c.b16 %v4066, %v4062
  %v4119 = vpack.c.b16 %v4067, %v4063
  %v4120 = vpack.c.b16 %v4072, %v4068
  %v4121 = vpack.c.b16 %v4073, %v4069
  %v4122 = vpack.c.b16 %v4074, %v4070
  %v4123 = vpack.c.b16 %v4075, %v4071
  %v4124 = vpack.c.b16 %v4080, %v4076
  %v4125 = vpack.c.b16 %v4081, %v4077
  %v4126 = vpack.c.b16 %v4082, %v4078
  %v4127 = vpack.c.b16 %v4083, %v4079
  %v4128 = vpack.c.b16 %v4088, %v4084
  %v4129 = vpack.c.b16 %v4089, %v4085
  %v4130 = vpack.c.b16 %v4090, %v4086
  %v4131 = vpack.c.b16 %v4091, %v4087
  %v4132 = vpack.c.b16 %v4096, %v4092
  %v4133 = vpack.c.b16 %v4097, %v4093
  %v4134 = vpack.c.b16 %v4098, %v4094
  %v4135 = vpack.c.b16 %v4099, %v4095
  %v4136 = vpack.c.b16 %v4104, %v4100
  %v4137 = vpack.c.b16 %v4105, %v4101
  %v4138 = vpack.c.b16 %v4106, %v4102
  %v4139 = vpack.c.b16 %v4107, %v4103
  %4172 = vmatpush.bf16.msra.mxu0 %v4136
  %4173 = vmatpush.bf16.msra.mxu0 %v4132
  %4174 = vmatpush.bf16.msra.mxu0 %v4128
  %4175 = vmatpush.bf16.msra.mxu0 %v4124
  %4176 = vmatpush.bf16.msra.mxu0 %v4120
  %4177 = vmatpush.bf16.msra.mxu0 %v4116
  %4178 = vmatpush.bf16.msra.mxu0 %v4112
  %4179 = vmatpush.bf16.msra.mxu0 %v4108
  %4180 = vmatmul.bf16.gmra.mxu0 %v3954
  %v4181 = vpop.f32.mrf.mxu0
  %v4182 = vadd.f32 %v4004, %v4181
  %v4183 = vpop.f32.mrf.mxu0
  %v4184 = vadd.f32 %v4004, %v4183
  %4185 = vmatmul.bf16.gmra.mxu0 %v3955
  %v4186 = vpop.f32.mrf.mxu0
  %v4187 = vadd.f32 %v4004, %v4186
  %v4188 = vpop.f32.mrf.mxu0
  %v4189 = vadd.f32 %v4004, %v4188
  %4190 = vmatmul.bf16.gmra.mxu0 %v3956
  %v4191 = vpop.f32.mrf.mxu0
  %v4192 = vadd.f32 %v4004, %v4191
  %v4193 = vpop.f32.mrf.mxu0
  %v4194 = vadd.f32 %v4004, %v4193
  %4195 = vmatmul.bf16.gmra.mxu0 %v3957
  %v4196 = vpop.f32.mrf.mxu0
  %v4197 = vadd.f32 %v4004, %v4196
  %v4198 = vpop.f32.mrf.mxu0
  %v4199 = vadd.f32 %v4004, %v4198
  %4200 = vmatmul.bf16.gmra.mxu0 %v3958
  %v4201 = vpop.f32.mrf.mxu0
  %v4202 = vadd.f32 %v4004, %v4201
  %v4203 = vpop.f32.mrf.mxu0
  %v4204 = vadd.f32 %v4004, %v4203
  %4205 = vmatmul.bf16.gmra.mxu0 %v3959
  %v4206 = vpop.f32.mrf.mxu0
  %v4207 = vadd.f32 %v4004, %v4206
  %v4208 = vpop.f32.mrf.mxu0
  %v4209 = vadd.f32 %v4004, %v4208
  %4210 = vmatmul.bf16.gmra.mxu0 %v3960
  %v4211 = vpop.f32.mrf.mxu0
  %v4212 = vadd.f32 %v4004, %v4211
  %v4213 = vpop.f32.mrf.mxu0
  %v4214 = vadd.f32 %v4004, %v4213
  %4215 = vmatmul.bf16.gmra.mxu0 %v3961
  %v4216 = vpop.f32.mrf.mxu0
  %v4217 = vadd.f32 %v4004, %v4216
  %v4218 = vpop.f32.mrf.mxu0
  %v4219 = vadd.f32 %v4004, %v4218
  %4220 = vmatmul.bf16.gmra.mxu0 %v3962
  %v4221 = vpop.f32.mrf.mxu0
  %v4222 = vadd.f32 %v4004, %v4221
  %v4223 = vpop.f32.mrf.mxu0
  %v4224 = vadd.f32 %v4004, %v4223
  %4225 = vmatmul.bf16.gmra.mxu0 %v3963
  %v4226 = vpop.f32.mrf.mxu0
  %v4227 = vadd.f32 %v4004, %v4226
  %v4228 = vpop.f32.mrf.mxu0
  %v4229 = vadd.f32 %v4004, %v4228
  %4230 = vmatmul.bf16.gmra.mxu0 %v3964
  %v4231 = vpop.f32.mrf.mxu0
  %v4232 = vadd.f32 %v4004, %v4231
  %v4233 = vpop.f32.mrf.mxu0
  %v4234 = vadd.f32 %v4004, %v4233
  %4235 = vmatmul.bf16.gmra.mxu0 %v3965
  %v4236 = vpop.f32.mrf.mxu0
  %v4237 = vadd.f32 %v4004, %v4236
  %v4238 = vpop.f32.mrf.mxu0
  %v4239 = vadd.f32 %v4004, %v4238
  %4240 = vmatmul.bf16.gmra.mxu0 %v3966
  %v4241 = vpop.f32.mrf.mxu0
  %v4242 = vadd.f32 %v4004, %v4241
  %v4243 = vpop.f32.mrf.mxu0
  %v4244 = vadd.f32 %v4004, %v4243
  %4245 = vmatmul.bf16.gmra.mxu0 %v3967
  %v4246 = vpop.f32.mrf.mxu0
  %v4247 = vadd.f32 %v4004, %v4246
  %v4248 = vpop.f32.mrf.mxu0
  %v4249 = vadd.f32 %v4004, %v4248
  %4250 = vmatmul.bf16.gmra.mxu0 %v3968
  %v4251 = vpop.f32.mrf.mxu0
  %v4252 = vadd.f32 %v4004, %v4251
  %v4253 = vpop.f32.mrf.mxu0
  %v4254 = vadd.f32 %v4004, %v4253
  %4255 = vmatmul.bf16.gmra.mxu0 %v3969
  %v4256 = vpop.f32.mrf.mxu0
  %v4257 = vadd.f32 %v4004, %v4256
  %v4258 = vpop.f32.mrf.mxu0
  %v4259 = vadd.f32 %v4004, %v4258
  %4260 = vdwg.mxu0
  %4261 = vmatpush.bf16.msra.mxu0 %v4137
  %4262 = vmatpush.bf16.msra.mxu0 %v4133
  %4263 = vmatpush.bf16.msra.mxu0 %v4129
  %4264 = vmatpush.bf16.msra.mxu0 %v4125
  %4265 = vmatpush.bf16.msra.mxu0 %v4121
  %4266 = vmatpush.bf16.msra.mxu0 %v4117
  %4267 = vmatpush.bf16.msra.mxu0 %v4113
  %4268 = vmatpush.bf16.msra.mxu0 %v4109
  %4269 = vmatmul.bf16.gmra.mxu0 %v3954
  %v4270 = vpop.f32.mrf.mxu0
  %v4271 = vadd.f32 %v4005, %v4270
  %v4272 = vpop.f32.mrf.mxu0
  %v4273 = vadd.f32 %v4005, %v4272
  %4274 = vmatmul.bf16.gmra.mxu0 %v3955
  %v4275 = vpop.f32.mrf.mxu0
  %v4276 = vadd.f32 %v4005, %v4275
  %v4277 = vpop.f32.mrf.mxu0
  %v4278 = vadd.f32 %v4005, %v4277
  %4279 = vmatmul.bf16.gmra.mxu0 %v3956
  %v4280 = vpop.f32.mrf.mxu0
  %v4281 = vadd.f32 %v4005, %v4280
  %v4282 = vpop.f32.mrf.mxu0
  %v4283 = vadd.f32 %v4005, %v4282
  %4284 = vmatmul.bf16.gmra.mxu0 %v3957
  %v4285 = vpop.f32.mrf.mxu0
  %v4286 = vadd.f32 %v4005, %v4285
  %v4287 = vpop.f32.mrf.mxu0
  %v4288 = vadd.f32 %v4005, %v4287
  %4289 = vmatmul.bf16.gmra.mxu0 %v3958
  %v4290 = vpop.f32.mrf.mxu0
  %v4291 = vadd.f32 %v4005, %v4290
  %v4292 = vpop.f32.mrf.mxu0
  %v4293 = vadd.f32 %v4005, %v4292
  %4294 = vmatmul.bf16.gmra.mxu0 %v3959
  %v4295 = vpop.f32.mrf.mxu0
  %v4296 = vadd.f32 %v4005, %v4295
  %v4297 = vpop.f32.mrf.mxu0
  %v4298 = vadd.f32 %v4005, %v4297
  %4299 = vmatmul.bf16.gmra.mxu0 %v3960
  %v4300 = vpop.f32.mrf.mxu0
  %v4301 = vadd.f32 %v4005, %v4300
  %v4302 = vpop.f32.mrf.mxu0
  %v4303 = vadd.f32 %v4005, %v4302
  %4304 = vmatmul.bf16.gmra.mxu0 %v3961
  %v4305 = vpop.f32.mrf.mxu0
  %v4306 = vadd.f32 %v4005, %v4305
  %v4307 = vpop.f32.mrf.mxu0
  %v4308 = vadd.f32 %v4005, %v4307
  %4309 = vmatmul.bf16.gmra.mxu0 %v3962
  %v4310 = vpop.f32.mrf.mxu0
  %v4311 = vadd.f32 %v4005, %v4310
  %v4312 = vpop.f32.mrf.mxu0
  %v4313 = vadd.f32 %v4005, %v4312
  %4314 = vmatmul.bf16.gmra.mxu0 %v3963
  %v4315 = vpop.f32.mrf.mxu0
  %v4316 = vadd.f32 %v4005, %v4315
  %v4317 = vpop.f32.mrf.mxu0
  %v4318 = vadd.f32 %v4005, %v4317
  %4319 = vmatmul.bf16.gmra.mxu0 %v3964
  %v4320 = vpop.f32.mrf.mxu0
  %v4321 = vadd.f32 %v4005, %v4320
  %v4322 = vpop.f32.mrf.mxu0
  %v4323 = vadd.f32 %v4005, %v4322
  %4324 = vmatmul.bf16.gmra.mxu0 %v3965
  %v4325 = vpop.f32.mrf.mxu0
  %v4326 = vadd.f32 %v4005, %v4325
  %v4327 = vpop.f32.mrf.mxu0
  %v4328 = vadd.f32 %v4005, %v4327
  %4329 = vmatmul.bf16.gmra.mxu0 %v3966
  %v4330 = vpop.f32.mrf.mxu0
  %v4331 = vadd.f32 %v4005, %v4330
  %v4332 = vpop.f32.mrf.mxu0
  %v4333 = vadd.f32 %v4005, %v4332
  %4334 = vmatmul.bf16.gmra.mxu0 %v3967
  %v4335 = vpop.f32.mrf.mxu0
  %v4336 = vadd.f32 %v4005, %v4335
  %v4337 = vpop.f32.mrf.mxu0
  %v4338 = vadd.f32 %v4005, %v4337
  %4339 = vmatmul.bf16.gmra.mxu0 %v3968
  %v4340 = vpop.f32.mrf.mxu0
  %v4341 = vadd.f32 %v4005, %v4340
  %v4342 = vpop.f32.mrf.mxu0
  %v4343 = vadd.f32 %v4005, %v4342
  %4344 = vmatmul.bf16.gmra.mxu0 %v3969
  %v4345 = vpop.f32.mrf.mxu0
  %v4346 = vadd.f32 %v4005, %v4345
  %v4347 = vpop.f32.mrf.mxu0
  %v4348 = vadd.f32 %v4005, %v4347
  %4349 = vdwg.mxu0
  %4350 = vmatpush.bf16.msra.mxu0 %v4138
  %4351 = vmatpush.bf16.msra.mxu0 %v4134
  %4352 = vmatpush.bf16.msra.mxu0 %v4130
  %4353 = vmatpush.bf16.msra.mxu0 %v4126
  %4354 = vmatpush.bf16.msra.mxu0 %v4122
  %4355 = vmatpush.bf16.msra.mxu0 %v4118
  %4356 = vmatpush.bf16.msra.mxu0 %v4114
  %4357 = vmatpush.bf16.msra.mxu0 %v4110
  %4358 = vmatmul.bf16.gmra.mxu0 %v3954
  %v4359 = vpop.f32.mrf.mxu0
  %v4360 = vadd.f32 %v4006, %v4359
  %v4361 = vpop.f32.mrf.mxu0
  %v4362 = vadd.f32 %v4006, %v4361
  %4363 = vmatmul.bf16.gmra.mxu0 %v3955
  %v4364 = vpop.f32.mrf.mxu0
  %v4365 = vadd.f32 %v4006, %v4364
  %v4366 = vpop.f32.mrf.mxu0
  %v4367 = vadd.f32 %v4006, %v4366
  %4368 = vmatmul.bf16.gmra.mxu0 %v3956
  %v4369 = vpop.f32.mrf.mxu0
  %v4370 = vadd.f32 %v4006, %v4369
  %v4371 = vpop.f32.mrf.mxu0
  %v4372 = vadd.f32 %v4006, %v4371
  %4373 = vmatmul.bf16.gmra.mxu0 %v3957
  %v4374 = vpop.f32.mrf.mxu0
  %v4375 = vadd.f32 %v4006, %v4374
  %v4376 = vpop.f32.mrf.mxu0
  %v4377 = vadd.f32 %v4006, %v4376
  %4378 = vmatmul.bf16.gmra.mxu0 %v3958
  %v4379 = vpop.f32.mrf.mxu0
  %v4380 = vadd.f32 %v4006, %v4379
  %v4381 = vpop.f32.mrf.mxu0
  %v4382 = vadd.f32 %v4006, %v4381
  %4383 = vmatmul.bf16.gmra.mxu0 %v3959
  %v4384 = vpop.f32.mrf.mxu0
  %v4385 = vadd.f32 %v4006, %v4384
  %v4386 = vpop.f32.mrf.mxu0
  %v4387 = vadd.f32 %v4006, %v4386
  %4388 = vmatmul.bf16.gmra.mxu0 %v3960
  %v4389 = vpop.f32.mrf.mxu0
  %v4390 = vadd.f32 %v4006, %v4389
  %v4391 = vpop.f32.mrf.mxu0
  %v4392 = vadd.f32 %v4006, %v4391
  %4393 = vmatmul.bf16.gmra.mxu0 %v3961
  %v4394 = vpop.f32.mrf.mxu0
  %v4395 = vadd.f32 %v4006, %v4394
  %v4396 = vpop.f32.mrf.mxu0
  %v4397 = vadd.f32 %v4006, %v4396
  %4398 = vmatmul.bf16.gmra.mxu0 %v3962
  %v4399 = vpop.f32.mrf.mxu0
  %v4400 = vadd.f32 %v4006, %v4399
  %v4401 = vpop.f32.mrf.mxu0
  %v4402 = vadd.f32 %v4006, %v4401
  %4403 = vmatmul.bf16.gmra.mxu0 %v3963
  %v4404 = vpop.f32.mrf.mxu0
  %v4405 = vadd.f32 %v4006, %v4404
  %v4406 = vpop.f32.mrf.mxu0
  %v4407 = vadd.f32 %v4006, %v4406
  %4408 = vmatmul.bf16.gmra.mxu0 %v3964
  %v4409 = vpop.f32.mrf.mxu0
  %v4410 = vadd.f32 %v4006, %v4409
  %v4411 = vpop.f32.mrf.mxu0
  %v4412 = vadd.f32 %v4006, %v4411
  %4413 = vmatmul.bf16.gmra.mxu0 %v3965
  %v4414 = vpop.f32.mrf.mxu0
  %v4415 = vadd.f32 %v4006, %v4414
  %v4416 = vpop.f32.mrf.mxu0
  %v4417 = vadd.f32 %v4006, %v4416
  %4418 = vmatmul.bf16.gmra.mxu0 %v3966
  %v4419 = vpop.f32.mrf.mxu0
  %v4420 = vadd.f32 %v4006, %v4419
  %v4421 = vpop.f32.mrf.mxu0
  %v4422 = vadd.f32 %v4006, %v4421
  %4423 = vmatmul.bf16.gmra.mxu0 %v3967
  %v4424 = vpop.f32.mrf.mxu0
  %v4425 = vadd.f32 %v4006, %v4424
  %v4426 = vpop.f32.mrf.mxu0
  %v4427 = vadd.f32 %v4006, %v4426
  %4428 = vmatmul.bf16.gmra.mxu0 %v3968
  %v4429 = vpop.f32.mrf.mxu0
  %v4430 = vadd.f32 %v4006, %v4429
  %v4431 = vpop.f32.mrf.mxu0
  %v4432 = vadd.f32 %v4006, %v4431
  %4433 = vmatmul.bf16.gmra.mxu0 %v3969
  %v4434 = vpop.f32.mrf.mxu0
  %v4435 = vadd.f32 %v4006, %v4434
  %v4436 = vpop.f32.mrf.mxu0
  %v4437 = vadd.f32 %v4006, %v4436
  %4438 = vdwg.mxu0
  %4439 = vmatpush.bf16.msra.mxu0 %v4139
  %4440 = vmatpush.bf16.msra.mxu0 %v4135
  %4441 = vmatpush.bf16.msra.mxu0 %v4131
  %4442 = vmatpush.bf16.msra.mxu0 %v4127
  %4443 = vmatpush.bf16.msra.mxu0 %v4123
  %4444 = vmatpush.bf16.msra.mxu0 %v4119
  %4445 = vmatpush.bf16.msra.mxu0 %v4115
  %4446 = vmatpush.bf16.msra.mxu0 %v4111
  %4447 = vmatmul.bf16.gmra.mxu0 %v3954
  %v4448 = vpop.f32.mrf.mxu0
  %v4449 = vadd.f32 %v4007, %v4448
  %v4450 = vpop.f32.mrf.mxu0
  %v4451 = vadd.f32 %v4007, %v4450
  %4452 = vmatmul.bf16.gmra.mxu0 %v3955
  %v4453 = vpop.f32.mrf.mxu0
  %v4454 = vadd.f32 %v4007, %v4453
  %v4455 = vpop.f32.mrf.mxu0
  %v4456 = vadd.f32 %v4007, %v4455
  %4457 = vmatmul.bf16.gmra.mxu0 %v3956
  %v4458 = vpop.f32.mrf.mxu0
  %v4459 = vadd.f32 %v4007, %v4458
  %v4460 = vpop.f32.mrf.mxu0
  %v4461 = vadd.f32 %v4007, %v4460
  %4462 = vmatmul.bf16.gmra.mxu0 %v3957
  %v4463 = vpop.f32.mrf.mxu0
  %v4464 = vadd.f32 %v4007, %v4463
  %v4465 = vpop.f32.mrf.mxu0
  %v4466 = vadd.f32 %v4007, %v4465
  %4467 = vmatmul.bf16.gmra.mxu0 %v3958
  %v4468 = vpop.f32.mrf.mxu0
  %v4469 = vadd.f32 %v4007, %v4468
  %v4470 = vpop.f32.mrf.mxu0
  %v4471 = vadd.f32 %v4007, %v4470
  %4472 = vmatmul.bf16.gmra.mxu0 %v3959
  %v4473 = vpop.f32.mrf.mxu0
  %v4474 = vadd.f32 %v4007, %v4473
  %v4475 = vpop.f32.mrf.mxu0
  %v4476 = vadd.f32 %v4007, %v4475
  %4477 = vmatmul.bf16.gmra.mxu0 %v3960
  %v4478 = vpop.f32.mrf.mxu0
  %v4479 = vadd.f32 %v4007, %v4478
  %v4480 = vpop.f32.mrf.mxu0
  %v4481 = vadd.f32 %v4007, %v4480
  %4482 = vmatmul.bf16.gmra.mxu0 %v3961
  %v4483 = vpop.f32.mrf.mxu0
  %v4484 = vadd.f32 %v4007, %v4483
  %v4485 = vpop.f32.mrf.mxu0
  %v4486 = vadd.f32 %v4007, %v4485
  %4487 = vmatmul.bf16.gmra.mxu0 %v3962
  %v4488 = vpop.f32.mrf.mxu0
  %v4489 = vadd.f32 %v4007, %v4488
  %v4490 = vpop.f32.mrf.mxu0
  %v4491 = vadd.f32 %v4007, %v4490
  %4492 = vmatmul.bf16.gmra.mxu0 %v3963
  %v4493 = vpop.f32.mrf.mxu0
  %v4494 = vadd.f32 %v4007, %v4493
  %v4495 = vpop.f32.mrf.mxu0
  %v4496 = vadd.f32 %v4007, %v4495
  %4497 = vmatmul.bf16.gmra.mxu0 %v3964
  %v4498 = vpop.f32.mrf.mxu0
  %v4499 = vadd.f32 %v4007, %v4498
  %v4500 = vpop.f32.mrf.mxu0
  %v4501 = vadd.f32 %v4007, %v4500
  %4502 = vmatmul.bf16.gmra.mxu0 %v3965
  %v4503 = vpop.f32.mrf.mxu0
  %v4504 = vadd.f32 %v4007, %v4503
  %v4505 = vpop.f32.mrf.mxu0
  %v4506 = vadd.f32 %v4007, %v4505
  %4507 = vmatmul.bf16.gmra.mxu0 %v3966
  %v4508 = vpop.f32.mrf.mxu0
  %v4509 = vadd.f32 %v4007, %v4508
  %v4510 = vpop.f32.mrf.mxu0
  %v4511 = vadd.f32 %v4007, %v4510
  %4512 = vmatmul.bf16.gmra.mxu0 %v3967
  %v4513 = vpop.f32.mrf.mxu0
  %v4514 = vadd.f32 %v4007, %v4513
  %v4515 = vpop.f32.mrf.mxu0
  %v4516 = vadd.f32 %v4007, %v4515
  %4517 = vmatmul.bf16.gmra.mxu0 %v3968
  %v4518 = vpop.f32.mrf.mxu0
  %v4519 = vadd.f32 %v4007, %v4518
  %v4520 = vpop.f32.mrf.mxu0
  %v4521 = vadd.f32 %v4007, %v4520
  %4522 = vmatmul.bf16.gmra.mxu0 %v3969
  %v4523 = vpop.f32.mrf.mxu0
  %v4524 = vadd.f32 %v4007, %v4523
  %v4525 = vpop.f32.mrf.mxu0
  %v4526 = vadd.f32 %v4007, %v4525
  %4527 = vdwg.mxu0
  %v4528 = vld [vmem:[%s12] sm:$0xff]
  %v4529 = vld [vmem:[%s12 + $0x8] sm:$0xff]
  %v4530 = vld [vmem:[%s12 + $0x10] sm:$0xff]
  %v4531 = vld [vmem:[%s12 + $0x18] sm:$0xff]
  %v4532 = vld [vmem:[%s12 + $0x20] sm:$0xff]
  %v4533 = vld [vmem:[%s12 + $0x28] sm:$0xff]
  %v4534 = vld [vmem:[%s12 + $0x30] sm:$0xff]
  %v4535 = vld [vmem:[%s12 + $0x38] sm:$0xff]
  %v4536 = vld [vmem:[%s12 + $0x40] sm:$0xff]
  %v4537 = vld [vmem:[%s12 + $0x48] sm:$0xff]
  %v4538 = vld [vmem:[%s12 + $0x50] sm:$0xff]
  %v4539 = vld [vmem:[%s12 + $0x58] sm:$0xff]
  %v4540 = vld [vmem:[%s12 + $0x60] sm:$0xff]
  %v4541 = vld [vmem:[%s12 + $0x68] sm:$0xff]
  %v4542 = vld [vmem:[%s12 + $0x70] sm:$0xff]
  %v4543 = vld [vmem:[%s12 + $0x78] sm:$0xff]
  %v4544 = vld [vmem:[%s12 + $0x80] sm:$0xff]
  %v4545 = vld [vmem:[%s12 + $0x88] sm:$0xff]
  %v4546 = vld [vmem:[%s12 + $0x90] sm:$0xff]
  %v4547 = vld [vmem:[%s12 + $0x98] sm:$0xff]
  %v4548 = vld [vmem:[%s12 + $0xa0] sm:$0xff]
  %v4549 = vld [vmem:[%s12 + $0xa8] sm:$0xff]
  %v4550 = vld [vmem:[%s12 + $0xb0] sm:$0xff]
  %v4551 = vld [vmem:[%s12 + $0xb8] sm:$0xff]
  %v4552 = vld [vmem:[%s12 + $0xc0] sm:$0xff]
  %v4553 = vld [vmem:[%s12 + $0xc8] sm:$0xff]
  %v4554 = vld [vmem:[%s12 + $0xd0] sm:$0xff]
  %v4555 = vld [vmem:[%s12 + $0xd8] sm:$0xff]
  %v4556 = vld [vmem:[%s12 + $0xe0] sm:$0xff]
  %v4557 = vld [vmem:[%s12 + $0xe8] sm:$0xff]
  %v4558 = vld [vmem:[%s12 + $0xf0] sm:$0xff]
  %v4559 = vld [vmem:[%s12 + $0xf8] sm:$0xff]
  %v4592 = vunpack.c.l.b16 %v4528
  %v4593 = vunpack.c.h.b16 %v4528
  %v4594 = vunpack.c.l.b16 %v4529
  %v4595 = vunpack.c.h.b16 %v4529
  %v4596 = vunpack.c.l.b16 %v4530
  %v4597 = vunpack.c.h.b16 %v4530
  %v4598 = vunpack.c.l.b16 %v4531
  %v4599 = vunpack.c.h.b16 %v4531
  %v4600 = vunpack.c.l.b16 %v4532
  %v4601 = vunpack.c.h.b16 %v4532
  %v4602 = vunpack.c.l.b16 %v4533
  %v4603 = vunpack.c.h.b16 %v4533
  %v4604 = vunpack.c.l.b16 %v4534
  %v4605 = vunpack.c.h.b16 %v4534
  %v4606 = vunpack.c.l.b16 %v4535
  %v4607 = vunpack.c.h.b16 %v4535
  %v4608 = vunpack.c.l.b16 %v4536
  %v4609 = vunpack.c.h.b16 %v4536
  %v4610 = vunpack.c.l.b16 %v4537
  %v4611 = vunpack.c.h.b16 %v4537
  %v4612 = vunpack.c.l.b16 %v4538
  %v4613 = vunpack.c.h.b16 %v4538
  %v4614 = vunpack.c.l.b16 %v4539
  %v4615 = vunpack.c.h.b16 %v4539
  %v4616 = vunpack.c.l.b16 %v4540
  %v4617 = vunpack.c.h.b16 %v4540
  %v4618 = vunpack.c.l.b16 %v4541
  %v4619 = vunpack.c.h.b16 %v4541
  %v4620 = vunpack.c.l.b16 %v4542
  %v4621 = vunpack.c.h.b16 %v4542
  %v4622 = vunpack.c.l.b16 %v4543
  %v4623 = vunpack.c.h.b16 %v4543
  %v4624 = vunpack.c.l.b16 %v4544
  %v4625 = vunpack.c.h.b16 %v4544
  %v4626 = vunpack.c.l.b16 %v4545
  %v4627 = vunpack.c.h.b16 %v4545
  %v4628 = vunpack.c.l.b16 %v4546
  %v4629 = vunpack.c.h.b16 %v4546
  %v4630 = vunpack.c.l.b16 %v4547
  %v4631 = vunpack.c.h.b16 %v4547
  %v4632 = vunpack.c.l.b16 %v4548
  %v4633 = vunpack.c.h.b16 %v4548
  %v4634 = vunpack.c.l.b16 %v4549
  %v4635 = vunpack.c.h.b16 %v4549
  %v4636 = vunpack.c.l.b16 %v4550
  %v4637 = vunpack.c.h.b16 %v4550
  %v4638 = vunpack.c.l.b16 %v4551
  %v4639 = vunpack.c.h.b16 %v4551
  %v4640 = vunpack.c.l.b16 %v4552
  %v4641 = vunpack.c.h.b16 %v4552
  %v4642 = vunpack.c.l.b16 %v4553
  %v4643 = vunpack.c.h.b16 %v4553
  %v4644 = vunpack.c.l.b16 %v4554
  %v4645 = vunpack.c.h.b16 %v4554
  %v4646 = vunpack.c.l.b16 %v4555
  %v4647 = vunpack.c.h.b16 %v4555
  %v4648 = vunpack.c.l.b16 %v4556
  %v4649 = vunpack.c.h.b16 %v4556
  %v4650 = vunpack.c.l.b16 %v4557
  %v4651 = vunpack.c.h.b16 %v4557
  %v4652 = vunpack.c.l.b16 %v4558
  %v4653 = vunpack.c.h.b16 %v4558
  %v4654 = vunpack.c.l.b16 %v4559
  %v4655 = vunpack.c.h.b16 %v4559
  %v4656 = vpack.c.b16 %v4596, %v4592
  %v4657 = vpack.c.b16 %v4597, %v4593
  %v4658 = vpack.c.b16 %v4598, %v4594
  %v4659 = vpack.c.b16 %v4599, %v4595
  %v4660 = vpack.c.b16 %v4604, %v4600
  %v4661 = vpack.c.b16 %v4605, %v4601
  %v4662 = vpack.c.b16 %v4606, %v4602
  %v4663 = vpack.c.b16 %v4607, %v4603
  %v4664 = vpack.c.b16 %v4612, %v4608
  %v4665 = vpack.c.b16 %v4613, %v4609
  %v4666 = vpack.c.b16 %v4614, %v4610
  %v4667 = vpack.c.b16 %v4615, %v4611
  %v4668 = vpack.c.b16 %v4620, %v4616
  %v4669 = vpack.c.b16 %v4621, %v4617
  %v4670 = vpack.c.b16 %v4622, %v4618
  %v4671 = vpack.c.b16 %v4623, %v4619
  %v4672 = vpack.c.b16 %v4628, %v4624
  %v4673 = vpack.c.b16 %v4629, %v4625
  %v4674 = vpack.c.b16 %v4630, %v4626
  %v4675 = vpack.c.b16 %v4631, %v4627
  %v4676 = vpack.c.b16 %v4636, %v4632
  %v4677 = vpack.c.b16 %v4637, %v4633
  %v4678 = vpack.c.b16 %v4638, %v4634
  %v4679 = vpack.c.b16 %v4639, %v4635
  %v4680 = vpack.c.b16 %v4644, %v4640
  %v4681 = vpack.c.b16 %v4645, %v4641
  %v4682 = vpack.c.b16 %v4646, %v4642
  %v4683 = vpack.c.b16 %v4647, %v4643
  %v4684 = vpack.c.b16 %v4652, %v4648
  %v4685 = vpack.c.b16 %v4653, %v4649
  %v4686 = vpack.c.b16 %v4654, %v4650
  %v4687 = vpack.c.b16 %v4655, %v4651
  %4720 = vmatpush.bf16.msra.mxu0 %v4684
  %4721 = vmatpush.bf16.msra.mxu0 %v4680
  %4722 = vmatpush.bf16.msra.mxu0 %v4676
  %4723 = vmatpush.bf16.msra.mxu0 %v4672
  %4724 = vmatpush.bf16.msra.mxu0 %v4668
  %4725 = vmatpush.bf16.msra.mxu0 %v4664
  %4726 = vmatpush.bf16.msra.mxu0 %v4660
  %4727 = vmatpush.bf16.msra.mxu0 %v4656
  %4728 = vmatmul.bf16.gmra.mxu0 0
  %v4729 = vpop.f32.mrf.mxu0
  %v4730 = vadd.f32 0.0, %v4729
  %v4731 = vpop.f32.mrf.mxu0
  %v4732 = vadd.f32 0.0, %v4731
  %4733 = vmatmul.bf16.gmra.mxu0 0
  %v4734 = vpop.f32.mrf.mxu0
  %v4735 = vadd.f32 0.0, %v4734
  %v4736 = vpop.f32.mrf.mxu0
  %v4737 = vadd.f32 0.0, %v4736
  %4738 = vmatmul.bf16.gmra.mxu0 0
  %v4739 = vpop.f32.mrf.mxu0
  %v4740 = vadd.f32 0.0, %v4739
  %v4741 = vpop.f32.mrf.mxu0
  %v4742 = vadd.f32 0.0, %v4741
  %4743 = vmatmul.bf16.gmra.mxu0 0
  %v4744 = vpop.f32.mrf.mxu0
  %v4745 = vadd.f32 0.0, %v4744
  %v4746 = vpop.f32.mrf.mxu0
  %v4747 = vadd.f32 0.0, %v4746
  %4748 = vdwg.mxu0
  %4749 = vmatpush.bf16.msra.mxu0 %v4685
  %4750 = vmatpush.bf16.msra.mxu0 %v4681
  %4751 = vmatpush.bf16.msra.mxu0 %v4677
  %4752 = vmatpush.bf16.msra.mxu0 %v4673
  %4753 = vmatpush.bf16.msra.mxu0 %v4669
  %4754 = vmatpush.bf16.msra.mxu0 %v4665
  %4755 = vmatpush.bf16.msra.mxu0 %v4661
  %4756 = vmatpush.bf16.msra.mxu0 %v4657
  %4757 = vmatmul.bf16.gmra.mxu0 0
  %v4758 = vpop.f32.mrf.mxu0
  %v4759 = vadd.f32 0.0, %v4758
  %v4760 = vpop.f32.mrf.mxu0
  %v4761 = vadd.f32 0.0, %v4760
  %4762 = vmatmul.bf16.gmra.mxu0 0
  %v4763 = vpop.f32.mrf.mxu0
  %v4764 = vadd.f32 0.0, %v4763
  %v4765 = vpop.f32.mrf.mxu0
  %v4766 = vadd.f32 0.0, %v4765
  %4767 = vmatmul.bf16.gmra.mxu0 0
  %v4768 = vpop.f32.mrf.mxu0
  %v4769 = vadd.f32 0.0, %v4768
  %v4770 = vpop.f32.mrf.mxu0
  %v4771 = vadd.f32 0.0, %v4770
  %4772 = vmatmul.bf16.gmra.mxu0 0
  %v4773 = vpop.f32.mrf.mxu0
  %v4774 = vadd.f32 0.0, %v4773
  %v4775 = vpop.f32.mrf.mxu0
  %v4776 = vadd.f32 0.0, %v4775
  %4777 = vdwg.mxu0
  %4778 = vmatpush.bf16.msra.mxu0 %v4686
  %4779 = vmatpush.bf16.msra.mxu0 %v4682
  %4780 = vmatpush.bf16.msra.mxu0 %v4678
  %4781 = vmatpush.bf16.msra.mxu0 %v4674
  %4782 = vmatpush.bf16.msra.mxu0 %v4670
  %4783 = vmatpush.bf16.msra.mxu0 %v4666
  %4784 = vmatpush.bf16.msra.mxu0 %v4662
  %4785 = vmatpush.bf16.msra.mxu0 %v4658
  %4786 = vmatmul.bf16.gmra.mxu0 0
  %v4787 = vpop.f32.mrf.mxu0
  %v4788 = vadd.f32 0.0, %v4787
  %v4789 = vpop.f32.mrf.mxu0
  %v4790 = vadd.f32 0.0, %v4789
  %4791 = vmatmul.bf16.gmra.mxu0 0
  %v4792 = vpop.f32.mrf.mxu0
  %v4793 = vadd.f32 0.0, %v4792
  %v4794 = vpop.f32.mrf.mxu0
  %v4795 = vadd.f32 0.0, %v4794
  %4796 = vmatmul.bf16.gmra.mxu0 0
  %v4797 = vpop.f32.mrf.mxu0
  %v4798 = vadd.f32 0.0, %v4797
  %v4799 = vpop.f32.mrf.mxu0
  %v4800 = vadd.f32 0.0, %v4799
  %4801 = vmatmul.bf16.gmra.mxu0 0
  %v4802 = vpop.f32.mrf.mxu0
  %v4803 = vadd.f32 0.0, %v4802
  %v4804 = vpop.f32.mrf.mxu0
  %v4805 = vadd.f32 0.0, %v4804
  %4806 = vdwg.mxu0
  %4807 = vmatpush.bf16.msra.mxu0 %v4687
  %4808 = vmatpush.bf16.msra.mxu0 %v4683
  %4809 = vmatpush.bf16.msra.mxu0 %v4679
  %4810 = vmatpush.bf16.msra.mxu0 %v4675
  %4811 = vmatpush.bf16.msra.mxu0 %v4671
  %4812 = vmatpush.bf16.msra.mxu0 %v4667
  %4813 = vmatpush.bf16.msra.mxu0 %v4663
  %4814 = vmatpush.bf16.msra.mxu0 %v4659
  %4815 = vmatmul.bf16.gmra.mxu0 0
  %v4816 = vpop.f32.mrf.mxu0
  %v4817 = vadd.f32 0.0, %v4816
  %v4818 = vpop.f32.mrf.mxu0
  %v4819 = vadd.f32 0.0, %v4818
  %4820 = vmatmul.bf16.gmra.mxu0 0
  %v4821 = vpop.f32.mrf.mxu0
  %v4822 = vadd.f32 0.0, %v4821
  %v4823 = vpop.f32.mrf.mxu0
  %v4824 = vadd.f32 0.0, %v4823
  %4825 = vmatmul.bf16.gmra.mxu0 0
  %v4826 = vpop.f32.mrf.mxu0
  %v4827 = vadd.f32 0.0, %v4826
  %v4828 = vpop.f32.mrf.mxu0
  %v4829 = vadd.f32 0.0, %v4828
  %4830 = vmatmul.bf16.gmra.mxu0 0
  %v4831 = vpop.f32.mrf.mxu0
  %v4832 = vadd.f32 0.0, %v4831
  %v4833 = vpop.f32.mrf.mxu0
  %v4834 = vadd.f32 0.0, %v4833
  %4835 = vdwg.mxu0
  %v4836 = vadd.f32 %v4182, %v4730
  %v4837 = vadd.f32 %v4271, %v4759
  %v4838 = vadd.f32 %v4360, %v4788
  %v4839 = vadd.f32 %v4449, %v4817
  %v4840 = vadd.f32 %v4184, %v4732
  %v4841 = vadd.f32 %v4273, %v4761
  %v4842 = vadd.f32 %v4362, %v4790
  %v4843 = vadd.f32 %v4451, %v4819
  %v4844 = vadd.f32 %v4187, %v4735
  %v4845 = vadd.f32 %v4276, %v4764
  %v4846 = vadd.f32 %v4365, %v4793
  %v4847 = vadd.f32 %v4454, %v4822
  %v4848 = vadd.f32 %v4189, %v4737
  %v4849 = vadd.f32 %v4278, %v4766
  %v4850 = vadd.f32 %v4367, %v4795
  %v4851 = vadd.f32 %v4456, %v4824
  %v4852 = vadd.f32 %v4192, %v4740
  %v4853 = vadd.f32 %v4281, %v4769
  %v4854 = vadd.f32 %v4370, %v4798
  %v4855 = vadd.f32 %v4459, %v4827
  %v4856 = vadd.f32 %v4194, %v4742
  %v4857 = vadd.f32 %v4283, %v4771
  %v4858 = vadd.f32 %v4372, %v4800
  %v4859 = vadd.f32 %v4461, %v4829
  %v4860 = vadd.f32 %v4197, %v4745
  %v4861 = vadd.f32 %v4286, %v4774
  %v4862 = vadd.f32 %v4375, %v4803
  %v4863 = vadd.f32 %v4464, %v4832
  %v4864 = vadd.f32 %v4199, %v4747
  %v4865 = vadd.f32 %v4288, %v4776
  %v4866 = vadd.f32 %v4377, %v4805
  %v4867 = vadd.f32 %v4466, %v4834
  %v4868 = vxor.u32 %v4836, 2147483648
  %v4869 = vxor.u32 %v4837, 2147483648
  %v4870 = vxor.u32 %v4838, 2147483648
  %v4871 = vxor.u32 %v4840, 2147483648
  %v4872 = vxor.u32 %v4841, 2147483648
  %v4873 = vxor.u32 %v4842, 2147483648
  %v4874 = vxor.u32 %v4844, 2147483648
  %v4875 = vxor.u32 %v4845, 2147483648
  %v4876 = vxor.u32 %v4846, 2147483648
  %v4877 = vxor.u32 %v4848, 2147483648
  %v4878 = vxor.u32 %v4849, 2147483648
  %v4879 = vxor.u32 %v4850, 2147483648
  %v4880 = vxor.u32 %v4852, 2147483648
  %v4881 = vxor.u32 %v4853, 2147483648
  %v4882 = vxor.u32 %v4854, 2147483648
  %v4883 = vxor.u32 %v4856, 2147483648
  %v4884 = vxor.u32 %v4857, 2147483648
  %v4885 = vxor.u32 %v4858, 2147483648
  %v4886 = vxor.u32 %v4860, 2147483648
  %v4887 = vxor.u32 %v4861, 2147483648
  %v4888 = vxor.u32 %v4862, 2147483648
  %v4889 = vxor.u32 %v4864, 2147483648
  %v4890 = vxor.u32 %v4865, 2147483648
  %v4891 = vxor.u32 %v4866, 2147483648
  %v4892 = vmul.f32 %v4868, 1.442695
  %v4893 = vpow.pop %v4892
  %v4894 = vmul.f32 %v4869, 1.442695
  %v4895 = vpow.pop %v4894
  %v4896 = vmul.f32 %v4870, 1.442695
  %v4897 = vpow.pop %v4896
  %v4898 = vmul.f32 %v4871, 1.442695
  %v4899 = vpow.pop %v4898
  %v4900 = vmul.f32 %v4872, 1.442695
  %v4901 = vpow.pop %v4900
  %v4902 = vmul.f32 %v4873, 1.442695
  %v4903 = vpow.pop %v4902
  %v4904 = vmul.f32 %v4874, 1.442695
  %v4905 = vpow.pop %v4904
  %v4906 = vmul.f32 %v4875, 1.442695
  %v4907 = vpow.pop %v4906
  %v4908 = vmul.f32 %v4876, 1.442695
  %v4909 = vpow.pop %v4908
  %v4910 = vmul.f32 %v4877, 1.442695
  %v4911 = vpow.pop %v4910
  %v4912 = vmul.f32 %v4878, 1.442695
  %v4913 = vpow.pop %v4912
  %v4914 = vmul.f32 %v4879, 1.442695
  %v4915 = vpow.pop %v4914
  %v4916 = vmul.f32 %v4880, 1.442695
  %v4917 = vpow.pop %v4916
  %v4918 = vmul.f32 %v4881, 1.442695
  %v4919 = vpow.pop %v4918
  %v4920 = vmul.f32 %v4882, 1.442695
  %v4921 = vpow.pop %v4920
  %v4922 = vmul.f32 %v4883, 1.442695
  %v4923 = vpow.pop %v4922
  %v4924 = vmul.f32 %v4884, 1.442695
  %v4925 = vpow.pop %v4924
  %v4926 = vmul.f32 %v4885, 1.442695
  %v4927 = vpow.pop %v4926
  %v4928 = vmul.f32 %v4886, 1.442695
  %v4929 = vpow.pop %v4928
  %v4930 = vmul.f32 %v4887, 1.442695
  %v4931 = vpow.pop %v4930
  %v4932 = vmul.f32 %v4888, 1.442695
  %v4933 = vpow.pop %v4932
  %v4934 = vmul.f32 %v4889, 1.442695
  %v4935 = vpow.pop %v4934
  %v4936 = vmul.f32 %v4890, 1.442695
  %v4937 = vpow.pop %v4936
  %v4938 = vmul.f32 %v4891, 1.442695
  %v4939 = vpow.pop %v4938
  %v4940 = vadd.f32 %v4893, 1.0
  %v4941 = vadd.f32 %v4895, 1.0
  %v4942 = vadd.f32 %v4897, 1.0
  %v4943 = vadd.f32 %v4899, 1.0
  %v4944 = vadd.f32 %v4901, 1.0
  %v4945 = vadd.f32 %v4903, 1.0
  %v4946 = vadd.f32 %v4905, 1.0
  %v4947 = vadd.f32 %v4907, 1.0
  %v4948 = vadd.f32 %v4909, 1.0
  %v4949 = vadd.f32 %v4911, 1.0
  %v4950 = vadd.f32 %v4913, 1.0
  %v4951 = vadd.f32 %v4915, 1.0
  %v4952 = vadd.f32 %v4917, 1.0
  %v4953 = vadd.f32 %v4919, 1.0
  %v4954 = vadd.f32 %v4921, 1.0
  %v4955 = vadd.f32 %v4923, 1.0
  %v4956 = vadd.f32 %v4925, 1.0
  %v4957 = vadd.f32 %v4927, 1.0
  %v4958 = vadd.f32 %v4929, 1.0
  %v4959 = vadd.f32 %v4931, 1.0
  %v4960 = vadd.f32 %v4933, 1.0
  %v4961 = vadd.f32 %v4935, 1.0
  %v4962 = vadd.f32 %v4937, 1.0
  %v4963 = vadd.f32 %v4939, 1.0
  %v4964 = vrcp.pop %v4940
  %v4965 = vmul.f32 %v4940, %v4964
  %v4966 = vsub.f32 1.0, %v4965
  %v4967 = vmul.f32 %v4964, %v4966
  %v4968 = vadd.f32 %v4964, %v4967
  %vm4969 = vweird.f32 %v4940
  %vm4970 = vweird.f32 %v4964
  %vm4971 = vmor %vm4969, %vm4970
  %v4972 = vsel %vm4971, %v4964, %v4968
  %v4973 = vand.u32 2147483647, %v4940
  %vm4974 = vcmp.eq.f32.partialorder %v4973, 8.507059e+37
  %v4975 = vand.u32 %v4940, 2147483648
  %v4976 = vor.u32 1.1754944e-38, %v4975
  %v4977 = vsel %vm4974, %v4976, %v4972
  %v4978 = vmul.f32 1.0, %v4977
  %v4979 = vrcp.pop %v4941
  %v4980 = vmul.f32 %v4941, %v4979
  %v4981 = vsub.f32 1.0, %v4980
  %v4982 = vmul.f32 %v4979, %v4981
  %v4983 = vadd.f32 %v4979, %v4982
  %vm4984 = vweird.f32 %v4941
  %vm4985 = vweird.f32 %v4979
  %vm4986 = vmor %vm4984, %vm4985
  %v4987 = vsel %vm4986, %v4979, %v4983
  %v4988 = vand.u32 2147483647, %v4941
  %vm4989 = vcmp.eq.f32.partialorder %v4988, 8.507059e+37
  %v4990 = vand.u32 %v4941, 2147483648
  %v4991 = vor.u32 1.1754944e-38, %v4990
  %v4992 = vsel %vm4989, %v4991, %v4987
  %v4993 = vmul.f32 1.0, %v4992
  %v4994 = vrcp.pop %v4942
  %v4995 = vmul.f32 %v4942, %v4994
  %v4996 = vsub.f32 1.0, %v4995
  %v4997 = vmul.f32 %v4994, %v4996
  %v4998 = vadd.f32 %v4994, %v4997
  %vm4999 = vweird.f32 %v4942
  %vm5000 = vweird.f32 %v4994
  %vm5001 = vmor %vm4999, %vm5000
  %v5002 = vsel %vm5001, %v4994, %v4998
  %v5003 = vand.u32 2147483647, %v4942
  %vm5004 = vcmp.eq.f32.partialorder %v5003, 8.507059e+37
  %v5005 = vand.u32 %v4942, 2147483648
  %v5006 = vor.u32 1.1754944e-38, %v5005
  %v5007 = vsel %vm5004, %v5006, %v5002
  %v5008 = vmul.f32 1.0, %v5007
  %v5009 = vrcp.pop %v4943
  %v5010 = vmul.f32 %v4943, %v5009
  %v5011 = vsub.f32 1.0, %v5010
  %v5012 = vmul.f32 %v5009, %v5011
  %v5013 = vadd.f32 %v5009, %v5012
  %vm5014 = vweird.f32 %v4943
  %vm5015 = vweird.f32 %v5009
  %vm5016 = vmor %vm5014, %vm5015
  %v5017 = vsel %vm5016, %v5009, %v5013
  %v5018 = vand.u32 2147483647, %v4943
  %vm5019 = vcmp.eq.f32.partialorder %v5018, 8.507059e+37
  %v5020 = vand.u32 %v4943, 2147483648
  %v5021 = vor.u32 1.1754944e-38, %v5020
  %v5022 = vsel %vm5019, %v5021, %v5017
  %v5023 = vmul.f32 1.0, %v5022
  %v5024 = vrcp.pop %v4944
  %v5025 = vmul.f32 %v4944, %v5024
  %v5026 = vsub.f32 1.0, %v5025
  %v5027 = vmul.f32 %v5024, %v5026
  %v5028 = vadd.f32 %v5024, %v5027
  %vm5029 = vweird.f32 %v4944
  %vm5030 = vweird.f32 %v5024
  %vm5031 = vmor %vm5029, %vm5030
  %v5032 = vsel %vm5031, %v5024, %v5028
  %v5033 = vand.u32 2147483647, %v4944
  %vm5034 = vcmp.eq.f32.partialorder %v5033, 8.507059e+37
  %v5035 = vand.u32 %v4944, 2147483648
  %v5036 = vor.u32 1.1754944e-38, %v5035
  %v5037 = vsel %vm5034, %v5036, %v5032
  %v5038 = vmul.f32 1.0, %v5037
  %v5039 = vrcp.pop %v4945
  %v5040 = vmul.f32 %v4945, %v5039
  %v5041 = vsub.f32 1.0, %v5040
  %v5042 = vmul.f32 %v5039, %v5041
  %v5043 = vadd.f32 %v5039, %v5042
  %vm5044 = vweird.f32 %v4945
  %vm5045 = vweird.f32 %v5039
  %vm5046 = vmor %vm5044, %vm5045
  %v5047 = vsel %vm5046, %v5039, %v5043
  %v5048 = vand.u32 2147483647, %v4945
  %vm5049 = vcmp.eq.f32.partialorder %v5048, 8.507059e+37
  %v5050 = vand.u32 %v4945, 2147483648
  %v5051 = vor.u32 1.1754944e-38, %v5050
  %v5052 = vsel %vm5049, %v5051, %v5047
  %v5053 = vmul.f32 1.0, %v5052
  %v5054 = vrcp.pop %v4946
  %v5055 = vmul.f32 %v4946, %v5054
  %v5056 = vsub.f32 1.0, %v5055
  %v5057 = vmul.f32 %v5054, %v5056
  %v5058 = vadd.f32 %v5054, %v5057
  %vm5059 = vweird.f32 %v4946
  %vm5060 = vweird.f32 %v5054
  %vm5061 = vmor %vm5059, %vm5060
  %v5062 = vsel %vm5061, %v5054, %v5058
  %v5063 = vand.u32 2147483647, %v4946
  %vm5064 = vcmp.eq.f32.partialorder %v5063, 8.507059e+37
  %v5065 = vand.u32 %v4946, 2147483648
  %v5066 = vor.u32 1.1754944e-38, %v5065
  %v5067 = vsel %vm5064, %v5066, %v5062
  %v5068 = vmul.f32 1.0, %v5067
  %v5069 = vrcp.pop %v4947
  %v5070 = vmul.f32 %v4947, %v5069
  %v5071 = vsub.f32 1.0, %v5070
  %v5072 = vmul.f32 %v5069, %v5071
  %v5073 = vadd.f32 %v5069, %v5072
  %vm5074 = vweird.f32 %v4947
  %vm5075 = vweird.f32 %v5069
  %vm5076 = vmor %vm5074, %vm5075
  %v5077 = vsel %vm5076, %v5069, %v5073
  %v5078 = vand.u32 2147483647, %v4947
  %vm5079 = vcmp.eq.f32.partialorder %v5078, 8.507059e+37
  %v5080 = vand.u32 %v4947, 2147483648
  %v5081 = vor.u32 1.1754944e-38, %v5080
  %v5082 = vsel %vm5079, %v5081, %v5077
  %v5083 = vmul.f32 1.0, %v5082
  %v5084 = vrcp.pop %v4948
  %v5085 = vmul.f32 %v4948, %v5084
  %v5086 = vsub.f32 1.0, %v5085
  %v5087 = vmul.f32 %v5084, %v5086
  %v5088 = vadd.f32 %v5084, %v5087
  %vm5089 = vweird.f32 %v4948
  %vm5090 = vweird.f32 %v5084
  %vm5091 = vmor %vm5089, %vm5090
  %v5092 = vsel %vm5091, %v5084, %v5088
  %v5093 = vand.u32 2147483647, %v4948
  %vm5094 = vcmp.eq.f32.partialorder %v5093, 8.507059e+37
  %v5095 = vand.u32 %v4948, 2147483648
  %v5096 = vor.u32 1.1754944e-38, %v5095
  %v5097 = vsel %vm5094, %v5096, %v5092
  %v5098 = vmul.f32 1.0, %v5097
  %v5099 = vrcp.pop %v4949
  %v5100 = vmul.f32 %v4949, %v5099
  %v5101 = vsub.f32 1.0, %v5100
  %v5102 = vmul.f32 %v5099, %v5101
  %v5103 = vadd.f32 %v5099, %v5102
  %vm5104 = vweird.f32 %v4949
  %vm5105 = vweird.f32 %v5099
  %vm5106 = vmor %vm5104, %vm5105
  %v5107 = vsel %vm5106, %v5099, %v5103
  %v5108 = vand.u32 2147483647, %v4949
  %vm5109 = vcmp.eq.f32.partialorder %v5108, 8.507059e+37
  %v5110 = vand.u32 %v4949, 2147483648
  %v5111 = vor.u32 1.1754944e-38, %v5110
  %v5112 = vsel %vm5109, %v5111, %v5107
  %v5113 = vmul.f32 1.0, %v5112
  %v5114 = vrcp.pop %v4950
  %v5115 = vmul.f32 %v4950, %v5114
  %v5116 = vsub.f32 1.0, %v5115
  %v5117 = vmul.f32 %v5114, %v5116
  %v5118 = vadd.f32 %v5114, %v5117
  %vm5119 = vweird.f32 %v4950
  %vm5120 = vweird.f32 %v5114
  %vm5121 = vmor %vm5119, %vm5120
  %v5122 = vsel %vm5121, %v5114, %v5118
  %v5123 = vand.u32 2147483647, %v4950
  %vm5124 = vcmp.eq.f32.partialorder %v5123, 8.507059e+37
  %v5125 = vand.u32 %v4950, 2147483648
  %v5126 = vor.u32 1.1754944e-38, %v5125
  %v5127 = vsel %vm5124, %v5126, %v5122
  %v5128 = vmul.f32 1.0, %v5127
  %v5129 = vrcp.pop %v4951
  %v5130 = vmul.f32 %v4951, %v5129
  %v5131 = vsub.f32 1.0, %v5130
  %v5132 = vmul.f32 %v5129, %v5131
  %v5133 = vadd.f32 %v5129, %v5132
  %vm5134 = vweird.f32 %v4951
  %vm5135 = vweird.f32 %v5129
  %vm5136 = vmor %vm5134, %vm5135
  %v5137 = vsel %vm5136, %v5129, %v5133
  %v5138 = vand.u32 2147483647, %v4951
  %vm5139 = vcmp.eq.f32.partialorder %v5138, 8.507059e+37
  %v5140 = vand.u32 %v4951, 2147483648
  %v5141 = vor.u32 1.1754944e-38, %v5140
  %v5142 = vsel %vm5139, %v5141, %v5137
  %v5143 = vmul.f32 1.0, %v5142
  %v5144 = vrcp.pop %v4952
  %v5145 = vmul.f32 %v4952, %v5144
  %v5146 = vsub.f32 1.0, %v5145
  %v5147 = vmul.f32 %v5144, %v5146
  %v5148 = vadd.f32 %v5144, %v5147
  %vm5149 = vweird.f32 %v4952
  %vm5150 = vweird.f32 %v5144
  %vm5151 = vmor %vm5149, %vm5150
  %v5152 = vsel %vm5151, %v5144, %v5148
  %v5153 = vand.u32 2147483647, %v4952
  %vm5154 = vcmp.eq.f32.partialorder %v5153, 8.507059e+37
  %v5155 = vand.u32 %v4952, 2147483648
  %v5156 = vor.u32 1.1754944e-38, %v5155
  %v5157 = vsel %vm5154, %v5156, %v5152
  %v5158 = vmul.f32 1.0, %v5157
  %v5159 = vrcp.pop %v4953
  %v5160 = vmul.f32 %v4953, %v5159
  %v5161 = vsub.f32 1.0, %v5160
  %v5162 = vmul.f32 %v5159, %v5161
  %v5163 = vadd.f32 %v5159, %v5162
  %vm5164 = vweird.f32 %v4953
  %vm5165 = vweird.f32 %v5159
  %vm5166 = vmor %vm5164, %vm5165
  %v5167 = vsel %vm5166, %v5159, %v5163
  %v5168 = vand.u32 2147483647, %v4953
  %vm5169 = vcmp.eq.f32.partialorder %v5168, 8.507059e+37
  %v5170 = vand.u32 %v4953, 2147483648
  %v5171 = vor.u32 1.1754944e-38, %v5170
  %v5172 = vsel %vm5169, %v5171, %v5167
  %v5173 = vmul.f32 1.0, %v5172
  %v5174 = vrcp.pop %v4954
  %v5175 = vmul.f32 %v4954, %v5174
  %v5176 = vsub.f32 1.0, %v5175
  %v5177 = vmul.f32 %v5174, %v5176
  %v5178 = vadd.f32 %v5174, %v5177
  %vm5179 = vweird.f32 %v4954
  %vm5180 = vweird.f32 %v5174
  %vm5181 = vmor %vm5179, %vm5180
  %v5182 = vsel %vm5181, %v5174, %v5178
  %v5183 = vand.u32 2147483647, %v4954
  %vm5184 = vcmp.eq.f32.partialorder %v5183, 8.507059e+37
  %v5185 = vand.u32 %v4954, 2147483648
  %v5186 = vor.u32 1.1754944e-38, %v5185
  %v5187 = vsel %vm5184, %v5186, %v5182
  %v5188 = vmul.f32 1.0, %v5187
  %v5189 = vrcp.pop %v4955
  %v5190 = vmul.f32 %v4955, %v5189
  %v5191 = vsub.f32 1.0, %v5190
  %v5192 = vmul.f32 %v5189, %v5191
  %v5193 = vadd.f32 %v5189, %v5192
  %vm5194 = vweird.f32 %v4955
  %vm5195 = vweird.f32 %v5189
  %vm5196 = vmor %vm5194, %vm5195
  %v5197 = vsel %vm5196, %v5189, %v5193
  %v5198 = vand.u32 2147483647, %v4955
  %vm5199 = vcmp.eq.f32.partialorder %v5198, 8.507059e+37
  %v5200 = vand.u32 %v4955, 2147483648
  %v5201 = vor.u32 1.1754944e-38, %v5200
  %v5202 = vsel %vm5199, %v5201, %v5197
  %v5203 = vmul.f32 1.0, %v5202
  %v5204 = vrcp.pop %v4956
  %v5205 = vmul.f32 %v4956, %v5204
  %v5206 = vsub.f32 1.0, %v5205
  %v5207 = vmul.f32 %v5204, %v5206
  %v5208 = vadd.f32 %v5204, %v5207
  %vm5209 = vweird.f32 %v4956
  %vm5210 = vweird.f32 %v5204
  %vm5211 = vmor %vm5209, %vm5210
  %v5212 = vsel %vm5211, %v5204, %v5208
  %v5213 = vand.u32 2147483647, %v4956
  %vm5214 = vcmp.eq.f32.partialorder %v5213, 8.507059e+37
  %v5215 = vand.u32 %v4956, 2147483648
  %v5216 = vor.u32 1.1754944e-38, %v5215
  %v5217 = vsel %vm5214, %v5216, %v5212
  %v5218 = vmul.f32 1.0, %v5217
  %v5219 = vrcp.pop %v4957
  %v5220 = vmul.f32 %v4957, %v5219
  %v5221 = vsub.f32 1.0, %v5220
  %v5222 = vmul.f32 %v5219, %v5221
  %v5223 = vadd.f32 %v5219, %v5222
  %vm5224 = vweird.f32 %v4957
  %vm5225 = vweird.f32 %v5219
  %vm5226 = vmor %vm5224, %vm5225
  %v5227 = vsel %vm5226, %v5219, %v5223
  %v5228 = vand.u32 2147483647, %v4957
  %vm5229 = vcmp.eq.f32.partialorder %v5228, 8.507059e+37
  %v5230 = vand.u32 %v4957, 2147483648
  %v5231 = vor.u32 1.1754944e-38, %v5230
  %v5232 = vsel %vm5229, %v5231, %v5227
  %v5233 = vmul.f32 1.0, %v5232
  %v5234 = vrcp.pop %v4958
  %v5235 = vmul.f32 %v4958, %v5234
  %v5236 = vsub.f32 1.0, %v5235
  %v5237 = vmul.f32 %v5234, %v5236
  %v5238 = vadd.f32 %v5234, %v5237
  %vm5239 = vweird.f32 %v4958
  %vm5240 = vweird.f32 %v5234
  %vm5241 = vmor %vm5239, %vm5240
  %v5242 = vsel %vm5241, %v5234, %v5238
  %v5243 = vand.u32 2147483647, %v4958
  %vm5244 = vcmp.eq.f32.partialorder %v5243, 8.507059e+37
  %v5245 = vand.u32 %v4958, 2147483648
  %v5246 = vor.u32 1.1754944e-38, %v5245
  %v5247 = vsel %vm5244, %v5246, %v5242
  %v5248 = vmul.f32 1.0, %v5247
  %v5249 = vrcp.pop %v4959
  %v5250 = vmul.f32 %v4959, %v5249
  %v5251 = vsub.f32 1.0, %v5250
  %v5252 = vmul.f32 %v5249, %v5251
  %v5253 = vadd.f32 %v5249, %v5252
  %vm5254 = vweird.f32 %v4959
  %vm5255 = vweird.f32 %v5249
  %vm5256 = vmor %vm5254, %vm5255
  %v5257 = vsel %vm5256, %v5249, %v5253
  %v5258 = vand.u32 2147483647, %v4959
  %vm5259 = vcmp.eq.f32.partialorder %v5258, 8.507059e+37
  %v5260 = vand.u32 %v4959, 2147483648
  %v5261 = vor.u32 1.1754944e-38, %v5260
  %v5262 = vsel %vm5259, %v5261, %v5257
  %v5263 = vmul.f32 1.0, %v5262
  %v5264 = vrcp.pop %v4960
  %v5265 = vmul.f32 %v4960, %v5264
  %v5266 = vsub.f32 1.0, %v5265
  %v5267 = vmul.f32 %v5264, %v5266
  %v5268 = vadd.f32 %v5264, %v5267
  %vm5269 = vweird.f32 %v4960
  %vm5270 = vweird.f32 %v5264
  %vm5271 = vmor %vm5269, %vm5270
  %v5272 = vsel %vm5271, %v5264, %v5268
  %v5273 = vand.u32 2147483647, %v4960
  %vm5274 = vcmp.eq.f32.partialorder %v5273, 8.507059e+37
  %v5275 = vand.u32 %v4960, 2147483648
  %v5276 = vor.u32 1.1754944e-38, %v5275
  %v5277 = vsel %vm5274, %v5276, %v5272
  %v5278 = vmul.f32 1.0, %v5277
  %v5279 = vrcp.pop %v4961
  %v5280 = vmul.f32 %v4961, %v5279
  %v5281 = vsub.f32 1.0, %v5280
  %v5282 = vmul.f32 %v5279, %v5281
  %v5283 = vadd.f32 %v5279, %v5282
  %vm5284 = vweird.f32 %v4961
  %vm5285 = vweird.f32 %v5279
  %vm5286 = vmor %vm5284, %vm5285
  %v5287 = vsel %vm5286, %v5279, %v5283
  %v5288 = vand.u32 2147483647, %v4961
  %vm5289 = vcmp.eq.f32.partialorder %v5288, 8.507059e+37
  %v5290 = vand.u32 %v4961, 2147483648
  %v5291 = vor.u32 1.1754944e-38, %v5290
  %v5292 = vsel %vm5289, %v5291, %v5287
  %v5293 = vmul.f32 1.0, %v5292
  %v5294 = vrcp.pop %v4962
  %v5295 = vmul.f32 %v4962, %v5294
  %v5296 = vsub.f32 1.0, %v5295
  %v5297 = vmul.f32 %v5294, %v5296
  %v5298 = vadd.f32 %v5294, %v5297
  %vm5299 = vweird.f32 %v4962
  %vm5300 = vweird.f32 %v5294
  %vm5301 = vmor %vm5299, %vm5300
  %v5302 = vsel %vm5301, %v5294, %v5298
  %v5303 = vand.u32 2147483647, %v4962
  %vm5304 = vcmp.eq.f32.partialorder %v5303, 8.507059e+37
  %v5305 = vand.u32 %v4962, 2147483648
  %v5306 = vor.u32 1.1754944e-38, %v5305
  %v5307 = vsel %vm5304, %v5306, %v5302
  %v5308 = vmul.f32 1.0, %v5307
  %v5309 = vrcp.pop %v4963
  %v5310 = vmul.f32 %v4963, %v5309
  %v5311 = vsub.f32 1.0, %v5310
  %v5312 = vmul.f32 %v5309, %v5311
  %v5313 = vadd.f32 %v5309, %v5312
  %vm5314 = vweird.f32 %v4963
  %vm5315 = vweird.f32 %v5309
  %vm5316 = vmor %vm5314, %vm5315
  %v5317 = vsel %vm5316, %v5309, %v5313
  %v5318 = vand.u32 2147483647, %v4963
  %vm5319 = vcmp.eq.f32.partialorder %v5318, 8.507059e+37
  %v5320 = vand.u32 %v4963, 2147483648
  %v5321 = vor.u32 1.1754944e-38, %v5320
  %v5322 = vsel %vm5319, %v5321, %v5317
  %v5323 = vmul.f32 1.0, %v5322
  %v5324 = vtanh.pop %v4839
  %v5325 = vtanh.pop %v4843
  %v5326 = vtanh.pop %v4847
  %v5327 = vtanh.pop %v4851
  %v5328 = vtanh.pop %v4855
  %v5329 = vtanh.pop %v4859
  %v5330 = vtanh.pop %v4863
  %v5331 = vtanh.pop %v4867
  %v5332 = vmul.f32 %v4993, 0.0
  %v5333 = vmul.f32 %v5038, 0.0
  %v5334 = vmul.f32 %v5083, 0.0
  %v5335 = vmul.f32 %v5128, 0.0
  %v5336 = vmul.f32 %v5173, 0.0
  %v5337 = vmul.f32 %v5218, 0.0
  %v5338 = vmul.f32 %v5263, 0.0
  %v5339 = vmul.f32 %v5308, 0.0
  %v5340 = vmul.f32 %v4978, %v5324
  %v5341 = vmul.f32 %v5023, %v5325
  %v5342 = vmul.f32 %v5068, %v5326
  %v5343 = vmul.f32 %v5113, %v5327
  %v5344 = vmul.f32 %v5158, %v5328
  %v5345 = vmul.f32 %v5203, %v5329
  %v5346 = vmul.f32 %v5248, %v5330
  %v5347 = vmul.f32 %v5293, %v5331
  %v5348 = vadd.f32 %v5332, %v5340
  %v5349 = vadd.f32 %v5333, %v5341
  %v5350 = vadd.f32 %v5334, %v5342
  %v5351 = vadd.f32 %v5335, %v5343
  %v5352 = vadd.f32 %v5336, %v5344
  %v5353 = vadd.f32 %v5337, %v5345
  %v5354 = vadd.f32 %v5338, %v5346
  %v5355 = vadd.f32 %v5339, %v5347
  %v5356 = vtanh.pop %v5348
  %v5357 = vtanh.pop %v5349
  %v5358 = vtanh.pop %v5350
  %v5359 = vtanh.pop %v5351
  %v5360 = vtanh.pop %v5352
  %v5361 = vtanh.pop %v5353
  %v5362 = vtanh.pop %v5354
  %v5363 = vtanh.pop %v5355
  %v5364 = vmul.f32 %v5008, %v5356
  %v5365 = vmul.f32 %v5053, %v5357
  %v5366 = vmul.f32 %v5098, %v5358
  %v5367 = vmul.f32 %v5143, %v5359
  %v5368 = vmul.f32 %v5188, %v5360
  %v5369 = vmul.f32 %v5233, %v5361
  %v5370 = vmul.f32 %v5278, %v5362
  %v5371 = vmul.f32 %v5323, %v5363
  %v5372 = vpack.c.bf16 %v5365, %v5364
  %v5373 = vpack.c.bf16 %v5367, %v5366
  %v5374 = vpack.c.bf16 %v5369, %v5368
  %v5375 = vpack.c.bf16 %v5371, %v5370
  %5376 = vmatpush.bf16.msra.mxu0 %v4684
  %5377 = vmatpush.bf16.msra.mxu0 %v4680
  %5378 = vmatpush.bf16.msra.mxu0 %v4676
  %5379 = vmatpush.bf16.msra.mxu0 %v4672
  %5380 = vmatpush.bf16.msra.mxu0 %v4668
  %5381 = vmatpush.bf16.msra.mxu0 %v4664
  %5382 = vmatpush.bf16.msra.mxu0 %v4660
  %5383 = vmatpush.bf16.msra.mxu0 %v4656
  %5384 = vmatmul.bf16.gmra.mxu0 %v5372
  %v5385 = vpop.f32.mrf.mxu0
  %v5386 = vadd.f32 0.0, %v5385
  %v5387 = vpop.f32.mrf.mxu0
  %v5388 = vadd.f32 0.0, %v5387
  %5389 = vmatmul.bf16.gmra.mxu0 %v5373
  %v5390 = vpop.f32.mrf.mxu0
  %v5391 = vadd.f32 0.0, %v5390
  %v5392 = vpop.f32.mrf.mxu0
  %v5393 = vadd.f32 0.0, %v5392
  %5394 = vmatmul.bf16.gmra.mxu0 %v5374
  %v5395 = vpop.f32.mrf.mxu0
  %v5396 = vadd.f32 0.0, %v5395
  %v5397 = vpop.f32.mrf.mxu0
  %v5398 = vadd.f32 0.0, %v5397
  %5399 = vmatmul.bf16.gmra.mxu0 %v5375
  %v5400 = vpop.f32.mrf.mxu0
  %v5401 = vadd.f32 0.0, %v5400
  %v5402 = vpop.f32.mrf.mxu0
  %v5403 = vadd.f32 0.0, %v5402
  %5404 = vdwg.mxu0
  %5405 = vmatpush.bf16.msra.mxu0 %v4685
  %5406 = vmatpush.bf16.msra.mxu0 %v4681
  %5407 = vmatpush.bf16.msra.mxu0 %v4677
  %5408 = vmatpush.bf16.msra.mxu0 %v4673
  %5409 = vmatpush.bf16.msra.mxu0 %v4669
  %5410 = vmatpush.bf16.msra.mxu0 %v4665
  %5411 = vmatpush.bf16.msra.mxu0 %v4661
  %5412 = vmatpush.bf16.msra.mxu0 %v4657
  %5413 = vmatmul.bf16.gmra.mxu0 %v5372
  %v5414 = vpop.f32.mrf.mxu0
  %v5415 = vadd.f32 0.0, %v5414
  %v5416 = vpop.f32.mrf.mxu0
  %v5417 = vadd.f32 0.0, %v5416
  %5418 = vmatmul.bf16.gmra.mxu0 %v5373
  %v5419 = vpop.f32.mrf.mxu0
  %v5420 = vadd.f32 0.0, %v5419
  %v5421 = vpop.f32.mrf.mxu0
  %v5422 = vadd.f32 0.0, %v5421
  %5423 = vmatmul.bf16.gmra.mxu0 %v5374
  %v5424 = vpop.f32.mrf.mxu0
  %v5425 = vadd.f32 0.0, %v5424
  %v5426 = vpop.f32.mrf.mxu0
  %v5427 = vadd.f32 0.0, %v5426
  %5428 = vmatmul.bf16.gmra.mxu0 %v5375
  %v5429 = vpop.f32.mrf.mxu0
  %v5430 = vadd.f32 0.0, %v5429
  %v5431 = vpop.f32.mrf.mxu0
  %v5432 = vadd.f32 0.0, %v5431
  %5433 = vdwg.mxu0
  %5434 = vmatpush.bf16.msra.mxu0 %v4686
  %5435 = vmatpush.bf16.msra.mxu0 %v4682
  %5436 = vmatpush.bf16.msra.mxu0 %v4678
  %5437 = vmatpush.bf16.msra.mxu0 %v4674
  %5438 = vmatpush.bf16.msra.mxu0 %v4670
  %5439 = vmatpush.bf16.msra.mxu0 %v4666
  %5440 = vmatpush.bf16.msra.mxu0 %v4662
  %5441 = vmatpush.bf16.msra.mxu0 %v4658
  %5442 = vmatmul.bf16.gmra.mxu0 %v5372
  %v5443 = vpop.f32.mrf.mxu0
  %v5444 = vadd.f32 0.0, %v5443
  %v5445 = vpop.f32.mrf.mxu0
  %v5446 = vadd.f32 0.0, %v5445
  %5447 = vmatmul.bf16.gmra.mxu0 %v5373
  %v5448 = vpop.f32.mrf.mxu0
  %v5449 = vadd.f32 0.0, %v5448
  %v5450 = vpop.f32.mrf.mxu0
  %v5451 = vadd.f32 0.0, %v5450
  %5452 = vmatmul.bf16.gmra.mxu0 %v5374
  %v5453 = vpop.f32.mrf.mxu0
  %v5454 = vadd.f32 0.0, %v5453
  %v5455 = vpop.f32.mrf.mxu0
  %v5456 = vadd.f32 0.0, %v5455
  %5457 = vmatmul.bf16.gmra.mxu0 %v5375
  %v5458 = vpop.f32.mrf.mxu0
  %v5459 = vadd.f32 0.0, %v5458
  %v5460 = vpop.f32.mrf.mxu0
  %v5461 = vadd.f32 0.0, %v5460
  %5462 = vdwg.mxu0
  %5463 = vmatpush.bf16.msra.mxu0 %v4687
  %5464 = vmatpush.bf16.msra.mxu0 %v4683
  %5465 = vmatpush.bf16.msra.mxu0 %v4679
  %5466 = vmatpush.bf16.msra.mxu0 %v4675
  %5467 = vmatpush.bf16.msra.mxu0 %v4671
  %5468 = vmatpush.bf16.msra.mxu0 %v4667
  %5469 = vmatpush.bf16.msra.mxu0 %v4663
  %5470 = vmatpush.bf16.msra.mxu0 %v4659
  %5471 = vmatmul.bf16.gmra.mxu0 %v5372
  %v5472 = vpop.f32.mrf.mxu0
  %v5473 = vadd.f32 0.0, %v5472
  %v5474 = vpop.f32.mrf.mxu0
  %v5475 = vadd.f32 0.0, %v5474
  %5476 = vmatmul.bf16.gmra.mxu0 %v5373
  %v5477 = vpop.f32.mrf.mxu0
  %v5478 = vadd.f32 0.0, %v5477
  %v5479 = vpop.f32.mrf.mxu0
  %v5480 = vadd.f32 0.0, %v5479
  %5481 = vmatmul.bf16.gmra.mxu0 %v5374
  %v5482 = vpop.f32.mrf.mxu0
  %v5483 = vadd.f32 0.0, %v5482
  %v5484 = vpop.f32.mrf.mxu0
  %v5485 = vadd.f32 0.0, %v5484
  %5486 = vmatmul.bf16.gmra.mxu0 %v5375
  %v5487 = vpop.f32.mrf.mxu0
  %v5488 = vadd.f32 0.0, %v5487
  %v5489 = vpop.f32.mrf.mxu0
  %v5490 = vadd.f32 0.0, %v5489
  %5491 = vdwg.mxu0
  %v5492 = vadd.f32 %v4202, %v5386
  %v5493 = vadd.f32 %v4291, %v5415
  %v5494 = vadd.f32 %v4380, %v5444
  %v5495 = vadd.f32 %v4469, %v5473
  %v5496 = vadd.f32 %v4204, %v5388
  %v5497 = vadd.f32 %v4293, %v5417
  %v5498 = vadd.f32 %v4382, %v5446
  %v5499 = vadd.f32 %v4471, %v5475
  %v5500 = vadd.f32 %v4207, %v5391
  %v5501 = vadd.f32 %v4296, %v5420
  %v5502 = vadd.f32 %v4385, %v5449
  %v5503 = vadd.f32 %v4474, %v5478
  %v5504 = vadd.f32 %v4209, %v5393
  %v5505 = vadd.f32 %v4298, %v5422
  %v5506 = vadd.f32 %v4387, %v5451
  %v5507 = vadd.f32 %v4476, %v5480
  %v5508 = vadd.f32 %v4212, %v5396
  %v5509 = vadd.f32 %v4301, %v5425
  %v5510 = vadd.f32 %v4390, %v5454
  %v5511 = vadd.f32 %v4479, %v5483
  %v5512 = vadd.f32 %v4214, %v5398
  %v5513 = vadd.f32 %v4303, %v5427
  %v5514 = vadd.f32 %v4392, %v5456
  %v5515 = vadd.f32 %v4481, %v5485
  %v5516 = vadd.f32 %v4217, %v5401
  %v5517 = vadd.f32 %v4306, %v5430
  %v5518 = vadd.f32 %v4395, %v5459
  %v5519 = vadd.f32 %v4484, %v5488
  %v5520 = vadd.f32 %v4219, %v5403
  %v5521 = vadd.f32 %v4308, %v5432
  %v5522 = vadd.f32 %v4397, %v5461
  %v5523 = vadd.f32 %v4486, %v5490
  %v5524 = vxor.u32 %v5492, 2147483648
  %v5525 = vxor.u32 %v5493, 2147483648
  %v5526 = vxor.u32 %v5494, 2147483648
  %v5527 = vxor.u32 %v5496, 2147483648
  %v5528 = vxor.u32 %v5497, 2147483648
  %v5529 = vxor.u32 %v5498, 2147483648
  %v5530 = vxor.u32 %v5500, 2147483648
  %v5531 = vxor.u32 %v5501, 2147483648
  %v5532 = vxor.u32 %v5502, 2147483648
  %v5533 = vxor.u32 %v5504, 2147483648
  %v5534 = vxor.u32 %v5505, 2147483648
  %v5535 = vxor.u32 %v5506, 2147483648
  %v5536 = vxor.u32 %v5508, 2147483648
  %v5537 = vxor.u32 %v5509, 2147483648
  %v5538 = vxor.u32 %v5510, 2147483648
  %v5539 = vxor.u32 %v5512, 2147483648
  %v5540 = vxor.u32 %v5513, 2147483648
  %v5541 = vxor.u32 %v5514, 2147483648
  %v5542 = vxor.u32 %v5516, 2147483648
  %v5543 = vxor.u32 %v5517, 2147483648
  %v5544 = vxor.u32 %v5518, 2147483648
  %v5545 = vxor.u32 %v5520, 2147483648
  %v5546 = vxor.u32 %v5521, 2147483648
  %v5547 = vxor.u32 %v5522, 2147483648
  %v5548 = vmul.f32 %v5524, 1.442695
  %v5549 = vpow.pop %v5548
  %v5550 = vmul.f32 %v5525, 1.442695
  %v5551 = vpow.pop %v5550
  %v5552 = vmul.f32 %v5526, 1.442695
  %v5553 = vpow.pop %v5552
  %v5554 = vmul.f32 %v5527, 1.442695
  %v5555 = vpow.pop %v5554
  %v5556 = vmul.f32 %v5528, 1.442695
  %v5557 = vpow.pop %v5556
  %v5558 = vmul.f32 %v5529, 1.442695
  %v5559 = vpow.pop %v5558
  %v5560 = vmul.f32 %v5530, 1.442695
  %v5561 = vpow.pop %v5560
  %v5562 = vmul.f32 %v5531, 1.442695
  %v5563 = vpow.pop %v5562
  %v5564 = vmul.f32 %v5532, 1.442695
  %v5565 = vpow.pop %v5564
  %v5566 = vmul.f32 %v5533, 1.442695
  %v5567 = vpow.pop %v5566
  %v5568 = vmul.f32 %v5534, 1.442695
  %v5569 = vpow.pop %v5568
  %v5570 = vmul.f32 %v5535, 1.442695
  %v5571 = vpow.pop %v5570
  %v5572 = vmul.f32 %v5536, 1.442695
  %v5573 = vpow.pop %v5572
  %v5574 = vmul.f32 %v5537, 1.442695
  %v5575 = vpow.pop %v5574
  %v5576 = vmul.f32 %v5538, 1.442695
  %v5577 = vpow.pop %v5576
  %v5578 = vmul.f32 %v5539, 1.442695
  %v5579 = vpow.pop %v5578
  %v5580 = vmul.f32 %v5540, 1.442695
  %v5581 = vpow.pop %v5580
  %v5582 = vmul.f32 %v5541, 1.442695
  %v5583 = vpow.pop %v5582
  %v5584 = vmul.f32 %v5542, 1.442695
  %v5585 = vpow.pop %v5584
  %v5586 = vmul.f32 %v5543, 1.442695
  %v5587 = vpow.pop %v5586
  %v5588 = vmul.f32 %v5544, 1.442695
  %v5589 = vpow.pop %v5588
  %v5590 = vmul.f32 %v5545, 1.442695
  %v5591 = vpow.pop %v5590
  %v5592 = vmul.f32 %v5546, 1.442695
  %v5593 = vpow.pop %v5592
  %v5594 = vmul.f32 %v5547, 1.442695
  %v5595 = vpow.pop %v5594
  %v5596 = vadd.f32 %v5549, 1.0
  %v5597 = vadd.f32 %v5551, 1.0
  %v5598 = vadd.f32 %v5553, 1.0
  %v5599 = vadd.f32 %v5555, 1.0
  %v5600 = vadd.f32 %v5557, 1.0
  %v5601 = vadd.f32 %v5559, 1.0
  %v5602 = vadd.f32 %v5561, 1.0
  %v5603 = vadd.f32 %v5563, 1.0
  %v5604 = vadd.f32 %v5565, 1.0
  %v5605 = vadd.f32 %v5567, 1.0
  %v5606 = vadd.f32 %v5569, 1.0
  %v5607 = vadd.f32 %v5571, 1.0
  %v5608 = vadd.f32 %v5573, 1.0
  %v5609 = vadd.f32 %v5575, 1.0
  %v5610 = vadd.f32 %v5577, 1.0
  %v5611 = vadd.f32 %v5579, 1.0
  %v5612 = vadd.f32 %v5581, 1.0
  %v5613 = vadd.f32 %v5583, 1.0
  %v5614 = vadd.f32 %v5585, 1.0
  %v5615 = vadd.f32 %v5587, 1.0
  %v5616 = vadd.f32 %v5589, 1.0
  %v5617 = vadd.f32 %v5591, 1.0
  %v5618 = vadd.f32 %v5593, 1.0
  %v5619 = vadd.f32 %v5595, 1.0
  %v5620 = vrcp.pop %v5596
  %v5621 = vmul.f32 %v5596, %v5620
  %v5622 = vsub.f32 1.0, %v5621
  %v5623 = vmul.f32 %v5620, %v5622
  %v5624 = vadd.f32 %v5620, %v5623
  %vm5625 = vweird.f32 %v5596
  %vm5626 = vweird.f32 %v5620
  %vm5627 = vmor %vm5625, %vm5626
  %v5628 = vsel %vm5627, %v5620, %v5624
  %v5629 = vand.u32 2147483647, %v5596
  %vm5630 = vcmp.eq.f32.partialorder %v5629, 8.507059e+37
  %v5631 = vand.u32 %v5596, 2147483648
  %v5632 = vor.u32 1.1754944e-38, %v5631
  %v5633 = vsel %vm5630, %v5632, %v5628
  %v5634 = vmul.f32 1.0, %v5633
  %v5635 = vrcp.pop %v5597
  %v5636 = vmul.f32 %v5597, %v5635
  %v5637 = vsub.f32 1.0, %v5636
  %v5638 = vmul.f32 %v5635, %v5637
  %v5639 = vadd.f32 %v5635, %v5638
  %vm5640 = vweird.f32 %v5597
  %vm5641 = vweird.f32 %v5635
  %vm5642 = vmor %vm5640, %vm5641
  %v5643 = vsel %vm5642, %v5635, %v5639
  %v5644 = vand.u32 2147483647, %v5597
  %vm5645 = vcmp.eq.f32.partialorder %v5644, 8.507059e+37
  %v5646 = vand.u32 %v5597, 2147483648
  %v5647 = vor.u32 1.1754944e-38, %v5646
  %v5648 = vsel %vm5645, %v5647, %v5643
  %v5649 = vmul.f32 1.0, %v5648
  %v5650 = vrcp.pop %v5598
  %v5651 = vmul.f32 %v5598, %v5650
  %v5652 = vsub.f32 1.0, %v5651
  %v5653 = vmul.f32 %v5650, %v5652
  %v5654 = vadd.f32 %v5650, %v5653
  %vm5655 = vweird.f32 %v5598
  %vm5656 = vweird.f32 %v5650
  %vm5657 = vmor %vm5655, %vm5656
  %v5658 = vsel %vm5657, %v5650, %v5654
  %v5659 = vand.u32 2147483647, %v5598
  %vm5660 = vcmp.eq.f32.partialorder %v5659, 8.507059e+37
  %v5661 = vand.u32 %v5598, 2147483648
  %v5662 = vor.u32 1.1754944e-38, %v5661
  %v5663 = vsel %vm5660, %v5662, %v5658
  %v5664 = vmul.f32 1.0, %v5663
  %v5665 = vrcp.pop %v5599
  %v5666 = vmul.f32 %v5599, %v5665
  %v5667 = vsub.f32 1.0, %v5666
  %v5668 = vmul.f32 %v5665, %v5667
  %v5669 = vadd.f32 %v5665, %v5668
  %vm5670 = vweird.f32 %v5599
  %vm5671 = vweird.f32 %v5665
  %vm5672 = vmor %vm5670, %vm5671
  %v5673 = vsel %vm5672, %v5665, %v5669
  %v5674 = vand.u32 2147483647, %v5599
  %vm5675 = vcmp.eq.f32.partialorder %v5674, 8.507059e+37
  %v5676 = vand.u32 %v5599, 2147483648
  %v5677 = vor.u32 1.1754944e-38, %v5676
  %v5678 = vsel %vm5675, %v5677, %v5673
  %v5679 = vmul.f32 1.0, %v5678
  %v5680 = vrcp.pop %v5600
  %v5681 = vmul.f32 %v5600, %v5680
  %v5682 = vsub.f32 1.0, %v5681
  %v5683 = vmul.f32 %v5680, %v5682
  %v5684 = vadd.f32 %v5680, %v5683
  %vm5685 = vweird.f32 %v5600
  %vm5686 = vweird.f32 %v5680
  %vm5687 = vmor %vm5685, %vm5686
  %v5688 = vsel %vm5687, %v5680, %v5684
  %v5689 = vand.u32 2147483647, %v5600
  %vm5690 = vcmp.eq.f32.partialorder %v5689, 8.507059e+37
  %v5691 = vand.u32 %v5600, 2147483648
  %v5692 = vor.u32 1.1754944e-38, %v5691
  %v5693 = vsel %vm5690, %v5692, %v5688
  %v5694 = vmul.f32 1.0, %v5693
  %v5695 = vrcp.pop %v5601
  %v5696 = vmul.f32 %v5601, %v5695
  %v5697 = vsub.f32 1.0, %v5696
  %v5698 = vmul.f32 %v5695, %v5697
  %v5699 = vadd.f32 %v5695, %v5698
  %vm5700 = vweird.f32 %v5601
  %vm5701 = vweird.f32 %v5695
  %vm5702 = vmor %vm5700, %vm5701
  %v5703 = vsel %vm5702, %v5695, %v5699
  %v5704 = vand.u32 2147483647, %v5601
  %vm5705 = vcmp.eq.f32.partialorder %v5704, 8.507059e+37
  %v5706 = vand.u32 %v5601, 2147483648
  %v5707 = vor.u32 1.1754944e-38, %v5706
  %v5708 = vsel %vm5705, %v5707, %v5703
  %v5709 = vmul.f32 1.0, %v5708
  %v5710 = vrcp.pop %v5602
  %v5711 = vmul.f32 %v5602, %v5710
  %v5712 = vsub.f32 1.0, %v5711
  %v5713 = vmul.f32 %v5710, %v5712
  %v5714 = vadd.f32 %v5710, %v5713
  %vm5715 = vweird.f32 %v5602
  %vm5716 = vweird.f32 %v5710
  %vm5717 = vmor %vm5715, %vm5716
  %v5718 = vsel %vm5717, %v5710, %v5714
  %v5719 = vand.u32 2147483647, %v5602
  %vm5720 = vcmp.eq.f32.partialorder %v5719, 8.507059e+37
  %v5721 = vand.u32 %v5602, 2147483648
  %v5722 = vor.u32 1.1754944e-38, %v5721
  %v5723 = vsel %vm5720, %v5722, %v5718
  %v5724 = vmul.f32 1.0, %v5723
  %v5725 = vrcp.pop %v5603
  %v5726 = vmul.f32 %v5603, %v5725
  %v5727 = vsub.f32 1.0, %v5726
  %v5728 = vmul.f32 %v5725, %v5727
  %v5729 = vadd.f32 %v5725, %v5728
  %vm5730 = vweird.f32 %v5603
  %vm5731 = vweird.f32 %v5725
  %vm5732 = vmor %vm5730, %vm5731
  %v5733 = vsel %vm5732, %v5725, %v5729
  %v5734 = vand.u32 2147483647, %v5603
  %vm5735 = vcmp.eq.f32.partialorder %v5734, 8.507059e+37
  %v5736 = vand.u32 %v5603, 2147483648
  %v5737 = vor.u32 1.1754944e-38, %v5736
  %v5738 = vsel %vm5735, %v5737, %v5733
  %v5739 = vmul.f32 1.0, %v5738
  %v5740 = vrcp.pop %v5604
  %v5741 = vmul.f32 %v5604, %v5740
  %v5742 = vsub.f32 1.0, %v5741
  %v5743 = vmul.f32 %v5740, %v5742
  %v5744 = vadd.f32 %v5740, %v5743
  %vm5745 = vweird.f32 %v5604
  %vm5746 = vweird.f32 %v5740
  %vm5747 = vmor %vm5745, %vm5746
  %v5748 = vsel %vm5747, %v5740, %v5744
  %v5749 = vand.u32 2147483647, %v5604
  %vm5750 = vcmp.eq.f32.partialorder %v5749, 8.507059e+37
  %v5751 = vand.u32 %v5604, 2147483648
  %v5752 = vor.u32 1.1754944e-38, %v5751
  %v5753 = vsel %vm5750, %v5752, %v5748
  %v5754 = vmul.f32 1.0, %v5753
  %v5755 = vrcp.pop %v5605
  %v5756 = vmul.f32 %v5605, %v5755
  %v5757 = vsub.f32 1.0, %v5756
  %v5758 = vmul.f32 %v5755, %v5757
  %v5759 = vadd.f32 %v5755, %v5758
  %vm5760 = vweird.f32 %v5605
  %vm5761 = vweird.f32 %v5755
  %vm5762 = vmor %vm5760, %vm5761
  %v5763 = vsel %vm5762, %v5755, %v5759
  %v5764 = vand.u32 2147483647, %v5605
  %vm5765 = vcmp.eq.f32.partialorder %v5764, 8.507059e+37
  %v5766 = vand.u32 %v5605, 2147483648
  %v5767 = vor.u32 1.1754944e-38, %v5766
  %v5768 = vsel %vm5765, %v5767, %v5763
  %v5769 = vmul.f32 1.0, %v5768
  %v5770 = vrcp.pop %v5606
  %v5771 = vmul.f32 %v5606, %v5770
  %v5772 = vsub.f32 1.0, %v5771
  %v5773 = vmul.f32 %v5770, %v5772
  %v5774 = vadd.f32 %v5770, %v5773
  %vm5775 = vweird.f32 %v5606
  %vm5776 = vweird.f32 %v5770
  %vm5777 = vmor %vm5775, %vm5776
  %v5778 = vsel %vm5777, %v5770, %v5774
  %v5779 = vand.u32 2147483647, %v5606
  %vm5780 = vcmp.eq.f32.partialorder %v5779, 8.507059e+37
  %v5781 = vand.u32 %v5606, 2147483648
  %v5782 = vor.u32 1.1754944e-38, %v5781
  %v5783 = vsel %vm5780, %v5782, %v5778
  %v5784 = vmul.f32 1.0, %v5783
  %v5785 = vrcp.pop %v5607
  %v5786 = vmul.f32 %v5607, %v5785
  %v5787 = vsub.f32 1.0, %v5786
  %v5788 = vmul.f32 %v5785, %v5787
  %v5789 = vadd.f32 %v5785, %v5788
  %vm5790 = vweird.f32 %v5607
  %vm5791 = vweird.f32 %v5785
  %vm5792 = vmor %vm5790, %vm5791
  %v5793 = vsel %vm5792, %v5785, %v5789
  %v5794 = vand.u32 2147483647, %v5607
  %vm5795 = vcmp.eq.f32.partialorder %v5794, 8.507059e+37
  %v5796 = vand.u32 %v5607, 2147483648
  %v5797 = vor.u32 1.1754944e-38, %v5796
  %v5798 = vsel %vm5795, %v5797, %v5793
  %v5799 = vmul.f32 1.0, %v5798
  %v5800 = vrcp.pop %v5608
  %v5801 = vmul.f32 %v5608, %v5800
  %v5802 = vsub.f32 1.0, %v5801
  %v5803 = vmul.f32 %v5800, %v5802
  %v5804 = vadd.f32 %v5800, %v5803
  %vm5805 = vweird.f32 %v5608
  %vm5806 = vweird.f32 %v5800
  %vm5807 = vmor %vm5805, %vm5806
  %v5808 = vsel %vm5807, %v5800, %v5804
  %v5809 = vand.u32 2147483647, %v5608
  %vm5810 = vcmp.eq.f32.partialorder %v5809, 8.507059e+37
  %v5811 = vand.u32 %v5608, 2147483648
  %v5812 = vor.u32 1.1754944e-38, %v5811
  %v5813 = vsel %vm5810, %v5812, %v5808
  %v5814 = vmul.f32 1.0, %v5813
  %v5815 = vrcp.pop %v5609
  %v5816 = vmul.f32 %v5609, %v5815
  %v5817 = vsub.f32 1.0, %v5816
  %v5818 = vmul.f32 %v5815, %v5817
  %v5819 = vadd.f32 %v5815, %v5818
  %vm5820 = vweird.f32 %v5609
  %vm5821 = vweird.f32 %v5815
  %vm5822 = vmor %vm5820, %vm5821
  %v5823 = vsel %vm5822, %v5815, %v5819
  %v5824 = vand.u32 2147483647, %v5609
  %vm5825 = vcmp.eq.f32.partialorder %v5824, 8.507059e+37
  %v5826 = vand.u32 %v5609, 2147483648
  %v5827 = vor.u32 1.1754944e-38, %v5826
  %v5828 = vsel %vm5825, %v5827, %v5823
  %v5829 = vmul.f32 1.0, %v5828
  %v5830 = vrcp.pop %v5610
  %v5831 = vmul.f32 %v5610, %v5830
  %v5832 = vsub.f32 1.0, %v5831
  %v5833 = vmul.f32 %v5830, %v5832
  %v5834 = vadd.f32 %v5830, %v5833
  %vm5835 = vweird.f32 %v5610
  %vm5836 = vweird.f32 %v5830
  %vm5837 = vmor %vm5835, %vm5836
  %v5838 = vsel %vm5837, %v5830, %v5834
  %v5839 = vand.u32 2147483647, %v5610
  %vm5840 = vcmp.eq.f32.partialorder %v5839, 8.507059e+37
  %v5841 = vand.u32 %v5610, 2147483648
  %v5842 = vor.u32 1.1754944e-38, %v5841
  %v5843 = vsel %vm5840, %v5842, %v5838
  %v5844 = vmul.f32 1.0, %v5843
  %v5845 = vrcp.pop %v5611
  %v5846 = vmul.f32 %v5611, %v5845
  %v5847 = vsub.f32 1.0, %v5846
  %v5848 = vmul.f32 %v5845, %v5847
  %v5849 = vadd.f32 %v5845, %v5848
  %vm5850 = vweird.f32 %v5611
  %vm5851 = vweird.f32 %v5845
  %vm5852 = vmor %vm5850, %vm5851
  %v5853 = vsel %vm5852, %v5845, %v5849
  %v5854 = vand.u32 2147483647, %v5611
  %vm5855 = vcmp.eq.f32.partialorder %v5854, 8.507059e+37
  %v5856 = vand.u32 %v5611, 2147483648
  %v5857 = vor.u32 1.1754944e-38, %v5856
  %v5858 = vsel %vm5855, %v5857, %v5853
  %v5859 = vmul.f32 1.0, %v5858
  %v5860 = vrcp.pop %v5612
  %v5861 = vmul.f32 %v5612, %v5860
  %v5862 = vsub.f32 1.0, %v5861
  %v5863 = vmul.f32 %v5860, %v5862
  %v5864 = vadd.f32 %v5860, %v5863
  %vm5865 = vweird.f32 %v5612
  %vm5866 = vweird.f32 %v5860
  %vm5867 = vmor %vm5865, %vm5866
  %v5868 = vsel %vm5867, %v5860, %v5864
  %v5869 = vand.u32 2147483647, %v5612
  %vm5870 = vcmp.eq.f32.partialorder %v5869, 8.507059e+37
  %v5871 = vand.u32 %v5612, 2147483648
  %v5872 = vor.u32 1.1754944e-38, %v5871
  %v5873 = vsel %vm5870, %v5872, %v5868
  %v5874 = vmul.f32 1.0, %v5873
  %v5875 = vrcp.pop %v5613
  %v5876 = vmul.f32 %v5613, %v5875
  %v5877 = vsub.f32 1.0, %v5876
  %v5878 = vmul.f32 %v5875, %v5877
  %v5879 = vadd.f32 %v5875, %v5878
  %vm5880 = vweird.f32 %v5613
  %vm5881 = vweird.f32 %v5875
  %vm5882 = vmor %vm5880, %vm5881
  %v5883 = vsel %vm5882, %v5875, %v5879
  %v5884 = vand.u32 2147483647, %v5613
  %vm5885 = vcmp.eq.f32.partialorder %v5884, 8.507059e+37
  %v5886 = vand.u32 %v5613, 2147483648
  %v5887 = vor.u32 1.1754944e-38, %v5886
  %v5888 = vsel %vm5885, %v5887, %v5883
  %v5889 = vmul.f32 1.0, %v5888
  %v5890 = vrcp.pop %v5614
  %v5891 = vmul.f32 %v5614, %v5890
  %v5892 = vsub.f32 1.0, %v5891
  %v5893 = vmul.f32 %v5890, %v5892
  %v5894 = vadd.f32 %v5890, %v5893
  %vm5895 = vweird.f32 %v5614
  %vm5896 = vweird.f32 %v5890
  %vm5897 = vmor %vm5895, %vm5896
  %v5898 = vsel %vm5897, %v5890, %v5894
  %v5899 = vand.u32 2147483647, %v5614
  %vm5900 = vcmp.eq.f32.partialorder %v5899, 8.507059e+37
  %v5901 = vand.u32 %v5614, 2147483648
  %v5902 = vor.u32 1.1754944e-38, %v5901
  %v5903 = vsel %vm5900, %v5902, %v5898
  %v5904 = vmul.f32 1.0, %v5903
  %v5905 = vrcp.pop %v5615
  %v5906 = vmul.f32 %v5615, %v5905
  %v5907 = vsub.f32 1.0, %v5906
  %v5908 = vmul.f32 %v5905, %v5907
  %v5909 = vadd.f32 %v5905, %v5908
  %vm5910 = vweird.f32 %v5615
  %vm5911 = vweird.f32 %v5905
  %vm5912 = vmor %vm5910, %vm5911
  %v5913 = vsel %vm5912, %v5905, %v5909
  %v5914 = vand.u32 2147483647, %v5615
  %vm5915 = vcmp.eq.f32.partialorder %v5914, 8.507059e+37
  %v5916 = vand.u32 %v5615, 2147483648
  %v5917 = vor.u32 1.1754944e-38, %v5916
  %v5918 = vsel %vm5915, %v5917, %v5913
  %v5919 = vmul.f32 1.0, %v5918
  %v5920 = vrcp.pop %v5616
  %v5921 = vmul.f32 %v5616, %v5920
  %v5922 = vsub.f32 1.0, %v5921
  %v5923 = vmul.f32 %v5920, %v5922
  %v5924 = vadd.f32 %v5920, %v5923
  %vm5925 = vweird.f32 %v5616
  %vm5926 = vweird.f32 %v5920
  %vm5927 = vmor %vm5925, %vm5926
  %v5928 = vsel %vm5927, %v5920, %v5924
  %v5929 = vand.u32 2147483647, %v5616
  %vm5930 = vcmp.eq.f32.partialorder %v5929, 8.507059e+37
  %v5931 = vand.u32 %v5616, 2147483648
  %v5932 = vor.u32 1.1754944e-38, %v5931
  %v5933 = vsel %vm5930, %v5932, %v5928
  %v5934 = vmul.f32 1.0, %v5933
  %v5935 = vrcp.pop %v5617
  %v5936 = vmul.f32 %v5617, %v5935
  %v5937 = vsub.f32 1.0, %v5936
  %v5938 = vmul.f32 %v5935, %v5937
  %v5939 = vadd.f32 %v5935, %v5938
  %vm5940 = vweird.f32 %v5617
  %vm5941 = vweird.f32 %v5935
  %vm5942 = vmor %vm5940, %vm5941
  %v5943 = vsel %vm5942, %v5935, %v5939
  %v5944 = vand.u32 2147483647, %v5617
  %vm5945 = vcmp.eq.f32.partialorder %v5944, 8.507059e+37
  %v5946 = vand.u32 %v5617, 2147483648
  %v5947 = vor.u32 1.1754944e-38, %v5946
  %v5948 = vsel %vm5945, %v5947, %v5943
  %v5949 = vmul.f32 1.0, %v5948
  %v5950 = vrcp.pop %v5618
  %v5951 = vmul.f32 %v5618, %v5950
  %v5952 = vsub.f32 1.0, %v5951
  %v5953 = vmul.f32 %v5950, %v5952
  %v5954 = vadd.f32 %v5950, %v5953
  %vm5955 = vweird.f32 %v5618
  %vm5956 = vweird.f32 %v5950
  %vm5957 = vmor %vm5955, %vm5956
  %v5958 = vsel %vm5957, %v5950, %v5954
  %v5959 = vand.u32 2147483647, %v5618
  %vm5960 = vcmp.eq.f32.partialorder %v5959, 8.507059e+37
  %v5961 = vand.u32 %v5618, 2147483648
  %v5962 = vor.u32 1.1754944e-38, %v5961
  %v5963 = vsel %vm5960, %v5962, %v5958
  %v5964 = vmul.f32 1.0, %v5963
  %v5965 = vrcp.pop %v5619
  %v5966 = vmul.f32 %v5619, %v5965
  %v5967 = vsub.f32 1.0, %v5966
  %v5968 = vmul.f32 %v5965, %v5967
  %v5969 = vadd.f32 %v5965, %v5968
  %vm5970 = vweird.f32 %v5619
  %vm5971 = vweird.f32 %v5965
  %vm5972 = vmor %vm5970, %vm5971
  %v5973 = vsel %vm5972, %v5965, %v5969
  %v5974 = vand.u32 2147483647, %v5619
  %vm5975 = vcmp.eq.f32.partialorder %v5974, 8.507059e+37
  %v5976 = vand.u32 %v5619, 2147483648
  %v5977 = vor.u32 1.1754944e-38, %v5976
  %v5978 = vsel %vm5975, %v5977, %v5973
  %v5979 = vmul.f32 1.0, %v5978
  %v5980 = vtanh.pop %v5495
  %v5981 = vtanh.pop %v5499
  %v5982 = vtanh.pop %v5503
  %v5983 = vtanh.pop %v5507
  %v5984 = vtanh.pop %v5511
  %v5985 = vtanh.pop %v5515
  %v5986 = vtanh.pop %v5519
  %v5987 = vtanh.pop %v5523
  %v5988 = vmul.f32 %v5649, %v5348
  %v5989 = vmul.f32 %v5694, %v5349
  %v5990 = vmul.f32 %v5739, %v5350
  %v5991 = vmul.f32 %v5784, %v5351
  %v5992 = vmul.f32 %v5829, %v5352
  %v5993 = vmul.f32 %v5874, %v5353
  %v5994 = vmul.f32 %v5919, %v5354
  %v5995 = vmul.f32 %v5964, %v5355
  %v5996 = vmul.f32 %v5634, %v5980
  %v5997 = vmul.f32 %v5679, %v5981
  %v5998 = vmul.f32 %v5724, %v5982
  %v5999 = vmul.f32 %v5769, %v5983
  %v6000 = vmul.f32 %v5814, %v5984
  %v6001 = vmul.f32 %v5859, %v5985
  %v6002 = vmul.f32 %v5904, %v5986
  %v6003 = vmul.f32 %v5949, %v5987
  %v6004 = vadd.f32 %v5988, %v5996
  %v6005 = vadd.f32 %v5989, %v5997
  %v6006 = vadd.f32 %v5990, %v5998
  %v6007 = vadd.f32 %v5991, %v5999
  %v6008 = vadd.f32 %v5992, %v6000
  %v6009 = vadd.f32 %v5993, %v6001
  %v6010 = vadd.f32 %v5994, %v6002
  %v6011 = vadd.f32 %v5995, %v6003
  %v6012 = vtanh.pop %v6004
  %v6013 = vtanh.pop %v6005
  %v6014 = vtanh.pop %v6006
  %v6015 = vtanh.pop %v6007
  %v6016 = vtanh.pop %v6008
  %v6017 = vtanh.pop %v6009
  %v6018 = vtanh.pop %v6010
  %v6019 = vtanh.pop %v6011
  %v6020 = vmul.f32 %v5664, %v6012
  %v6021 = vmul.f32 %v5709, %v6013
  %v6022 = vmul.f32 %v5754, %v6014
  %v6023 = vmul.f32 %v5799, %v6015
  %v6024 = vmul.f32 %v5844, %v6016
  %v6025 = vmul.f32 %v5889, %v6017
  %v6026 = vmul.f32 %v5934, %v6018
  %v6027 = vmul.f32 %v5979, %v6019
  %v6028 = vpack.c.bf16 %v6021, %v6020
  %v6029 = vpack.c.bf16 %v6023, %v6022
  %v6030 = vpack.c.bf16 %v6025, %v6024
  %v6031 = vpack.c.bf16 %v6027, %v6026
  %6032 = vmatpush.bf16.msra.mxu0 %v4684
  %6033 = vmatpush.bf16.msra.mxu0 %v4680
  %6034 = vmatpush.bf16.msra.mxu0 %v4676
  %6035 = vmatpush.bf16.msra.mxu0 %v4672
  %6036 = vmatpush.bf16.msra.mxu0 %v4668
  %6037 = vmatpush.bf16.msra.mxu0 %v4664
  %6038 = vmatpush.bf16.msra.mxu0 %v4660
  %6039 = vmatpush.bf16.msra.mxu0 %v4656
  %6040 = vmatmul.bf16.gmra.mxu0 %v6028
  %v6041 = vpop.f32.mrf.mxu0
  %v6042 = vadd.f32 0.0, %v6041
  %v6043 = vpop.f32.mrf.mxu0
  %v6044 = vadd.f32 0.0, %v6043
  %6045 = vmatmul.bf16.gmra.mxu0 %v6029
  %v6046 = vpop.f32.mrf.mxu0
  %v6047 = vadd.f32 0.0, %v6046
  %v6048 = vpop.f32.mrf.mxu0
  %v6049 = vadd.f32 0.0, %v6048
  %6050 = vmatmul.bf16.gmra.mxu0 %v6030
  %v6051 = vpop.f32.mrf.mxu0
  %v6052 = vadd.f32 0.0, %v6051
  %v6053 = vpop.f32.mrf.mxu0
  %v6054 = vadd.f32 0.0, %v6053
  %6055 = vmatmul.bf16.gmra.mxu0 %v6031
  %v6056 = vpop.f32.mrf.mxu0
  %v6057 = vadd.f32 0.0, %v6056
  %v6058 = vpop.f32.mrf.mxu0
  %v6059 = vadd.f32 0.0, %v6058
  %6060 = vdwg.mxu0
  %6061 = vmatpush.bf16.msra.mxu0 %v4685
  %6062 = vmatpush.bf16.msra.mxu0 %v4681
  %6063 = vmatpush.bf16.msra.mxu0 %v4677
  %6064 = vmatpush.bf16.msra.mxu0 %v4673
  %6065 = vmatpush.bf16.msra.mxu0 %v4669
  %6066 = vmatpush.bf16.msra.mxu0 %v4665
  %6067 = vmatpush.bf16.msra.mxu0 %v4661
  %6068 = vmatpush.bf16.msra.mxu0 %v4657
  %6069 = vmatmul.bf16.gmra.mxu0 %v6028
  %v6070 = vpop.f32.mrf.mxu0
  %v6071 = vadd.f32 0.0, %v6070
  %v6072 = vpop.f32.mrf.mxu0
  %v6073 = vadd.f32 0.0, %v6072
  %6074 = vmatmul.bf16.gmra.mxu0 %v6029
  %v6075 = vpop.f32.mrf.mxu0
  %v6076 = vadd.f32 0.0, %v6075
  %v6077 = vpop.f32.mrf.mxu0
  %v6078 = vadd.f32 0.0, %v6077
  %6079 = vmatmul.bf16.gmra.mxu0 %v6030
  %v6080 = vpop.f32.mrf.mxu0
  %v6081 = vadd.f32 0.0, %v6080
  %v6082 = vpop.f32.mrf.mxu0
  %v6083 = vadd.f32 0.0, %v6082
  %6084 = vmatmul.bf16.gmra.mxu0 %v6031
  %v6085 = vpop.f32.mrf.mxu0
  %v6086 = vadd.f32 0.0, %v6085
  %v6087 = vpop.f32.mrf.mxu0
  %v6088 = vadd.f32 0.0, %v6087
  %6089 = vdwg.mxu0
  %6090 = vmatpush.bf16.msra.mxu0 %v4686
  %6091 = vmatpush.bf16.msra.mxu0 %v4682
  %6092 = vmatpush.bf16.msra.mxu0 %v4678
  %6093 = vmatpush.bf16.msra.mxu0 %v4674
  %6094 = vmatpush.bf16.msra.mxu0 %v4670
  %6095 = vmatpush.bf16.msra.mxu0 %v4666
  %6096 = vmatpush.bf16.msra.mxu0 %v4662
  %6097 = vmatpush.bf16.msra.mxu0 %v4658
  %6098 = vmatmul.bf16.gmra.mxu0 %v6028
  %v6099 = vpop.f32.mrf.mxu0
  %v6100 = vadd.f32 0.0, %v6099
  %v6101 = vpop.f32.mrf.mxu0
  %v6102 = vadd.f32 0.0, %v6101
  %6103 = vmatmul.bf16.gmra.mxu0 %v6029
  %v6104 = vpop.f32.mrf.mxu0
  %v6105 = vadd.f32 0.0, %v6104
  %v6106 = vpop.f32.mrf.mxu0
  %v6107 = vadd.f32 0.0, %v6106
  %6108 = vmatmul.bf16.gmra.mxu0 %v6030
  %v6109 = vpop.f32.mrf.mxu0
  %v6110 = vadd.f32 0.0, %v6109
  %v6111 = vpop.f32.mrf.mxu0
  %v6112 = vadd.f32 0.0, %v6111
  %6113 = vmatmul.bf16.gmra.mxu0 %v6031
  %v6114 = vpop.f32.mrf.mxu0
  %v6115 = vadd.f32 0.0, %v6114
  %v6116 = vpop.f32.mrf.mxu0
  %v6117 = vadd.f32 0.0, %v6116
  %6118 = vdwg.mxu0
  %6119 = vmatpush.bf16.msra.mxu0 %v4687
  %6120 = vmatpush.bf16.msra.mxu0 %v4683
  %6121 = vmatpush.bf16.msra.mxu0 %v4679
  %6122 = vmatpush.bf16.msra.mxu0 %v4675
  %6123 = vmatpush.bf16.msra.mxu0 %v4671
  %6124 = vmatpush.bf16.msra.mxu0 %v4667
  %6125 = vmatpush.bf16.msra.mxu0 %v4663
  %6126 = vmatpush.bf16.msra.mxu0 %v4659
  %6127 = vmatmul.bf16.gmra.mxu0 %v6028
  %v6128 = vpop.f32.mrf.mxu0
  %v6129 = vadd.f32 0.0, %v6128
  %v6130 = vpop.f32.mrf.mxu0
  %v6131 = vadd.f32 0.0, %v6130
  %6132 = vmatmul.bf16.gmra.mxu0 %v6029
  %v6133 = vpop.f32.mrf.mxu0
  %v6134 = vadd.f32 0.0, %v6133
  %v6135 = vpop.f32.mrf.mxu0
  %v6136 = vadd.f32 0.0, %v6135
  %6137 = vmatmul.bf16.gmra.mxu0 %v6030
  %v6138 = vpop.f32.mrf.mxu0
  %v6139 = vadd.f32 0.0, %v6138
  %v6140 = vpop.f32.mrf.mxu0
  %v6141 = vadd.f32 0.0, %v6140
  %6142 = vmatmul.bf16.gmra.mxu0 %v6031
  %v6143 = vpop.f32.mrf.mxu0
  %v6144 = vadd.f32 0.0, %v6143
  %v6145 = vpop.f32.mrf.mxu0
  %v6146 = vadd.f32 0.0, %v6145
  %6147 = vdwg.mxu0
  %v6148 = vadd.f32 %v4222, %v6042
  %v6149 = vadd.f32 %v4311, %v6071
  %v6150 = vadd.f32 %v4400, %v6100
  %v6151 = vadd.f32 %v4489, %v6129
  %v6152 = vadd.f32 %v4224, %v6044
  %v6153 = vadd.f32 %v4313, %v6073
  %v6154 = vadd.f32 %v4402, %v6102
  %v6155 = vadd.f32 %v4491, %v6131
  %v6156 = vadd.f32 %v4227, %v6047
  %v6157 = vadd.f32 %v4316, %v6076
  %v6158 = vadd.f32 %v4405, %v6105
  %v6159 = vadd.f32 %v4494, %v6134
  %v6160 = vadd.f32 %v4229, %v6049
  %v6161 = vadd.f32 %v4318, %v6078
  %v6162 = vadd.f32 %v4407, %v6107
  %v6163 = vadd.f32 %v4496, %v6136
  %v6164 = vadd.f32 %v4232, %v6052
  %v6165 = vadd.f32 %v4321, %v6081
  %v6166 = vadd.f32 %v4410, %v6110
  %v6167 = vadd.f32 %v4499, %v6139
  %v6168 = vadd.f32 %v4234, %v6054
  %v6169 = vadd.f32 %v4323, %v6083
  %v6170 = vadd.f32 %v4412, %v6112
  %v6171 = vadd.f32 %v4501, %v6141
  %v6172 = vadd.f32 %v4237, %v6057
  %v6173 = vadd.f32 %v4326, %v6086
  %v6174 = vadd.f32 %v4415, %v6115
  %v6175 = vadd.f32 %v4504, %v6144
  %v6176 = vadd.f32 %v4239, %v6059
  %v6177 = vadd.f32 %v4328, %v6088
  %v6178 = vadd.f32 %v4417, %v6117
  %v6179 = vadd.f32 %v4506, %v6146
  %v6180 = vxor.u32 %v6148, 2147483648
  %v6181 = vxor.u32 %v6149, 2147483648
  %v6182 = vxor.u32 %v6150, 2147483648
  %v6183 = vxor.u32 %v6152, 2147483648
  %v6184 = vxor.u32 %v6153, 2147483648
  %v6185 = vxor.u32 %v6154, 2147483648
  %v6186 = vxor.u32 %v6156, 2147483648
  %v6187 = vxor.u32 %v6157, 2147483648
  %v6188 = vxor.u32 %v6158, 2147483648
  %v6189 = vxor.u32 %v6160, 2147483648
  %v6190 = vxor.u32 %v6161, 2147483648
  %v6191 = vxor.u32 %v6162, 2147483648
  %v6192 = vxor.u32 %v6164, 2147483648
  %v6193 = vxor.u32 %v6165, 2147483648
  %v6194 = vxor.u32 %v6166, 2147483648
  %v6195 = vxor.u32 %v6168, 2147483648
  %v6196 = vxor.u32 %v6169, 2147483648
  %v6197 = vxor.u32 %v6170, 2147483648
  %v6198 = vxor.u32 %v6172, 2147483648
  %v6199 = vxor.u32 %v6173, 2147483648
  %v6200 = vxor.u32 %v6174, 2147483648
  %v6201 = vxor.u32 %v6176, 2147483648
  %v6202 = vxor.u32 %v6177, 2147483648
  %v6203 = vxor.u32 %v6178, 2147483648
  %v6204 = vmul.f32 %v6180, 1.442695
  %v6205 = vpow.pop %v6204
  %v6206 = vmul.f32 %v6181, 1.442695
  %v6207 = vpow.pop %v6206
  %v6208 = vmul.f32 %v6182, 1.442695
  %v6209 = vpow.pop %v6208
  %v6210 = vmul.f32 %v6183, 1.442695
  %v6211 = vpow.pop %v6210
  %v6212 = vmul.f32 %v6184, 1.442695
  %v6213 = vpow.pop %v6212
  %v6214 = vmul.f32 %v6185, 1.442695
  %v6215 = vpow.pop %v6214
  %v6216 = vmul.f32 %v6186, 1.442695
  %v6217 = vpow.pop %v6216
  %v6218 = vmul.f32 %v6187, 1.442695
  %v6219 = vpow.pop %v6218
  %v6220 = vmul.f32 %v6188, 1.442695
  %v6221 = vpow.pop %v6220
  %v6222 = vmul.f32 %v6189, 1.442695
  %v6223 = vpow.pop %v6222
  %v6224 = vmul.f32 %v6190, 1.442695
  %v6225 = vpow.pop %v6224
  %v6226 = vmul.f32 %v6191, 1.442695
  %v6227 = vpow.pop %v6226
  %v6228 = vmul.f32 %v6192, 1.442695
  %v6229 = vpow.pop %v6228
  %v6230 = vmul.f32 %v6193, 1.442695
  %v6231 = vpow.pop %v6230
  %v6232 = vmul.f32 %v6194, 1.442695
  %v6233 = vpow.pop %v6232
  %v6234 = vmul.f32 %v6195, 1.442695
  %v6235 = vpow.pop %v6234
  %v6236 = vmul.f32 %v6196, 1.442695
  %v6237 = vpow.pop %v6236
  %v6238 = vmul.f32 %v6197, 1.442695
  %v6239 = vpow.pop %v6238
  %v6240 = vmul.f32 %v6198, 1.442695
  %v6241 = vpow.pop %v6240
  %v6242 = vmul.f32 %v6199, 1.442695
  %v6243 = vpow.pop %v6242
  %v6244 = vmul.f32 %v6200, 1.442695
  %v6245 = vpow.pop %v6244
  %v6246 = vmul.f32 %v6201, 1.442695
  %v6247 = vpow.pop %v6246
  %v6248 = vmul.f32 %v6202, 1.442695
  %v6249 = vpow.pop %v6248
  %v6250 = vmul.f32 %v6203, 1.442695
  %v6251 = vpow.pop %v6250
  %v6252 = vadd.f32 %v6205, 1.0
  %v6253 = vadd.f32 %v6207, 1.0
  %v6254 = vadd.f32 %v6209, 1.0
  %v6255 = vadd.f32 %v6211, 1.0
  %v6256 = vadd.f32 %v6213, 1.0
  %v6257 = vadd.f32 %v6215, 1.0
  %v6258 = vadd.f32 %v6217, 1.0
  %v6259 = vadd.f32 %v6219, 1.0
  %v6260 = vadd.f32 %v6221, 1.0
  %v6261 = vadd.f32 %v6223, 1.0
  %v6262 = vadd.f32 %v6225, 1.0
  %v6263 = vadd.f32 %v6227, 1.0
  %v6264 = vadd.f32 %v6229, 1.0
  %v6265 = vadd.f32 %v6231, 1.0
  %v6266 = vadd.f32 %v6233, 1.0
  %v6267 = vadd.f32 %v6235, 1.0
  %v6268 = vadd.f32 %v6237, 1.0
  %v6269 = vadd.f32 %v6239, 1.0
  %v6270 = vadd.f32 %v6241, 1.0
  %v6271 = vadd.f32 %v6243, 1.0
  %v6272 = vadd.f32 %v6245, 1.0
  %v6273 = vadd.f32 %v6247, 1.0
  %v6274 = vadd.f32 %v6249, 1.0
  %v6275 = vadd.f32 %v6251, 1.0
  %v6276 = vrcp.pop %v6252
  %v6277 = vmul.f32 %v6252, %v6276
  %v6278 = vsub.f32 1.0, %v6277
  %v6279 = vmul.f32 %v6276, %v6278
  %v6280 = vadd.f32 %v6276, %v6279
  %vm6281 = vweird.f32 %v6252
  %vm6282 = vweird.f32 %v6276
  %vm6283 = vmor %vm6281, %vm6282
  %v6284 = vsel %vm6283, %v6276, %v6280
  %v6285 = vand.u32 2147483647, %v6252
  %vm6286 = vcmp.eq.f32.partialorder %v6285, 8.507059e+37
  %v6287 = vand.u32 %v6252, 2147483648
  %v6288 = vor.u32 1.1754944e-38, %v6287
  %v6289 = vsel %vm6286, %v6288, %v6284
  %v6290 = vmul.f32 1.0, %v6289
  %v6291 = vrcp.pop %v6253
  %v6292 = vmul.f32 %v6253, %v6291
  %v6293 = vsub.f32 1.0, %v6292
  %v6294 = vmul.f32 %v6291, %v6293
  %v6295 = vadd.f32 %v6291, %v6294
  %vm6296 = vweird.f32 %v6253
  %vm6297 = vweird.f32 %v6291
  %vm6298 = vmor %vm6296, %vm6297
  %v6299 = vsel %vm6298, %v6291, %v6295
  %v6300 = vand.u32 2147483647, %v6253
  %vm6301 = vcmp.eq.f32.partialorder %v6300, 8.507059e+37
  %v6302 = vand.u32 %v6253, 2147483648
  %v6303 = vor.u32 1.1754944e-38, %v6302
  %v6304 = vsel %vm6301, %v6303, %v6299
  %v6305 = vmul.f32 1.0, %v6304
  %v6306 = vrcp.pop %v6254
  %v6307 = vmul.f32 %v6254, %v6306
  %v6308 = vsub.f32 1.0, %v6307
  %v6309 = vmul.f32 %v6306, %v6308
  %v6310 = vadd.f32 %v6306, %v6309
  %vm6311 = vweird.f32 %v6254
  %vm6312 = vweird.f32 %v6306
  %vm6313 = vmor %vm6311, %vm6312
  %v6314 = vsel %vm6313, %v6306, %v6310
  %v6315 = vand.u32 2147483647, %v6254
  %vm6316 = vcmp.eq.f32.partialorder %v6315, 8.507059e+37
  %v6317 = vand.u32 %v6254, 2147483648
  %v6318 = vor.u32 1.1754944e-38, %v6317
  %v6319 = vsel %vm6316, %v6318, %v6314
  %v6320 = vmul.f32 1.0, %v6319
  %v6321 = vrcp.pop %v6255
  %v6322 = vmul.f32 %v6255, %v6321
  %v6323 = vsub.f32 1.0, %v6322
  %v6324 = vmul.f32 %v6321, %v6323
  %v6325 = vadd.f32 %v6321, %v6324
  %vm6326 = vweird.f32 %v6255
  %vm6327 = vweird.f32 %v6321
  %vm6328 = vmor %vm6326, %vm6327
  %v6329 = vsel %vm6328, %v6321, %v6325
  %v6330 = vand.u32 2147483647, %v6255
  %vm6331 = vcmp.eq.f32.partialorder %v6330, 8.507059e+37
  %v6332 = vand.u32 %v6255, 2147483648
  %v6333 = vor.u32 1.1754944e-38, %v6332
  %v6334 = vsel %vm6331, %v6333, %v6329
  %v6335 = vmul.f32 1.0, %v6334
  %v6336 = vrcp.pop %v6256
  %v6337 = vmul.f32 %v6256, %v6336
  %v6338 = vsub.f32 1.0, %v6337
  %v6339 = vmul.f32 %v6336, %v6338
  %v6340 = vadd.f32 %v6336, %v6339
  %vm6341 = vweird.f32 %v6256
  %vm6342 = vweird.f32 %v6336
  %vm6343 = vmor %vm6341, %vm6342
  %v6344 = vsel %vm6343, %v6336, %v6340
  %v6345 = vand.u32 2147483647, %v6256
  %vm6346 = vcmp.eq.f32.partialorder %v6345, 8.507059e+37
  %v6347 = vand.u32 %v6256, 2147483648
  %v6348 = vor.u32 1.1754944e-38, %v6347
  %v6349 = vsel %vm6346, %v6348, %v6344
  %v6350 = vmul.f32 1.0, %v6349
  %v6351 = vrcp.pop %v6257
  %v6352 = vmul.f32 %v6257, %v6351
  %v6353 = vsub.f32 1.0, %v6352
  %v6354 = vmul.f32 %v6351, %v6353
  %v6355 = vadd.f32 %v6351, %v6354
  %vm6356 = vweird.f32 %v6257
  %vm6357 = vweird.f32 %v6351
  %vm6358 = vmor %vm6356, %vm6357
  %v6359 = vsel %vm6358, %v6351, %v6355
  %v6360 = vand.u32 2147483647, %v6257
  %vm6361 = vcmp.eq.f32.partialorder %v6360, 8.507059e+37
  %v6362 = vand.u32 %v6257, 2147483648
  %v6363 = vor.u32 1.1754944e-38, %v6362
  %v6364 = vsel %vm6361, %v6363, %v6359
  %v6365 = vmul.f32 1.0, %v6364
  %v6366 = vrcp.pop %v6258
  %v6367 = vmul.f32 %v6258, %v6366
  %v6368 = vsub.f32 1.0, %v6367
  %v6369 = vmul.f32 %v6366, %v6368
  %v6370 = vadd.f32 %v6366, %v6369
  %vm6371 = vweird.f32 %v6258
  %vm6372 = vweird.f32 %v6366
  %vm6373 = vmor %vm6371, %vm6372
  %v6374 = vsel %vm6373, %v6366, %v6370
  %v6375 = vand.u32 2147483647, %v6258
  %vm6376 = vcmp.eq.f32.partialorder %v6375, 8.507059e+37
  %v6377 = vand.u32 %v6258, 2147483648
  %v6378 = vor.u32 1.1754944e-38, %v6377
  %v6379 = vsel %vm6376, %v6378, %v6374
  %v6380 = vmul.f32 1.0, %v6379
  %v6381 = vrcp.pop %v6259
  %v6382 = vmul.f32 %v6259, %v6381
  %v6383 = vsub.f32 1.0, %v6382
  %v6384 = vmul.f32 %v6381, %v6383
  %v6385 = vadd.f32 %v6381, %v6384
  %vm6386 = vweird.f32 %v6259
  %vm6387 = vweird.f32 %v6381
  %vm6388 = vmor %vm6386, %vm6387
  %v6389 = vsel %vm6388, %v6381, %v6385
  %v6390 = vand.u32 2147483647, %v6259
  %vm6391 = vcmp.eq.f32.partialorder %v6390, 8.507059e+37
  %v6392 = vand.u32 %v6259, 2147483648
  %v6393 = vor.u32 1.1754944e-38, %v6392
  %v6394 = vsel %vm6391, %v6393, %v6389
  %v6395 = vmul.f32 1.0, %v6394
  %v6396 = vrcp.pop %v6260
  %v6397 = vmul.f32 %v6260, %v6396
  %v6398 = vsub.f32 1.0, %v6397
  %v6399 = vmul.f32 %v6396, %v6398
  %v6400 = vadd.f32 %v6396, %v6399
  %vm6401 = vweird.f32 %v6260
  %vm6402 = vweird.f32 %v6396
  %vm6403 = vmor %vm6401, %vm6402
  %v6404 = vsel %vm6403, %v6396, %v6400
  %v6405 = vand.u32 2147483647, %v6260
  %vm6406 = vcmp.eq.f32.partialorder %v6405, 8.507059e+37
  %v6407 = vand.u32 %v6260, 2147483648
  %v6408 = vor.u32 1.1754944e-38, %v6407
  %v6409 = vsel %vm6406, %v6408, %v6404
  %v6410 = vmul.f32 1.0, %v6409
  %v6411 = vrcp.pop %v6261
  %v6412 = vmul.f32 %v6261, %v6411
  %v6413 = vsub.f32 1.0, %v6412
  %v6414 = vmul.f32 %v6411, %v6413
  %v6415 = vadd.f32 %v6411, %v6414
  %vm6416 = vweird.f32 %v6261
  %vm6417 = vweird.f32 %v6411
  %vm6418 = vmor %vm6416, %vm6417
  %v6419 = vsel %vm6418, %v6411, %v6415
  %v6420 = vand.u32 2147483647, %v6261
  %vm6421 = vcmp.eq.f32.partialorder %v6420, 8.507059e+37
  %v6422 = vand.u32 %v6261, 2147483648
  %v6423 = vor.u32 1.1754944e-38, %v6422
  %v6424 = vsel %vm6421, %v6423, %v6419
  %v6425 = vmul.f32 1.0, %v6424
  %v6426 = vrcp.pop %v6262
  %v6427 = vmul.f32 %v6262, %v6426
  %v6428 = vsub.f32 1.0, %v6427
  %v6429 = vmul.f32 %v6426, %v6428
  %v6430 = vadd.f32 %v6426, %v6429
  %vm6431 = vweird.f32 %v6262
  %vm6432 = vweird.f32 %v6426
  %vm6433 = vmor %vm6431, %vm6432
  %v6434 = vsel %vm6433, %v6426, %v6430
  %v6435 = vand.u32 2147483647, %v6262
  %vm6436 = vcmp.eq.f32.partialorder %v6435, 8.507059e+37
  %v6437 = vand.u32 %v6262, 2147483648
  %v6438 = vor.u32 1.1754944e-38, %v6437
  %v6439 = vsel %vm6436, %v6438, %v6434
  %v6440 = vmul.f32 1.0, %v6439
  %v6441 = vrcp.pop %v6263
  %v6442 = vmul.f32 %v6263, %v6441
  %v6443 = vsub.f32 1.0, %v6442
  %v6444 = vmul.f32 %v6441, %v6443
  %v6445 = vadd.f32 %v6441, %v6444
  %vm6446 = vweird.f32 %v6263
  %vm6447 = vweird.f32 %v6441
  %vm6448 = vmor %vm6446, %vm6447
  %v6449 = vsel %vm6448, %v6441, %v6445
  %v6450 = vand.u32 2147483647, %v6263
  %vm6451 = vcmp.eq.f32.partialorder %v6450, 8.507059e+37
  %v6452 = vand.u32 %v6263, 2147483648
  %v6453 = vor.u32 1.1754944e-38, %v6452
  %v6454 = vsel %vm6451, %v6453, %v6449
  %v6455 = vmul.f32 1.0, %v6454
  %v6456 = vrcp.pop %v6264
  %v6457 = vmul.f32 %v6264, %v6456
  %v6458 = vsub.f32 1.0, %v6457
  %v6459 = vmul.f32 %v6456, %v6458
  %v6460 = vadd.f32 %v6456, %v6459
  %vm6461 = vweird.f32 %v6264
  %vm6462 = vweird.f32 %v6456
  %vm6463 = vmor %vm6461, %vm6462
  %v6464 = vsel %vm6463, %v6456, %v6460
  %v6465 = vand.u32 2147483647, %v6264
  %vm6466 = vcmp.eq.f32.partialorder %v6465, 8.507059e+37
  %v6467 = vand.u32 %v6264, 2147483648
  %v6468 = vor.u32 1.1754944e-38, %v6467
  %v6469 = vsel %vm6466, %v6468, %v6464
  %v6470 = vmul.f32 1.0, %v6469
  %v6471 = vrcp.pop %v6265
  %v6472 = vmul.f32 %v6265, %v6471
  %v6473 = vsub.f32 1.0, %v6472
  %v6474 = vmul.f32 %v6471, %v6473
  %v6475 = vadd.f32 %v6471, %v6474
  %vm6476 = vweird.f32 %v6265
  %vm6477 = vweird.f32 %v6471
  %vm6478 = vmor %vm6476, %vm6477
  %v6479 = vsel %vm6478, %v6471, %v6475
  %v6480 = vand.u32 2147483647, %v6265
  %vm6481 = vcmp.eq.f32.partialorder %v6480, 8.507059e+37
  %v6482 = vand.u32 %v6265, 2147483648
  %v6483 = vor.u32 1.1754944e-38, %v6482
  %v6484 = vsel %vm6481, %v6483, %v6479
  %v6485 = vmul.f32 1.0, %v6484
  %v6486 = vrcp.pop %v6266
  %v6487 = vmul.f32 %v6266, %v6486
  %v6488 = vsub.f32 1.0, %v6487
  %v6489 = vmul.f32 %v6486, %v6488
  %v6490 = vadd.f32 %v6486, %v6489
  %vm6491 = vweird.f32 %v6266
  %vm6492 = vweird.f32 %v6486
  %vm6493 = vmor %vm6491, %vm6492
  %v6494 = vsel %vm6493, %v6486, %v6490
  %v6495 = vand.u32 2147483647, %v6266
  %vm6496 = vcmp.eq.f32.partialorder %v6495, 8.507059e+37
  %v6497 = vand.u32 %v6266, 2147483648
  %v6498 = vor.u32 1.1754944e-38, %v6497
  %v6499 = vsel %vm6496, %v6498, %v6494
  %v6500 = vmul.f32 1.0, %v6499
  %v6501 = vrcp.pop %v6267
  %v6502 = vmul.f32 %v6267, %v6501
  %v6503 = vsub.f32 1.0, %v6502
  %v6504 = vmul.f32 %v6501, %v6503
  %v6505 = vadd.f32 %v6501, %v6504
  %vm6506 = vweird.f32 %v6267
  %vm6507 = vweird.f32 %v6501
  %vm6508 = vmor %vm6506, %vm6507
  %v6509 = vsel %vm6508, %v6501, %v6505
  %v6510 = vand.u32 2147483647, %v6267
  %vm6511 = vcmp.eq.f32.partialorder %v6510, 8.507059e+37
  %v6512 = vand.u32 %v6267, 2147483648
  %v6513 = vor.u32 1.1754944e-38, %v6512
  %v6514 = vsel %vm6511, %v6513, %v6509
  %v6515 = vmul.f32 1.0, %v6514
  %v6516 = vrcp.pop %v6268
  %v6517 = vmul.f32 %v6268, %v6516
  %v6518 = vsub.f32 1.0, %v6517
  %v6519 = vmul.f32 %v6516, %v6518
  %v6520 = vadd.f32 %v6516, %v6519
  %vm6521 = vweird.f32 %v6268
  %vm6522 = vweird.f32 %v6516
  %vm6523 = vmor %vm6521, %vm6522
  %v6524 = vsel %vm6523, %v6516, %v6520
  %v6525 = vand.u32 2147483647, %v6268
  %vm6526 = vcmp.eq.f32.partialorder %v6525, 8.507059e+37
  %v6527 = vand.u32 %v6268, 2147483648
  %v6528 = vor.u32 1.1754944e-38, %v6527
  %v6529 = vsel %vm6526, %v6528, %v6524
  %v6530 = vmul.f32 1.0, %v6529
  %v6531 = vrcp.pop %v6269
  %v6532 = vmul.f32 %v6269, %v6531
  %v6533 = vsub.f32 1.0, %v6532
  %v6534 = vmul.f32 %v6531, %v6533
  %v6535 = vadd.f32 %v6531, %v6534
  %vm6536 = vweird.f32 %v6269
  %vm6537 = vweird.f32 %v6531
  %vm6538 = vmor %vm6536, %vm6537
  %v6539 = vsel %vm6538, %v6531, %v6535
  %v6540 = vand.u32 2147483647, %v6269
  %vm6541 = vcmp.eq.f32.partialorder %v6540, 8.507059e+37
  %v6542 = vand.u32 %v6269, 2147483648
  %v6543 = vor.u32 1.1754944e-38, %v6542
  %v6544 = vsel %vm6541, %v6543, %v6539
  %v6545 = vmul.f32 1.0, %v6544
  %v6546 = vrcp.pop %v6270
  %v6547 = vmul.f32 %v6270, %v6546
  %v6548 = vsub.f32 1.0, %v6547
  %v6549 = vmul.f32 %v6546, %v6548
  %v6550 = vadd.f32 %v6546, %v6549
  %vm6551 = vweird.f32 %v6270
  %vm6552 = vweird.f32 %v6546
  %vm6553 = vmor %vm6551, %vm6552
  %v6554 = vsel %vm6553, %v6546, %v6550
  %v6555 = vand.u32 2147483647, %v6270
  %vm6556 = vcmp.eq.f32.partialorder %v6555, 8.507059e+37
  %v6557 = vand.u32 %v6270, 2147483648
  %v6558 = vor.u32 1.1754944e-38, %v6557
  %v6559 = vsel %vm6556, %v6558, %v6554
  %v6560 = vmul.f32 1.0, %v6559
  %v6561 = vrcp.pop %v6271
  %v6562 = vmul.f32 %v6271, %v6561
  %v6563 = vsub.f32 1.0, %v6562
  %v6564 = vmul.f32 %v6561, %v6563
  %v6565 = vadd.f32 %v6561, %v6564
  %vm6566 = vweird.f32 %v6271
  %vm6567 = vweird.f32 %v6561
  %vm6568 = vmor %vm6566, %vm6567
  %v6569 = vsel %vm6568, %v6561, %v6565
  %v6570 = vand.u32 2147483647, %v6271
  %vm6571 = vcmp.eq.f32.partialorder %v6570, 8.507059e+37
  %v6572 = vand.u32 %v6271, 2147483648
  %v6573 = vor.u32 1.1754944e-38, %v6572
  %v6574 = vsel %vm6571, %v6573, %v6569
  %v6575 = vmul.f32 1.0, %v6574
  %v6576 = vrcp.pop %v6272
  %v6577 = vmul.f32 %v6272, %v6576
  %v6578 = vsub.f32 1.0, %v6577
  %v6579 = vmul.f32 %v6576, %v6578
  %v6580 = vadd.f32 %v6576, %v6579
  %vm6581 = vweird.f32 %v6272
  %vm6582 = vweird.f32 %v6576
  %vm6583 = vmor %vm6581, %vm6582
  %v6584 = vsel %vm6583, %v6576, %v6580
  %v6585 = vand.u32 2147483647, %v6272
  %vm6586 = vcmp.eq.f32.partialorder %v6585, 8.507059e+37
  %v6587 = vand.u32 %v6272, 2147483648
  %v6588 = vor.u32 1.1754944e-38, %v6587
  %v6589 = vsel %vm6586, %v6588, %v6584
  %v6590 = vmul.f32 1.0, %v6589
  %v6591 = vrcp.pop %v6273
  %v6592 = vmul.f32 %v6273, %v6591
  %v6593 = vsub.f32 1.0, %v6592
  %v6594 = vmul.f32 %v6591, %v6593
  %v6595 = vadd.f32 %v6591, %v6594
  %vm6596 = vweird.f32 %v6273
  %vm6597 = vweird.f32 %v6591
  %vm6598 = vmor %vm6596, %vm6597
  %v6599 = vsel %vm6598, %v6591, %v6595
  %v6600 = vand.u32 2147483647, %v6273
  %vm6601 = vcmp.eq.f32.partialorder %v6600, 8.507059e+37
  %v6602 = vand.u32 %v6273, 2147483648
  %v6603 = vor.u32 1.1754944e-38, %v6602
  %v6604 = vsel %vm6601, %v6603, %v6599
  %v6605 = vmul.f32 1.0, %v6604
  %v6606 = vrcp.pop %v6274
  %v6607 = vmul.f32 %v6274, %v6606
  %v6608 = vsub.f32 1.0, %v6607
  %v6609 = vmul.f32 %v6606, %v6608
  %v6610 = vadd.f32 %v6606, %v6609
  %vm6611 = vweird.f32 %v6274
  %vm6612 = vweird.f32 %v6606
  %vm6613 = vmor %vm6611, %vm6612
  %v6614 = vsel %vm6613, %v6606, %v6610
  %v6615 = vand.u32 2147483647, %v6274
  %vm6616 = vcmp.eq.f32.partialorder %v6615, 8.507059e+37
  %v6617 = vand.u32 %v6274, 2147483648
  %v6618 = vor.u32 1.1754944e-38, %v6617
  %v6619 = vsel %vm6616, %v6618, %v6614
  %v6620 = vmul.f32 1.0, %v6619
  %v6621 = vrcp.pop %v6275
  %v6622 = vmul.f32 %v6275, %v6621
  %v6623 = vsub.f32 1.0, %v6622
  %v6624 = vmul.f32 %v6621, %v6623
  %v6625 = vadd.f32 %v6621, %v6624
  %vm6626 = vweird.f32 %v6275
  %vm6627 = vweird.f32 %v6621
  %vm6628 = vmor %vm6626, %vm6627
  %v6629 = vsel %vm6628, %v6621, %v6625
  %v6630 = vand.u32 2147483647, %v6275
  %vm6631 = vcmp.eq.f32.partialorder %v6630, 8.507059e+37
  %v6632 = vand.u32 %v6275, 2147483648
  %v6633 = vor.u32 1.1754944e-38, %v6632
  %v6634 = vsel %vm6631, %v6633, %v6629
  %v6635 = vmul.f32 1.0, %v6634
  %v6636 = vtanh.pop %v6151
  %v6637 = vtanh.pop %v6155
  %v6638 = vtanh.pop %v6159
  %v6639 = vtanh.pop %v6163
  %v6640 = vtanh.pop %v6167
  %v6641 = vtanh.pop %v6171
  %v6642 = vtanh.pop %v6175
  %v6643 = vtanh.pop %v6179
  %v6644 = vmul.f32 %v6305, %v6004
  %v6645 = vmul.f32 %v6350, %v6005
  %v6646 = vmul.f32 %v6395, %v6006
  %v6647 = vmul.f32 %v6440, %v6007
  %v6648 = vmul.f32 %v6485, %v6008
  %v6649 = vmul.f32 %v6530, %v6009
  %v6650 = vmul.f32 %v6575, %v6010
  %v6651 = vmul.f32 %v6620, %v6011
  %v6652 = vmul.f32 %v6290, %v6636
  %v6653 = vmul.f32 %v6335, %v6637
  %v6654 = vmul.f32 %v6380, %v6638
  %v6655 = vmul.f32 %v6425, %v6639
  %v6656 = vmul.f32 %v6470, %v6640
  %v6657 = vmul.f32 %v6515, %v6641
  %v6658 = vmul.f32 %v6560, %v6642
  %v6659 = vmul.f32 %v6605, %v6643
  %v6660 = vadd.f32 %v6644, %v6652
  %v6661 = vadd.f32 %v6645, %v6653
  %v6662 = vadd.f32 %v6646, %v6654
  %v6663 = vadd.f32 %v6647, %v6655
  %v6664 = vadd.f32 %v6648, %v6656
  %v6665 = vadd.f32 %v6649, %v6657
  %v6666 = vadd.f32 %v6650, %v6658
  %v6667 = vadd.f32 %v6651, %v6659
  %v6668 = vtanh.pop %v6660
  %v6669 = vtanh.pop %v6661
  %v6670 = vtanh.pop %v6662
  %v6671 = vtanh.pop %v6663
  %v6672 = vtanh.pop %v6664
  %v6673 = vtanh.pop %v6665
  %v6674 = vtanh.pop %v6666
  %v6675 = vtanh.pop %v6667
  %v6676 = vmul.f32 %v6320, %v6668
  %v6677 = vmul.f32 %v6365, %v6669
  %v6678 = vmul.f32 %v6410, %v6670
  %v6679 = vmul.f32 %v6455, %v6671
  %v6680 = vmul.f32 %v6500, %v6672
  %v6681 = vmul.f32 %v6545, %v6673
  %v6682 = vmul.f32 %v6590, %v6674
  %v6683 = vmul.f32 %v6635, %v6675
  %v6684 = vpack.c.bf16 %v6677, %v6676
  %v6685 = vpack.c.bf16 %v6679, %v6678
  %v6686 = vpack.c.bf16 %v6681, %v6680
  %v6687 = vpack.c.bf16 %v6683, %v6682
  %6688 = vmatpush.bf16.msra.mxu0 %v4684
  %6689 = vmatpush.bf16.msra.mxu0 %v4680
  %6690 = vmatpush.bf16.msra.mxu0 %v4676
  %6691 = vmatpush.bf16.msra.mxu0 %v4672
  %6692 = vmatpush.bf16.msra.mxu0 %v4668
  %6693 = vmatpush.bf16.msra.mxu0 %v4664
  %6694 = vmatpush.bf16.msra.mxu0 %v4660
  %6695 = vmatpush.bf16.msra.mxu0 %v4656
  %6696 = vmatmul.bf16.gmra.mxu0 %v6684
  %v6697 = vpop.f32.mrf.mxu0
  %v6698 = vadd.f32 0.0, %v6697
  %v6699 = vpop.f32.mrf.mxu0
  %v6700 = vadd.f32 0.0, %v6699
  %6701 = vmatmul.bf16.gmra.mxu0 %v6685
  %v6702 = vpop.f32.mrf.mxu0
  %v6703 = vadd.f32 0.0, %v6702
  %v6704 = vpop.f32.mrf.mxu0
  %v6705 = vadd.f32 0.0, %v6704
  %6706 = vmatmul.bf16.gmra.mxu0 %v6686
  %v6707 = vpop.f32.mrf.mxu0
  %v6708 = vadd.f32 0.0, %v6707
  %v6709 = vpop.f32.mrf.mxu0
  %v6710 = vadd.f32 0.0, %v6709
  %6711 = vmatmul.bf16.gmra.mxu0 %v6687
  %v6712 = vpop.f32.mrf.mxu0
  %v6713 = vadd.f32 0.0, %v6712
  %v6714 = vpop.f32.mrf.mxu0
  %v6715 = vadd.f32 0.0, %v6714
  %6716 = vdwg.mxu0
  %6717 = vmatpush.bf16.msra.mxu0 %v4685
  %6718 = vmatpush.bf16.msra.mxu0 %v4681
  %6719 = vmatpush.bf16.msra.mxu0 %v4677
  %6720 = vmatpush.bf16.msra.mxu0 %v4673
  %6721 = vmatpush.bf16.msra.mxu0 %v4669
  %6722 = vmatpush.bf16.msra.mxu0 %v4665
  %6723 = vmatpush.bf16.msra.mxu0 %v4661
  %6724 = vmatpush.bf16.msra.mxu0 %v4657
  %6725 = vmatmul.bf16.gmra.mxu0 %v6684
  %v6726 = vpop.f32.mrf.mxu0
  %v6727 = vadd.f32 0.0, %v6726
  %v6728 = vpop.f32.mrf.mxu0
  %v6729 = vadd.f32 0.0, %v6728
  %6730 = vmatmul.bf16.gmra.mxu0 %v6685
  %v6731 = vpop.f32.mrf.mxu0
  %v6732 = vadd.f32 0.0, %v6731
  %v6733 = vpop.f32.mrf.mxu0
  %v6734 = vadd.f32 0.0, %v6733
  %6735 = vmatmul.bf16.gmra.mxu0 %v6686
  %v6736 = vpop.f32.mrf.mxu0
  %v6737 = vadd.f32 0.0, %v6736
  %v6738 = vpop.f32.mrf.mxu0
  %v6739 = vadd.f32 0.0, %v6738
  %6740 = vmatmul.bf16.gmra.mxu0 %v6687
  %v6741 = vpop.f32.mrf.mxu0
  %v6742 = vadd.f32 0.0, %v6741
  %v6743 = vpop.f32.mrf.mxu0
  %v6744 = vadd.f32 0.0, %v6743
  %6745 = vdwg.mxu0
  %6746 = vmatpush.bf16.msra.mxu0 %v4686
  %6747 = vmatpush.bf16.msra.mxu0 %v4682
  %6748 = vmatpush.bf16.msra.mxu0 %v4678
  %6749 = vmatpush.bf16.msra.mxu0 %v4674
  %6750 = vmatpush.bf16.msra.mxu0 %v4670
  %6751 = vmatpush.bf16.msra.mxu0 %v4666
  %6752 = vmatpush.bf16.msra.mxu0 %v4662
  %6753 = vmatpush.bf16.msra.mxu0 %v4658
  %6754 = vmatmul.bf16.gmra.mxu0 %v6684
  %v6755 = vpop.f32.mrf.mxu0
  %v6756 = vadd.f32 0.0, %v6755
  %v6757 = vpop.f32.mrf.mxu0
  %v6758 = vadd.f32 0.0, %v6757
  %6759 = vmatmul.bf16.gmra.mxu0 %v6685
  %v6760 = vpop.f32.mrf.mxu0
  %v6761 = vadd.f32 0.0, %v6760
  %v6762 = vpop.f32.mrf.mxu0
  %v6763 = vadd.f32 0.0, %v6762
  %6764 = vmatmul.bf16.gmra.mxu0 %v6686
  %v6765 = vpop.f32.mrf.mxu0
  %v6766 = vadd.f32 0.0, %v6765
  %v6767 = vpop.f32.mrf.mxu0
  %v6768 = vadd.f32 0.0, %v6767
  %6769 = vmatmul.bf16.gmra.mxu0 %v6687
  %v6770 = vpop.f32.mrf.mxu0
  %v6771 = vadd.f32 0.0, %v6770
  %v6772 = vpop.f32.mrf.mxu0
  %v6773 = vadd.f32 0.0, %v6772
  %6774 = vdwg.mxu0
  %6775 = vmatpush.bf16.msra.mxu0 %v4687
  %6776 = vmatpush.bf16.msra.mxu0 %v4683
  %6777 = vmatpush.bf16.msra.mxu0 %v4679
  %6778 = vmatpush.bf16.msra.mxu0 %v4675
  %6779 = vmatpush.bf16.msra.mxu0 %v4671
  %6780 = vmatpush.bf16.msra.mxu0 %v4667
  %6781 = vmatpush.bf16.msra.mxu0 %v4663
  %6782 = vmatpush.bf16.msra.mxu0 %v4659
  %6783 = vmatmul.bf16.gmra.mxu0 %v6684
  %v6784 = vpop.f32.mrf.mxu0
  %v6785 = vadd.f32 0.0, %v6784
  %v6786 = vpop.f32.mrf.mxu0
  %v6787 = vadd.f32 0.0, %v6786
  %6788 = vmatmul.bf16.gmra.mxu0 %v6685
  %v6789 = vpop.f32.mrf.mxu0
  %v6790 = vadd.f32 0.0, %v6789
  %v6791 = vpop.f32.mrf.mxu0
  %v6792 = vadd.f32 0.0, %v6791
  %6793 = vmatmul.bf16.gmra.mxu0 %v6686
  %v6794 = vpop.f32.mrf.mxu0
  %v6795 = vadd.f32 0.0, %v6794
  %v6796 = vpop.f32.mrf.mxu0
  %v6797 = vadd.f32 0.0, %v6796
  %6798 = vmatmul.bf16.gmra.mxu0 %v6687
  %v6799 = vpop.f32.mrf.mxu0
  %v6800 = vadd.f32 0.0, %v6799
  %v6801 = vpop.f32.mrf.mxu0
  %v6802 = vadd.f32 0.0, %v6801
  %6803 = vdwg.mxu0
  %v6804 = vadd.f32 %v4242, %v6698
  %v6805 = vadd.f32 %v4331, %v6727
  %v6806 = vadd.f32 %v4420, %v6756
  %v6807 = vadd.f32 %v4509, %v6785
  %v6808 = vadd.f32 %v4244, %v6700
  %v6809 = vadd.f32 %v4333, %v6729
  %v6810 = vadd.f32 %v4422, %v6758
  %v6811 = vadd.f32 %v4511, %v6787
  %v6812 = vadd.f32 %v4247, %v6703
  %v6813 = vadd.f32 %v4336, %v6732
  %v6814 = vadd.f32 %v4425, %v6761
  %v6815 = vadd.f32 %v4514, %v6790
  %v6816 = vadd.f32 %v4249, %v6705
  %v6817 = vadd.f32 %v4338, %v6734
  %v6818 = vadd.f32 %v4427, %v6763
  %v6819 = vadd.f32 %v4516, %v6792
  %v6820 = vadd.f32 %v4252, %v6708
  %v6821 = vadd.f32 %v4341, %v6737
  %v6822 = vadd.f32 %v4430, %v6766
  %v6823 = vadd.f32 %v4519, %v6795
  %v6824 = vadd.f32 %v4254, %v6710
  %v6825 = vadd.f32 %v4343, %v6739
  %v6826 = vadd.f32 %v4432, %v6768
  %v6827 = vadd.f32 %v4521, %v6797
  %v6828 = vadd.f32 %v4257, %v6713
  %v6829 = vadd.f32 %v4346, %v6742
  %v6830 = vadd.f32 %v4435, %v6771
  %v6831 = vadd.f32 %v4524, %v6800
  %v6832 = vadd.f32 %v4259, %v6715
  %v6833 = vadd.f32 %v4348, %v6744
  %v6834 = vadd.f32 %v4437, %v6773
  %v6835 = vadd.f32 %v4526, %v6802
  %v6836 = vxor.u32 %v6804, 2147483648
  %v6837 = vxor.u32 %v6805, 2147483648
  %v6838 = vxor.u32 %v6806, 2147483648
  %v6839 = vxor.u32 %v6808, 2147483648
  %v6840 = vxor.u32 %v6809, 2147483648
  %v6841 = vxor.u32 %v6810, 2147483648
  %v6842 = vxor.u32 %v6812, 2147483648
  %v6843 = vxor.u32 %v6813, 2147483648
  %v6844 = vxor.u32 %v6814, 2147483648
  %v6845 = vxor.u32 %v6816, 2147483648
  %v6846 = vxor.u32 %v6817, 2147483648
  %v6847 = vxor.u32 %v6818, 2147483648
  %v6848 = vxor.u32 %v6820, 2147483648
  %v6849 = vxor.u32 %v6821, 2147483648
  %v6850 = vxor.u32 %v6822, 2147483648
  %v6851 = vxor.u32 %v6824, 2147483648
  %v6852 = vxor.u32 %v6825, 2147483648
  %v6853 = vxor.u32 %v6826, 2147483648
  %v6854 = vxor.u32 %v6828, 2147483648
  %v6855 = vxor.u32 %v6829, 2147483648
  %v6856 = vxor.u32 %v6830, 2147483648
  %v6857 = vxor.u32 %v6832, 2147483648
  %v6858 = vxor.u32 %v6833, 2147483648
  %v6859 = vxor.u32 %v6834, 2147483648
  %v6860 = vmul.f32 %v6836, 1.442695
  %v6861 = vpow.pop %v6860
  %v6862 = vmul.f32 %v6837, 1.442695
  %v6863 = vpow.pop %v6862
  %v6864 = vmul.f32 %v6838, 1.442695
  %v6865 = vpow.pop %v6864
  %v6866 = vmul.f32 %v6839, 1.442695
  %v6867 = vpow.pop %v6866
  %v6868 = vmul.f32 %v6840, 1.442695
  %v6869 = vpow.pop %v6868
  %v6870 = vmul.f32 %v6841, 1.442695
  %v6871 = vpow.pop %v6870
  %v6872 = vmul.f32 %v6842, 1.442695
  %v6873 = vpow.pop %v6872
  %v6874 = vmul.f32 %v6843, 1.442695
  %v6875 = vpow.pop %v6874
  %v6876 = vmul.f32 %v6844, 1.442695
  %v6877 = vpow.pop %v6876
  %v6878 = vmul.f32 %v6845, 1.442695
  %v6879 = vpow.pop %v6878
  %v6880 = vmul.f32 %v6846, 1.442695
  %v6881 = vpow.pop %v6880
  %v6882 = vmul.f32 %v6847, 1.442695
  %v6883 = vpow.pop %v6882
  %v6884 = vmul.f32 %v6848, 1.442695
  %v6885 = vpow.pop %v6884
  %v6886 = vmul.f32 %v6849, 1.442695
  %v6887 = vpow.pop %v6886
  %v6888 = vmul.f32 %v6850, 1.442695
  %v6889 = vpow.pop %v6888
  %v6890 = vmul.f32 %v6851, 1.442695
  %v6891 = vpow.pop %v6890
  %v6892 = vmul.f32 %v6852, 1.442695
  %v6893 = vpow.pop %v6892
  %v6894 = vmul.f32 %v6853, 1.442695
  %v6895 = vpow.pop %v6894
  %v6896 = vmul.f32 %v6854, 1.442695
  %v6897 = vpow.pop %v6896
  %v6898 = vmul.f32 %v6855, 1.442695
  %v6899 = vpow.pop %v6898
  %v6900 = vmul.f32 %v6856, 1.442695
  %v6901 = vpow.pop %v6900
  %v6902 = vmul.f32 %v6857, 1.442695
  %v6903 = vpow.pop %v6902
  %v6904 = vmul.f32 %v6858, 1.442695
  %v6905 = vpow.pop %v6904
  %v6906 = vmul.f32 %v6859, 1.442695
  %v6907 = vpow.pop %v6906
  %v6908 = vadd.f32 %v6861, 1.0
  %v6909 = vadd.f32 %v6863, 1.0
  %v6910 = vadd.f32 %v6865, 1.0
  %v6911 = vadd.f32 %v6867, 1.0
  %v6912 = vadd.f32 %v6869, 1.0
  %v6913 = vadd.f32 %v6871, 1.0
  %v6914 = vadd.f32 %v6873, 1.0
  %v6915 = vadd.f32 %v6875, 1.0
  %v6916 = vadd.f32 %v6877, 1.0
  %v6917 = vadd.f32 %v6879, 1.0
  %v6918 = vadd.f32 %v6881, 1.0
  %v6919 = vadd.f32 %v6883, 1.0
  %v6920 = vadd.f32 %v6885, 1.0
  %v6921 = vadd.f32 %v6887, 1.0
  %v6922 = vadd.f32 %v6889, 1.0
  %v6923 = vadd.f32 %v6891, 1.0
  %v6924 = vadd.f32 %v6893, 1.0
  %v6925 = vadd.f32 %v6895, 1.0
  %v6926 = vadd.f32 %v6897, 1.0
  %v6927 = vadd.f32 %v6899, 1.0
  %v6928 = vadd.f32 %v6901, 1.0
  %v6929 = vadd.f32 %v6903, 1.0
  %v6930 = vadd.f32 %v6905, 1.0
  %v6931 = vadd.f32 %v6907, 1.0
  %v6932 = vrcp.pop %v6908
  %v6933 = vmul.f32 %v6908, %v6932
  %v6934 = vsub.f32 1.0, %v6933
  %v6935 = vmul.f32 %v6932, %v6934
  %v6936 = vadd.f32 %v6932, %v6935
  %vm6937 = vweird.f32 %v6908
  %vm6938 = vweird.f32 %v6932
  %vm6939 = vmor %vm6937, %vm6938
  %v6940 = vsel %vm6939, %v6932, %v6936
  %v6941 = vand.u32 2147483647, %v6908
  %vm6942 = vcmp.eq.f32.partialorder %v6941, 8.507059e+37
  %v6943 = vand.u32 %v6908, 2147483648
  %v6944 = vor.u32 1.1754944e-38, %v6943
  %v6945 = vsel %vm6942, %v6944, %v6940
  %v6946 = vmul.f32 1.0, %v6945
  %v6947 = vrcp.pop %v6909
  %v6948 = vmul.f32 %v6909, %v6947
  %v6949 = vsub.f32 1.0, %v6948
  %v6950 = vmul.f32 %v6947, %v6949
  %v6951 = vadd.f32 %v6947, %v6950
  %vm6952 = vweird.f32 %v6909
  %vm6953 = vweird.f32 %v6947
  %vm6954 = vmor %vm6952, %vm6953
  %v6955 = vsel %vm6954, %v6947, %v6951
  %v6956 = vand.u32 2147483647, %v6909
  %vm6957 = vcmp.eq.f32.partialorder %v6956, 8.507059e+37
  %v6958 = vand.u32 %v6909, 2147483648
  %v6959 = vor.u32 1.1754944e-38, %v6958
  %v6960 = vsel %vm6957, %v6959, %v6955
  %v6961 = vmul.f32 1.0, %v6960
  %v6962 = vrcp.pop %v6910
  %v6963 = vmul.f32 %v6910, %v6962
  %v6964 = vsub.f32 1.0, %v6963
  %v6965 = vmul.f32 %v6962, %v6964
  %v6966 = vadd.f32 %v6962, %v6965
  %vm6967 = vweird.f32 %v6910
  %vm6968 = vweird.f32 %v6962
  %vm6969 = vmor %vm6967, %vm6968
  %v6970 = vsel %vm6969, %v6962, %v6966
  %v6971 = vand.u32 2147483647, %v6910
  %vm6972 = vcmp.eq.f32.partialorder %v6971, 8.507059e+37
  %v6973 = vand.u32 %v6910, 2147483648
  %v6974 = vor.u32 1.1754944e-38, %v6973
  %v6975 = vsel %vm6972, %v6974, %v6970
  %v6976 = vmul.f32 1.0, %v6975
  %v6977 = vrcp.pop %v6911
  %v6978 = vmul.f32 %v6911, %v6977
  %v6979 = vsub.f32 1.0, %v6978
  %v6980 = vmul.f32 %v6977, %v6979
  %v6981 = vadd.f32 %v6977, %v6980
  %vm6982 = vweird.f32 %v6911
  %vm6983 = vweird.f32 %v6977
  %vm6984 = vmor %vm6982, %vm6983
  %v6985 = vsel %vm6984, %v6977, %v6981
  %v6986 = vand.u32 2147483647, %v6911
  %vm6987 = vcmp.eq.f32.partialorder %v6986, 8.507059e+37
  %v6988 = vand.u32 %v6911, 2147483648
  %v6989 = vor.u32 1.1754944e-38, %v6988
  %v6990 = vsel %vm6987, %v6989, %v6985
  %v6991 = vmul.f32 1.0, %v6990
  %v6992 = vrcp.pop %v6912
  %v6993 = vmul.f32 %v6912, %v6992
  %v6994 = vsub.f32 1.0, %v6993
  %v6995 = vmul.f32 %v6992, %v6994
  %v6996 = vadd.f32 %v6992, %v6995
  %vm6997 = vweird.f32 %v6912
  %vm6998 = vweird.f32 %v6992
  %vm6999 = vmor %vm6997, %vm6998
  %v7000 = vsel %vm6999, %v6992, %v6996
  %v7001 = vand.u32 2147483647, %v6912
  %vm7002 = vcmp.eq.f32.partialorder %v7001, 8.507059e+37
  %v7003 = vand.u32 %v6912, 2147483648
  %v7004 = vor.u32 1.1754944e-38, %v7003
  %v7005 = vsel %vm7002, %v7004, %v7000
  %v7006 = vmul.f32 1.0, %v7005
  %v7007 = vrcp.pop %v6913
  %v7008 = vmul.f32 %v6913, %v7007
  %v7009 = vsub.f32 1.0, %v7008
  %v7010 = vmul.f32 %v7007, %v7009
  %v7011 = vadd.f32 %v7007, %v7010
  %vm7012 = vweird.f32 %v6913
  %vm7013 = vweird.f32 %v7007
  %vm7014 = vmor %vm7012, %vm7013
  %v7015 = vsel %vm7014, %v7007, %v7011
  %v7016 = vand.u32 2147483647, %v6913
  %vm7017 = vcmp.eq.f32.partialorder %v7016, 8.507059e+37
  %v7018 = vand.u32 %v6913, 2147483648
  %v7019 = vor.u32 1.1754944e-38, %v7018
  %v7020 = vsel %vm7017, %v7019, %v7015
  %v7021 = vmul.f32 1.0, %v7020
  %v7022 = vrcp.pop %v6914
  %v7023 = vmul.f32 %v6914, %v7022
  %v7024 = vsub.f32 1.0, %v7023
  %v7025 = vmul.f32 %v7022, %v7024
  %v7026 = vadd.f32 %v7022, %v7025
  %vm7027 = vweird.f32 %v6914
  %vm7028 = vweird.f32 %v7022
  %vm7029 = vmor %vm7027, %vm7028
  %v7030 = vsel %vm7029, %v7022, %v7026
  %v7031 = vand.u32 2147483647, %v6914
  %vm7032 = vcmp.eq.f32.partialorder %v7031, 8.507059e+37
  %v7033 = vand.u32 %v6914, 2147483648
  %v7034 = vor.u32 1.1754944e-38, %v7033
  %v7035 = vsel %vm7032, %v7034, %v7030
  %v7036 = vmul.f32 1.0, %v7035
  %v7037 = vrcp.pop %v6915
  %v7038 = vmul.f32 %v6915, %v7037
  %v7039 = vsub.f32 1.0, %v7038
  %v7040 = vmul.f32 %v7037, %v7039
  %v7041 = vadd.f32 %v7037, %v7040
  %vm7042 = vweird.f32 %v6915
  %vm7043 = vweird.f32 %v7037
  %vm7044 = vmor %vm7042, %vm7043
  %v7045 = vsel %vm7044, %v7037, %v7041
  %v7046 = vand.u32 2147483647, %v6915
  %vm7047 = vcmp.eq.f32.partialorder %v7046, 8.507059e+37
  %v7048 = vand.u32 %v6915, 2147483648
  %v7049 = vor.u32 1.1754944e-38, %v7048
  %v7050 = vsel %vm7047, %v7049, %v7045
  %v7051 = vmul.f32 1.0, %v7050
  %v7052 = vrcp.pop %v6916
  %v7053 = vmul.f32 %v6916, %v7052
  %v7054 = vsub.f32 1.0, %v7053
  %v7055 = vmul.f32 %v7052, %v7054
  %v7056 = vadd.f32 %v7052, %v7055
  %vm7057 = vweird.f32 %v6916
  %vm7058 = vweird.f32 %v7052
  %vm7059 = vmor %vm7057, %vm7058
  %v7060 = vsel %vm7059, %v7052, %v7056
  %v7061 = vand.u32 2147483647, %v6916
  %vm7062 = vcmp.eq.f32.partialorder %v7061, 8.507059e+37
  %v7063 = vand.u32 %v6916, 2147483648
  %v7064 = vor.u32 1.1754944e-38, %v7063
  %v7065 = vsel %vm7062, %v7064, %v7060
  %v7066 = vmul.f32 1.0, %v7065
  %v7067 = vrcp.pop %v6917
  %v7068 = vmul.f32 %v6917, %v7067
  %v7069 = vsub.f32 1.0, %v7068
  %v7070 = vmul.f32 %v7067, %v7069
  %v7071 = vadd.f32 %v7067, %v7070
  %vm7072 = vweird.f32 %v6917
  %vm7073 = vweird.f32 %v7067
  %vm7074 = vmor %vm7072, %vm7073
  %v7075 = vsel %vm7074, %v7067, %v7071
  %v7076 = vand.u32 2147483647, %v6917
  %vm7077 = vcmp.eq.f32.partialorder %v7076, 8.507059e+37
  %v7078 = vand.u32 %v6917, 2147483648
  %v7079 = vor.u32 1.1754944e-38, %v7078
  %v7080 = vsel %vm7077, %v7079, %v7075
  %v7081 = vmul.f32 1.0, %v7080
  %v7082 = vrcp.pop %v6918
  %v7083 = vmul.f32 %v6918, %v7082
  %v7084 = vsub.f32 1.0, %v7083
  %v7085 = vmul.f32 %v7082, %v7084
  %v7086 = vadd.f32 %v7082, %v7085
  %vm7087 = vweird.f32 %v6918
  %vm7088 = vweird.f32 %v7082
  %vm7089 = vmor %vm7087, %vm7088
  %v7090 = vsel %vm7089, %v7082, %v7086
  %v7091 = vand.u32 2147483647, %v6918
  %vm7092 = vcmp.eq.f32.partialorder %v7091, 8.507059e+37
  %v7093 = vand.u32 %v6918, 2147483648
  %v7094 = vor.u32 1.1754944e-38, %v7093
  %v7095 = vsel %vm7092, %v7094, %v7090
  %v7096 = vmul.f32 1.0, %v7095
  %v7097 = vrcp.pop %v6919
  %v7098 = vmul.f32 %v6919, %v7097
  %v7099 = vsub.f32 1.0, %v7098
  %v7100 = vmul.f32 %v7097, %v7099
  %v7101 = vadd.f32 %v7097, %v7100
  %vm7102 = vweird.f32 %v6919
  %vm7103 = vweird.f32 %v7097
  %vm7104 = vmor %vm7102, %vm7103
  %v7105 = vsel %vm7104, %v7097, %v7101
  %v7106 = vand.u32 2147483647, %v6919
  %vm7107 = vcmp.eq.f32.partialorder %v7106, 8.507059e+37
  %v7108 = vand.u32 %v6919, 2147483648
  %v7109 = vor.u32 1.1754944e-38, %v7108
  %v7110 = vsel %vm7107, %v7109, %v7105
  %v7111 = vmul.f32 1.0, %v7110
  %v7112 = vrcp.pop %v6920
  %v7113 = vmul.f32 %v6920, %v7112
  %v7114 = vsub.f32 1.0, %v7113
  %v7115 = vmul.f32 %v7112, %v7114
  %v7116 = vadd.f32 %v7112, %v7115
  %vm7117 = vweird.f32 %v6920
  %vm7118 = vweird.f32 %v7112
  %vm7119 = vmor %vm7117, %vm7118
  %v7120 = vsel %vm7119, %v7112, %v7116
  %v7121 = vand.u32 2147483647, %v6920
  %vm7122 = vcmp.eq.f32.partialorder %v7121, 8.507059e+37
  %v7123 = vand.u32 %v6920, 2147483648
  %v7124 = vor.u32 1.1754944e-38, %v7123
  %v7125 = vsel %vm7122, %v7124, %v7120
  %v7126 = vmul.f32 1.0, %v7125
  %v7127 = vrcp.pop %v6921
  %v7128 = vmul.f32 %v6921, %v7127
  %v7129 = vsub.f32 1.0, %v7128
  %v7130 = vmul.f32 %v7127, %v7129
  %v7131 = vadd.f32 %v7127, %v7130
  %vm7132 = vweird.f32 %v6921
  %vm7133 = vweird.f32 %v7127
  %vm7134 = vmor %vm7132, %vm7133
  %v7135 = vsel %vm7134, %v7127, %v7131
  %v7136 = vand.u32 2147483647, %v6921
  %vm7137 = vcmp.eq.f32.partialorder %v7136, 8.507059e+37
  %v7138 = vand.u32 %v6921, 2147483648
  %v7139 = vor.u32 1.1754944e-38, %v7138
  %v7140 = vsel %vm7137, %v7139, %v7135
  %v7141 = vmul.f32 1.0, %v7140
  %v7142 = vrcp.pop %v6922
  %v7143 = vmul.f32 %v6922, %v7142
  %v7144 = vsub.f32 1.0, %v7143
  %v7145 = vmul.f32 %v7142, %v7144
  %v7146 = vadd.f32 %v7142, %v7145
  %vm7147 = vweird.f32 %v6922
  %vm7148 = vweird.f32 %v7142
  %vm7149 = vmor %vm7147, %vm7148
  %v7150 = vsel %vm7149, %v7142, %v7146
  %v7151 = vand.u32 2147483647, %v6922
  %vm7152 = vcmp.eq.f32.partialorder %v7151, 8.507059e+37
  %v7153 = vand.u32 %v6922, 2147483648
  %v7154 = vor.u32 1.1754944e-38, %v7153
  %v7155 = vsel %vm7152, %v7154, %v7150
  %v7156 = vmul.f32 1.0, %v7155
  %v7157 = vrcp.pop %v6923
  %v7158 = vmul.f32 %v6923, %v7157
  %v7159 = vsub.f32 1.0, %v7158
  %v7160 = vmul.f32 %v7157, %v7159
  %v7161 = vadd.f32 %v7157, %v7160
  %vm7162 = vweird.f32 %v6923
  %vm7163 = vweird.f32 %v7157
  %vm7164 = vmor %vm7162, %vm7163
  %v7165 = vsel %vm7164, %v7157, %v7161
  %v7166 = vand.u32 2147483647, %v6923
  %vm7167 = vcmp.eq.f32.partialorder %v7166, 8.507059e+37
  %v7168 = vand.u32 %v6923, 2147483648
  %v7169 = vor.u32 1.1754944e-38, %v7168
  %v7170 = vsel %vm7167, %v7169, %v7165
  %v7171 = vmul.f32 1.0, %v7170
  %v7172 = vrcp.pop %v6924
  %v7173 = vmul.f32 %v6924, %v7172
  %v7174 = vsub.f32 1.0, %v7173
  %v7175 = vmul.f32 %v7172, %v7174
  %v7176 = vadd.f32 %v7172, %v7175
  %vm7177 = vweird.f32 %v6924
  %vm7178 = vweird.f32 %v7172
  %vm7179 = vmor %vm7177, %vm7178
  %v7180 = vsel %vm7179, %v7172, %v7176
  %v7181 = vand.u32 2147483647, %v6924
  %vm7182 = vcmp.eq.f32.partialorder %v7181, 8.507059e+37
  %v7183 = vand.u32 %v6924, 2147483648
  %v7184 = vor.u32 1.1754944e-38, %v7183
  %v7185 = vsel %vm7182, %v7184, %v7180
  %v7186 = vmul.f32 1.0, %v7185
  %v7187 = vrcp.pop %v6925
  %v7188 = vmul.f32 %v6925, %v7187
  %v7189 = vsub.f32 1.0, %v7188
  %v7190 = vmul.f32 %v7187, %v7189
  %v7191 = vadd.f32 %v7187, %v7190
  %vm7192 = vweird.f32 %v6925
  %vm7193 = vweird.f32 %v7187
  %vm7194 = vmor %vm7192, %vm7193
  %v7195 = vsel %vm7194, %v7187, %v7191
  %v7196 = vand.u32 2147483647, %v6925
  %vm7197 = vcmp.eq.f32.partialorder %v7196, 8.507059e+37
  %v7198 = vand.u32 %v6925, 2147483648
  %v7199 = vor.u32 1.1754944e-38, %v7198
  %v7200 = vsel %vm7197, %v7199, %v7195
  %v7201 = vmul.f32 1.0, %v7200
  %v7202 = vrcp.pop %v6926
  %v7203 = vmul.f32 %v6926, %v7202
  %v7204 = vsub.f32 1.0, %v7203
  %v7205 = vmul.f32 %v7202, %v7204
  %v7206 = vadd.f32 %v7202, %v7205
  %vm7207 = vweird.f32 %v6926
  %vm7208 = vweird.f32 %v7202
  %vm7209 = vmor %vm7207, %vm7208
  %v7210 = vsel %vm7209, %v7202, %v7206
  %v7211 = vand.u32 2147483647, %v6926
  %vm7212 = vcmp.eq.f32.partialorder %v7211, 8.507059e+37
  %v7213 = vand.u32 %v6926, 2147483648
  %v7214 = vor.u32 1.1754944e-38, %v7213
  %v7215 = vsel %vm7212, %v7214, %v7210
  %v7216 = vmul.f32 1.0, %v7215
  %v7217 = vrcp.pop %v6927
  %v7218 = vmul.f32 %v6927, %v7217
  %v7219 = vsub.f32 1.0, %v7218
  %v7220 = vmul.f32 %v7217, %v7219
  %v7221 = vadd.f32 %v7217, %v7220
  %vm7222 = vweird.f32 %v6927
  %vm7223 = vweird.f32 %v7217
  %vm7224 = vmor %vm7222, %vm7223
  %v7225 = vsel %vm7224, %v7217, %v7221
  %v7226 = vand.u32 2147483647, %v6927
  %vm7227 = vcmp.eq.f32.partialorder %v7226, 8.507059e+37
  %v7228 = vand.u32 %v6927, 2147483648
  %v7229 = vor.u32 1.1754944e-38, %v7228
  %v7230 = vsel %vm7227, %v7229, %v7225
  %v7231 = vmul.f32 1.0, %v7230
  %v7232 = vrcp.pop %v6928
  %v7233 = vmul.f32 %v6928, %v7232
  %v7234 = vsub.f32 1.0, %v7233
  %v7235 = vmul.f32 %v7232, %v7234
  %v7236 = vadd.f32 %v7232, %v7235
  %vm7237 = vweird.f32 %v6928
  %vm7238 = vweird.f32 %v7232
  %vm7239 = vmor %vm7237, %vm7238
  %v7240 = vsel %vm7239, %v7232, %v7236
  %v7241 = vand.u32 2147483647, %v6928
  %vm7242 = vcmp.eq.f32.partialorder %v7241, 8.507059e+37
  %v7243 = vand.u32 %v6928, 2147483648
  %v7244 = vor.u32 1.1754944e-38, %v7243
  %v7245 = vsel %vm7242, %v7244, %v7240
  %v7246 = vmul.f32 1.0, %v7245
  %v7247 = vrcp.pop %v6929
  %v7248 = vmul.f32 %v6929, %v7247
  %v7249 = vsub.f32 1.0, %v7248
  %v7250 = vmul.f32 %v7247, %v7249
  %v7251 = vadd.f32 %v7247, %v7250
  %vm7252 = vweird.f32 %v6929
  %vm7253 = vweird.f32 %v7247
  %vm7254 = vmor %vm7252, %vm7253
  %v7255 = vsel %vm7254, %v7247, %v7251
  %v7256 = vand.u32 2147483647, %v6929
  %vm7257 = vcmp.eq.f32.partialorder %v7256, 8.507059e+37
  %v7258 = vand.u32 %v6929, 2147483648
  %v7259 = vor.u32 1.1754944e-38, %v7258
  %v7260 = vsel %vm7257, %v7259, %v7255
  %v7261 = vmul.f32 1.0, %v7260
  %v7262 = vrcp.pop %v6930
  %v7263 = vmul.f32 %v6930, %v7262
  %v7264 = vsub.f32 1.0, %v7263
  %v7265 = vmul.f32 %v7262, %v7264
  %v7266 = vadd.f32 %v7262, %v7265
  %vm7267 = vweird.f32 %v6930
  %vm7268 = vweird.f32 %v7262
  %vm7269 = vmor %vm7267, %vm7268
  %v7270 = vsel %vm7269, %v7262, %v7266
  %v7271 = vand.u32 2147483647, %v6930
  %vm7272 = vcmp.eq.f32.partialorder %v7271, 8.507059e+37
  %v7273 = vand.u32 %v6930, 2147483648
  %v7274 = vor.u32 1.1754944e-38, %v7273
  %v7275 = vsel %vm7272, %v7274, %v7270
  %v7276 = vmul.f32 1.0, %v7275
  %v7277 = vrcp.pop %v6931
  %v7278 = vmul.f32 %v6931, %v7277
  %v7279 = vsub.f32 1.0, %v7278
  %v7280 = vmul.f32 %v7277, %v7279
  %v7281 = vadd.f32 %v7277, %v7280
  %vm7282 = vweird.f32 %v6931
  %vm7283 = vweird.f32 %v7277
  %vm7284 = vmor %vm7282, %vm7283
  %v7285 = vsel %vm7284, %v7277, %v7281
  %v7286 = vand.u32 2147483647, %v6931
  %vm7287 = vcmp.eq.f32.partialorder %v7286, 8.507059e+37
  %v7288 = vand.u32 %v6931, 2147483648
  %v7289 = vor.u32 1.1754944e-38, %v7288
  %v7290 = vsel %vm7287, %v7289, %v7285
  %v7291 = vmul.f32 1.0, %v7290
  %v7292 = vtanh.pop %v6807
  %v7293 = vtanh.pop %v6811
  %v7294 = vtanh.pop %v6815
  %v7295 = vtanh.pop %v6819
  %v7296 = vtanh.pop %v6823
  %v7297 = vtanh.pop %v6827
  %v7298 = vtanh.pop %v6831
  %v7299 = vtanh.pop %v6835
  %v7300 = vmul.f32 %v6961, %v6660
  %v7301 = vmul.f32 %v7006, %v6661
  %v7302 = vmul.f32 %v7051, %v6662
  %v7303 = vmul.f32 %v7096, %v6663
  %v7304 = vmul.f32 %v7141, %v6664
  %v7305 = vmul.f32 %v7186, %v6665
  %v7306 = vmul.f32 %v7231, %v6666
  %v7307 = vmul.f32 %v7276, %v6667
  %v7308 = vmul.f32 %v6946, %v7292
  %v7309 = vmul.f32 %v6991, %v7293
  %v7310 = vmul.f32 %v7036, %v7294
  %v7311 = vmul.f32 %v7081, %v7295
  %v7312 = vmul.f32 %v7126, %v7296
  %v7313 = vmul.f32 %v7171, %v7297
  %v7314 = vmul.f32 %v7216, %v7298
  %v7315 = vmul.f32 %v7261, %v7299
  %v7316 = vadd.f32 %v7300, %v7308
  %v7317 = vadd.f32 %v7301, %v7309
  %v7318 = vadd.f32 %v7302, %v7310
  %v7319 = vadd.f32 %v7303, %v7311
  %v7320 = vadd.f32 %v7304, %v7312
  %v7321 = vadd.f32 %v7305, %v7313
  %v7322 = vadd.f32 %v7306, %v7314
  %v7323 = vadd.f32 %v7307, %v7315
  %v7324 = vtanh.pop %v7316
  %v7325 = vtanh.pop %v7317
  %v7326 = vtanh.pop %v7318
  %v7327 = vtanh.pop %v7319
  %v7328 = vtanh.pop %v7320
  %v7329 = vtanh.pop %v7321
  %v7330 = vtanh.pop %v7322
  %v7331 = vtanh.pop %v7323
  %v7332 = vmul.f32 %v6976, %v7324
  %v7333 = vmul.f32 %v7021, %v7325
  %v7334 = vmul.f32 %v7066, %v7326
  %v7335 = vmul.f32 %v7111, %v7327
  %v7336 = vmul.f32 %v7156, %v7328
  %v7337 = vmul.f32 %v7201, %v7329
  %v7338 = vmul.f32 %v7246, %v7330
  %v7339 = vmul.f32 %v7291, %v7331
  %v7340 = vpack.c.bf16 %v7332, %v7332
  %v7341 = vpack.c.bf16 %v7333, %v7333
  %v7342 = vpack.c.bf16 %v7334, %v7334
  %v7343 = vpack.c.bf16 %v7335, %v7335
  %v7344 = vpack.c.bf16 %v7336, %v7336
  %v7345 = vpack.c.bf16 %v7337, %v7337
  %v7346 = vpack.c.bf16 %v7338, %v7338
  %v7347 = vpack.c.bf16 %v7339, %v7339
  %v7356 = vunpack.c.l.b16 %v3838
  %v7357 = vunpack.c.l.b16 %v3839
  %v7358 = vunpack.c.l.b16 %v3840
  %v7359 = vunpack.c.l.b16 %v3841
  %v7360 = vunpack.c.l.b16 %v3842
  %v7361 = vunpack.c.l.b16 %v3843
  %v7362 = vunpack.c.l.b16 %v3844
  %v7363 = vunpack.c.l.b16 %v3845
  %v7364 = vpack.c.b16 %v7357, %v7356
  %v7365 = vpack.c.b16 %v7359, %v7358
  %v7366 = vpack.c.b16 %v7361, %v7360
  %v7367 = vpack.c.b16 %v7363, %v7362
  %v7380 = vunpack.c.l.b16 %v7340
  %v7381 = vunpack.c.l.b16 %v7341
  %v7382 = vunpack.c.l.b16 %v7342
  %v7383 = vunpack.c.l.b16 %v7343
  %v7384 = vunpack.c.l.b16 %v7344
  %v7385 = vunpack.c.l.b16 %v7345
  %v7386 = vunpack.c.l.b16 %v7346
  %v7387 = vunpack.c.l.b16 %v7347
  %v7388 = vpack.c.b16 %v7381, %v7380
  %v7389 = vpack.c.b16 %v7383, %v7382
  %v7390 = vpack.c.b16 %v7385, %v7384
  %v7391 = vpack.c.b16 %v7387, %v7386
  %v7396 = vld [vmem:[%s14] sm:$0xf]
  %v7397 = vld [vmem:[%s14 + $0x4] sm:$0xf]
  %v7398 = vld [vmem:[%s14 + $0x8] sm:$0xf]
  %v7399 = vld [vmem:[%s14 + $0xc] sm:$0xf]
  %v7400 = vld [vmem:[%s14 + $0x10] sm:$0xf]
  %v7401 = vld [vmem:[%s14 + $0x14] sm:$0xf]
  %v7402 = vld [vmem:[%s14 + $0x18] sm:$0xf]
  %v7403 = vld [vmem:[%s14 + $0x1c] sm:$0xf]
  %v7404 = vld [vmem:[%s14 + $0x20] sm:$0xf]
  %v7405 = vld [vmem:[%s14 + $0x24] sm:$0xf]
  %v7406 = vld [vmem:[%s14 + $0x28] sm:$0xf]
  %v7407 = vld [vmem:[%s14 + $0x2c] sm:$0xf]
  %v7408 = vld [vmem:[%s14 + $0x30] sm:$0xf]
  %v7409 = vld [vmem:[%s14 + $0x34] sm:$0xf]
  %v7410 = vld [vmem:[%s14 + $0x38] sm:$0xf]
  %v7411 = vld [vmem:[%s14 + $0x3c] sm:$0xf]
  %v7412 = vld [vmem:[%s14 + $0x40] sm:$0xf]
  %v7413 = vld [vmem:[%s14 + $0x44] sm:$0xf]
  %v7414 = vld [vmem:[%s14 + $0x48] sm:$0xf]
  %v7415 = vld [vmem:[%s14 + $0x4c] sm:$0xf]
  %v7416 = vld [vmem:[%s14 + $0x50] sm:$0xf]
  %v7417 = vld [vmem:[%s14 + $0x54] sm:$0xf]
  %v7418 = vld [vmem:[%s14 + $0x58] sm:$0xf]
  %v7419 = vld [vmem:[%s14 + $0x5c] sm:$0xf]
  %v7420 = vld [vmem:[%s14 + $0x60] sm:$0xf]
  %v7421 = vld [vmem:[%s14 + $0x64] sm:$0xf]
  %v7422 = vld [vmem:[%s14 + $0x68] sm:$0xf]
  %v7423 = vld [vmem:[%s14 + $0x6c] sm:$0xf]
  %v7424 = vld [vmem:[%s14 + $0x70] sm:$0xf]
  %v7425 = vld [vmem:[%s14 + $0x74] sm:$0xf]
  %v7426 = vld [vmem:[%s14 + $0x78] sm:$0xf]
  %v7427 = vld [vmem:[%s14 + $0x7c] sm:$0xf]
  %v7428 = vld [vmem:[%s15] sm:$0x1]
  %v7430 = vperm.slane %v7428, 0
  %v7464 = vunpack.c.l.b16 %v7396
  %v7465 = vunpack.c.l.b16 %v7397
  %v7466 = vunpack.c.l.b16 %v7398
  %v7467 = vunpack.c.l.b16 %v7399
  %v7468 = vunpack.c.l.b16 %v7400
  %v7469 = vunpack.c.l.b16 %v7401
  %v7470 = vunpack.c.l.b16 %v7402
  %v7471 = vunpack.c.l.b16 %v7403
  %v7472 = vunpack.c.l.b16 %v7404
  %v7473 = vunpack.c.l.b16 %v7405
  %v7474 = vunpack.c.l.b16 %v7406
  %v7475 = vunpack.c.l.b16 %v7407
  %v7476 = vunpack.c.l.b16 %v7408
  %v7477 = vunpack.c.l.b16 %v7409
  %v7478 = vunpack.c.l.b16 %v7410
  %v7479 = vunpack.c.l.b16 %v7411
  %v7480 = vunpack.c.l.b16 %v7412
  %v7481 = vunpack.c.l.b16 %v7413
  %v7482 = vunpack.c.l.b16 %v7414
  %v7483 = vunpack.c.l.b16 %v7415
  %v7484 = vunpack.c.l.b16 %v7416
  %v7485 = vunpack.c.l.b16 %v7417
  %v7486 = vunpack.c.l.b16 %v7418
  %v7487 = vunpack.c.l.b16 %v7419
  %v7488 = vunpack.c.l.b16 %v7420
  %v7489 = vunpack.c.l.b16 %v7421
  %v7490 = vunpack.c.l.b16 %v7422
  %v7491 = vunpack.c.l.b16 %v7423
  %v7492 = vunpack.c.l.b16 %v7424
  %v7493 = vunpack.c.l.b16 %v7425
  %v7494 = vunpack.c.l.b16 %v7426
  %v7495 = vunpack.c.l.b16 %v7427
  %v7496 = vpack.c.b16 %v7465, %v7464
  %v7497 = vpack.c.b16 %v7467, %v7466
  %v7498 = vpack.c.b16 %v7469, %v7468
  %v7499 = vpack.c.b16 %v7471, %v7470
  %v7500 = vpack.c.b16 %v7473, %v7472
  %v7501 = vpack.c.b16 %v7475, %v7474
  %v7502 = vpack.c.b16 %v7477, %v7476
  %v7503 = vpack.c.b16 %v7479, %v7478
  %v7504 = vpack.c.b16 %v7481, %v7480
  %v7505 = vpack.c.b16 %v7483, %v7482
  %v7506 = vpack.c.b16 %v7485, %v7484
  %v7507 = vpack.c.b16 %v7487, %v7486
  %v7508 = vpack.c.b16 %v7489, %v7488
  %v7509 = vpack.c.b16 %v7491, %v7490
  %v7510 = vpack.c.b16 %v7493, %v7492
  %v7511 = vpack.c.b16 %v7495, %v7494
  %7528 = vmatpush.bf16.msra.mxu0 %v7503
  %7529 = vmatpush.bf16.msra.mxu0 %v7502
  %7530 = vmatpush.bf16.msra.mxu0 %v7501
  %7531 = vmatpush.bf16.msra.mxu0 %v7500
  %7532 = vmatpush.bf16.msra.mxu0 %v7499
  %7533 = vmatpush.bf16.msra.mxu0 %v7498
  %7534 = vmatpush.bf16.msra.mxu0 %v7497
  %7535 = vmatpush.bf16.msra.mxu0 %v7496
  %7536 = vmatmul.bf16.gmra.mxu0 %v7364
  %v7537 = vpop.f32.mrf.mxu0
  %v7538 = vadd.f32 %v7430, %v7537
  %v7539 = vpop.f32.mrf.mxu0
  %v7540 = vadd.f32 %v7430, %v7539
  %7541 = vmatmul.bf16.gmra.mxu0 %v7365
  %v7542 = vpop.f32.mrf.mxu0
  %v7543 = vadd.f32 %v7430, %v7542
  %v7544 = vpop.f32.mrf.mxu0
  %v7545 = vadd.f32 %v7430, %v7544
  %7546 = vmatmul.bf16.gmra.mxu0 %v7366
  %v7547 = vpop.f32.mrf.mxu0
  %v7548 = vadd.f32 %v7430, %v7547
  %v7549 = vpop.f32.mrf.mxu0
  %v7550 = vadd.f32 %v7430, %v7549
  %7551 = vmatmul.bf16.gmra.mxu0 %v7367
  %v7552 = vpop.f32.mrf.mxu0
  %v7553 = vadd.f32 %v7430, %v7552
  %v7554 = vpop.f32.mrf.mxu0
  %v7555 = vadd.f32 %v7430, %v7554
  %7556 = vdwg.mxu0
  %7557 = vmatpush.bf16.msra.mxu0 %v7511
  %7558 = vmatpush.bf16.msra.mxu0 %v7510
  %7559 = vmatpush.bf16.msra.mxu0 %v7509
  %7560 = vmatpush.bf16.msra.mxu0 %v7508
  %7561 = vmatpush.bf16.msra.mxu0 %v7507
  %7562 = vmatpush.bf16.msra.mxu0 %v7506
  %7563 = vmatpush.bf16.msra.mxu0 %v7505
  %7564 = vmatpush.bf16.msra.mxu0 %v7504
  %7565 = vmatmul.bf16.gmra.mxu0 %v7388
  %v7566 = vpop.f32.mrf.mxu0
  %v7567 = vadd.f32 %v7538, %v7566
  %v7568 = vpop.f32.mrf.mxu0
  %v7569 = vadd.f32 %v7540, %v7568
  %7570 = vmatmul.bf16.gmra.mxu0 %v7389
  %v7571 = vpop.f32.mrf.mxu0
  %v7572 = vadd.f32 %v7543, %v7571
  %v7573 = vpop.f32.mrf.mxu0
  %v7574 = vadd.f32 %v7545, %v7573
  %7575 = vmatmul.bf16.gmra.mxu0 %v7390
  %v7576 = vpop.f32.mrf.mxu0
  %v7577 = vadd.f32 %v7548, %v7576
  %v7578 = vpop.f32.mrf.mxu0
  %v7579 = vadd.f32 %v7550, %v7578
  %7580 = vmatmul.bf16.gmra.mxu0 %v7391
  %v7581 = vpop.f32.mrf.mxu0
  %v7582 = vadd.f32 %v7553, %v7581
  %v7583 = vpop.f32.mrf.mxu0
  %v7584 = vadd.f32 %v7555, %v7583
  %7585 = vdwg.mxu0
  %v7586 = vmax.f32 %v7567, 0.0
  %v7587 = vmax.f32 %v7569, 0.0
  %v7588 = vmax.f32 %v7572, 0.0
  %v7589 = vmax.f32 %v7574, 0.0
  %v7590 = vmax.f32 %v7577, 0.0
  %v7591 = vmax.f32 %v7579, 0.0
  %v7592 = vmax.f32 %v7582, 0.0
  %v7593 = vmax.f32 %v7584, 0.0
  %v7594 = vld [vmem:[%s23] sm:$0xff]
  %v7595 = vld [vmem:[%s23 + $0x8] sm:$0xff]
  %v7596 = vld [vmem:[%s23 + $0x10] sm:$0xff]
  %v7597 = vld [vmem:[%s23 + $0x18] sm:$0xff]
  %v7598 = vld [vmem:[%s23 + $0x20] sm:$0xff]
  %v7599 = vld [vmem:[%s23 + $0x28] sm:$0xff]
  %v7600 = vld [vmem:[%s23 + $0x30] sm:$0xff]
  %v7601 = vld [vmem:[%s23 + $0x38] sm:$0xff]
  %v7602 = vmul.f32 %v7586, %v7594
  %v7603 = vmul.f32 %v7587, %v7595
  %v7604 = vmul.f32 %v7588, %v7596
  %v7605 = vmul.f32 %v7589, %v7597
  %v7606 = vmul.f32 %v7590, %v7598
  %v7607 = vmul.f32 %v7591, %v7599
  %v7608 = vmul.f32 %v7592, %v7600
  %v7609 = vmul.f32 %v7593, %v7601
  %v7610 = vpack.c.bf16 %v7602, %v7602
  %v7611 = vpack.c.bf16 %v7603, %v7603
  %v7612 = vpack.c.bf16 %v7604, %v7604
  %v7613 = vpack.c.bf16 %v7605, %v7605
  %v7614 = vpack.c.bf16 %v7606, %v7606
  %v7615 = vpack.c.bf16 %v7607, %v7607
  %v7616 = vpack.c.bf16 %v7608, %v7608
  %v7617 = vpack.c.bf16 %v7609, %v7609
  %v7626 = vrot.slane %v7602, 1
  %v7627 = vrot.slane %v7603, 1
  %v7628 = vsel %vm102, %v7626, %v7627
  %v7629 = vrot.slane %v7604, 1
  %v7630 = vsel %vm102, %v7627, %v7629
  %v7631 = vrot.slane %v7605, 1
  %v7632 = vsel %vm102, %v7629, %v7631
  %v7633 = vrot.slane %v7606, 1
  %v7634 = vsel %vm102, %v7631, %v7633
  %v7635 = vrot.slane %v7607, 1
  %v7636 = vsel %vm102, %v7633, %v7635
  %v7637 = vrot.slane %v7608, 1
  %v7638 = vsel %vm102, %v7635, %v7637
  %v7639 = vrot.slane %v7609, 1
  %v7640 = vsel %vm102, %v7637, %v7639
  %v7650 = vsel %vm102, %v7639, %v7626
  %v7651 = vrot.slane %v7602, 2
  %v7652 = vrot.slane %v7603, 2
  %v7653 = vsel %vm128, %v7651, %v7652
  %v7654 = vrot.slane %v7604, 2
  %v7655 = vsel %vm128, %v7652, %v7654
  %v7656 = vrot.slane %v7605, 2
  %v7657 = vsel %vm128, %v7654, %v7656
  %v7658 = vrot.slane %v7606, 2
  %v7659 = vsel %vm128, %v7656, %v7658
  %v7660 = vrot.slane %v7607, 2
  %v7661 = vsel %vm128, %v7658, %v7660
  %v7662 = vrot.slane %v7608, 2
  %v7663 = vsel %vm128, %v7660, %v7662
  %v7664 = vrot.slane %v7609, 2
  %v7665 = vsel %vm128, %v7662, %v7664
  %v7675 = vsel %vm128, %v7664, %v7651
  %v7676 = vrot.slane %v7602, 3
  %v7677 = vrot.slane %v7603, 3
  %v7678 = vsel %vm154, %v7676, %v7677
  %v7679 = vrot.slane %v7604, 3
  %v7680 = vsel %vm154, %v7677, %v7679
  %v7681 = vrot.slane %v7605, 3
  %v7682 = vsel %vm154, %v7679, %v7681
  %v7683 = vrot.slane %v7606, 3
  %v7684 = vsel %vm154, %v7681, %v7683
  %v7685 = vrot.slane %v7607, 3
  %v7686 = vsel %vm154, %v7683, %v7685
  %v7687 = vrot.slane %v7608, 3
  %v7688 = vsel %vm154, %v7685, %v7687
  %v7689 = vrot.slane %v7609, 3
  %v7690 = vsel %vm154, %v7687, %v7689
  %v7700 = vsel %vm154, %v7689, %v7676
  %v7701 = vrot.slane %v7602, 4
  %v7702 = vrot.slane %v7603, 4
  %v7703 = vsel %vm180, %v7701, %v7702
  %v7704 = vrot.slane %v7604, 4
  %v7705 = vsel %vm180, %v7702, %v7704
  %v7706 = vrot.slane %v7605, 4
  %v7707 = vsel %vm180, %v7704, %v7706
  %v7708 = vrot.slane %v7606, 4
  %v7709 = vsel %vm180, %v7706, %v7708
  %v7710 = vrot.slane %v7607, 4
  %v7711 = vsel %vm180, %v7708, %v7710
  %v7712 = vrot.slane %v7608, 4
  %v7713 = vsel %vm180, %v7710, %v7712
  %v7714 = vrot.slane %v7609, 4
  %v7715 = vsel %vm180, %v7712, %v7714
  %v7725 = vsel %vm180, %v7714, %v7701
  %v7726 = vpack.c.bf16 %v7630, %v7628
  %v7727 = vpack.c.bf16 %v7634, %v7632
  %v7728 = vpack.c.bf16 %v7638, %v7636
  %v7729 = vpack.c.bf16 %v7650, %v7640
  %v7730 = vpack.c.bf16 %v7655, %v7653
  %v7731 = vpack.c.bf16 %v7659, %v7657
  %v7732 = vpack.c.bf16 %v7663, %v7661
  %v7733 = vpack.c.bf16 %v7675, %v7665
  %v7734 = vpack.c.bf16 %v7680, %v7678
  %v7735 = vpack.c.bf16 %v7684, %v7682
  %v7736 = vpack.c.bf16 %v7688, %v7686
  %v7737 = vpack.c.bf16 %v7700, %v7690
  %v7738 = vpack.c.bf16 %v7705, %v7703
  %v7739 = vpack.c.bf16 %v7709, %v7707
  %v7740 = vpack.c.bf16 %v7713, %v7711
  %v7741 = vpack.c.bf16 %v7725, %v7715
  %v7742 = vld [vmem:[%s16] sm:$0xf]
  %v7743 = vld [vmem:[%s16 + $0x4] sm:$0xf]
  %v7744 = vld [vmem:[%s16 + $0x8] sm:$0xf]
  %v7745 = vld [vmem:[%s16 + $0xc] sm:$0xf]
  %v7746 = vld [vmem:[%s18] sm:$0x1]
  %v7748 = vperm.slane %v7746, 0
  %v7754 = vunpack.c.l.b16 %v7742
  %v7755 = vunpack.c.l.b16 %v7743
  %v7756 = vunpack.c.l.b16 %v7744
  %v7757 = vunpack.c.l.b16 %v7745
  %v7758 = vpack.c.b16 %v7755, %v7754
  %v7759 = vpack.c.b16 %v7757, %v7756
  %v7763 = vsel %vm1887, %v7726, 0
  %v7766 = vsel %vm1887, %v7727, 0
  %v7769 = vsel %vm1887, %v7728, 0
  %v7772 = vsel %vm1887, %v7729, 0
  %v7775 = vsel %vm1887, %v7730, 0
  %v7778 = vsel %vm1887, %v7731, 0
  %v7781 = vsel %vm1887, %v7732, 0
  %v7784 = vsel %vm1887, %v7733, 0
  %v7787 = vsel %vm1887, %v7734, 0
  %v7790 = vsel %vm1887, %v7735, 0
  %v7793 = vsel %vm1887, %v7736, 0
  %v7796 = vsel %vm1887, %v7737, 0
  %v7799 = vsel %vm1887, %v7738, 0
  %v7802 = vsel %vm1887, %v7739, 0
  %v7805 = vsel %vm1887, %v7740, 0
  %v7808 = vsel %vm1887, %v7741, 0
  %7810 = vmatpush.bf16.msra.mxu0 0
  %7811 = vmatpush.bf16.msra.mxu0 0
  %7812 = vmatpush.bf16.msra.mxu0 0
  %7813 = vmatpush.bf16.msra.mxu0 0
  %7814 = vmatpush.bf16.msra.mxu0 0
  %7815 = vmatpush.bf16.msra.mxu0 0
  %7816 = vmatpush.bf16.msra.mxu0 %v7759
  %7817 = vmatpush.bf16.msra.mxu0 %v7758
  %7818 = vmatmul.bf16.gmra.mxu0 %v7763
  %v7819 = vpop.f32.mrf.mxu0
  %v7820 = vadd.f32 %v7748, %v7819
  %v7821 = vpop.f32.mrf.mxu0
  %v7822 = vadd.f32 %v7748, %v7821
  %7823 = vmatmul.bf16.gmra.mxu0 %v7766
  %v7824 = vpop.f32.mrf.mxu0
  %v7825 = vadd.f32 %v7748, %v7824
  %v7826 = vpop.f32.mrf.mxu0
  %v7827 = vadd.f32 %v7748, %v7826
  %7828 = vmatmul.bf16.gmra.mxu0 %v7769
  %v7829 = vpop.f32.mrf.mxu0
  %v7830 = vadd.f32 %v7748, %v7829
  %v7831 = vpop.f32.mrf.mxu0
  %v7832 = vadd.f32 %v7748, %v7831
  %7833 = vmatmul.bf16.gmra.mxu0 %v7772
  %v7834 = vpop.f32.mrf.mxu0
  %v7835 = vadd.f32 %v7748, %v7834
  %v7836 = vpop.f32.mrf.mxu0
  %v7837 = vadd.f32 %v7748, %v7836
  %7838 = vmatmul.bf16.gmra.mxu0 %v7775
  %v7839 = vpop.f32.mrf.mxu0
  %v7840 = vadd.f32 %v7748, %v7839
  %v7841 = vpop.f32.mrf.mxu0
  %v7842 = vadd.f32 %v7748, %v7841
  %7843 = vmatmul.bf16.gmra.mxu0 %v7778
  %v7844 = vpop.f32.mrf.mxu0
  %v7845 = vadd.f32 %v7748, %v7844
  %v7846 = vpop.f32.mrf.mxu0
  %v7847 = vadd.f32 %v7748, %v7846
  %7848 = vmatmul.bf16.gmra.mxu0 %v7781
  %v7849 = vpop.f32.mrf.mxu0
  %v7850 = vadd.f32 %v7748, %v7849
  %v7851 = vpop.f32.mrf.mxu0
  %v7852 = vadd.f32 %v7748, %v7851
  %7853 = vmatmul.bf16.gmra.mxu0 %v7784
  %v7854 = vpop.f32.mrf.mxu0
  %v7855 = vadd.f32 %v7748, %v7854
  %v7856 = vpop.f32.mrf.mxu0
  %v7857 = vadd.f32 %v7748, %v7856
  %7858 = vmatmul.bf16.gmra.mxu0 %v7787
  %v7859 = vpop.f32.mrf.mxu0
  %v7860 = vadd.f32 %v7748, %v7859
  %v7861 = vpop.f32.mrf.mxu0
  %v7862 = vadd.f32 %v7748, %v7861
  %7863 = vmatmul.bf16.gmra.mxu0 %v7790
  %v7864 = vpop.f32.mrf.mxu0
  %v7865 = vadd.f32 %v7748, %v7864
  %v7866 = vpop.f32.mrf.mxu0
  %v7867 = vadd.f32 %v7748, %v7866
  %7868 = vmatmul.bf16.gmra.mxu0 %v7793
  %v7869 = vpop.f32.mrf.mxu0
  %v7870 = vadd.f32 %v7748, %v7869
  %v7871 = vpop.f32.mrf.mxu0
  %v7872 = vadd.f32 %v7748, %v7871
  %7873 = vmatmul.bf16.gmra.mxu0 %v7796
  %v7874 = vpop.f32.mrf.mxu0
  %v7875 = vadd.f32 %v7748, %v7874
  %v7876 = vpop.f32.mrf.mxu0
  %v7877 = vadd.f32 %v7748, %v7876
  %7878 = vmatmul.bf16.gmra.mxu0 %v7799
  %v7879 = vpop.f32.mrf.mxu0
  %v7880 = vadd.f32 %v7748, %v7879
  %v7881 = vpop.f32.mrf.mxu0
  %v7882 = vadd.f32 %v7748, %v7881
  %7883 = vmatmul.bf16.gmra.mxu0 %v7802
  %v7884 = vpop.f32.mrf.mxu0
  %v7885 = vadd.f32 %v7748, %v7884
  %v7886 = vpop.f32.mrf.mxu0
  %v7887 = vadd.f32 %v7748, %v7886
  %7888 = vmatmul.bf16.gmra.mxu0 %v7805
  %v7889 = vpop.f32.mrf.mxu0
  %v7890 = vadd.f32 %v7748, %v7889
  %v7891 = vpop.f32.mrf.mxu0
  %v7892 = vadd.f32 %v7748, %v7891
  %7893 = vmatmul.bf16.gmra.mxu0 %v7808
  %v7894 = vpop.f32.mrf.mxu0
  %v7895 = vadd.f32 %v7748, %v7894
  %v7896 = vpop.f32.mrf.mxu0
  %v7897 = vadd.f32 %v7748, %v7896
  %7898 = vdwg.mxu0
  %v7899 = vld [vmem:[%s17] sm:$0xf]
  %v7900 = vld [vmem:[%s17 + $0x4] sm:$0xf]
  %v7901 = vld [vmem:[%s17 + $0x8] sm:$0xf]
  %v7902 = vld [vmem:[%s17 + $0xc] sm:$0xf]
  %v7907 = vunpack.c.l.b16 %v7899
  %v7908 = vunpack.c.l.b16 %v7900
  %v7909 = vunpack.c.l.b16 %v7901
  %v7910 = vunpack.c.l.b16 %v7902
  %v7911 = vpack.c.b16 %v7908, %v7907
  %v7912 = vpack.c.b16 %v7910, %v7909
  %7915 = vmatpush.bf16.msra.mxu0 0
  %7916 = vmatpush.bf16.msra.mxu0 0
  %7917 = vmatpush.bf16.msra.mxu0 0
  %7918 = vmatpush.bf16.msra.mxu0 0
  %7919 = vmatpush.bf16.msra.mxu0 0
  %7920 = vmatpush.bf16.msra.mxu0 0
  %7921 = vmatpush.bf16.msra.mxu0 %v7912
  %7922 = vmatpush.bf16.msra.mxu0 %v7911
  %7923 = vmatmul.bf16.gmra.mxu0 %v2254
  %v7924 = vpop.f32.mrf.mxu0
  %v7925 = vadd.f32 0.0, %v7924
  %v7926 = vpop.f32.mrf.mxu0
  %v7927 = vadd.f32 0.0, %v7926
  %7928 = vmatmul.bf16.gmra.mxu0 %v2254
  %v7929 = vpop.f32.mrf.mxu0
  %v7930 = vadd.f32 0.0, %v7929
  %v7931 = vpop.f32.mrf.mxu0
  %v7932 = vadd.f32 0.0, %v7931
  %7933 = vmatmul.bf16.gmra.mxu0 %v2254
  %v7934 = vpop.f32.mrf.mxu0
  %v7935 = vadd.f32 0.0, %v7934
  %v7936 = vpop.f32.mrf.mxu0
  %v7937 = vadd.f32 0.0, %v7936
  %7938 = vmatmul.bf16.gmra.mxu0 %v2254
  %v7939 = vpop.f32.mrf.mxu0
  %v7940 = vadd.f32 0.0, %v7939
  %v7941 = vpop.f32.mrf.mxu0
  %v7942 = vadd.f32 0.0, %v7941
  %7943 = vdwg.mxu0
  %v7944 = vadd.f32 %v7820, %v7925
  %v7945 = vadd.f32 %v7822, %v7927
  %v7946 = vadd.f32 %v7825, %v7930
  %v7947 = vadd.f32 %v7827, %v7932
  %v7948 = vadd.f32 %v7830, %v7935
  %v7949 = vadd.f32 %v7832, %v7937
  %v7950 = vadd.f32 %v7835, %v7940
  %v7951 = vadd.f32 %v7837, %v7942
  %v7952 = vxor.u32 %v7944, 2147483648
  %v7953 = vxor.u32 %v7945, 2147483648
  %v7954 = vxor.u32 %v7946, 2147483648
  %v7955 = vxor.u32 %v7947, 2147483648
  %v7956 = vxor.u32 %v7948, 2147483648
  %v7957 = vxor.u32 %v7949, 2147483648
  %v7958 = vxor.u32 %v7950, 2147483648
  %v7959 = vxor.u32 %v7951, 2147483648
  %v7960 = vmul.f32 %v7952, 1.442695
  %v7961 = vpow.pop %v7960
  %v7962 = vmul.f32 %v7953, 1.442695
  %v7963 = vpow.pop %v7962
  %v7964 = vmul.f32 %v7954, 1.442695
  %v7965 = vpow.pop %v7964
  %v7966 = vmul.f32 %v7955, 1.442695
  %v7967 = vpow.pop %v7966
  %v7968 = vmul.f32 %v7956, 1.442695
  %v7969 = vpow.pop %v7968
  %v7970 = vmul.f32 %v7957, 1.442695
  %v7971 = vpow.pop %v7970
  %v7972 = vmul.f32 %v7958, 1.442695
  %v7973 = vpow.pop %v7972
  %v7974 = vmul.f32 %v7959, 1.442695
  %v7975 = vpow.pop %v7974
  %v7976 = vadd.f32 %v7961, 1.0
  %v7977 = vadd.f32 %v7963, 1.0
  %v7978 = vadd.f32 %v7965, 1.0
  %v7979 = vadd.f32 %v7967, 1.0
  %v7980 = vadd.f32 %v7969, 1.0
  %v7981 = vadd.f32 %v7971, 1.0
  %v7982 = vadd.f32 %v7973, 1.0
  %v7983 = vadd.f32 %v7975, 1.0
  %v7984 = vrcp.pop %v7976
  %v7985 = vmul.f32 %v7976, %v7984
  %v7986 = vsub.f32 1.0, %v7985
  %v7987 = vmul.f32 %v7984, %v7986
  %v7988 = vadd.f32 %v7984, %v7987
  %vm7989 = vweird.f32 %v7976
  %vm7990 = vweird.f32 %v7984
  %vm7991 = vmor %vm7989, %vm7990
  %v7992 = vsel %vm7991, %v7984, %v7988
  %v7993 = vand.u32 2147483647, %v7976
  %vm7994 = vcmp.eq.f32.partialorder %v7993, 8.507059e+37
  %v7995 = vand.u32 %v7976, 2147483648
  %v7996 = vor.u32 1.1754944e-38, %v7995
  %v7997 = vsel %vm7994, %v7996, %v7992
  %v7998 = vmul.f32 1.0, %v7997
  %v7999 = vrcp.pop %v7977
  %v8000 = vmul.f32 %v7977, %v7999
  %v8001 = vsub.f32 1.0, %v8000
  %v8002 = vmul.f32 %v7999, %v8001
  %v8003 = vadd.f32 %v7999, %v8002
  %vm8004 = vweird.f32 %v7977
  %vm8005 = vweird.f32 %v7999
  %vm8006 = vmor %vm8004, %vm8005
  %v8007 = vsel %vm8006, %v7999, %v8003
  %v8008 = vand.u32 2147483647, %v7977
  %vm8009 = vcmp.eq.f32.partialorder %v8008, 8.507059e+37
  %v8010 = vand.u32 %v7977, 2147483648
  %v8011 = vor.u32 1.1754944e-38, %v8010
  %v8012 = vsel %vm8009, %v8011, %v8007
  %v8013 = vmul.f32 1.0, %v8012
  %v8014 = vrcp.pop %v7978
  %v8015 = vmul.f32 %v7978, %v8014
  %v8016 = vsub.f32 1.0, %v8015
  %v8017 = vmul.f32 %v8014, %v8016
  %v8018 = vadd.f32 %v8014, %v8017
  %vm8019 = vweird.f32 %v7978
  %vm8020 = vweird.f32 %v8014
  %vm8021 = vmor %vm8019, %vm8020
  %v8022 = vsel %vm8021, %v8014, %v8018
  %v8023 = vand.u32 2147483647, %v7978
  %vm8024 = vcmp.eq.f32.partialorder %v8023, 8.507059e+37
  %v8025 = vand.u32 %v7978, 2147483648
  %v8026 = vor.u32 1.1754944e-38, %v8025
  %v8027 = vsel %vm8024, %v8026, %v8022
  %v8028 = vmul.f32 1.0, %v8027
  %v8029 = vrcp.pop %v7979
  %v8030 = vmul.f32 %v7979, %v8029
  %v8031 = vsub.f32 1.0, %v8030
  %v8032 = vmul.f32 %v8029, %v8031
  %v8033 = vadd.f32 %v8029, %v8032
  %vm8034 = vweird.f32 %v7979
  %vm8035 = vweird.f32 %v8029
  %vm8036 = vmor %vm8034, %vm8035
  %v8037 = vsel %vm8036, %v8029, %v8033
  %v8038 = vand.u32 2147483647, %v7979
  %vm8039 = vcmp.eq.f32.partialorder %v8038, 8.507059e+37
  %v8040 = vand.u32 %v7979, 2147483648
  %v8041 = vor.u32 1.1754944e-38, %v8040
  %v8042 = vsel %vm8039, %v8041, %v8037
  %v8043 = vmul.f32 1.0, %v8042
  %v8044 = vrcp.pop %v7980
  %v8045 = vmul.f32 %v7980, %v8044
  %v8046 = vsub.f32 1.0, %v8045
  %v8047 = vmul.f32 %v8044, %v8046
  %v8048 = vadd.f32 %v8044, %v8047
  %vm8049 = vweird.f32 %v7980
  %vm8050 = vweird.f32 %v8044
  %vm8051 = vmor %vm8049, %vm8050
  %v8052 = vsel %vm8051, %v8044, %v8048
  %v8053 = vand.u32 2147483647, %v7980
  %vm8054 = vcmp.eq.f32.partialorder %v8053, 8.507059e+37
  %v8055 = vand.u32 %v7980, 2147483648
  %v8056 = vor.u32 1.1754944e-38, %v8055
  %v8057 = vsel %vm8054, %v8056, %v8052
  %v8058 = vmul.f32 1.0, %v8057
  %v8059 = vrcp.pop %v7981
  %v8060 = vmul.f32 %v7981, %v8059
  %v8061 = vsub.f32 1.0, %v8060
  %v8062 = vmul.f32 %v8059, %v8061
  %v8063 = vadd.f32 %v8059, %v8062
  %vm8064 = vweird.f32 %v7981
  %vm8065 = vweird.f32 %v8059
  %vm8066 = vmor %vm8064, %vm8065
  %v8067 = vsel %vm8066, %v8059, %v8063
  %v8068 = vand.u32 2147483647, %v7981
  %vm8069 = vcmp.eq.f32.partialorder %v8068, 8.507059e+37
  %v8070 = vand.u32 %v7981, 2147483648
  %v8071 = vor.u32 1.1754944e-38, %v8070
  %v8072 = vsel %vm8069, %v8071, %v8067
  %v8073 = vmul.f32 1.0, %v8072
  %v8074 = vrcp.pop %v7982
  %v8075 = vmul.f32 %v7982, %v8074
  %v8076 = vsub.f32 1.0, %v8075
  %v8077 = vmul.f32 %v8074, %v8076
  %v8078 = vadd.f32 %v8074, %v8077
  %vm8079 = vweird.f32 %v7982
  %vm8080 = vweird.f32 %v8074
  %vm8081 = vmor %vm8079, %vm8080
  %v8082 = vsel %vm8081, %v8074, %v8078
  %v8083 = vand.u32 2147483647, %v7982
  %vm8084 = vcmp.eq.f32.partialorder %v8083, 8.507059e+37
  %v8085 = vand.u32 %v7982, 2147483648
  %v8086 = vor.u32 1.1754944e-38, %v8085
  %v8087 = vsel %vm8084, %v8086, %v8082
  %v8088 = vmul.f32 1.0, %v8087
  %v8089 = vrcp.pop %v7983
  %v8090 = vmul.f32 %v7983, %v8089
  %v8091 = vsub.f32 1.0, %v8090
  %v8092 = vmul.f32 %v8089, %v8091
  %v8093 = vadd.f32 %v8089, %v8092
  %vm8094 = vweird.f32 %v7983
  %vm8095 = vweird.f32 %v8089
  %vm8096 = vmor %vm8094, %vm8095
  %v8097 = vsel %vm8096, %v8089, %v8093
  %v8098 = vand.u32 2147483647, %v7983
  %vm8099 = vcmp.eq.f32.partialorder %v8098, 8.507059e+37
  %v8100 = vand.u32 %v7983, 2147483648
  %v8101 = vor.u32 1.1754944e-38, %v8100
  %v8102 = vsel %vm8099, %v8101, %v8097
  %v8103 = vmul.f32 1.0, %v8102
  %v8104 = vtanh.pop %v7944
  %v8105 = vtanh.pop %v7945
  %v8106 = vtanh.pop %v7946
  %v8107 = vtanh.pop %v7947
  %v8108 = vtanh.pop %v7948
  %v8109 = vtanh.pop %v7949
  %v8110 = vtanh.pop %v7950
  %v8111 = vtanh.pop %v7951
  %v8112 = vmul.f32 %v7998, 0.0
  %v8113 = vmul.f32 %v8013, 0.0
  %v8114 = vmul.f32 %v8028, 0.0
  %v8115 = vmul.f32 %v8043, 0.0
  %v8116 = vmul.f32 %v8058, 0.0
  %v8117 = vmul.f32 %v8073, 0.0
  %v8118 = vmul.f32 %v8088, 0.0
  %v8119 = vmul.f32 %v8103, 0.0
  %8128 = vrot.lane.b32.xlu0 %v8104, 32
  %v8129 = vpop.permute.xlu0 %8128
  %8130 = vrot.lane.b32.xlu0 %v8105, 32
  %v8131 = vpop.permute.xlu0 %8130
  %8132 = vrot.lane.b32.xlu0 %v8106, 32
  %v8133 = vpop.permute.xlu0 %8132
  %8134 = vrot.lane.b32.xlu0 %v8107, 32
  %v8135 = vpop.permute.xlu0 %8134
  %8136 = vrot.lane.b32.xlu0 %v8108, 32
  %v8137 = vpop.permute.xlu0 %8136
  %8138 = vrot.lane.b32.xlu0 %v8109, 32
  %v8139 = vpop.permute.xlu0 %8138
  %8140 = vrot.lane.b32.xlu0 %v8110, 32
  %v8141 = vpop.permute.xlu0 %8140
  %8142 = vrot.lane.b32.xlu0 %v8111, 32
  %v8143 = vpop.permute.xlu0 %8142
  %v8152 = vmul.f32 %v7998, %v8129
  %v8153 = vmul.f32 %v8013, %v8131
  %v8154 = vmul.f32 %v8028, %v8133
  %v8155 = vmul.f32 %v8043, %v8135
  %v8156 = vmul.f32 %v8058, %v8137
  %v8157 = vmul.f32 %v8073, %v8139
  %v8158 = vmul.f32 %v8088, %v8141
  %v8159 = vmul.f32 %v8103, %v8143
  %8168 = vrot.lane.b32.xlu0 %v8152, 32
  %v8169 = vpop.permute.xlu0 %8168
  %8170 = vrot.lane.b32.xlu0 %v8153, 32
  %v8171 = vpop.permute.xlu0 %8170
  %8172 = vrot.lane.b32.xlu0 %v8154, 32
  %v8173 = vpop.permute.xlu0 %8172
  %8174 = vrot.lane.b32.xlu0 %v8155, 32
  %v8175 = vpop.permute.xlu0 %8174
  %8176 = vrot.lane.b32.xlu0 %v8156, 32
  %v8177 = vpop.permute.xlu0 %8176
  %8178 = vrot.lane.b32.xlu0 %v8157, 32
  %v8179 = vpop.permute.xlu0 %8178
  %8180 = vrot.lane.b32.xlu0 %v8158, 32
  %v8181 = vpop.permute.xlu0 %8180
  %8182 = vrot.lane.b32.xlu0 %v8159, 32
  %v8183 = vpop.permute.xlu0 %8182
  %v8192 = vadd.f32 %v8112, %v8169
  %v8193 = vadd.f32 %v8113, %v8171
  %v8194 = vadd.f32 %v8114, %v8173
  %v8195 = vadd.f32 %v8115, %v8175
  %v8196 = vadd.f32 %v8116, %v8177
  %v8197 = vadd.f32 %v8117, %v8179
  %v8198 = vadd.f32 %v8118, %v8181
  %v8199 = vadd.f32 %v8119, %v8183
  %v8200 = vtanh.pop %v8192
  %v8201 = vtanh.pop %v8193
  %v8202 = vtanh.pop %v8194
  %v8203 = vtanh.pop %v8195
  %v8204 = vtanh.pop %v8196
  %v8205 = vtanh.pop %v8197
  %v8206 = vtanh.pop %v8198
  %v8207 = vtanh.pop %v8199
  %8216 = vrot.lane.b32.xlu0 %v8200, 32
  %v8217 = vpop.permute.xlu0 %8216
  %8218 = vrot.lane.b32.xlu0 %v8201, 32
  %v8219 = vpop.permute.xlu0 %8218
  %8220 = vrot.lane.b32.xlu0 %v8202, 32
  %v8221 = vpop.permute.xlu0 %8220
  %8222 = vrot.lane.b32.xlu0 %v8203, 32
  %v8223 = vpop.permute.xlu0 %8222
  %8224 = vrot.lane.b32.xlu0 %v8204, 32
  %v8225 = vpop.permute.xlu0 %8224
  %8226 = vrot.lane.b32.xlu0 %v8205, 32
  %v8227 = vpop.permute.xlu0 %8226
  %8228 = vrot.lane.b32.xlu0 %v8206, 32
  %v8229 = vpop.permute.xlu0 %8228
  %8230 = vrot.lane.b32.xlu0 %v8207, 32
  %v8231 = vpop.permute.xlu0 %8230
  %v8240 = vmul.f32 %v7998, %v8217
  %v8241 = vmul.f32 %v8013, %v8219
  %v8242 = vmul.f32 %v8028, %v8221
  %v8243 = vmul.f32 %v8043, %v8223
  %v8244 = vmul.f32 %v8058, %v8225
  %v8245 = vmul.f32 %v8073, %v8227
  %v8246 = vmul.f32 %v8088, %v8229
  %v8247 = vmul.f32 %v8103, %v8231
  %v8248 = vpack.c.bf16 %v8241, %v8240
  %v8249 = vpack.c.bf16 %v8243, %v8242
  %v8250 = vpack.c.bf16 %v8245, %v8244
  %v8251 = vpack.c.bf16 %v8247, %v8246
  %8256 = vrot.lane.b32.xlu0 %v8248, 64
  %v8257 = vpop.permute.xlu0 %8256
  %8258 = vrot.lane.b32.xlu0 %v8249, 64
  %v8259 = vpop.permute.xlu0 %8258
  %8260 = vrot.lane.b32.xlu0 %v8250, 64
  %v8261 = vpop.permute.xlu0 %8260
  %8262 = vrot.lane.b32.xlu0 %v8251, 64
  %v8263 = vpop.permute.xlu0 %8262
  %v8265 = vsel %vm1887, %v8257, 0
  %v8268 = vsel %vm1887, %v8259, 0
  %v8271 = vsel %vm1887, %v8261, 0
  %v8274 = vsel %vm1887, %v8263, 0
  %8276 = vmatpush.bf16.msra.mxu0 0
  %8277 = vmatpush.bf16.msra.mxu0 0
  %8278 = vmatpush.bf16.msra.mxu0 0
  %8279 = vmatpush.bf16.msra.mxu0 0
  %8280 = vmatpush.bf16.msra.mxu0 0
  %8281 = vmatpush.bf16.msra.mxu0 0
  %8282 = vmatpush.bf16.msra.mxu0 %v7912
  %8283 = vmatpush.bf16.msra.mxu0 %v7911
  %8284 = vmatmul.bf16.gmra.mxu0 %v8265
  %v8285 = vpop.f32.mrf.mxu0
  %v8286 = vadd.f32 0.0, %v8285
  %v8287 = vpop.f32.mrf.mxu0
  %v8288 = vadd.f32 0.0, %v8287
  %8289 = vmatmul.bf16.gmra.mxu0 %v8268
  %v8290 = vpop.f32.mrf.mxu0
  %v8291 = vadd.f32 0.0, %v8290
  %v8292 = vpop.f32.mrf.mxu0
  %v8293 = vadd.f32 0.0, %v8292
  %8294 = vmatmul.bf16.gmra.mxu0 %v8271
  %v8295 = vpop.f32.mrf.mxu0
  %v8296 = vadd.f32 0.0, %v8295
  %v8297 = vpop.f32.mrf.mxu0
  %v8298 = vadd.f32 0.0, %v8297
  %8299 = vmatmul.bf16.gmra.mxu0 %v8274
  %v8300 = vpop.f32.mrf.mxu0
  %v8301 = vadd.f32 0.0, %v8300
  %v8302 = vpop.f32.mrf.mxu0
  %v8303 = vadd.f32 0.0, %v8302
  %8304 = vdwg.mxu0
  %v8305 = vadd.f32 %v7840, %v8286
  %v8306 = vadd.f32 %v7842, %v8288
  %v8307 = vadd.f32 %v7845, %v8291
  %v8308 = vadd.f32 %v7847, %v8293
  %v8309 = vadd.f32 %v7850, %v8296
  %v8310 = vadd.f32 %v7852, %v8298
  %v8311 = vadd.f32 %v7855, %v8301
  %v8312 = vadd.f32 %v7857, %v8303
  %v8313 = vxor.u32 %v8305, 2147483648
  %v8314 = vxor.u32 %v8306, 2147483648
  %v8315 = vxor.u32 %v8307, 2147483648
  %v8316 = vxor.u32 %v8308, 2147483648
  %v8317 = vxor.u32 %v8309, 2147483648
  %v8318 = vxor.u32 %v8310, 2147483648
  %v8319 = vxor.u32 %v8311, 2147483648
  %v8320 = vxor.u32 %v8312, 2147483648
  %v8321 = vmul.f32 %v8313, 1.442695
  %v8322 = vpow.pop %v8321
  %v8323 = vmul.f32 %v8314, 1.442695
  %v8324 = vpow.pop %v8323
  %v8325 = vmul.f32 %v8315, 1.442695
  %v8326 = vpow.pop %v8325
  %v8327 = vmul.f32 %v8316, 1.442695
  %v8328 = vpow.pop %v8327
  %v8329 = vmul.f32 %v8317, 1.442695
  %v8330 = vpow.pop %v8329
  %v8331 = vmul.f32 %v8318, 1.442695
  %v8332 = vpow.pop %v8331
  %v8333 = vmul.f32 %v8319, 1.442695
  %v8334 = vpow.pop %v8333
  %v8335 = vmul.f32 %v8320, 1.442695
  %v8336 = vpow.pop %v8335
  %v8337 = vadd.f32 %v8322, 1.0
  %v8338 = vadd.f32 %v8324, 1.0
  %v8339 = vadd.f32 %v8326, 1.0
  %v8340 = vadd.f32 %v8328, 1.0
  %v8341 = vadd.f32 %v8330, 1.0
  %v8342 = vadd.f32 %v8332, 1.0
  %v8343 = vadd.f32 %v8334, 1.0
  %v8344 = vadd.f32 %v8336, 1.0
  %v8345 = vrcp.pop %v8337
  %v8346 = vmul.f32 %v8337, %v8345
  %v8347 = vsub.f32 1.0, %v8346
  %v8348 = vmul.f32 %v8345, %v8347
  %v8349 = vadd.f32 %v8345, %v8348
  %vm8350 = vweird.f32 %v8337
  %vm8351 = vweird.f32 %v8345
  %vm8352 = vmor %vm8350, %vm8351
  %v8353 = vsel %vm8352, %v8345, %v8349
  %v8354 = vand.u32 2147483647, %v8337
  %vm8355 = vcmp.eq.f32.partialorder %v8354, 8.507059e+37
  %v8356 = vand.u32 %v8337, 2147483648
  %v8357 = vor.u32 1.1754944e-38, %v8356
  %v8358 = vsel %vm8355, %v8357, %v8353
  %v8359 = vmul.f32 1.0, %v8358
  %v8360 = vrcp.pop %v8338
  %v8361 = vmul.f32 %v8338, %v8360
  %v8362 = vsub.f32 1.0, %v8361
  %v8363 = vmul.f32 %v8360, %v8362
  %v8364 = vadd.f32 %v8360, %v8363
  %vm8365 = vweird.f32 %v8338
  %vm8366 = vweird.f32 %v8360
  %vm8367 = vmor %vm8365, %vm8366
  %v8368 = vsel %vm8367, %v8360, %v8364
  %v8369 = vand.u32 2147483647, %v8338
  %vm8370 = vcmp.eq.f32.partialorder %v8369, 8.507059e+37
  %v8371 = vand.u32 %v8338, 2147483648
  %v8372 = vor.u32 1.1754944e-38, %v8371
  %v8373 = vsel %vm8370, %v8372, %v8368
  %v8374 = vmul.f32 1.0, %v8373
  %v8375 = vrcp.pop %v8339
  %v8376 = vmul.f32 %v8339, %v8375
  %v8377 = vsub.f32 1.0, %v8376
  %v8378 = vmul.f32 %v8375, %v8377
  %v8379 = vadd.f32 %v8375, %v8378
  %vm8380 = vweird.f32 %v8339
  %vm8381 = vweird.f32 %v8375
  %vm8382 = vmor %vm8380, %vm8381
  %v8383 = vsel %vm8382, %v8375, %v8379
  %v8384 = vand.u32 2147483647, %v8339
  %vm8385 = vcmp.eq.f32.partialorder %v8384, 8.507059e+37
  %v8386 = vand.u32 %v8339, 2147483648
  %v8387 = vor.u32 1.1754944e-38, %v8386
  %v8388 = vsel %vm8385, %v8387, %v8383
  %v8389 = vmul.f32 1.0, %v8388
  %v8390 = vrcp.pop %v8340
  %v8391 = vmul.f32 %v8340, %v8390
  %v8392 = vsub.f32 1.0, %v8391
  %v8393 = vmul.f32 %v8390, %v8392
  %v8394 = vadd.f32 %v8390, %v8393
  %vm8395 = vweird.f32 %v8340
  %vm8396 = vweird.f32 %v8390
  %vm8397 = vmor %vm8395, %vm8396
  %v8398 = vsel %vm8397, %v8390, %v8394
  %v8399 = vand.u32 2147483647, %v8340
  %vm8400 = vcmp.eq.f32.partialorder %v8399, 8.507059e+37
  %v8401 = vand.u32 %v8340, 2147483648
  %v8402 = vor.u32 1.1754944e-38, %v8401
  %v8403 = vsel %vm8400, %v8402, %v8398
  %v8404 = vmul.f32 1.0, %v8403
  %v8405 = vrcp.pop %v8341
  %v8406 = vmul.f32 %v8341, %v8405
  %v8407 = vsub.f32 1.0, %v8406
  %v8408 = vmul.f32 %v8405, %v8407
  %v8409 = vadd.f32 %v8405, %v8408
  %vm8410 = vweird.f32 %v8341
  %vm8411 = vweird.f32 %v8405
  %vm8412 = vmor %vm8410, %vm8411
  %v8413 = vsel %vm8412, %v8405, %v8409
  %v8414 = vand.u32 2147483647, %v8341
  %vm8415 = vcmp.eq.f32.partialorder %v8414, 8.507059e+37
  %v8416 = vand.u32 %v8341, 2147483648
  %v8417 = vor.u32 1.1754944e-38, %v8416
  %v8418 = vsel %vm8415, %v8417, %v8413
  %v8419 = vmul.f32 1.0, %v8418
  %v8420 = vrcp.pop %v8342
  %v8421 = vmul.f32 %v8342, %v8420
  %v8422 = vsub.f32 1.0, %v8421
  %v8423 = vmul.f32 %v8420, %v8422
  %v8424 = vadd.f32 %v8420, %v8423
  %vm8425 = vweird.f32 %v8342
  %vm8426 = vweird.f32 %v8420
  %vm8427 = vmor %vm8425, %vm8426
  %v8428 = vsel %vm8427, %v8420, %v8424
  %v8429 = vand.u32 2147483647, %v8342
  %vm8430 = vcmp.eq.f32.partialorder %v8429, 8.507059e+37
  %v8431 = vand.u32 %v8342, 2147483648
  %v8432 = vor.u32 1.1754944e-38, %v8431
  %v8433 = vsel %vm8430, %v8432, %v8428
  %v8434 = vmul.f32 1.0, %v8433
  %v8435 = vrcp.pop %v8343
  %v8436 = vmul.f32 %v8343, %v8435
  %v8437 = vsub.f32 1.0, %v8436
  %v8438 = vmul.f32 %v8435, %v8437
  %v8439 = vadd.f32 %v8435, %v8438
  %vm8440 = vweird.f32 %v8343
  %vm8441 = vweird.f32 %v8435
  %vm8442 = vmor %vm8440, %vm8441
  %v8443 = vsel %vm8442, %v8435, %v8439
  %v8444 = vand.u32 2147483647, %v8343
  %vm8445 = vcmp.eq.f32.partialorder %v8444, 8.507059e+37
  %v8446 = vand.u32 %v8343, 2147483648
  %v8447 = vor.u32 1.1754944e-38, %v8446
  %v8448 = vsel %vm8445, %v8447, %v8443
  %v8449 = vmul.f32 1.0, %v8448
  %v8450 = vrcp.pop %v8344
  %v8451 = vmul.f32 %v8344, %v8450
  %v8452 = vsub.f32 1.0, %v8451
  %v8453 = vmul.f32 %v8450, %v8452
  %v8454 = vadd.f32 %v8450, %v8453
  %vm8455 = vweird.f32 %v8344
  %vm8456 = vweird.f32 %v8450
  %vm8457 = vmor %vm8455, %vm8456
  %v8458 = vsel %vm8457, %v8450, %v8454
  %v8459 = vand.u32 2147483647, %v8344
  %vm8460 = vcmp.eq.f32.partialorder %v8459, 8.507059e+37
  %v8461 = vand.u32 %v8344, 2147483648
  %v8462 = vor.u32 1.1754944e-38, %v8461
  %v8463 = vsel %vm8460, %v8462, %v8458
  %v8464 = vmul.f32 1.0, %v8463
  %v8465 = vtanh.pop %v8305
  %v8466 = vtanh.pop %v8306
  %v8467 = vtanh.pop %v8307
  %v8468 = vtanh.pop %v8308
  %v8469 = vtanh.pop %v8309
  %v8470 = vtanh.pop %v8310
  %v8471 = vtanh.pop %v8311
  %v8472 = vtanh.pop %v8312
  %v8473 = vmul.f32 %v8359, %v8192
  %v8474 = vmul.f32 %v8374, %v8193
  %v8475 = vmul.f32 %v8389, %v8194
  %v8476 = vmul.f32 %v8404, %v8195
  %v8477 = vmul.f32 %v8419, %v8196
  %v8478 = vmul.f32 %v8434, %v8197
  %v8479 = vmul.f32 %v8449, %v8198
  %v8480 = vmul.f32 %v8464, %v8199
  %8489 = vrot.lane.b32.xlu0 %v8465, 32
  %v8490 = vpop.permute.xlu0 %8489
  %8491 = vrot.lane.b32.xlu0 %v8466, 32
  %v8492 = vpop.permute.xlu0 %8491
  %8493 = vrot.lane.b32.xlu0 %v8467, 32
  %v8494 = vpop.permute.xlu0 %8493
  %8495 = vrot.lane.b32.xlu0 %v8468, 32
  %v8496 = vpop.permute.xlu0 %8495
  %8497 = vrot.lane.b32.xlu0 %v8469, 32
  %v8498 = vpop.permute.xlu0 %8497
  %8499 = vrot.lane.b32.xlu0 %v8470, 32
  %v8500 = vpop.permute.xlu0 %8499
  %8501 = vrot.lane.b32.xlu0 %v8471, 32
  %v8502 = vpop.permute.xlu0 %8501
  %8503 = vrot.lane.b32.xlu0 %v8472, 32
  %v8504 = vpop.permute.xlu0 %8503
  %v8513 = vmul.f32 %v8359, %v8490
  %v8514 = vmul.f32 %v8374, %v8492
  %v8515 = vmul.f32 %v8389, %v8494
  %v8516 = vmul.f32 %v8404, %v8496
  %v8517 = vmul.f32 %v8419, %v8498
  %v8518 = vmul.f32 %v8434, %v8500
  %v8519 = vmul.f32 %v8449, %v8502
  %v8520 = vmul.f32 %v8464, %v8504
  %8529 = vrot.lane.b32.xlu0 %v8513, 32
  %v8530 = vpop.permute.xlu0 %8529
  %8531 = vrot.lane.b32.xlu0 %v8514, 32
  %v8532 = vpop.permute.xlu0 %8531
  %8533 = vrot.lane.b32.xlu0 %v8515, 32
  %v8534 = vpop.permute.xlu0 %8533
  %8535 = vrot.lane.b32.xlu0 %v8516, 32
  %v8536 = vpop.permute.xlu0 %8535
  %8537 = vrot.lane.b32.xlu0 %v8517, 32
  %v8538 = vpop.permute.xlu0 %8537
  %8539 = vrot.lane.b32.xlu0 %v8518, 32
  %v8540 = vpop.permute.xlu0 %8539
  %8541 = vrot.lane.b32.xlu0 %v8519, 32
  %v8542 = vpop.permute.xlu0 %8541
  %8543 = vrot.lane.b32.xlu0 %v8520, 32
  %v8544 = vpop.permute.xlu0 %8543
  %v8553 = vadd.f32 %v8473, %v8530
  %v8554 = vadd.f32 %v8474, %v8532
  %v8555 = vadd.f32 %v8475, %v8534
  %v8556 = vadd.f32 %v8476, %v8536
  %v8557 = vadd.f32 %v8477, %v8538
  %v8558 = vadd.f32 %v8478, %v8540
  %v8559 = vadd.f32 %v8479, %v8542
  %v8560 = vadd.f32 %v8480, %v8544
  %v8561 = vtanh.pop %v8553
  %v8562 = vtanh.pop %v8554
  %v8563 = vtanh.pop %v8555
  %v8564 = vtanh.pop %v8556
  %v8565 = vtanh.pop %v8557
  %v8566 = vtanh.pop %v8558
  %v8567 = vtanh.pop %v8559
  %v8568 = vtanh.pop %v8560
  %8577 = vrot.lane.b32.xlu0 %v8561, 32
  %v8578 = vpop.permute.xlu0 %8577
  %8579 = vrot.lane.b32.xlu0 %v8562, 32
  %v8580 = vpop.permute.xlu0 %8579
  %8581 = vrot.lane.b32.xlu0 %v8563, 32
  %v8582 = vpop.permute.xlu0 %8581
  %8583 = vrot.lane.b32.xlu0 %v8564, 32
  %v8584 = vpop.permute.xlu0 %8583
  %8585 = vrot.lane.b32.xlu0 %v8565, 32
  %v8586 = vpop.permute.xlu0 %8585
  %8587 = vrot.lane.b32.xlu0 %v8566, 32
  %v8588 = vpop.permute.xlu0 %8587
  %8589 = vrot.lane.b32.xlu0 %v8567, 32
  %v8590 = vpop.permute.xlu0 %8589
  %8591 = vrot.lane.b32.xlu0 %v8568, 32
  %v8592 = vpop.permute.xlu0 %8591
  %v8601 = vmul.f32 %v8359, %v8578
  %v8602 = vmul.f32 %v8374, %v8580
  %v8603 = vmul.f32 %v8389, %v8582
  %v8604 = vmul.f32 %v8404, %v8584
  %v8605 = vmul.f32 %v8419, %v8586
  %v8606 = vmul.f32 %v8434, %v8588
  %v8607 = vmul.f32 %v8449, %v8590
  %v8608 = vmul.f32 %v8464, %v8592
  %v8609 = vpack.c.bf16 %v8602, %v8601
  %v8610 = vpack.c.bf16 %v8604, %v8603
  %v8611 = vpack.c.bf16 %v8606, %v8605
  %v8612 = vpack.c.bf16 %v8608, %v8607
  %8617 = vrot.lane.b32.xlu0 %v8609, 64
  %v8618 = vpop.permute.xlu0 %8617
  %8619 = vrot.lane.b32.xlu0 %v8610, 64
  %v8620 = vpop.permute.xlu0 %8619
  %8621 = vrot.lane.b32.xlu0 %v8611, 64
  %v8622 = vpop.permute.xlu0 %8621
  %8623 = vrot.lane.b32.xlu0 %v8612, 64
  %v8624 = vpop.permute.xlu0 %8623
  %v8626 = vsel %vm1887, %v8618, 0
  %v8629 = vsel %vm1887, %v8620, 0
  %v8632 = vsel %vm1887, %v8622, 0
  %v8635 = vsel %vm1887, %v8624, 0
  %8637 = vmatpush.bf16.msra.mxu0 0
  %8638 = vmatpush.bf16.msra.mxu0 0
  %8639 = vmatpush.bf16.msra.mxu0 0
  %8640 = vmatpush.bf16.msra.mxu0 0
  %8641 = vmatpush.bf16.msra.mxu0 0
  %8642 = vmatpush.bf16.msra.mxu0 0
  %8643 = vmatpush.bf16.msra.mxu0 %v7912
  %8644 = vmatpush.bf16.msra.mxu0 %v7911
  %8645 = vmatmul.bf16.gmra.mxu0 %v8626
  %v8646 = vpop.f32.mrf.mxu0
  %v8647 = vadd.f32 0.0, %v8646
  %v8648 = vpop.f32.mrf.mxu0
  %v8649 = vadd.f32 0.0, %v8648
  %8650 = vmatmul.bf16.gmra.mxu0 %v8629
  %v8651 = vpop.f32.mrf.mxu0
  %v8652 = vadd.f32 0.0, %v8651
  %v8653 = vpop.f32.mrf.mxu0
  %v8654 = vadd.f32 0.0, %v8653
  %8655 = vmatmul.bf16.gmra.mxu0 %v8632
  %v8656 = vpop.f32.mrf.mxu0
  %v8657 = vadd.f32 0.0, %v8656
  %v8658 = vpop.f32.mrf.mxu0
  %v8659 = vadd.f32 0.0, %v8658
  %8660 = vmatmul.bf16.gmra.mxu0 %v8635
  %v8661 = vpop.f32.mrf.mxu0
  %v8662 = vadd.f32 0.0, %v8661
  %v8663 = vpop.f32.mrf.mxu0
  %v8664 = vadd.f32 0.0, %v8663
  %8665 = vdwg.mxu0
  %v8666 = vadd.f32 %v7860, %v8647
  %v8667 = vadd.f32 %v7862, %v8649
  %v8668 = vadd.f32 %v7865, %v8652
  %v8669 = vadd.f32 %v7867, %v8654
  %v8670 = vadd.f32 %v7870, %v8657
  %v8671 = vadd.f32 %v7872, %v8659
  %v8672 = vadd.f32 %v7875, %v8662
  %v8673 = vadd.f32 %v7877, %v8664
  %v8674 = vxor.u32 %v8666, 2147483648
  %v8675 = vxor.u32 %v8667, 2147483648
  %v8676 = vxor.u32 %v8668, 2147483648
  %v8677 = vxor.u32 %v8669, 2147483648
  %v8678 = vxor.u32 %v8670, 2147483648
  %v8679 = vxor.u32 %v8671, 2147483648
  %v8680 = vxor.u32 %v8672, 2147483648
  %v8681 = vxor.u32 %v8673, 2147483648
  %v8682 = vmul.f32 %v8674, 1.442695
  %v8683 = vpow.pop %v8682
  %v8684 = vmul.f32 %v8675, 1.442695
  %v8685 = vpow.pop %v8684
  %v8686 = vmul.f32 %v8676, 1.442695
  %v8687 = vpow.pop %v8686
  %v8688 = vmul.f32 %v8677, 1.442695
  %v8689 = vpow.pop %v8688
  %v8690 = vmul.f32 %v8678, 1.442695
  %v8691 = vpow.pop %v8690
  %v8692 = vmul.f32 %v8679, 1.442695
  %v8693 = vpow.pop %v8692
  %v8694 = vmul.f32 %v8680, 1.442695
  %v8695 = vpow.pop %v8694
  %v8696 = vmul.f32 %v8681, 1.442695
  %v8697 = vpow.pop %v8696
  %v8698 = vadd.f32 %v8683, 1.0
  %v8699 = vadd.f32 %v8685, 1.0
  %v8700 = vadd.f32 %v8687, 1.0
  %v8701 = vadd.f32 %v8689, 1.0
  %v8702 = vadd.f32 %v8691, 1.0
  %v8703 = vadd.f32 %v8693, 1.0
  %v8704 = vadd.f32 %v8695, 1.0
  %v8705 = vadd.f32 %v8697, 1.0
  %v8706 = vrcp.pop %v8698
  %v8707 = vmul.f32 %v8698, %v8706
  %v8708 = vsub.f32 1.0, %v8707
  %v8709 = vmul.f32 %v8706, %v8708
  %v8710 = vadd.f32 %v8706, %v8709
  %vm8711 = vweird.f32 %v8698
  %vm8712 = vweird.f32 %v8706
  %vm8713 = vmor %vm8711, %vm8712
  %v8714 = vsel %vm8713, %v8706, %v8710
  %v8715 = vand.u32 2147483647, %v8698
  %vm8716 = vcmp.eq.f32.partialorder %v8715, 8.507059e+37
  %v8717 = vand.u32 %v8698, 2147483648
  %v8718 = vor.u32 1.1754944e-38, %v8717
  %v8719 = vsel %vm8716, %v8718, %v8714
  %v8720 = vmul.f32 1.0, %v8719
  %v8721 = vrcp.pop %v8699
  %v8722 = vmul.f32 %v8699, %v8721
  %v8723 = vsub.f32 1.0, %v8722
  %v8724 = vmul.f32 %v8721, %v8723
  %v8725 = vadd.f32 %v8721, %v8724
  %vm8726 = vweird.f32 %v8699
  %vm8727 = vweird.f32 %v8721
  %vm8728 = vmor %vm8726, %vm8727
  %v8729 = vsel %vm8728, %v8721, %v8725
  %v8730 = vand.u32 2147483647, %v8699
  %vm8731 = vcmp.eq.f32.partialorder %v8730, 8.507059e+37
  %v8732 = vand.u32 %v8699, 2147483648
  %v8733 = vor.u32 1.1754944e-38, %v8732
  %v8734 = vsel %vm8731, %v8733, %v8729
  %v8735 = vmul.f32 1.0, %v8734
  %v8736 = vrcp.pop %v8700
  %v8737 = vmul.f32 %v8700, %v8736
  %v8738 = vsub.f32 1.0, %v8737
  %v8739 = vmul.f32 %v8736, %v8738
  %v8740 = vadd.f32 %v8736, %v8739
  %vm8741 = vweird.f32 %v8700
  %vm8742 = vweird.f32 %v8736
  %vm8743 = vmor %vm8741, %vm8742
  %v8744 = vsel %vm8743, %v8736, %v8740
  %v8745 = vand.u32 2147483647, %v8700
  %vm8746 = vcmp.eq.f32.partialorder %v8745, 8.507059e+37
  %v8747 = vand.u32 %v8700, 2147483648
  %v8748 = vor.u32 1.1754944e-38, %v8747
  %v8749 = vsel %vm8746, %v8748, %v8744
  %v8750 = vmul.f32 1.0, %v8749
  %v8751 = vrcp.pop %v8701
  %v8752 = vmul.f32 %v8701, %v8751
  %v8753 = vsub.f32 1.0, %v8752
  %v8754 = vmul.f32 %v8751, %v8753
  %v8755 = vadd.f32 %v8751, %v8754
  %vm8756 = vweird.f32 %v8701
  %vm8757 = vweird.f32 %v8751
  %vm8758 = vmor %vm8756, %vm8757
  %v8759 = vsel %vm8758, %v8751, %v8755
  %v8760 = vand.u32 2147483647, %v8701
  %vm8761 = vcmp.eq.f32.partialorder %v8760, 8.507059e+37
  %v8762 = vand.u32 %v8701, 2147483648
  %v8763 = vor.u32 1.1754944e-38, %v8762
  %v8764 = vsel %vm8761, %v8763, %v8759
  %v8765 = vmul.f32 1.0, %v8764
  %v8766 = vrcp.pop %v8702
  %v8767 = vmul.f32 %v8702, %v8766
  %v8768 = vsub.f32 1.0, %v8767
  %v8769 = vmul.f32 %v8766, %v8768
  %v8770 = vadd.f32 %v8766, %v8769
  %vm8771 = vweird.f32 %v8702
  %vm8772 = vweird.f32 %v8766
  %vm8773 = vmor %vm8771, %vm8772
  %v8774 = vsel %vm8773, %v8766, %v8770
  %v8775 = vand.u32 2147483647, %v8702
  %vm8776 = vcmp.eq.f32.partialorder %v8775, 8.507059e+37
  %v8777 = vand.u32 %v8702, 2147483648
  %v8778 = vor.u32 1.1754944e-38, %v8777
  %v8779 = vsel %vm8776, %v8778, %v8774
  %v8780 = vmul.f32 1.0, %v8779
  %v8781 = vrcp.pop %v8703
  %v8782 = vmul.f32 %v8703, %v8781
  %v8783 = vsub.f32 1.0, %v8782
  %v8784 = vmul.f32 %v8781, %v8783
  %v8785 = vadd.f32 %v8781, %v8784
  %vm8786 = vweird.f32 %v8703
  %vm8787 = vweird.f32 %v8781
  %vm8788 = vmor %vm8786, %vm8787
  %v8789 = vsel %vm8788, %v8781, %v8785
  %v8790 = vand.u32 2147483647, %v8703
  %vm8791 = vcmp.eq.f32.partialorder %v8790, 8.507059e+37
  %v8792 = vand.u32 %v8703, 2147483648
  %v8793 = vor.u32 1.1754944e-38, %v8792
  %v8794 = vsel %vm8791, %v8793, %v8789
  %v8795 = vmul.f32 1.0, %v8794
  %v8796 = vrcp.pop %v8704
  %v8797 = vmul.f32 %v8704, %v8796
  %v8798 = vsub.f32 1.0, %v8797
  %v8799 = vmul.f32 %v8796, %v8798
  %v8800 = vadd.f32 %v8796, %v8799
  %vm8801 = vweird.f32 %v8704
  %vm8802 = vweird.f32 %v8796
  %vm8803 = vmor %vm8801, %vm8802
  %v8804 = vsel %vm8803, %v8796, %v8800
  %v8805 = vand.u32 2147483647, %v8704
  %vm8806 = vcmp.eq.f32.partialorder %v8805, 8.507059e+37
  %v8807 = vand.u32 %v8704, 2147483648
  %v8808 = vor.u32 1.1754944e-38, %v8807
  %v8809 = vsel %vm8806, %v8808, %v8804
  %v8810 = vmul.f32 1.0, %v8809
  %v8811 = vrcp.pop %v8705
  %v8812 = vmul.f32 %v8705, %v8811
  %v8813 = vsub.f32 1.0, %v8812
  %v8814 = vmul.f32 %v8811, %v8813
  %v8815 = vadd.f32 %v8811, %v8814
  %vm8816 = vweird.f32 %v8705
  %vm8817 = vweird.f32 %v8811
  %vm8818 = vmor %vm8816, %vm8817
  %v8819 = vsel %vm8818, %v8811, %v8815
  %v8820 = vand.u32 2147483647, %v8705
  %vm8821 = vcmp.eq.f32.partialorder %v8820, 8.507059e+37
  %v8822 = vand.u32 %v8705, 2147483648
  %v8823 = vor.u32 1.1754944e-38, %v8822
  %v8824 = vsel %vm8821, %v8823, %v8819
  %v8825 = vmul.f32 1.0, %v8824
  %v8826 = vtanh.pop %v8666
  %v8827 = vtanh.pop %v8667
  %v8828 = vtanh.pop %v8668
  %v8829 = vtanh.pop %v8669
  %v8830 = vtanh.pop %v8670
  %v8831 = vtanh.pop %v8671
  %v8832 = vtanh.pop %v8672
  %v8833 = vtanh.pop %v8673
  %v8834 = vmul.f32 %v8720, %v8553
  %v8835 = vmul.f32 %v8735, %v8554
  %v8836 = vmul.f32 %v8750, %v8555
  %v8837 = vmul.f32 %v8765, %v8556
  %v8838 = vmul.f32 %v8780, %v8557
  %v8839 = vmul.f32 %v8795, %v8558
  %v8840 = vmul.f32 %v8810, %v8559
  %v8841 = vmul.f32 %v8825, %v8560
  %8850 = vrot.lane.b32.xlu0 %v8826, 32
  %v8851 = vpop.permute.xlu0 %8850
  %8852 = vrot.lane.b32.xlu0 %v8827, 32
  %v8853 = vpop.permute.xlu0 %8852
  %8854 = vrot.lane.b32.xlu0 %v8828, 32
  %v8855 = vpop.permute.xlu0 %8854
  %8856 = vrot.lane.b32.xlu0 %v8829, 32
  %v8857 = vpop.permute.xlu0 %8856
  %8858 = vrot.lane.b32.xlu0 %v8830, 32
  %v8859 = vpop.permute.xlu0 %8858
  %8860 = vrot.lane.b32.xlu0 %v8831, 32
  %v8861 = vpop.permute.xlu0 %8860
  %8862 = vrot.lane.b32.xlu0 %v8832, 32
  %v8863 = vpop.permute.xlu0 %8862
  %8864 = vrot.lane.b32.xlu0 %v8833, 32
  %v8865 = vpop.permute.xlu0 %8864
  %v8874 = vmul.f32 %v8720, %v8851
  %v8875 = vmul.f32 %v8735, %v8853
  %v8876 = vmul.f32 %v8750, %v8855
  %v8877 = vmul.f32 %v8765, %v8857
  %v8878 = vmul.f32 %v8780, %v8859
  %v8879 = vmul.f32 %v8795, %v8861
  %v8880 = vmul.f32 %v8810, %v8863
  %v8881 = vmul.f32 %v8825, %v8865
  %8890 = vrot.lane.b32.xlu0 %v8874, 32
  %v8891 = vpop.permute.xlu0 %8890
  %8892 = vrot.lane.b32.xlu0 %v8875, 32
  %v8893 = vpop.permute.xlu0 %8892
  %8894 = vrot.lane.b32.xlu0 %v8876, 32
  %v8895 = vpop.permute.xlu0 %8894
  %8896 = vrot.lane.b32.xlu0 %v8877, 32
  %v8897 = vpop.permute.xlu0 %8896
  %8898 = vrot.lane.b32.xlu0 %v8878, 32
  %v8899 = vpop.permute.xlu0 %8898
  %8900 = vrot.lane.b32.xlu0 %v8879, 32
  %v8901 = vpop.permute.xlu0 %8900
  %8902 = vrot.lane.b32.xlu0 %v8880, 32
  %v8903 = vpop.permute.xlu0 %8902
  %8904 = vrot.lane.b32.xlu0 %v8881, 32
  %v8905 = vpop.permute.xlu0 %8904
  %v8914 = vadd.f32 %v8834, %v8891
  %v8915 = vadd.f32 %v8835, %v8893
  %v8916 = vadd.f32 %v8836, %v8895
  %v8917 = vadd.f32 %v8837, %v8897
  %v8918 = vadd.f32 %v8838, %v8899
  %v8919 = vadd.f32 %v8839, %v8901
  %v8920 = vadd.f32 %v8840, %v8903
  %v8921 = vadd.f32 %v8841, %v8905
  %v8922 = vtanh.pop %v8914
  %v8923 = vtanh.pop %v8915
  %v8924 = vtanh.pop %v8916
  %v8925 = vtanh.pop %v8917
  %v8926 = vtanh.pop %v8918
  %v8927 = vtanh.pop %v8919
  %v8928 = vtanh.pop %v8920
  %v8929 = vtanh.pop %v8921
  %8938 = vrot.lane.b32.xlu0 %v8922, 32
  %v8939 = vpop.permute.xlu0 %8938
  %8940 = vrot.lane.b32.xlu0 %v8923, 32
  %v8941 = vpop.permute.xlu0 %8940
  %8942 = vrot.lane.b32.xlu0 %v8924, 32
  %v8943 = vpop.permute.xlu0 %8942
  %8944 = vrot.lane.b32.xlu0 %v8925, 32
  %v8945 = vpop.permute.xlu0 %8944
  %8946 = vrot.lane.b32.xlu0 %v8926, 32
  %v8947 = vpop.permute.xlu0 %8946
  %8948 = vrot.lane.b32.xlu0 %v8927, 32
  %v8949 = vpop.permute.xlu0 %8948
  %8950 = vrot.lane.b32.xlu0 %v8928, 32
  %v8951 = vpop.permute.xlu0 %8950
  %8952 = vrot.lane.b32.xlu0 %v8929, 32
  %v8953 = vpop.permute.xlu0 %8952
  %v8962 = vmul.f32 %v8720, %v8939
  %v8963 = vmul.f32 %v8735, %v8941
  %v8964 = vmul.f32 %v8750, %v8943
  %v8965 = vmul.f32 %v8765, %v8945
  %v8966 = vmul.f32 %v8780, %v8947
  %v8967 = vmul.f32 %v8795, %v8949
  %v8968 = vmul.f32 %v8810, %v8951
  %v8969 = vmul.f32 %v8825, %v8953
  %v8970 = vpack.c.bf16 %v8963, %v8962
  %v8971 = vpack.c.bf16 %v8965, %v8964
  %v8972 = vpack.c.bf16 %v8967, %v8966
  %v8973 = vpack.c.bf16 %v8969, %v8968
  %8978 = vrot.lane.b32.xlu0 %v8970, 64
  %v8979 = vpop.permute.xlu0 %8978
  %8980 = vrot.lane.b32.xlu0 %v8971, 64
  %v8981 = vpop.permute.xlu0 %8980
  %8982 = vrot.lane.b32.xlu0 %v8972, 64
  %v8983 = vpop.permute.xlu0 %8982
  %8984 = vrot.lane.b32.xlu0 %v8973, 64
  %v8985 = vpop.permute.xlu0 %8984
  %v8987 = vsel %vm1887, %v8979, 0
  %v8990 = vsel %vm1887, %v8981, 0
  %v8993 = vsel %vm1887, %v8983, 0
  %v8996 = vsel %vm1887, %v8985, 0
  %8998 = vmatpush.bf16.msra.mxu0 0
  %8999 = vmatpush.bf16.msra.mxu0 0
  %9000 = vmatpush.bf16.msra.mxu0 0
  %9001 = vmatpush.bf16.msra.mxu0 0
  %9002 = vmatpush.bf16.msra.mxu0 0
  %9003 = vmatpush.bf16.msra.mxu0 0
  %9004 = vmatpush.bf16.msra.mxu0 %v7912
  %9005 = vmatpush.bf16.msra.mxu0 %v7911
  %9006 = vmatmul.bf16.gmra.mxu0 %v8987
  %v9007 = vpop.f32.mrf.mxu0
  %v9008 = vadd.f32 0.0, %v9007
  %v9009 = vpop.f32.mrf.mxu0
  %v9010 = vadd.f32 0.0, %v9009
  %9011 = vmatmul.bf16.gmra.mxu0 %v8990
  %v9012 = vpop.f32.mrf.mxu0
  %v9013 = vadd.f32 0.0, %v9012
  %v9014 = vpop.f32.mrf.mxu0
  %v9015 = vadd.f32 0.0, %v9014
  %9016 = vmatmul.bf16.gmra.mxu0 %v8993
  %v9017 = vpop.f32.mrf.mxu0
  %v9018 = vadd.f32 0.0, %v9017
  %v9019 = vpop.f32.mrf.mxu0
  %v9020 = vadd.f32 0.0, %v9019
  %9021 = vmatmul.bf16.gmra.mxu0 %v8996
  %v9022 = vpop.f32.mrf.mxu0
  %v9023 = vadd.f32 0.0, %v9022
  %v9024 = vpop.f32.mrf.mxu0
  %v9025 = vadd.f32 0.0, %v9024
  %9026 = vdwg.mxu0
  %v9027 = vadd.f32 %v7880, %v9008
  %v9028 = vadd.f32 %v7882, %v9010
  %v9029 = vadd.f32 %v7885, %v9013
  %v9030 = vadd.f32 %v7887, %v9015
  %v9031 = vadd.f32 %v7890, %v9018
  %v9032 = vadd.f32 %v7892, %v9020
  %v9033 = vadd.f32 %v7895, %v9023
  %v9034 = vadd.f32 %v7897, %v9025
  %v9035 = vxor.u32 %v9027, 2147483648
  %v9036 = vxor.u32 %v9028, 2147483648
  %v9037 = vxor.u32 %v9029, 2147483648
  %v9038 = vxor.u32 %v9030, 2147483648
  %v9039 = vxor.u32 %v9031, 2147483648
  %v9040 = vxor.u32 %v9032, 2147483648
  %v9041 = vxor.u32 %v9033, 2147483648
  %v9042 = vxor.u32 %v9034, 2147483648
  %v9043 = vmul.f32 %v9035, 1.442695
  %v9044 = vpow.pop %v9043
  %v9045 = vmul.f32 %v9036, 1.442695
  %v9046 = vpow.pop %v9045
  %v9047 = vmul.f32 %v9037, 1.442695
  %v9048 = vpow.pop %v9047
  %v9049 = vmul.f32 %v9038, 1.442695
  %v9050 = vpow.pop %v9049
  %v9051 = vmul.f32 %v9039, 1.442695
  %v9052 = vpow.pop %v9051
  %v9053 = vmul.f32 %v9040, 1.442695
  %v9054 = vpow.pop %v9053
  %v9055 = vmul.f32 %v9041, 1.442695
  %v9056 = vpow.pop %v9055
  %v9057 = vmul.f32 %v9042, 1.442695
  %v9058 = vpow.pop %v9057
  %v9059 = vadd.f32 %v9044, 1.0
  %v9060 = vadd.f32 %v9046, 1.0
  %v9061 = vadd.f32 %v9048, 1.0
  %v9062 = vadd.f32 %v9050, 1.0
  %v9063 = vadd.f32 %v9052, 1.0
  %v9064 = vadd.f32 %v9054, 1.0
  %v9065 = vadd.f32 %v9056, 1.0
  %v9066 = vadd.f32 %v9058, 1.0
  %v9067 = vrcp.pop %v9059
  %v9068 = vmul.f32 %v9059, %v9067
  %v9069 = vsub.f32 1.0, %v9068
  %v9070 = vmul.f32 %v9067, %v9069
  %v9071 = vadd.f32 %v9067, %v9070
  %vm9072 = vweird.f32 %v9059
  %vm9073 = vweird.f32 %v9067
  %vm9074 = vmor %vm9072, %vm9073
  %v9075 = vsel %vm9074, %v9067, %v9071
  %v9076 = vand.u32 2147483647, %v9059
  %vm9077 = vcmp.eq.f32.partialorder %v9076, 8.507059e+37
  %v9078 = vand.u32 %v9059, 2147483648
  %v9079 = vor.u32 1.1754944e-38, %v9078
  %v9080 = vsel %vm9077, %v9079, %v9075
  %v9081 = vmul.f32 1.0, %v9080
  %v9082 = vrcp.pop %v9060
  %v9083 = vmul.f32 %v9060, %v9082
  %v9084 = vsub.f32 1.0, %v9083
  %v9085 = vmul.f32 %v9082, %v9084
  %v9086 = vadd.f32 %v9082, %v9085
  %vm9087 = vweird.f32 %v9060
  %vm9088 = vweird.f32 %v9082
  %vm9089 = vmor %vm9087, %vm9088
  %v9090 = vsel %vm9089, %v9082, %v9086
  %v9091 = vand.u32 2147483647, %v9060
  %vm9092 = vcmp.eq.f32.partialorder %v9091, 8.507059e+37
  %v9093 = vand.u32 %v9060, 2147483648
  %v9094 = vor.u32 1.1754944e-38, %v9093
  %v9095 = vsel %vm9092, %v9094, %v9090
  %v9096 = vmul.f32 1.0, %v9095
  %v9097 = vrcp.pop %v9061
  %v9098 = vmul.f32 %v9061, %v9097
  %v9099 = vsub.f32 1.0, %v9098
  %v9100 = vmul.f32 %v9097, %v9099
  %v9101 = vadd.f32 %v9097, %v9100
  %vm9102 = vweird.f32 %v9061
  %vm9103 = vweird.f32 %v9097
  %vm9104 = vmor %vm9102, %vm9103
  %v9105 = vsel %vm9104, %v9097, %v9101
  %v9106 = vand.u32 2147483647, %v9061
  %vm9107 = vcmp.eq.f32.partialorder %v9106, 8.507059e+37
  %v9108 = vand.u32 %v9061, 2147483648
  %v9109 = vor.u32 1.1754944e-38, %v9108
  %v9110 = vsel %vm9107, %v9109, %v9105
  %v9111 = vmul.f32 1.0, %v9110
  %v9112 = vrcp.pop %v9062
  %v9113 = vmul.f32 %v9062, %v9112
  %v9114 = vsub.f32 1.0, %v9113
  %v9115 = vmul.f32 %v9112, %v9114
  %v9116 = vadd.f32 %v9112, %v9115
  %vm9117 = vweird.f32 %v9062
  %vm9118 = vweird.f32 %v9112
  %vm9119 = vmor %vm9117, %vm9118
  %v9120 = vsel %vm9119, %v9112, %v9116
  %v9121 = vand.u32 2147483647, %v9062
  %vm9122 = vcmp.eq.f32.partialorder %v9121, 8.507059e+37
  %v9123 = vand.u32 %v9062, 2147483648
  %v9124 = vor.u32 1.1754944e-38, %v9123
  %v9125 = vsel %vm9122, %v9124, %v9120
  %v9126 = vmul.f32 1.0, %v9125
  %v9127 = vrcp.pop %v9063
  %v9128 = vmul.f32 %v9063, %v9127
  %v9129 = vsub.f32 1.0, %v9128
  %v9130 = vmul.f32 %v9127, %v9129
  %v9131 = vadd.f32 %v9127, %v9130
  %vm9132 = vweird.f32 %v9063
  %vm9133 = vweird.f32 %v9127
  %vm9134 = vmor %vm9132, %vm9133
  %v9135 = vsel %vm9134, %v9127, %v9131
  %v9136 = vand.u32 2147483647, %v9063
  %vm9137 = vcmp.eq.f32.partialorder %v9136, 8.507059e+37
  %v9138 = vand.u32 %v9063, 2147483648
  %v9139 = vor.u32 1.1754944e-38, %v9138
  %v9140 = vsel %vm9137, %v9139, %v9135
  %v9141 = vmul.f32 1.0, %v9140
  %v9142 = vrcp.pop %v9064
  %v9143 = vmul.f32 %v9064, %v9142
  %v9144 = vsub.f32 1.0, %v9143
  %v9145 = vmul.f32 %v9142, %v9144
  %v9146 = vadd.f32 %v9142, %v9145
  %vm9147 = vweird.f32 %v9064
  %vm9148 = vweird.f32 %v9142
  %vm9149 = vmor %vm9147, %vm9148
  %v9150 = vsel %vm9149, %v9142, %v9146
  %v9151 = vand.u32 2147483647, %v9064
  %vm9152 = vcmp.eq.f32.partialorder %v9151, 8.507059e+37
  %v9153 = vand.u32 %v9064, 2147483648
  %v9154 = vor.u32 1.1754944e-38, %v9153
  %v9155 = vsel %vm9152, %v9154, %v9150
  %v9156 = vmul.f32 1.0, %v9155
  %v9157 = vrcp.pop %v9065
  %v9158 = vmul.f32 %v9065, %v9157
  %v9159 = vsub.f32 1.0, %v9158
  %v9160 = vmul.f32 %v9157, %v9159
  %v9161 = vadd.f32 %v9157, %v9160
  %vm9162 = vweird.f32 %v9065
  %vm9163 = vweird.f32 %v9157
  %vm9164 = vmor %vm9162, %vm9163
  %v9165 = vsel %vm9164, %v9157, %v9161
  %v9166 = vand.u32 2147483647, %v9065
  %vm9167 = vcmp.eq.f32.partialorder %v9166, 8.507059e+37
  %v9168 = vand.u32 %v9065, 2147483648
  %v9169 = vor.u32 1.1754944e-38, %v9168
  %v9170 = vsel %vm9167, %v9169, %v9165
  %v9171 = vmul.f32 1.0, %v9170
  %v9172 = vrcp.pop %v9066
  %v9173 = vmul.f32 %v9066, %v9172
  %v9174 = vsub.f32 1.0, %v9173
  %v9175 = vmul.f32 %v9172, %v9174
  %v9176 = vadd.f32 %v9172, %v9175
  %vm9177 = vweird.f32 %v9066
  %vm9178 = vweird.f32 %v9172
  %vm9179 = vmor %vm9177, %vm9178
  %v9180 = vsel %vm9179, %v9172, %v9176
  %v9181 = vand.u32 2147483647, %v9066
  %vm9182 = vcmp.eq.f32.partialorder %v9181, 8.507059e+37
  %v9183 = vand.u32 %v9066, 2147483648
  %v9184 = vor.u32 1.1754944e-38, %v9183
  %v9185 = vsel %vm9182, %v9184, %v9180
  %v9186 = vmul.f32 1.0, %v9185
  %v9187 = vtanh.pop %v9027
  %v9188 = vtanh.pop %v9028
  %v9189 = vtanh.pop %v9029
  %v9190 = vtanh.pop %v9030
  %v9191 = vtanh.pop %v9031
  %v9192 = vtanh.pop %v9032
  %v9193 = vtanh.pop %v9033
  %v9194 = vtanh.pop %v9034
  %v9195 = vmul.f32 %v9081, %v8914
  %v9196 = vmul.f32 %v9096, %v8915
  %v9197 = vmul.f32 %v9111, %v8916
  %v9198 = vmul.f32 %v9126, %v8917
  %v9199 = vmul.f32 %v9141, %v8918
  %v9200 = vmul.f32 %v9156, %v8919
  %v9201 = vmul.f32 %v9171, %v8920
  %v9202 = vmul.f32 %v9186, %v8921
  %9211 = vrot.lane.b32.xlu0 %v9187, 32
  %v9212 = vpop.permute.xlu0 %9211
  %9213 = vrot.lane.b32.xlu0 %v9188, 32
  %v9214 = vpop.permute.xlu0 %9213
  %9215 = vrot.lane.b32.xlu0 %v9189, 32
  %v9216 = vpop.permute.xlu0 %9215
  %9217 = vrot.lane.b32.xlu0 %v9190, 32
  %v9218 = vpop.permute.xlu0 %9217
  %9219 = vrot.lane.b32.xlu0 %v9191, 32
  %v9220 = vpop.permute.xlu0 %9219
  %9221 = vrot.lane.b32.xlu0 %v9192, 32
  %v9222 = vpop.permute.xlu0 %9221
  %9223 = vrot.lane.b32.xlu0 %v9193, 32
  %v9224 = vpop.permute.xlu0 %9223
  %9225 = vrot.lane.b32.xlu0 %v9194, 32
  %v9226 = vpop.permute.xlu0 %9225
  %v9235 = vmul.f32 %v9081, %v9212
  %v9236 = vmul.f32 %v9096, %v9214
  %v9237 = vmul.f32 %v9111, %v9216
  %v9238 = vmul.f32 %v9126, %v9218
  %v9239 = vmul.f32 %v9141, %v9220
  %v9240 = vmul.f32 %v9156, %v9222
  %v9241 = vmul.f32 %v9171, %v9224
  %v9242 = vmul.f32 %v9186, %v9226
  %9251 = vrot.lane.b32.xlu0 %v9235, 32
  %v9252 = vpop.permute.xlu0 %9251
  %9253 = vrot.lane.b32.xlu0 %v9236, 32
  %v9254 = vpop.permute.xlu0 %9253
  %9255 = vrot.lane.b32.xlu0 %v9237, 32
  %v9256 = vpop.permute.xlu0 %9255
  %9257 = vrot.lane.b32.xlu0 %v9238, 32
  %v9258 = vpop.permute.xlu0 %9257
  %9259 = vrot.lane.b32.xlu0 %v9239, 32
  %v9260 = vpop.permute.xlu0 %9259
  %9261 = vrot.lane.b32.xlu0 %v9240, 32
  %v9262 = vpop.permute.xlu0 %9261
  %9263 = vrot.lane.b32.xlu0 %v9241, 32
  %v9264 = vpop.permute.xlu0 %9263
  %9265 = vrot.lane.b32.xlu0 %v9242, 32
  %v9266 = vpop.permute.xlu0 %9265
  %v9275 = vadd.f32 %v9195, %v9252
  %v9276 = vadd.f32 %v9196, %v9254
  %v9277 = vadd.f32 %v9197, %v9256
  %v9278 = vadd.f32 %v9198, %v9258
  %v9279 = vadd.f32 %v9199, %v9260
  %v9280 = vadd.f32 %v9200, %v9262
  %v9281 = vadd.f32 %v9201, %v9264
  %v9282 = vadd.f32 %v9202, %v9266
  %v9283 = vtanh.pop %v9275
  %v9284 = vtanh.pop %v9276
  %v9285 = vtanh.pop %v9277
  %v9286 = vtanh.pop %v9278
  %v9287 = vtanh.pop %v9279
  %v9288 = vtanh.pop %v9280
  %v9289 = vtanh.pop %v9281
  %v9290 = vtanh.pop %v9282
  %9299 = vrot.lane.b32.xlu0 %v9283, 32
  %v9300 = vpop.permute.xlu0 %9299
  %9301 = vrot.lane.b32.xlu0 %v9284, 32
  %v9302 = vpop.permute.xlu0 %9301
  %9303 = vrot.lane.b32.xlu0 %v9285, 32
  %v9304 = vpop.permute.xlu0 %9303
  %9305 = vrot.lane.b32.xlu0 %v9286, 32
  %v9306 = vpop.permute.xlu0 %9305
  %9307 = vrot.lane.b32.xlu0 %v9287, 32
  %v9308 = vpop.permute.xlu0 %9307
  %9309 = vrot.lane.b32.xlu0 %v9288, 32
  %v9310 = vpop.permute.xlu0 %9309
  %9311 = vrot.lane.b32.xlu0 %v9289, 32
  %v9312 = vpop.permute.xlu0 %9311
  %9313 = vrot.lane.b32.xlu0 %v9290, 32
  %v9314 = vpop.permute.xlu0 %9313
  %v9323 = vmul.f32 %v9081, %v9300
  %v9324 = vmul.f32 %v9096, %v9302
  %v9325 = vmul.f32 %v9111, %v9304
  %v9326 = vmul.f32 %v9126, %v9306
  %v9327 = vmul.f32 %v9141, %v9308
  %v9328 = vmul.f32 %v9156, %v9310
  %v9329 = vmul.f32 %v9171, %v9312
  %v9330 = vmul.f32 %v9186, %v9314
  %v9331 = vpack.c.bf16 %v9323, %v9323
  %v9332 = vpack.c.bf16 %v9324, %v9324
  %v9333 = vpack.c.bf16 %v9325, %v9325
  %v9334 = vpack.c.bf16 %v9326, %v9326
  %v9335 = vpack.c.bf16 %v9327, %v9327
  %v9336 = vpack.c.bf16 %v9328, %v9328
  %v9337 = vpack.c.bf16 %v9329, %v9329
  %v9338 = vpack.c.bf16 %v9330, %v9330
  %v9347 = vunpack.c.l.b16 %v7610
  %v9348 = vunpack.c.l.b16 %v7611
  %v9349 = vunpack.c.l.b16 %v7612
  %v9350 = vunpack.c.l.b16 %v7613
  %v9351 = vunpack.c.l.b16 %v7614
  %v9352 = vunpack.c.l.b16 %v7615
  %v9353 = vunpack.c.l.b16 %v7616
  %v9354 = vunpack.c.l.b16 %v7617
  %v9355 = vpack.c.b16 %v9348, %v9347
  %v9356 = vpack.c.b16 %v9350, %v9349
  %v9357 = vpack.c.b16 %v9352, %v9351
  %v9358 = vpack.c.b16 %v9354, %v9353
  %v9367 = vunpack.c.l.b16 %v9331
  %v9368 = vunpack.c.l.b16 %v9332
  %v9369 = vunpack.c.l.b16 %v9333
  %v9370 = vunpack.c.l.b16 %v9334
  %v9371 = vunpack.c.l.b16 %v9335
  %v9372 = vunpack.c.l.b16 %v9336
  %v9373 = vunpack.c.l.b16 %v9337
  %v9374 = vunpack.c.l.b16 %v9338
  %v9375 = vpack.c.b16 %v9368, %v9367
  %v9376 = vpack.c.b16 %v9370, %v9369
  %v9377 = vpack.c.b16 %v9372, %v9371
  %v9378 = vpack.c.b16 %v9374, %v9373
  %9379 = vrot.lane.b32.xlu0 %v9375, 96
  %v9380 = vpop.permute.xlu0 %9379
  %9381 = vrot.lane.b32.xlu0 %v9376, 96
  %v9382 = vpop.permute.xlu0 %9381
  %9383 = vrot.lane.b32.xlu0 %v9377, 96
  %v9384 = vpop.permute.xlu0 %9383
  %9385 = vrot.lane.b32.xlu0 %v9378, 96
  %v9386 = vpop.permute.xlu0 %9385
  %v9389 = vsel %vm1887, %v9355, %v9380
  %v9392 = vsel %vm1887, %v9356, %v9382
  %v9395 = vsel %vm1887, %v9357, %v9384
  %v9398 = vsel %vm1887, %v9358, %v9386
  %v9399 = vld [vmem:[%s19] sm:$0xf]
  %v9400 = vld [vmem:[%s19 + $0x4] sm:$0xf]
  %v9401 = vld [vmem:[%s19 + $0x8] sm:$0xf]
  %v9402 = vld [vmem:[%s19 + $0xc] sm:$0xf]
  %v9403 = vld [vmem:[%s19 + $0x10] sm:$0xf]
  %v9404 = vld [vmem:[%s19 + $0x14] sm:$0xf]
  %v9405 = vld [vmem:[%s19 + $0x18] sm:$0xf]
  %v9406 = vld [vmem:[%s19 + $0x1c] sm:$0xf]
  %v9407 = vld [vmem:[%s20] sm:$0x1]
  %v9409 = vperm.slane %v9407, 0
  %v9419 = vunpack.c.l.b16 %v9399
  %v9420 = vunpack.c.l.b16 %v9400
  %v9421 = vunpack.c.l.b16 %v9401
  %v9422 = vunpack.c.l.b16 %v9402
  %v9423 = vunpack.c.l.b16 %v9403
  %v9424 = vunpack.c.l.b16 %v9404
  %v9425 = vunpack.c.l.b16 %v9405
  %v9426 = vunpack.c.l.b16 %v9406
  %v9427 = vpack.c.b16 %v9420, %v9419
  %v9428 = vpack.c.b16 %v9422, %v9421
  %v9429 = vpack.c.b16 %v9424, %v9423
  %v9430 = vpack.c.b16 %v9426, %v9425
  %v9435 = vsel %vm3776, %v9389, 0
  %v9437 = vsel %vm3776, %v9392, 0
  %v9439 = vsel %vm3776, %v9395, 0
  %v9441 = vsel %vm3776, %v9398, 0
  %9443 = vmatpush.bf16.msra.mxu0 0
  %9444 = vmatpush.bf16.msra.mxu0 0
  %9445 = vmatpush.bf16.msra.mxu0 0
  %9446 = vmatpush.bf16.msra.mxu0 0
  %9447 = vmatpush.bf16.msra.mxu0 %v9430
  %9448 = vmatpush.bf16.msra.mxu0 %v9429
  %9449 = vmatpush.bf16.msra.mxu0 %v9428
  %9450 = vmatpush.bf16.msra.mxu0 %v9427
  %9451 = vmatmul.bf16.gmra.mxu0 %v9435
  %v9452 = vpop.f32.mrf.mxu0
  %v9453 = vadd.f32 %v9409, %v9452
  %v9454 = vpop.f32.mrf.mxu0
  %v9455 = vadd.f32 %v9409, %v9454
  %9456 = vmatmul.bf16.gmra.mxu0 %v9437
  %v9457 = vpop.f32.mrf.mxu0
  %v9458 = vadd.f32 %v9409, %v9457
  %v9459 = vpop.f32.mrf.mxu0
  %v9460 = vadd.f32 %v9409, %v9459
  %9461 = vmatmul.bf16.gmra.mxu0 %v9439
  %v9462 = vpop.f32.mrf.mxu0
  %v9463 = vadd.f32 %v9409, %v9462
  %v9464 = vpop.f32.mrf.mxu0
  %v9465 = vadd.f32 %v9409, %v9464
  %9466 = vmatmul.bf16.gmra.mxu0 %v9441
  %v9467 = vpop.f32.mrf.mxu0
  %v9468 = vadd.f32 %v9409, %v9467
  %v9469 = vpop.f32.mrf.mxu0
  %v9470 = vadd.f32 %v9409, %v9469
  %9471 = vdwg.mxu0
  %v9472 = vxor.u32 %v9453, 2147483648
  %v9473 = vxor.u32 %v9455, 2147483648
  %v9474 = vxor.u32 %v9458, 2147483648
  %v9475 = vxor.u32 %v9460, 2147483648
  %v9476 = vxor.u32 %v9463, 2147483648
  %v9477 = vxor.u32 %v9465, 2147483648
  %v9478 = vxor.u32 %v9468, 2147483648
  %v9479 = vxor.u32 %v9470, 2147483648
  %v9480 = vmul.f32 %v9472, 1.442695
  %v9481 = vpow.pop %v9480
  %v9482 = vmul.f32 %v9473, 1.442695
  %v9483 = vpow.pop %v9482
  %v9484 = vmul.f32 %v9474, 1.442695
  %v9485 = vpow.pop %v9484
  %v9486 = vmul.f32 %v9475, 1.442695
  %v9487 = vpow.pop %v9486
  %v9488 = vmul.f32 %v9476, 1.442695
  %v9489 = vpow.pop %v9488
  %v9490 = vmul.f32 %v9477, 1.442695
  %v9491 = vpow.pop %v9490
  %v9492 = vmul.f32 %v9478, 1.442695
  %v9493 = vpow.pop %v9492
  %v9494 = vmul.f32 %v9479, 1.442695
  %v9495 = vpow.pop %v9494
  %v9496 = vadd.f32 %v9481, 1.0
  %v9497 = vadd.f32 %v9483, 1.0
  %v9498 = vadd.f32 %v9485, 1.0
  %v9499 = vadd.f32 %v9487, 1.0
  %v9500 = vadd.f32 %v9489, 1.0
  %v9501 = vadd.f32 %v9491, 1.0
  %v9502 = vadd.f32 %v9493, 1.0
  %v9503 = vadd.f32 %v9495, 1.0
  %v9504 = vrcp.pop %v9496
  %v9505 = vmul.f32 %v9496, %v9504
  %v9506 = vsub.f32 1.0, %v9505
  %v9507 = vmul.f32 %v9504, %v9506
  %v9508 = vadd.f32 %v9504, %v9507
  %vm9509 = vweird.f32 %v9496
  %vm9510 = vweird.f32 %v9504
  %vm9511 = vmor %vm9509, %vm9510
  %v9512 = vsel %vm9511, %v9504, %v9508
  %v9513 = vand.u32 2147483647, %v9496
  %vm9514 = vcmp.eq.f32.partialorder %v9513, 8.507059e+37
  %v9515 = vand.u32 %v9496, 2147483648
  %v9516 = vor.u32 1.1754944e-38, %v9515
  %v9517 = vsel %vm9514, %v9516, %v9512
  %v9518 = vmul.f32 1.0, %v9517
  %v9519 = vrcp.pop %v9497
  %v9520 = vmul.f32 %v9497, %v9519
  %v9521 = vsub.f32 1.0, %v9520
  %v9522 = vmul.f32 %v9519, %v9521
  %v9523 = vadd.f32 %v9519, %v9522
  %vm9524 = vweird.f32 %v9497
  %vm9525 = vweird.f32 %v9519
  %vm9526 = vmor %vm9524, %vm9525
  %v9527 = vsel %vm9526, %v9519, %v9523
  %v9528 = vand.u32 2147483647, %v9497
  %vm9529 = vcmp.eq.f32.partialorder %v9528, 8.507059e+37
  %v9530 = vand.u32 %v9497, 2147483648
  %v9531 = vor.u32 1.1754944e-38, %v9530
  %v9532 = vsel %vm9529, %v9531, %v9527
  %v9533 = vmul.f32 1.0, %v9532
  %v9534 = vrcp.pop %v9498
  %v9535 = vmul.f32 %v9498, %v9534
  %v9536 = vsub.f32 1.0, %v9535
  %v9537 = vmul.f32 %v9534, %v9536
  %v9538 = vadd.f32 %v9534, %v9537
  %vm9539 = vweird.f32 %v9498
  %vm9540 = vweird.f32 %v9534
  %vm9541 = vmor %vm9539, %vm9540
  %v9542 = vsel %vm9541, %v9534, %v9538
  %v9543 = vand.u32 2147483647, %v9498
  %vm9544 = vcmp.eq.f32.partialorder %v9543, 8.507059e+37
  %v9545 = vand.u32 %v9498, 2147483648
  %v9546 = vor.u32 1.1754944e-38, %v9545
  %v9547 = vsel %vm9544, %v9546, %v9542
  %v9548 = vmul.f32 1.0, %v9547
  %v9549 = vrcp.pop %v9499
  %v9550 = vmul.f32 %v9499, %v9549
  %v9551 = vsub.f32 1.0, %v9550
  %v9552 = vmul.f32 %v9549, %v9551
  %v9553 = vadd.f32 %v9549, %v9552
  %vm9554 = vweird.f32 %v9499
  %vm9555 = vweird.f32 %v9549
  %vm9556 = vmor %vm9554, %vm9555
  %v9557 = vsel %vm9556, %v9549, %v9553
  %v9558 = vand.u32 2147483647, %v9499
  %vm9559 = vcmp.eq.f32.partialorder %v9558, 8.507059e+37
  %v9560 = vand.u32 %v9499, 2147483648
  %v9561 = vor.u32 1.1754944e-38, %v9560
  %v9562 = vsel %vm9559, %v9561, %v9557
  %v9563 = vmul.f32 1.0, %v9562
  %v9564 = vrcp.pop %v9500
  %v9565 = vmul.f32 %v9500, %v9564
  %v9566 = vsub.f32 1.0, %v9565
  %v9567 = vmul.f32 %v9564, %v9566
  %v9568 = vadd.f32 %v9564, %v9567
  %vm9569 = vweird.f32 %v9500
  %vm9570 = vweird.f32 %v9564
  %vm9571 = vmor %vm9569, %vm9570
  %v9572 = vsel %vm9571, %v9564, %v9568
  %v9573 = vand.u32 2147483647, %v9500
  %vm9574 = vcmp.eq.f32.partialorder %v9573, 8.507059e+37
  %v9575 = vand.u32 %v9500, 2147483648
  %v9576 = vor.u32 1.1754944e-38, %v9575
  %v9577 = vsel %vm9574, %v9576, %v9572
  %v9578 = vmul.f32 1.0, %v9577
  %v9579 = vrcp.pop %v9501
  %v9580 = vmul.f32 %v9501, %v9579
  %v9581 = vsub.f32 1.0, %v9580
  %v9582 = vmul.f32 %v9579, %v9581
  %v9583 = vadd.f32 %v9579, %v9582
  %vm9584 = vweird.f32 %v9501
  %vm9585 = vweird.f32 %v9579
  %vm9586 = vmor %vm9584, %vm9585
  %v9587 = vsel %vm9586, %v9579, %v9583
  %v9588 = vand.u32 2147483647, %v9501
  %vm9589 = vcmp.eq.f32.partialorder %v9588, 8.507059e+37
  %v9590 = vand.u32 %v9501, 2147483648
  %v9591 = vor.u32 1.1754944e-38, %v9590
  %v9592 = vsel %vm9589, %v9591, %v9587
  %v9593 = vmul.f32 1.0, %v9592
  %v9594 = vrcp.pop %v9502
  %v9595 = vmul.f32 %v9502, %v9594
  %v9596 = vsub.f32 1.0, %v9595
  %v9597 = vmul.f32 %v9594, %v9596
  %v9598 = vadd.f32 %v9594, %v9597
  %vm9599 = vweird.f32 %v9502
  %vm9600 = vweird.f32 %v9594
  %vm9601 = vmor %vm9599, %vm9600
  %v9602 = vsel %vm9601, %v9594, %v9598
  %v9603 = vand.u32 2147483647, %v9502
  %vm9604 = vcmp.eq.f32.partialorder %v9603, 8.507059e+37
  %v9605 = vand.u32 %v9502, 2147483648
  %v9606 = vor.u32 1.1754944e-38, %v9605
  %v9607 = vsel %vm9604, %v9606, %v9602
  %v9608 = vmul.f32 1.0, %v9607
  %v9609 = vrcp.pop %v9503
  %v9610 = vmul.f32 %v9503, %v9609
  %v9611 = vsub.f32 1.0, %v9610
  %v9612 = vmul.f32 %v9609, %v9611
  %v9613 = vadd.f32 %v9609, %v9612
  %vm9614 = vweird.f32 %v9503
  %vm9615 = vweird.f32 %v9609
  %vm9616 = vmor %vm9614, %vm9615
  %v9617 = vsel %vm9616, %v9609, %v9613
  %v9618 = vand.u32 2147483647, %v9503
  %vm9619 = vcmp.eq.f32.partialorder %v9618, 8.507059e+37
  %v9620 = vand.u32 %v9503, 2147483648
  %v9621 = vor.u32 1.1754944e-38, %v9620
  %v9622 = vsel %vm9619, %v9621, %v9617
  %v9623 = vmul.f32 1.0, %v9622
  %9624 = vst [vmem:[%s24] sm:$0xff] %v9518
  %9625 = vst [vmem:[%s24 + $0x8] sm:$0xff] %v9533
  %9626 = vst [vmem:[%s24 + $0x10] sm:$0xff] %v9548
  %9627 = vst [vmem:[%s24 + $0x18] sm:$0xff] %v9563
  %9628 = vst [vmem:[%s24 + $0x20] sm:$0xff] %v9578
  %9629 = vst [vmem:[%s24 + $0x28] sm:$0xff] %v9593
  %9630 = vst [vmem:[%s24 + $0x30] sm:$0xff] %v9608
  %9631 = vst [vmem:[%s24 + $0x38] sm:$0xff] %v9623
  // Predicated region
  $region98: #{graphsage_forward.3} parent=0 // pred_check
    _
  $region99: #{graphsage_forward.3} parent=0 // pred_check_branch
    %9633 = sbr.rel (0) target = $region101
  $region100: #{graphsage_forward.3} parent=0 // pred_region
    _
  $region101: #{graphsage_forward.3} parent=0 // pred_fallthru
    _
  // Predicated region
  $region102: #{graphsage_forward.3} parent=0 // pred_check
    _
  $region103: #{graphsage_forward.3} parent=0 // pred_check_branch
    %9635 = sbr.rel (0) target = $region105
  $region104: #{graphsage_forward.3} parent=0 // pred_region
    _
  $region105: #{graphsage_forward.3} parent=0 // pred_fallthru
    _

</llo_original>
